<compile_context>
chip_gen: v6e
topology: v6e:2x2x1
jax: 0.10.0
libtpu: 0.0.40
codegen_flags: <defaults>
</compile_context>

<pallas_src>
import functools
import math

import jax
import jax.numpy as jnp
from jax import lax
from jax.experimental import pallas as pl
from jax.experimental.pallas import tpu as pltpu


# --------------------------- in-kernel math helpers ------------------------ #

def _layernorm(x, g, b, eps):
    mu = jnp.mean(x, axis=-1, keepdims=True)
    var = jnp.mean(jnp.square(x - mu), axis=-1, keepdims=True)
    return (x - mu) * lax.rsqrt(var + eps) * g + b


def _erf(x):
    # Abramowitz & Stegun 7.1.26 (|err| <= 1.5e-7): exact-GELU-accurate at f32, built only
    # from exp/mul/add/select (exp runs on the EUP).
    p = 0.3275911
    a1, a2, a3, a4, a5 = 0.254829592, -0.284496736, 1.421413741, -1.453152027, 1.061405429
    sgn = jnp.where(x < 0.0, -1.0, 1.0)
    ax = jnp.abs(x)
    t = 1.0 / (1.0 + p * ax)
    poly = t * (a1 + t * (a2 + t * (a3 + t * (a4 + t * a5))))
    return sgn * (1.0 - poly * jnp.exp(-ax * ax))


def _gelu_exact(x):
    return 0.5 * x * (1.0 + _erf(x * (1.0 / math.sqrt(2.0))))


def _deq_matmul(x_bf16, wq_ref, s_ref, b_ref):
    """Weight-only int8 matmul: y = (x @ q) * per_out_channel_scale + bias (f32 acc).

    int8 values are exactly representable in bf16, so widening q -> bf16 and scaling the
    f32 accumulator afterwards is numerically identical to x @ (q * scale).
    """
    w = wq_ref[0].astype(jnp.float32).astype(jnp.bfloat16)
    y = jnp.dot(x_bf16, w, preferred_element_type=jnp.float32)
    return y * s_ref[0] + b_ref[0]


# ------------------------------ fused ViT kernel --------------------------- #

def _vit_kernel(x_ref, wp_ref, bp_ref, cls_ref, pos_ref,
                ln1g_ref, ln1b_ref,
                wqkv_ref, sqkv_ref, bqkv_ref,
                wout_ref, sout_ref, bout_ref,
                ln2g_ref, ln2b_ref,
                wfc1_ref, sfc1_ref, bfc1_ref,
                wfc2_ref, sfc2_ref, bfc2_ref,
                lng_ref, lnb_ref, headw_ref, headb_ref,
                o_ref,
                h_sc, attn_sc, mask_sc,
                *, num_heads, batch, eps):
    """One encoder layer per grid step.  layer==0 also does patch-embed + cls + pos and
    precomputes the block-diagonal mask; layer==last also does final LN + class head."""
    layer = pl.program_id(0)
    num_layers = pl.num_programs(0)
    m, d = h_sc.shape
    hd = d // num_heads
    scale = 1.0 / math.sqrt(hd)

    # ---------------- layer 0: embed + mask precompute ----------------
    @pl.when(layer == 0)
    def _():
        # Conv2d(k=P, stride=P) over a single 32x32 patch == matmul on the NCHW-flattened
        # patch (weight pre-transposed to (C*P*P, D)).
        patch = jnp.dot(x_ref[...].astype(jnp.bfloat16), wp_ref[...],
                        preferred_element_type=jnp.float32) + bp_ref[...]
        cls_row = cls_ref[...] + pos_ref[0:1, :]                       # (1, D)
        h_sc[0:batch, :] = jnp.broadcast_to(cls_row, (batch, d))
        h_sc[batch:m, :] = patch + pos_ref[1:2, :]

        # same-image (block-diagonal) additive mask; image id of row r is r % batch
        # (seq-major layout).  Built once; reused by every layer.
        rows = lax.broadcasted_iota(jnp.int32, (m, m), 0)
        cols = lax.broadcasted_iota(jnp.int32, (m, m), 1)
        if (batch & (batch - 1)) == 0:
            same = (rows & (batch - 1)) == (cols & (batch - 1))
        else:
            same = (rows % batch) == (cols % batch)
        mask_sc[...] = jnp.where(same, 0.0, -1e30)

    h = h_sc[...]                                                      # (M, D) f32 residual

    # ---------------- multi-head self-attention (pre-LN) ----------------
    y = _layernorm(h, ln1g_ref[0], ln1b_ref[0], eps)
    qkv = _deq_matmul(y.astype(jnp.bfloat16), wqkv_ref, sqkv_ref, bqkv_ref)   # (M, 3D)
    neg_mask = mask_sc[...]

    # TODO(synk): compute only the block-diagonal score blocks once batch is tiled up;
    # dense masked (M, M) attention is fine at M = seq*batch = 4.
    for hh in range(num_heads):                   # static unroll; heads are lane slices
        qh = qkv[:, hh * hd:(hh + 1) * hd]
        kh = qkv[:, d + hh * hd: d + (hh + 1) * hd]
        vh = qkv[:, 2 * d + hh * hd: 2 * d + (hh + 1) * hd]
        s = lax.dot_general(qh, kh, dimension_numbers=(((1,), (1,)), ((), ())),
                            preferred_element_type=jnp.float32) * scale + neg_mask
        s = s - jnp.max(s, axis=-1, keepdims=True)
        p = jnp.exp(s)
        p = p / jnp.sum(p, axis=-1, keepdims=True)
        # per-head store into the VMEM scratch at a static lane slice (no concat).
        attn_sc[:, hh * hd:(hh + 1) * hd] = jnp.dot(p, vh, preferred_element_type=jnp.float32)

    attn = _deq_matmul(attn_sc[...].astype(jnp.bfloat16), wout_ref, sout_ref, bout_ref)
    h = h + attn

    # ---------------- MLP (pre-LN) with fused exact-GELU ----------------
    y = _layernorm(h, ln2g_ref[0], ln2b_ref[0], eps)
    y = _deq_matmul(y.astype(jnp.bfloat16), wfc1_ref, sfc1_ref, bfc1_ref)
    y = _gelu_exact(y)
    y = _deq_matmul(y.astype(jnp.bfloat16), wfc2_ref, sfc2_ref, bfc2_ref)
    h = h + y

    h_sc[...] = h                                                      # persist residual

    # ---------------- last layer: final LN + class head ----------------
    @pl.when(layer == num_layers - 1)
    def _():
        yc = _layernorm(h[0:batch, :], lng_ref[...], lnb_ref[...], eps)
        logits = jnp.dot(yc.astype(jnp.bfloat16), headw_ref[...],
                         preferred_element_type=jnp.float32) + headb_ref[...]
        o_ref[...] = logits


# ------------------------------ call wrapper -------------------------------- #

def vit_forward(x, params, cfg):
    n, c, img_h, img_w = x.shape
    p, nh = cfg["patch_size"], cfg["num_heads"]
    assert img_h == p and img_w == p, "vit_b_32 @ image_size=32 has exactly one patch"
    seq = 2
    # TODO(synk): generalize patch extraction for n_patches > 1 (image_size != patch_size).

    d = params["patch_w"].shape[1]
    num_layers = params["ln1_g"].shape[0]
    mlp = params["w_fc1_q"].shape[-1]
    ncls_pad = params["head_w"].shape[1]
    m = seq * n

    x_flat = x.reshape(n, c * p * p)              # NCHW flatten = Conv2d weight order

    def fixed(arr):
        shp = tuple(arr.shape)
        nd = len(shp)
        return pl.BlockSpec(shp, lambda l, _nd=nd: (0,) * _nd)

    def perlayer(arr):
        shp = tuple(arr.shape)
        nd = len(shp)
        return pl.BlockSpec((1,) + shp[1:], lambda l, _nd=nd: (l,) + (0,) * (_nd - 1))

    inputs = [
        x_flat, params["patch_w"], params["patch_b"], params["cls_token"], params["pos_embedding"],
        params["ln1_g"], params["ln1_b"],
        params["w_qkv_q"], params["s_qkv"], params["b_qkv"],
        params["w_out_q"], params["s_out"], params["b_out"],
        params["ln2_g"], params["ln2_b"],
        params["w_fc1_q"], params["s_fc1"], params["b_fc1"],
        params["w_fc2_q"], params["s_fc2"], params["b_fc2"],
        params["ln_g"], params["ln_b"], params["head_w"], params["head_b"],
    ]
    in_specs = [
        fixed(x_flat), fixed(params["patch_w"]), fixed(params["patch_b"]),
        fixed(params["cls_token"]), fixed(params["pos_embedding"]),
        perlayer(params["ln1_g"]), perlayer(params["ln1_b"]),
        perlayer(params["w_qkv_q"]), perlayer(params["s_qkv"]), perlayer(params["b_qkv"]),
        perlayer(params["w_out_q"]), perlayer(params["s_out"]), perlayer(params["b_out"]),
        perlayer(params["ln2_g"]), perlayer(params["ln2_b"]),
        perlayer(params["w_fc1_q"]), perlayer(params["s_fc1"]), perlayer(params["b_fc1"]),
        perlayer(params["w_fc2_q"]), perlayer(params["s_fc2"]), perlayer(params["b_fc2"]),
        fixed(params["ln_g"]), fixed(params["ln_b"]),
        fixed(params["head_w"]), fixed(params["head_b"]),
    ]

    # --- scoped-VMEM budget: only raise the limit when per-layer weights are large
    # (real vit_b_32 sizes); cap at ~85% of physical VMEM instead of a hard 64 MiB. ---
    per_layer_bytes = (d * 3 * d + d * d + 2 * d * mlp)                    # int8 weights
    per_layer_bytes += 4 * (2 * 3 * d + 2 * d + 2 * mlp + 6 * d)           # f32 scales/biases/LN
    fixed_bytes = (x_flat.size * 4 + params["patch_w"].size * 2 +
                   params["head_w"].size * 2 + (3 * seq + 8) * d * 4 + 2 * ncls_pad * 4)
    scratch_bytes = (2 * m * d + m * m + n * ncls_pad) * 4
    needed = 2 * per_layer_bytes + fixed_bytes + scratch_bytes + (4 << 20)  # + headroom

    cp_kwargs = {"dimension_semantics": ("arbitrary",)}   # layer axis is sequential
    # TODO(synk): once a batch/row-tile grid axis exists, mark it "parallel" so both v7x
    # TensorCores are used; at batch=2 / seq=2 there is no useful independent axis.
    if needed > (16 << 20):
        try:
            phys = pltpu.get_tpu_info().vmem_capacity_bytes
        except Exception:
            phys = 64 << 20
        cp_kwargs["vmem_limit_bytes"] = int(min(max(needed, 32 << 20), int(phys * 0.85)))

    logits = pl.pallas_call(
        functools.partial(_vit_kernel, num_heads=nh, batch=n, eps=1e-6),
        out_shape=jax.ShapeDtypeStruct((n, ncls_pad), jnp.float32),
        grid=(num_layers,),
        in_specs=in_specs,
        out_specs=pl.BlockSpec((n, ncls_pad), lambda l: (0, 0)),     # written on last layer
        scratch_shapes=[
            pltpu.VMEM((m, d), jnp.float32),     # residual stream (persists across layers)
            pltpu.VMEM((m, d), jnp.float32),     # per-head attention output assembly
            pltpu.VMEM((m, m), jnp.float32),     # block-diagonal additive mask
        ],
        compiler_params=pltpu.CompilerParams(**cp_kwargs),
    )(*inputs)
    return logits[:, :cfg["num_classes"]]


# ------------------------- parameters (synthetic init) ---------------------- #

def _quantize_per_out_channel(w):
    """w: (L, in, out) f32  ->  (int8 q, f32 scale (L,1,out)) with W ~= q * scale."""
    amax = jnp.max(jnp.abs(w), axis=-2, keepdims=True)
    scl = jnp.where(amax > 0, amax / 127.0, 1.0).astype(jnp.float32)
    q = jnp.clip(jnp.round(w / scl), -127.0, 127.0).astype(jnp.int8)
    return q, scl


def init_params(key, cfg):
    """Synthetic init matching torchvision ViT parameter shapes.

    Matmul weights are PRE-TRANSPOSED (in_features, out_features), stacked along a leading
    layer axis, and the four streamed encoder weights are quantized once to int8 with
    per-output-channel f32 scales (weight-only quant; activations stay bf16/f32).
    """
    d, p, c = cfg["hidden"], cfg["patch_size"], cfg["in_channels"]
    mlp, num_layers, ncls = cfg["mlp_dim"], cfg["num_layers"], cfg["num_classes"]
    seq = 1 + (cfg["image_size"] // p) ** 2
    ncls_pad = max(128, ((ncls + 127) // 128) * 128)      # lane-dense head output

    def rnd(k, shape, scale=0.02):
        return scale * jax.random.normal(k, shape, dtype=jnp.float32)

    keys = jax.random.split(key, 8)
    head_w = jnp.zeros((d, ncls_pad), jnp.float32).at[:, :ncls].set(rnd(keys[2], (d, ncls)))
    params = {
        "patch_w": rnd(keys[0], (c * p * p, d)).astype(jnp.bfloat16),  # Conv2d weight, transposed
        "patch_b": jnp.zeros((1, d), jnp.float32),
        "cls_token": jnp.zeros((1, d), jnp.float32),
        "pos_embedding": rnd(keys[1], (seq, d)),
        "ln_g": jnp.ones((1, d), jnp.float32),             # encoder final LayerNorm
        "ln_b": jnp.zeros((1, d), jnp.float32),
        "head_w": head_w.astype(jnp.bfloat16),             # head weight, transposed + lane-padded
        "head_b": jnp.zeros((1, ncls_pad), jnp.float32),
    }
    lkeys = jax.random.split(keys[3], 4)
    wq, sq = _quantize_per_out_channel(rnd(lkeys[0], (num_layers, d, 3 * d)))   # in_proj.T
    wo, so = _quantize_per_out_channel(rnd(lkeys[1], (num_layers, d, d)))       # out_proj.T
    w1, s1 = _quantize_per_out_channel(rnd(lkeys[2], (num_layers, d, mlp)))     # linear1.T
    w2, s2 = _quantize_per_out_channel(rnd(lkeys[3], (num_layers, mlp, d)))     # linear2.T
    params.update({
        "ln1_g": jnp.ones((num_layers, 1, d), jnp.float32),
        "ln1_b": jnp.zeros((num_layers, 1, d), jnp.float32),
        "w_qkv_q": wq, "s_qkv": sq, "b_qkv": jnp.zeros((num_layers, 1, 3 * d), jnp.float32),
        "w_out_q": wo, "s_out": so, "b_out": jnp.zeros((num_layers, 1, d), jnp.float32),
        "ln2_g": jnp.ones((num_layers, 1, d), jnp.float32),
        "ln2_b": jnp.zeros((num_layers, 1, d), jnp.float32),
        "w_fc1_q": w1, "s_fc1": s1, "b_fc1": jnp.zeros((num_layers, 1, mlp), jnp.float32),
        "w_fc2_q": w2, "s_fc2": s2, "b_fc2": jnp.zeros((num_layers, 1, d), jnp.float32),
    })
    return params


# ---------------------------------- main ------------------------------------ #

if __name__ == "__main__":
    # Reduced hyperparameters for a fast synthetic run.
    # Real vit_b_32: hidden=768, mlp_dim=3072, num_heads=12, num_layers=12 — same code path
    # (the wrapper raises vmem_limit_bytes, capped at 85% of physical VMEM, at those sizes).
    cfg = dict(
        image_size=32, patch_size=32, in_channels=3,
        hidden=256, mlp_dim=1024, num_heads=4, num_layers=3, num_classes=10,
    )
    key = jax.random.PRNGKey(0)
    pkey, xkey = jax.random.split(key)
    params = init_params(pkey, cfg)
    x = jax.random.normal(
        xkey, (2, cfg["in_channels"], cfg["image_size"], cfg["image_size"]),
        dtype=jnp.float32)                                # NCHW, like PyTorch

    fwd = jax.jit(functools.partial(vit_forward, cfg=cfg))
    logits = jax.block_until_ready(fwd(x, params))
    assert logits.shape == (2, cfg["num_classes"])
    assert bool(jnp.all(jnp.isfinite(logits)))
    print("KERNEL_OK")
</pallas_src>

<mosaic_0001>
module attributes {stable_mosaic.version = 11 : i64} {
  func.func @_vit_kernel(%arg0: i32, %arg1: memref<2x3072xf32, #tpu.memory_space<vmem>>, %arg2: memref<3072x256xbf16, #tpu.memory_space<vmem>>, %arg3: memref<1x256xf32, #tpu.memory_space<vmem>>, %arg4: memref<1x256xf32, #tpu.memory_space<vmem>>, %arg5: memref<2x256xf32, #tpu.memory_space<vmem>>, %arg6: memref<1x1x256xf32, #tpu.memory_space<vmem>>, %arg7: memref<1x1x256xf32, #tpu.memory_space<vmem>>, %arg8: memref<1x256x768xi8, #tpu.memory_space<vmem>>, %arg9: memref<1x1x768xf32, #tpu.memory_space<vmem>>, %arg10: memref<1x1x768xf32, #tpu.memory_space<vmem>>, %arg11: memref<1x256x256xi8, #tpu.memory_space<vmem>>, %arg12: memref<1x1x256xf32, #tpu.memory_space<vmem>>, %arg13: memref<1x1x256xf32, #tpu.memory_space<vmem>>, %arg14: memref<1x1x256xf32, #tpu.memory_space<vmem>>, %arg15: memref<1x1x256xf32, #tpu.memory_space<vmem>>, %arg16: memref<1x256x1024xi8, #tpu.memory_space<vmem>>, %arg17: memref<1x1x1024xf32, #tpu.memory_space<vmem>>, %arg18: memref<1x1x1024xf32, #tpu.memory_space<vmem>>, %arg19: memref<1x1024x256xi8, #tpu.memory_space<vmem>>, %arg20: memref<1x1x256xf32, #tpu.memory_space<vmem>>, %arg21: memref<1x1x256xf32, #tpu.memory_space<vmem>>, %arg22: memref<1x256xf32, #tpu.memory_space<vmem>>, %arg23: memref<1x256xf32, #tpu.memory_space<vmem>>, %arg24: memref<256x128xbf16, #tpu.memory_space<vmem>>, %arg25: memref<1x128xf32, #tpu.memory_space<vmem>>, %arg26: memref<2x128xf32, #tpu.memory_space<vmem>>, %arg27: memref<4x256xf32, #tpu.memory_space<vmem>>, %arg28: memref<4x256xf32, #tpu.memory_space<vmem>>, %arg29: memref<4x4xf32, #tpu.memory_space<vmem>>) attributes {dimension_semantics = [#tpu.dimension_semantics<arbitrary>], iteration_bounds = array<i64: 3>, scalar_prefetch = 0 : i64, scratch_operands = 3 : i64, tpu.core_type = #tpu.core_type<tc>, window_params = [{pipeline_mode = #tpu.pipeline_mode<synchronous>, transform_indices = @transform_0, window_bounds = array<i64: 2, 3072>}, {pipeline_mode = #tpu.pipeline_mode<synchronous>, transform_indices = @transform_1, window_bounds = array<i64: 3072, 256>}, {pipeline_mode = #tpu.pipeline_mode<synchronous>, transform_indices = @transform_2, window_bounds = array<i64: 1, 256>}, {pipeline_mode = #tpu.pipeline_mode<synchronous>, transform_indices = @transform_3, window_bounds = array<i64: 1, 256>}, {pipeline_mode = #tpu.pipeline_mode<synchronous>, transform_indices = @transform_4, window_bounds = array<i64: 2, 256>}, {transform_indices = @transform_5, window_bounds = array<i64: 1, 1, 256>}, {transform_indices = @transform_6, window_bounds = array<i64: 1, 1, 256>}, {transform_indices = @transform_7, window_bounds = array<i64: 1, 256, 768>}, {transform_indices = @transform_8, window_bounds = array<i64: 1, 1, 768>}, {transform_indices = @transform_9, window_bounds = array<i64: 1, 1, 768>}, {transform_indices = @transform_10, window_bounds = array<i64: 1, 256, 256>}, {transform_indices = @transform_11, window_bounds = array<i64: 1, 1, 256>}, {transform_indices = @transform_12, window_bounds = array<i64: 1, 1, 256>}, {transform_indices = @transform_13, window_bounds = array<i64: 1, 1, 256>}, {transform_indices = @transform_14, window_bounds = array<i64: 1, 1, 256>}, {transform_indices = @transform_15, window_bounds = array<i64: 1, 256, 1024>}, {transform_indices = @transform_16, window_bounds = array<i64: 1, 1, 1024>}, {transform_indices = @transform_17, window_bounds = array<i64: 1, 1, 1024>}, {transform_indices = @transform_18, window_bounds = array<i64: 1, 1024, 256>}, {transform_indices = @transform_19, window_bounds = array<i64: 1, 1, 256>}, {transform_indices = @transform_20, window_bounds = array<i64: 1, 1, 256>}, {pipeline_mode = #tpu.pipeline_mode<synchronous>, transform_indices = @transform_21, window_bounds = array<i64: 1, 256>}, {pipeline_mode = #tpu.pipeline_mode<synchronous>, transform_indices = @transform_22, window_bounds = array<i64: 1, 256>}, {pipeline_mode = #tpu.pipeline_mode<synchronous>, transform_indices = @transform_23, window_bounds = array<i64: 256, 128>}, {pipeline_mode = #tpu.pipeline_mode<synchronous>, transform_indices = @transform_24, window_bounds = array<i64: 1, 128>}, {pipeline_mode = #tpu.pipeline_mode<synchronous>, transform_indices = @transform_25, window_bounds = array<i64: 2, 128>}]} {
    %c0_i32 = arith.constant 0 : i32
    %0 = arith.cmpi eq, %arg0, %c0_i32 : i32
    %1 = arith.extui %0 : i1 to i32
    %c0_i32_0 = arith.constant 0 : i32
    %2 = arith.cmpi ne, %1, %c0_i32_0 : i32
    scf.if %2 {
      %c0_111 = arith.constant 0 : index
      %c0_112 = arith.constant 0 : index
      %233 = vector.load %arg1[%c0_111, %c0_112] : memref<2x3072xf32, #tpu.memory_space<vmem>>, vector<2x3072xf32>
      %234 = arith.truncf %233 : vector<2x3072xf32> to vector<2x3072xbf16>
      %c0_113 = arith.constant 0 : index
      %c0_114 = arith.constant 0 : index
      %235 = vector.load %arg2[%c0_113, %c0_114] : memref<3072x256xbf16, #tpu.memory_space<vmem>>, vector<3072x256xbf16>
      %cst_115 = arith.constant dense<0.000000e+00> : vector<2x256xf32>
      %236 = tpu.matmul %234, %235, %cst_115 {dimension_numbers = #tpu.dot_dimension_numbers<[1], [0], [0], [1], [0, 0, 1, 1], [], []>} : vector<2x3072xbf16>, vector<3072x256xbf16>, vector<2x256xf32> -> vector<2x256xf32>
      %c0_116 = arith.constant 0 : index
      %c0_117 = arith.constant 0 : index
      %237 = vector.load %arg3[%c0_116, %c0_117] : memref<1x256xf32, #tpu.memory_space<vmem>>, vector<1x256xf32>
      %238 = vector.broadcast %237 : vector<1x256xf32> to vector<2x256xf32>
      %239 = arith.addf %236, %238 : vector<2x256xf32>
      %c0_118 = arith.constant 0 : index
      %c0_119 = arith.constant 0 : index
      %240 = vector.load %arg4[%c0_118, %c0_119] : memref<1x256xf32, #tpu.memory_space<vmem>>, vector<1x256xf32>
      %c0_120 = arith.constant 0 : index
      %c0_121 = arith.constant 0 : index
      %241 = vector.load %arg5[%c0_120, %c0_121] : memref<2x256xf32, #tpu.memory_space<vmem>>, vector<1x256xf32>
      %242 = arith.addf %240, %241 : vector<1x256xf32>
      %243 = vector.shape_cast %242 : vector<1x256xf32> to vector<1x256xf32>
      %244 = vector.broadcast %243 : vector<1x256xf32> to vector<2x256xf32>
      %c0_122 = arith.constant 0 : index
      %c0_123 = arith.constant 0 : index
      %245 = vector.load %arg27[%c0_122, %c0_123] : memref<4x256xf32, #tpu.memory_space<vmem>>, vector<2x256xf32>
      tpu.vector_store %arg27[%c0_122, %c0_123], %244 {strides = array<i32>} : memref<4x256xf32, #tpu.memory_space<vmem>>, vector<2x256xf32>,
      %c1 = arith.constant 1 : index
      %c0_124 = arith.constant 0 : index
      %246 = vector.load %arg5[%c1, %c0_124] : memref<2x256xf32, #tpu.memory_space<vmem>>, vector<1x256xf32>
      %247 = vector.broadcast %246 : vector<1x256xf32> to vector<2x256xf32>
      %248 = arith.addf %239, %247 : vector<2x256xf32>
      %c2 = arith.constant 2 : index
      %c0_125 = arith.constant 0 : index
      %249 = vector.load %arg27[%c2, %c0_125] : memref<4x256xf32, #tpu.memory_space<vmem>>, vector<2x256xf32>
      tpu.vector_store %arg27[%c2, %c0_125], %248 {strides = array<i32>} : memref<4x256xf32, #tpu.memory_space<vmem>>, vector<2x256xf32>,
      %250 = tpu.iota {dimensions = array<i32: 0>} : vector<4x4xi32>
      %251 = tpu.iota {dimensions = array<i32: 1>} : vector<4x4xi32>
      %c1_i32 = arith.constant 1 : i32
      %252 = vector.broadcast %c1_i32 : i32 to vector<4x4xi32>
      %253 = arith.andi %250, %252 : vector<4x4xi32>
      %c1_i32_126 = arith.constant 1 : i32
      %254 = vector.broadcast %c1_i32_126 : i32 to vector<4x4xi32>
      %255 = arith.andi %251, %254 : vector<4x4xi32>
      %256 = arith.cmpi eq, %253, %255 : vector<4x4xi32>
      %cst_127 = arith.constant 0.000000e+00 : f32
      %cst_128 = arith.constant -1.000000e+30 : f32
      %257 = vector.broadcast %cst_127 : f32 to vector<4x4xf32>
      %258 = vector.broadcast %cst_128 : f32 to vector<4x4xf32>
      %259 = arith.select %256, %257, %258 : vector<4x4xi1>, vector<4x4xf32>
      %c0_129 = arith.constant 0 : index
      %c0_130 = arith.constant 0 : index
      %260 = vector.load %arg29[%c0_129, %c0_130] : memref<4x4xf32, #tpu.memory_space<vmem>>, vector<4x4xf32>
      tpu.vector_store %arg29[%c0_129, %c0_130], %259 {strides = array<i32>} : memref<4x4xf32, #tpu.memory_space<vmem>>, vector<4x4xf32>,
    } else {
    }
    %c0 = arith.constant 0 : index
    %c0_1 = arith.constant 0 : index
    %3 = vector.load %arg27[%c0, %c0_1] : memref<4x256xf32, #tpu.memory_space<vmem>>, vector<4x256xf32>
    %c0_2 = arith.constant 0 : index
    %c0_3 = arith.constant 0 : index
    %c0_4 = arith.constant 0 : index
    %4 = vector.load %arg6[%c0_2, %c0_3, %c0_4] : memref<1x1x256xf32, #tpu.memory_space<vmem>>, vector<1x1x256xf32>
    %5 = vector.shape_cast %4 : vector<1x1x256xf32> to vector<1x256xf32>
    %c0_5 = arith.constant 0 : index
    %c0_6 = arith.constant 0 : index
    %c0_7 = arith.constant 0 : index
    %6 = vector.load %arg7[%c0_5, %c0_6, %c0_7] : memref<1x1x256xf32, #tpu.memory_space<vmem>>, vector<1x1x256xf32>
    %7 = vector.shape_cast %6 : vector<1x1x256xf32> to vector<1x256xf32>
    %cst = arith.constant dense<0.000000e+00> : vector<4xf32>
    %8 = vector.multi_reduction <add>, %3, %cst [1] : vector<4x256xf32> to vector<4xf32>
    %9 = vector.shape_cast %8 : vector<4xf32> to vector<4x1xf32>
    %cst_8 = arith.constant 2.560000e+02 : f32
    %10 = vector.broadcast %cst_8 : f32 to vector<4x1xf32>
    %11 = arith.divf %9, %10 : vector<4x1xf32>
    %12 = vector.broadcast %11 : vector<4x1xf32> to vector<4x256xf32>
    %13 = arith.subf %3, %12 : vector<4x256xf32>
    %14 = arith.mulf %13, %13 : vector<4x256xf32>
    %cst_9 = arith.constant dense<0.000000e+00> : vector<4xf32>
    %15 = vector.multi_reduction <add>, %14, %cst_9 [1] : vector<4x256xf32> to vector<4xf32>
    %16 = vector.shape_cast %15 : vector<4xf32> to vector<4x1xf32>
    %cst_10 = arith.constant 2.560000e+02 : f32
    %17 = vector.broadcast %cst_10 : f32 to vector<4x1xf32>
    %18 = arith.divf %16, %17 : vector<4x1xf32>
    %19 = vector.broadcast %11 : vector<4x1xf32> to vector<4x256xf32>
    %20 = arith.subf %3, %19 : vector<4x256xf32>
    %cst_11 = arith.constant 9.99999997E-7 : f32
    %21 = vector.broadcast %cst_11 : f32 to vector<4x1xf32>
    %22 = arith.addf %18, %21 : vector<4x1xf32>
    %23 = math.rsqrt %22 : vector<4x1xf32>
    %24 = vector.broadcast %23 : vector<4x1xf32> to vector<4x256xf32>
    %25 = arith.mulf %20, %24 : vector<4x256xf32>
    %26 = vector.broadcast %5 : vector<1x256xf32> to vector<4x256xf32>
    %27 = arith.mulf %25, %26 : vector<4x256xf32>
    %28 = vector.broadcast %7 : vector<1x256xf32> to vector<4x256xf32>
    %29 = arith.addf %27, %28 : vector<4x256xf32>
    %30 = arith.truncf %29 : vector<4x256xf32> to vector<4x256xbf16>
    %c0_12 = arith.constant 0 : index
    %c0_13 = arith.constant 0 : index
    %c0_14 = arith.constant 0 : index
    %31 = vector.load %arg8[%c0_12, %c0_13, %c0_14] : memref<1x256x768xi8, #tpu.memory_space<vmem>>, vector<1x256x768xi8>
    %32 = vector.shape_cast %31 : vector<1x256x768xi8> to vector<256x768xi8>
    %33 = arith.sitofp %32 : vector<256x768xi8> to vector<256x768xf32>
    %34 = arith.truncf %33 : vector<256x768xf32> to vector<256x768xbf16>
    %cst_15 = arith.constant dense<0.000000e+00> : vector<4x768xf32>
    %35 = tpu.matmul %30, %34, %cst_15 {dimension_numbers = #tpu.dot_dimension_numbers<[1], [0], [0], [1], [0, 0, 1, 1], [], []>} : vector<4x256xbf16>, vector<256x768xbf16>, vector<4x768xf32> -> vector<4x768xf32>
    %c0_16 = arith.constant 0 : index
    %c0_17 = arith.constant 0 : index
    %c0_18 = arith.constant 0 : index
    %36 = vector.load %arg9[%c0_16, %c0_17, %c0_18] : memref<1x1x768xf32, #tpu.memory_space<vmem>>, vector<1x1x768xf32>
    %37 = vector.shape_cast %36 : vector<1x1x768xf32> to vector<1x768xf32>
    %38 = vector.broadcast %37 : vector<1x768xf32> to vector<4x768xf32>
    %39 = arith.mulf %35, %38 : vector<4x768xf32>
    %c0_19 = arith.constant 0 : index
    %c0_20 = arith.constant 0 : index
    %c0_21 = arith.constant 0 : index
    %40 = vector.load %arg10[%c0_19, %c0_20, %c0_21] : memref<1x1x768xf32, #tpu.memory_space<vmem>>, vector<1x1x768xf32>
    %41 = vector.shape_cast %40 : vector<1x1x768xf32> to vector<1x768xf32>
    %42 = vector.broadcast %41 : vector<1x768xf32> to vector<4x768xf32>
    %43 = arith.addf %39, %42 : vector<4x768xf32>
    %c0_22 = arith.constant 0 : index
    %c0_23 = arith.constant 0 : index
    %44 = vector.load %arg29[%c0_22, %c0_23] : memref<4x4xf32, #tpu.memory_space<vmem>>, vector<4x4xf32>
    %45 = vector.extract_strided_slice %43 {offsets = [0, 0], sizes = [4, 64], strides = [1, 1]} : vector<4x768xf32> to vector<4x64xf32>
    %46 = vector.extract_strided_slice %43 {offsets = [0, 256], sizes = [4, 64], strides = [1, 1]} : vector<4x768xf32> to vector<4x64xf32>
    %47 = vector.extract_strided_slice %43 {offsets = [0, 512], sizes = [4, 64], strides = [1, 1]} : vector<4x768xf32> to vector<4x64xf32>
    %cst_24 = arith.constant dense<0.000000e+00> : vector<4x4xf32>
    %48 = tpu.matmul %45, %46, %cst_24 {dimension_numbers = #tpu.dot_dimension_numbers<[1], [1], [0], [0], [0, 0, 1, 0], [], []>} : vector<4x64xf32>, vector<4x64xf32>, vector<4x4xf32> -> vector<4x4xf32>
    %cst_25 = arith.constant 1.250000e-01 : f32
    %49 = vector.broadcast %cst_25 : f32 to vector<4x4xf32>
    %50 = arith.mulf %48, %49 : vector<4x4xf32>
    %51 = arith.addf %50, %44 : vector<4x4xf32>
    %cst_26 = arith.constant dense<0xFF800000> : vector<4xf32>
    %52 = vector.multi_reduction <maximumf>, %51, %cst_26 [1] : vector<4x4xf32> to vector<4xf32>
    %53 = vector.shape_cast %52 : vector<4xf32> to vector<4x1xf32>
    %54 = vector.broadcast %53 : vector<4x1xf32> to vector<4x4xf32>
    %55 = arith.subf %51, %54 : vector<4x4xf32>
    %56 = math.exp %55 : vector<4x4xf32>
    %cst_27 = arith.constant dense<0.000000e+00> : vector<4xf32>
    %57 = vector.multi_reduction <add>, %56, %cst_27 [1] : vector<4x4xf32> to vector<4xf32>
    %58 = vector.shape_cast %57 : vector<4xf32> to vector<4x1xf32>
    %59 = vector.broadcast %58 : vector<4x1xf32> to vector<4x4xf32>
    %60 = arith.divf %56, %59 : vector<4x4xf32>
    %cst_28 = arith.constant dense<0.000000e+00> : vector<4x64xf32>
    %61 = tpu.matmul %60, %47, %cst_28 {dimension_numbers = #tpu.dot_dimension_numbers<[1], [0], [0], [1], [0, 0, 1, 1], [], []>} : vector<4x4xf32>, vector<4x64xf32>, vector<4x64xf32> -> vector<4x64xf32>
    %c0_29 = arith.constant 0 : index
    %c0_30 = arith.constant 0 : index
    %62 = vector.load %arg28[%c0_29, %c0_30] : memref<4x256xf32, #tpu.memory_space<vmem>>, vector<4x64xf32>
    tpu.vector_store %arg28[%c0_29, %c0_30], %61 {strides = array<i32>} : memref<4x256xf32, #tpu.memory_space<vmem>>, vector<4x64xf32>,
    %63 = vector.extract_strided_slice %43 {offsets = [0, 64], sizes = [4, 64], strides = [1, 1]} : vector<4x768xf32> to vector<4x64xf32>
    %64 = vector.extract_strided_slice %43 {offsets = [0, 320], sizes = [4, 64], strides = [1, 1]} : vector<4x768xf32> to vector<4x64xf32>
    %65 = vector.extract_strided_slice %43 {offsets = [0, 576], sizes = [4, 64], strides = [1, 1]} : vector<4x768xf32> to vector<4x64xf32>
    %cst_31 = arith.constant dense<0.000000e+00> : vector<4x4xf32>
    %66 = tpu.matmul %63, %64, %cst_31 {dimension_numbers = #tpu.dot_dimension_numbers<[1], [1], [0], [0], [0, 0, 1, 0], [], []>} : vector<4x64xf32>, vector<4x64xf32>, vector<4x4xf32> -> vector<4x4xf32>
    %cst_32 = arith.constant 1.250000e-01 : f32
    %67 = vector.broadcast %cst_32 : f32 to vector<4x4xf32>
    %68 = arith.mulf %66, %67 : vector<4x4xf32>
    %69 = arith.addf %68, %44 : vector<4x4xf32>
    %cst_33 = arith.constant dense<0xFF800000> : vector<4xf32>
    %70 = vector.multi_reduction <maximumf>, %69, %cst_33 [1] : vector<4x4xf32> to vector<4xf32>
    %71 = vector.shape_cast %70 : vector<4xf32> to vector<4x1xf32>
    %72 = vector.broadcast %71 : vector<4x1xf32> to vector<4x4xf32>
    %73 = arith.subf %69, %72 : vector<4x4xf32>
    %74 = math.exp %73 : vector<4x4xf32>
    %cst_34 = arith.constant dense<0.000000e+00> : vector<4xf32>
    %75 = vector.multi_reduction <add>, %74, %cst_34 [1] : vector<4x4xf32> to vector<4xf32>
    %76 = vector.shape_cast %75 : vector<4xf32> to vector<4x1xf32>
    %77 = vector.broadcast %76 : vector<4x1xf32> to vector<4x4xf32>
    %78 = arith.divf %74, %77 : vector<4x4xf32>
    %cst_35 = arith.constant dense<0.000000e+00> : vector<4x64xf32>
    %79 = tpu.matmul %78, %65, %cst_35 {dimension_numbers = #tpu.dot_dimension_numbers<[1], [0], [0], [1], [0, 0, 1, 1], [], []>} : vector<4x4xf32>, vector<4x64xf32>, vector<4x64xf32> -> vector<4x64xf32>
    %c0_36 = arith.constant 0 : index
    %c64 = arith.constant 64 : index
    %80 = vector.load %arg28[%c0_36, %c64] : memref<4x256xf32, #tpu.memory_space<vmem>>, vector<4x64xf32>
    tpu.vector_store %arg28[%c0_36, %c64], %79 {strides = array<i32>} : memref<4x256xf32, #tpu.memory_space<vmem>>, vector<4x64xf32>,
    %81 = vector.extract_strided_slice %43 {offsets = [0, 128], sizes = [4, 64], strides = [1, 1]} : vector<4x768xf32> to vector<4x64xf32>
    %82 = vector.extract_strided_slice %43 {offsets = [0, 384], sizes = [4, 64], strides = [1, 1]} : vector<4x768xf32> to vector<4x64xf32>
    %83 = vector.extract_strided_slice %43 {offsets = [0, 640], sizes = [4, 64], strides = [1, 1]} : vector<4x768xf32> to vector<4x64xf32>
    %cst_37 = arith.constant dense<0.000000e+00> : vector<4x4xf32>
    %84 = tpu.matmul %81, %82, %cst_37 {dimension_numbers = #tpu.dot_dimension_numbers<[1], [1], [0], [0], [0, 0, 1, 0], [], []>} : vector<4x64xf32>, vector<4x64xf32>, vector<4x4xf32> -> vector<4x4xf32>
    %cst_38 = arith.constant 1.250000e-01 : f32
    %85 = vector.broadcast %cst_38 : f32 to vector<4x4xf32>
    %86 = arith.mulf %84, %85 : vector<4x4xf32>
    %87 = arith.addf %86, %44 : vector<4x4xf32>
    %cst_39 = arith.constant dense<0xFF800000> : vector<4xf32>
    %88 = vector.multi_reduction <maximumf>, %87, %cst_39 [1] : vector<4x4xf32> to vector<4xf32>
    %89 = vector.shape_cast %88 : vector<4xf32> to vector<4x1xf32>
    %90 = vector.broadcast %89 : vector<4x1xf32> to vector<4x4xf32>
    %91 = arith.subf %87, %90 : vector<4x4xf32>
    %92 = math.exp %91 : vector<4x4xf32>
    %cst_40 = arith.constant dense<0.000000e+00> : vector<4xf32>
    %93 = vector.multi_reduction <add>, %92, %cst_40 [1] : vector<4x4xf32> to vector<4xf32>
    %94 = vector.shape_cast %93 : vector<4xf32> to vector<4x1xf32>
    %95 = vector.broadcast %94 : vector<4x1xf32> to vector<4x4xf32>
    %96 = arith.divf %92, %95 : vector<4x4xf32>
    %cst_41 = arith.constant dense<0.000000e+00> : vector<4x64xf32>
    %97 = tpu.matmul %96, %83, %cst_41 {dimension_numbers = #tpu.dot_dimension_numbers<[1], [0], [0], [1], [0, 0, 1, 1], [], []>} : vector<4x4xf32>, vector<4x64xf32>, vector<4x64xf32> -> vector<4x64xf32>
    %c0_42 = arith.constant 0 : index
    %c128 = arith.constant 128 : index
    %98 = vector.load %arg28[%c0_42, %c128] : memref<4x256xf32, #tpu.memory_space<vmem>>, vector<4x64xf32>
    tpu.vector_store %arg28[%c0_42, %c128], %97 {strides = array<i32>} : memref<4x256xf32, #tpu.memory_space<vmem>>, vector<4x64xf32>,
    %99 = vector.extract_strided_slice %43 {offsets = [0, 192], sizes = [4, 64], strides = [1, 1]} : vector<4x768xf32> to vector<4x64xf32>
    %100 = vector.extract_strided_slice %43 {offsets = [0, 448], sizes = [4, 64], strides = [1, 1]} : vector<4x768xf32> to vector<4x64xf32>
    %101 = vector.extract_strided_slice %43 {offsets = [0, 704], sizes = [4, 64], strides = [1, 1]} : vector<4x768xf32> to vector<4x64xf32>
    %cst_43 = arith.constant dense<0.000000e+00> : vector<4x4xf32>
    %102 = tpu.matmul %99, %100, %cst_43 {dimension_numbers = #tpu.dot_dimension_numbers<[1], [1], [0], [0], [0, 0, 1, 0], [], []>} : vector<4x64xf32>, vector<4x64xf32>, vector<4x4xf32> -> vector<4x4xf32>
    %cst_44 = arith.constant 1.250000e-01 : f32
    %103 = vector.broadcast %cst_44 : f32 to vector<4x4xf32>
    %104 = arith.mulf %102, %103 : vector<4x4xf32>
    %105 = arith.addf %104, %44 : vector<4x4xf32>
    %cst_45 = arith.constant dense<0xFF800000> : vector<4xf32>
    %106 = vector.multi_reduction <maximumf>, %105, %cst_45 [1] : vector<4x4xf32> to vector<4xf32>
    %107 = vector.shape_cast %106 : vector<4xf32> to vector<4x1xf32>
    %108 = vector.broadcast %107 : vector<4x1xf32> to vector<4x4xf32>
    %109 = arith.subf %105, %108 : vector<4x4xf32>
    %110 = math.exp %109 : vector<4x4xf32>
    %cst_46 = arith.constant dense<0.000000e+00> : vector<4xf32>
    %111 = vector.multi_reduction <add>, %110, %cst_46 [1] : vector<4x4xf32> to vector<4xf32>
    %112 = vector.shape_cast %111 : vector<4xf32> to vector<4x1xf32>
    %113 = vector.broadcast %112 : vector<4x1xf32> to vector<4x4xf32>
    %114 = arith.divf %110, %113 : vector<4x4xf32>
    %cst_47 = arith.constant dense<0.000000e+00> : vector<4x64xf32>
    %115 = tpu.matmul %114, %101, %cst_47 {dimension_numbers = #tpu.dot_dimension_numbers<[1], [0], [0], [1], [0, 0, 1, 1], [], []>} : vector<4x4xf32>, vector<4x64xf32>, vector<4x64xf32> -> vector<4x64xf32>
    %c0_48 = arith.constant 0 : index
    %c192 = arith.constant 192 : index
    %116 = vector.load %arg28[%c0_48, %c192] : memref<4x256xf32, #tpu.memory_space<vmem>>, vector<4x64xf32>
    tpu.vector_store %arg28[%c0_48, %c192], %115 {strides = array<i32>} : memref<4x256xf32, #tpu.memory_space<vmem>>, vector<4x64xf32>,
    %c0_49 = arith.constant 0 : index
    %c0_50 = arith.constant 0 : index
    %117 = vector.load %arg28[%c0_49, %c0_50] : memref<4x256xf32, #tpu.memory_space<vmem>>, vector<4x256xf32>
    %118 = arith.truncf %117 : vector<4x256xf32> to vector<4x256xbf16>
    %c0_51 = arith.constant 0 : index
    %c0_52 = arith.constant 0 : index
    %c0_53 = arith.constant 0 : index
    %119 = vector.load %arg11[%c0_51, %c0_52, %c0_53] : memref<1x256x256xi8, #tpu.memory_space<vmem>>, vector<1x256x256xi8>
    %120 = vector.shape_cast %119 : vector<1x256x256xi8> to vector<256x256xi8>
    %121 = arith.sitofp %120 : vector<256x256xi8> to vector<256x256xf32>
    %122 = arith.truncf %121 : vector<256x256xf32> to vector<256x256xbf16>
    %cst_54 = arith.constant dense<0.000000e+00> : vector<4x256xf32>
    %123 = tpu.matmul %118, %122, %cst_54 {dimension_numbers = #tpu.dot_dimension_numbers<[1], [0], [0], [1], [0, 0, 1, 1], [], []>} : vector<4x256xbf16>, vector<256x256xbf16>, vector<4x256xf32> -> vector<4x256xf32>
    %c0_55 = arith.constant 0 : index
    %c0_56 = arith.constant 0 : index
    %c0_57 = arith.constant 0 : index
    %124 = vector.load %arg12[%c0_55, %c0_56, %c0_57] : memref<1x1x256xf32, #tpu.memory_space<vmem>>, vector<1x1x256xf32>
    %125 = vector.shape_cast %124 : vector<1x1x256xf32> to vector<1x256xf32>
    %126 = vector.broadcast %125 : vector<1x256xf32> to vector<4x256xf32>
    %127 = arith.mulf %123, %126 : vector<4x256xf32>
    %c0_58 = arith.constant 0 : index
    %c0_59 = arith.constant 0 : index
    %c0_60 = arith.constant 0 : index
    %128 = vector.load %arg13[%c0_58, %c0_59, %c0_60] : memref<1x1x256xf32, #tpu.memory_space<vmem>>, vector<1x1x256xf32>
    %129 = vector.shape_cast %128 : vector<1x1x256xf32> to vector<1x256xf32>
    %130 = vector.broadcast %129 : vector<1x256xf32> to vector<4x256xf32>
    %131 = arith.addf %127, %130 : vector<4x256xf32>
    %132 = arith.addf %3, %131 : vector<4x256xf32>
    %c0_61 = arith.constant 0 : index
    %c0_62 = arith.constant 0 : index
    %c0_63 = arith.constant 0 : index
    %133 = vector.load %arg14[%c0_61, %c0_62, %c0_63] : memref<1x1x256xf32, #tpu.memory_space<vmem>>, vector<1x1x256xf32>
    %134 = vector.shape_cast %133 : vector<1x1x256xf32> to vector<1x256xf32>
    %c0_64 = arith.constant 0 : index
    %c0_65 = arith.constant 0 : index
    %c0_66 = arith.constant 0 : index
    %135 = vector.load %arg15[%c0_64, %c0_65, %c0_66] : memref<1x1x256xf32, #tpu.memory_space<vmem>>, vector<1x1x256xf32>
    %136 = vector.shape_cast %135 : vector<1x1x256xf32> to vector<1x256xf32>
    %cst_67 = arith.constant dense<0.000000e+00> : vector<4xf32>
    %137 = vector.multi_reduction <add>, %132, %cst_67 [1] : vector<4x256xf32> to vector<4xf32>
    %138 = vector.shape_cast %137 : vector<4xf32> to vector<4x1xf32>
    %cst_68 = arith.constant 2.560000e+02 : f32
    %139 = vector.broadcast %cst_68 : f32 to vector<4x1xf32>
    %140 = arith.divf %138, %139 : vector<4x1xf32>
    %141 = vector.broadcast %140 : vector<4x1xf32> to vector<4x256xf32>
    %142 = arith.subf %132, %141 : vector<4x256xf32>
    %143 = arith.mulf %142, %142 : vector<4x256xf32>
    %cst_69 = arith.constant dense<0.000000e+00> : vector<4xf32>
    %144 = vector.multi_reduction <add>, %143, %cst_69 [1] : vector<4x256xf32> to vector<4xf32>
    %145 = vector.shape_cast %144 : vector<4xf32> to vector<4x1xf32>
    %cst_70 = arith.constant 2.560000e+02 : f32
    %146 = vector.broadcast %cst_70 : f32 to vector<4x1xf32>
    %147 = arith.divf %145, %146 : vector<4x1xf32>
    %148 = vector.broadcast %140 : vector<4x1xf32> to vector<4x256xf32>
    %149 = arith.subf %132, %148 : vector<4x256xf32>
    %cst_71 = arith.constant 9.99999997E-7 : f32
    %150 = vector.broadcast %cst_71 : f32 to vector<4x1xf32>
    %151 = arith.addf %147, %150 : vector<4x1xf32>
    %152 = math.rsqrt %151 : vector<4x1xf32>
    %153 = vector.broadcast %152 : vector<4x1xf32> to vector<4x256xf32>
    %154 = arith.mulf %149, %153 : vector<4x256xf32>
    %155 = vector.broadcast %134 : vector<1x256xf32> to vector<4x256xf32>
    %156 = arith.mulf %154, %155 : vector<4x256xf32>
    %157 = vector.broadcast %136 : vector<1x256xf32> to vector<4x256xf32>
    %158 = arith.addf %156, %157 : vector<4x256xf32>
    %159 = arith.truncf %158 : vector<4x256xf32> to vector<4x256xbf16>
    %c0_72 = arith.constant 0 : index
    %c0_73 = arith.constant 0 : index
    %c0_74 = arith.constant 0 : index
    %160 = vector.load %arg16[%c0_72, %c0_73, %c0_74] : memref<1x256x1024xi8, #tpu.memory_space<vmem>>, vector<1x256x1024xi8>
    %161 = vector.shape_cast %160 : vector<1x256x1024xi8> to vector<256x1024xi8>
    %162 = arith.sitofp %161 : vector<256x1024xi8> to vector<256x1024xf32>
    %163 = arith.truncf %162 : vector<256x1024xf32> to vector<256x1024xbf16>
    %cst_75 = arith.constant dense<0.000000e+00> : vector<4x1024xf32>
    %164 = tpu.matmul %159, %163, %cst_75 {dimension_numbers = #tpu.dot_dimension_numbers<[1], [0], [0], [1], [0, 0, 1, 1], [], []>} : vector<4x256xbf16>, vector<256x1024xbf16>, vector<4x1024xf32> -> vector<4x1024xf32>
    %c0_76 = arith.constant 0 : index
    %c0_77 = arith.constant 0 : index
    %c0_78 = arith.constant 0 : index
    %165 = vector.load %arg17[%c0_76, %c0_77, %c0_78] : memref<1x1x1024xf32, #tpu.memory_space<vmem>>, vector<1x1x1024xf32>
    %166 = vector.shape_cast %165 : vector<1x1x1024xf32> to vector<1x1024xf32>
    %167 = vector.broadcast %166 : vector<1x1024xf32> to vector<4x1024xf32>
    %168 = arith.mulf %164, %167 : vector<4x1024xf32>
    %c0_79 = arith.constant 0 : index
    %c0_80 = arith.constant 0 : index
    %c0_81 = arith.constant 0 : index
    %169 = vector.load %arg18[%c0_79, %c0_80, %c0_81] : memref<1x1x1024xf32, #tpu.memory_space<vmem>>, vector<1x1x1024xf32>
    %170 = vector.shape_cast %169 : vector<1x1x1024xf32> to vector<1x1024xf32>
    %171 = vector.broadcast %170 : vector<1x1024xf32> to vector<4x1024xf32>
    %172 = arith.addf %168, %171 : vector<4x1024xf32>
    %cst_82 = arith.constant 5.000000e-01 : f32
    %173 = vector.broadcast %cst_82 : f32 to vector<4x1024xf32>
    %174 = arith.mulf %173, %172 : vector<4x1024xf32>
    %cst_83 = arith.constant 0.707106769 : f32
    %175 = vector.broadcast %cst_83 : f32 to vector<4x1024xf32>
    %176 = arith.mulf %172, %175 : vector<4x1024xf32>
    %cst_84 = arith.constant 0.000000e+00 : f32
    %177 = vector.broadcast %cst_84 : f32 to vector<4x1024xf32>
    %178 = arith.cmpf olt, %176, %177 : vector<4x1024xf32>
    %cst_85 = arith.constant -1.000000e+00 : f32
    %cst_86 = arith.constant 1.000000e+00 : f32
    %179 = vector.broadcast %cst_85 : f32 to vector<4x1024xf32>
    %180 = vector.broadcast %cst_86 : f32 to vector<4x1024xf32>
    %181 = arith.select %178, %179, %180 : vector<4x1024xi1>, vector<4x1024xf32>
    %182 = math.absf %176 : vector<4x1024xf32>
    %cst_87 = arith.constant 0.327591091 : f32
    %183 = vector.broadcast %cst_87 : f32 to vector<4x1024xf32>
    %184 = arith.mulf %183, %182 : vector<4x1024xf32>
    %cst_88 = arith.constant 1.000000e+00 : f32
    %185 = vector.broadcast %cst_88 : f32 to vector<4x1024xf32>
    %186 = arith.addf %185, %184 : vector<4x1024xf32>
    %cst_89 = arith.constant 1.000000e+00 : f32
    %187 = vector.broadcast %cst_89 : f32 to vector<4x1024xf32>
    %188 = arith.divf %187, %186 : vector<4x1024xf32>
    %cst_90 = arith.constant 1.06140542 : f32
    %189 = vector.broadcast %cst_90 : f32 to vector<4x1024xf32>
    %190 = arith.mulf %188, %189 : vector<4x1024xf32>
    %cst_91 = arith.constant -1.45315206 : f32
    %191 = vector.broadcast %cst_91 : f32 to vector<4x1024xf32>
    %192 = arith.addf %191, %190 : vector<4x1024xf32>
    %193 = arith.mulf %188, %192 : vector<4x1024xf32>
    %cst_92 = arith.constant 1.42141378 : f32
    %194 = vector.broadcast %cst_92 : f32 to vector<4x1024xf32>
    %195 = arith.addf %194, %193 : vector<4x1024xf32>
    %196 = arith.mulf %188, %195 : vector<4x1024xf32>
    %cst_93 = arith.constant -0.284496725 : f32
    %197 = vector.broadcast %cst_93 : f32 to vector<4x1024xf32>
    %198 = arith.addf %197, %196 : vector<4x1024xf32>
    %199 = arith.mulf %188, %198 : vector<4x1024xf32>
    %cst_94 = arith.constant 0.254829586 : f32
    %200 = vector.broadcast %cst_94 : f32 to vector<4x1024xf32>
    %201 = arith.addf %200, %199 : vector<4x1024xf32>
    %202 = arith.mulf %188, %201 : vector<4x1024xf32>
    %cst_95 = arith.constant 0.000000e+00 : f32
    %203 = vector.broadcast %cst_95 : f32 to vector<4x1024xf32>
    %204 = arith.subf %203, %182 : vector<4x1024xf32>
    %205 = arith.mulf %204, %182 : vector<4x1024xf32>
    %206 = math.exp %205 : vector<4x1024xf32>
    %207 = arith.mulf %202, %206 : vector<4x1024xf32>
    %cst_96 = arith.constant 1.000000e+00 : f32
    %208 = vector.broadcast %cst_96 : f32 to vector<4x1024xf32>
    %209 = arith.subf %208, %207 : vector<4x1024xf32>
    %210 = arith.mulf %181, %209 : vector<4x1024xf32>
    %cst_97 = arith.constant 1.000000e+00 : f32
    %211 = vector.broadcast %cst_97 : f32 to vector<4x1024xf32>
    %212 = arith.addf %211, %210 : vector<4x1024xf32>
    %213 = arith.mulf %174, %212 : vector<4x1024xf32>
    %214 = arith.truncf %213 : vector<4x1024xf32> to vector<4x1024xbf16>
    %c0_98 = arith.constant 0 : index
    %c0_99 = arith.constant 0 : index
    %c0_100 = arith.constant 0 : index
    %215 = vector.load %arg19[%c0_98, %c0_99, %c0_100] : memref<1x1024x256xi8, #tpu.memory_space<vmem>>, vector<1x1024x256xi8>
    %216 = vector.shape_cast %215 : vector<1x1024x256xi8> to vector<1024x256xi8>
    %217 = arith.sitofp %216 : vector<1024x256xi8> to vector<1024x256xf32>
    %218 = arith.truncf %217 : vector<1024x256xf32> to vector<1024x256xbf16>
    %cst_101 = arith.constant dense<0.000000e+00> : vector<4x256xf32>
    %219 = tpu.matmul %214, %218, %cst_101 {dimension_numbers = #tpu.dot_dimension_numbers<[1], [0], [0], [1], [0, 0, 1, 1], [], []>} : vector<4x1024xbf16>, vector<1024x256xbf16>, vector<4x256xf32> -> vector<4x256xf32>
    %c0_102 = arith.constant 0 : index
    %c0_103 = arith.constant 0 : index
    %c0_104 = arith.constant 0 : index
    %220 = vector.load %arg20[%c0_102, %c0_103, %c0_104] : memref<1x1x256xf32, #tpu.memory_space<vmem>>, vector<1x1x256xf32>
    %221 = vector.shape_cast %220 : vector<1x1x256xf32> to vector<1x256xf32>
    %222 = vector.broadcast %221 : vector<1x256xf32> to vector<4x256xf32>
    %223 = arith.mulf %219, %222 : vector<4x256xf32>
    %c0_105 = arith.constant 0 : index
    %c0_106 = arith.constant 0 : index
    %c0_107 = arith.constant 0 : index
    %224 = vector.load %arg21[%c0_105, %c0_106, %c0_107] : memref<1x1x256xf32, #tpu.memory_space<vmem>>, vector<1x1x256xf32>
    %225 = vector.shape_cast %224 : vector<1x1x256xf32> to vector<1x256xf32>
    %226 = vector.broadcast %225 : vector<1x256xf32> to vector<4x256xf32>
    %227 = arith.addf %223, %226 : vector<4x256xf32>
    %228 = arith.addf %132, %227 : vector<4x256xf32>
    %c0_108 = arith.constant 0 : index
    %c0_109 = arith.constant 0 : index
    %229 = vector.load %arg27[%c0_108, %c0_109] : memref<4x256xf32, #tpu.memory_space<vmem>>, vector<4x256xf32>
    tpu.vector_store %arg27[%c0_108, %c0_109], %228 {strides = array<i32>} : memref<4x256xf32, #tpu.memory_space<vmem>>, vector<4x256xf32>,
    %c2_i32 = arith.constant 2 : i32
    %230 = arith.cmpi eq, %arg0, %c2_i32 : i32
    %231 = arith.extui %230 : i1 to i32
    %c0_i32_110 = arith.constant 0 : i32
    %232 = arith.cmpi ne, %231, %c0_i32_110 : i32
    scf.if %232 {
      %233 = vector.extract_strided_slice %228 {offsets = [0, 0], sizes = [2, 256], strides = [1, 1]} : vector<4x256xf32> to vector<2x256xf32>
      %c0_111 = arith.constant 0 : index
      %c0_112 = arith.constant 0 : index
      %234 = vector.load %arg22[%c0_111, %c0_112] : memref<1x256xf32, #tpu.memory_space<vmem>>, vector<1x256xf32>
      %c0_113 = arith.constant 0 : index
      %c0_114 = arith.constant 0 : index
      %235 = vector.load %arg23[%c0_113, %c0_114] : memref<1x256xf32, #tpu.memory_space<vmem>>, vector<1x256xf32>
      %cst_115 = arith.constant dense<0.000000e+00> : vector<2xf32>
      %236 = vector.multi_reduction <add>, %233, %cst_115 [1] : vector<2x256xf32> to vector<2xf32>
      %237 = vector.shape_cast %236 : vector<2xf32> to vector<2x1xf32>
      %cst_116 = arith.constant 2.560000e+02 : f32
      %238 = vector.broadcast %cst_116 : f32 to vector<2x1xf32>
      %239 = arith.divf %237, %238 : vector<2x1xf32>
      %240 = vector.broadcast %239 : vector<2x1xf32> to vector<2x256xf32>
      %241 = arith.subf %233, %240 : vector<2x256xf32>
      %242 = arith.mulf %241, %241 : vector<2x256xf32>
      %cst_117 = arith.constant dense<0.000000e+00> : vector<2xf32>
      %243 = vector.multi_reduction <add>, %242, %cst_117 [1] : vector<2x256xf32> to vector<2xf32>
      %244 = vector.shape_cast %243 : vector<2xf32> to vector<2x1xf32>
      %cst_118 = arith.constant 2.560000e+02 : f32
      %245 = vector.broadcast %cst_118 : f32 to vector<2x1xf32>
      %246 = arith.divf %244, %245 : vector<2x1xf32>
      %247 = vector.broadcast %239 : vector<2x1xf32> to vector<2x256xf32>
      %248 = arith.subf %233, %247 : vector<2x256xf32>
      %cst_119 = arith.constant 9.99999997E-7 : f32
      %249 = vector.broadcast %cst_119 : f32 to vector<2x1xf32>
      %250 = arith.addf %246, %249 : vector<2x1xf32>
      %251 = math.rsqrt %250 : vector<2x1xf32>
      %252 = vector.broadcast %251 : vector<2x1xf32> to vector<2x256xf32>
      %253 = arith.mulf %248, %252 : vector<2x256xf32>
      %254 = vector.broadcast %234 : vector<1x256xf32> to vector<2x256xf32>
      %255 = arith.mulf %253, %254 : vector<2x256xf32>
      %256 = vector.broadcast %235 : vector<1x256xf32> to vector<2x256xf32>
      %257 = arith.addf %255, %256 : vector<2x256xf32>
      %258 = arith.truncf %257 : vector<2x256xf32> to vector<2x256xbf16>
      %c0_120 = arith.constant 0 : index
      %c0_121 = arith.constant 0 : index
      %259 = vector.load %arg24[%c0_120, %c0_121] : memref<256x128xbf16, #tpu.memory_space<vmem>>, vector<256x128xbf16>
      %cst_122 = arith.constant dense<0.000000e+00> : vector<2x128xf32>
      %260 = tpu.matmul %258, %259, %cst_122 {dimension_numbers = #tpu.dot_dimension_numbers<[1], [0], [0], [1], [0, 0, 1, 1], [], []>} : vector<2x256xbf16>, vector<256x128xbf16>, vector<2x128xf32> -> vector<2x128xf32>
      %c0_123 = arith.constant 0 : index
      %c0_124 = arith.constant 0 : index
      %261 = vector.load %arg25[%c0_123, %c0_124] : memref<1x128xf32, #tpu.memory_space<vmem>>, vector<1x128xf32>
      %262 = vector.broadcast %261 : vector<1x128xf32> to vector<2x128xf32>
      %263 = arith.addf %260, %262 : vector<2x128xf32>
      %c0_125 = arith.constant 0 : index
      %c0_126 = arith.constant 0 : index
      %264 = vector.load %arg26[%c0_125, %c0_126] : memref<2x128xf32, #tpu.memory_space<vmem>>, vector<2x128xf32>
      tpu.vector_store %arg26[%c0_125, %c0_126], %263 {strides = array<i32>} : memref<2x128xf32, #tpu.memory_space<vmem>>, vector<2x128xf32>,
    } else {
    }
    return
  }
  func.func @transform_0(%arg0: i32) -> (i32, i32) {
    %c0_i32 = arith.constant 0 : i32
    %c0_i32_0 = arith.constant 0 : i32
    %c0_i32_1 = arith.constant 0 : i32
    return %c0_i32, %c0_i32_0 : i32, i32
  }
  func.func @transform_1(%arg0: i32) -> (i32, i32) {
    %c0_i32 = arith.constant 0 : i32
    %c0_i32_0 = arith.constant 0 : i32
    %c0_i32_1 = arith.constant 0 : i32
    return %c0_i32, %c0_i32_0 : i32, i32
  }
  func.func @transform_2(%arg0: i32) -> (i32, i32) {
    %c0_i32 = arith.constant 0 : i32
    %c0_i32_0 = arith.constant 0 : i32
    %c0_i32_1 = arith.constant 0 : i32
    return %c0_i32, %c0_i32_0 : i32, i32
  }
  func.func @transform_3(%arg0: i32) -> (i32, i32) {
    %c0_i32 = arith.constant 0 : i32
    %c0_i32_0 = arith.constant 0 : i32
    %c0_i32_1 = arith.constant 0 : i32
    return %c0_i32, %c0_i32_0 : i32, i32
  }
  func.func @transform_4(%arg0: i32) -> (i32, i32) {
    %c0_i32 = arith.constant 0 : i32
    %c0_i32_0 = arith.constant 0 : i32
    %c0_i32_1 = arith.constant 0 : i32
    return %c0_i32, %c0_i32_0 : i32, i32
  }
  func.func @transform_5(%arg0: i32) -> (i32, i32, i32) {
    %c0_i32 = arith.constant 0 : i32
    %c0_i32_0 = arith.constant 0 : i32
    %c0_i32_1 = arith.constant 0 : i32
    return %arg0, %c0_i32, %c0_i32_0 : i32, i32, i32
  }
  func.func @transform_6(%arg0: i32) -> (i32, i32, i32) {
    %c0_i32 = arith.constant 0 : i32
    %c0_i32_0 = arith.constant 0 : i32
    %c0_i32_1 = arith.constant 0 : i32
    return %arg0, %c0_i32, %c0_i32_0 : i32, i32, i32
  }
  func.func @transform_7(%arg0: i32) -> (i32, i32, i32) {
    %c0_i32 = arith.constant 0 : i32
    %c0_i32_0 = arith.constant 0 : i32
    %c0_i32_1 = arith.constant 0 : i32
    return %arg0, %c0_i32, %c0_i32_0 : i32, i32, i32
  }
  func.func @transform_8(%arg0: i32) -> (i32, i32, i32) {
    %c0_i32 = arith.constant 0 : i32
    %c0_i32_0 = arith.constant 0 : i32
    %c0_i32_1 = arith.constant 0 : i32
    return %arg0, %c0_i32, %c0_i32_0 : i32, i32, i32
  }
  func.func @transform_9(%arg0: i32) -> (i32, i32, i32) {
    %c0_i32 = arith.constant 0 : i32
    %c0_i32_0 = arith.constant 0 : i32
    %c0_i32_1 = arith.constant 0 : i32
    return %arg0, %c0_i32, %c0_i32_0 : i32, i32, i32
  }
  func.func @transform_10(%arg0: i32) -> (i32, i32, i32) {
    %c0_i32 = arith.constant 0 : i32
    %c0_i32_0 = arith.constant 0 : i32
    %c0_i32_1 = arith.constant 0 : i32
    return %arg0, %c0_i32, %c0_i32_0 : i32, i32, i32
  }
  func.func @transform_11(%arg0: i32) -> (i32, i32, i32) {
    %c0_i32 = arith.constant 0 : i32
    %c0_i32_0 = arith.constant 0 : i32
    %c0_i32_1 = arith.constant 0 : i32
    return %arg0, %c0_i32, %c0_i32_0 : i32, i32, i32
  }
  func.func @transform_12(%arg0: i32) -> (i32, i32, i32) {
    %c0_i32 = arith.constant 0 : i32
    %c0_i32_0 = arith.constant 0 : i32
    %c0_i32_1 = arith.constant 0 : i32
    return %arg0, %c0_i32, %c0_i32_0 : i32, i32, i32
  }
  func.func @transform_13(%arg0: i32) -> (i32, i32, i32) {
    %c0_i32 = arith.constant 0 : i32
    %c0_i32_0 = arith.constant 0 : i32
    %c0_i32_1 = arith.constant 0 : i32
    return %arg0, %c0_i32, %c0_i32_0 : i32, i32, i32
  }
  func.func @transform_14(%arg0: i32) -> (i32, i32, i32) {
    %c0_i32 = arith.constant 0 : i32
    %c0_i32_0 = arith.constant 0 : i32
    %c0_i32_1 = arith.constant 0 : i32
    return %arg0, %c0_i32, %c0_i32_0 : i32, i32, i32
  }
  func.func @transform_15(%arg0: i32) -> (i32, i32, i32) {
    %c0_i32 = arith.constant 0 : i32
    %c0_i32_0 = arith.constant 0 : i32
    %c0_i32_1 = arith.constant 0 : i32
    return %arg0, %c0_i32, %c0_i32_0 : i32, i32, i32
  }
  func.func @transform_16(%arg0: i32) -> (i32, i32, i32) {
    %c0_i32 = arith.constant 0 : i32
    %c0_i32_0 = arith.constant 0 : i32
    %c0_i32_1 = arith.constant 0 : i32
    return %arg0, %c0_i32, %c0_i32_0 : i32, i32, i32
  }
  func.func @transform_17(%arg0: i32) -> (i32, i32, i32) {
    %c0_i32 = arith.constant 0 : i32
    %c0_i32_0 = arith.constant 0 : i32
    %c0_i32_1 = arith.constant 0 : i32
    return %arg0, %c0_i32, %c0_i32_0 : i32, i32, i32
  }
  func.func @transform_18(%arg0: i32) -> (i32, i32, i32) {
    %c0_i32 = arith.constant 0 : i32
    %c0_i32_0 = arith.constant 0 : i32
    %c0_i32_1 = arith.constant 0 : i32
    return %arg0, %c0_i32, %c0_i32_0 : i32, i32, i32
  }
  func.func @transform_19(%arg0: i32) -> (i32, i32, i32) {
    %c0_i32 = arith.constant 0 : i32
    %c0_i32_0 = arith.constant 0 : i32
    %c0_i32_1 = arith.constant 0 : i32
    return %arg0, %c0_i32, %c0_i32_0 : i32, i32, i32
  }
  func.func @transform_20(%arg0: i32) -> (i32, i32, i32) {
    %c0_i32 = arith.constant 0 : i32
    %c0_i32_0 = arith.constant 0 : i32
    %c0_i32_1 = arith.constant 0 : i32
    return %arg0, %c0_i32, %c0_i32_0 : i32, i32, i32
  }
  func.func @transform_21(%arg0: i32) -> (i32, i32) {
    %c0_i32 = arith.constant 0 : i32
    %c0_i32_0 = arith.constant 0 : i32
    %c0_i32_1 = arith.constant 0 : i32
    return %c0_i32, %c0_i32_0 : i32, i32
  }
  func.func @transform_22(%arg0: i32) -> (i32, i32) {
    %c0_i32 = arith.constant 0 : i32
    %c0_i32_0 = arith.constant 0 : i32
    %c0_i32_1 = arith.constant 0 : i32
    return %c0_i32, %c0_i32_0 : i32, i32
  }
  func.func @transform_23(%arg0: i32) -> (i32, i32) {
    %c0_i32 = arith.constant 0 : i32
    %c0_i32_0 = arith.constant 0 : i32
    %c0_i32_1 = arith.constant 0 : i32
    return %c0_i32, %c0_i32_0 : i32, i32
  }
  func.func @transform_24(%arg0: i32) -> (i32, i32) {
    %c0_i32 = arith.constant 0 : i32
    %c0_i32_0 = arith.constant 0 : i32
    %c0_i32_1 = arith.constant 0 : i32
    return %c0_i32, %c0_i32_0 : i32, i32
  }
  func.func @transform_25(%arg0: i32) -> (i32, i32) {
    %c0_i32 = arith.constant 0 : i32
    %c0_i32_0 = arith.constant 0 : i32
    %c0_i32_1 = arith.constant 0 : i32
    return %c0_i32, %c0_i32_0 : i32, i32
  }
}

</mosaic_0001>

<llo_original>
// kernel: vit_forward.1
$region0: #{vit_forward.1}
  #allocation0 [shape = 'u32[]', space=smem, size = 0x4, offset = 0x4, fixed_abs, tag = 'smem constant byte address 0x4 - core index']
  #allocation1 [shape = 'u32[144,128]{1,0:T(1,128)}', space=vmem, size = 0x12000, scoped, tag = 'internal scratch']
  #allocation2 [shape = 'f32[4,256]{1,0:T(4,128)}', space=vmem, size = 0x1000, scoped, tag = 'scratch operand']
  #allocation3 [shape = 'f32[4,256]{1,0:T(4,128)}', space=vmem, size = 0x1000, scoped, tag = 'scratch operand']
  #allocation4 [shape = 'f32[4,4]{1,0:T(4,128)}', space=vmem, size = 0x800, scoped, tag = 'scratch operand']
  %s0 = inlined_call_operand.vmem [shape: f32[2,3072], index: 0, kind: input, shape index: {}]
  %s1 = inlined_call_operand.hbm [shape: bf16[3072,256], index: 1, kind: input, shape index: {}]
  %s2 = inlined_call_operand.hbm [shape: f32[1,256], index: 2, kind: input, shape index: {}]
  %s3 = inlined_call_operand.hbm [shape: f32[1,256], index: 3, kind: input, shape index: {}]
  %s4 = inlined_call_operand.hbm [shape: f32[2,256], index: 4, kind: input, shape index: {}]
  %s5 = inlined_call_operand.hbm [shape: f32[3,1,256], index: 5, kind: input, shape index: {}]
  %s6 = inlined_call_operand.hbm [shape: f32[3,1,256], index: 6, kind: input, shape index: {}]
  %s7 = inlined_call_operand.hbm [shape: s8[3,256,768], index: 7, kind: input, shape index: {}]
  %s8 = inlined_call_operand.hbm [shape: f32[3,1,768], index: 8, kind: input, shape index: {}]
  %s9 = inlined_call_operand.hbm [shape: f32[3,1,768], index: 9, kind: input, shape index: {}]
  %s10 = inlined_call_operand.hbm [shape: s8[3,256,256], index: 10, kind: input, shape index: {}]
  %s11 = inlined_call_operand.hbm [shape: f32[3,1,256], index: 11, kind: input, shape index: {}]
  %s12 = inlined_call_operand.hbm [shape: f32[3,1,256], index: 12, kind: input, shape index: {}]
  %s13 = inlined_call_operand.hbm [shape: f32[3,1,256], index: 13, kind: input, shape index: {}]
  %s14 = inlined_call_operand.hbm [shape: f32[3,1,256], index: 14, kind: input, shape index: {}]
  %s15 = inlined_call_operand.hbm [shape: s8[3,256,1024], index: 15, kind: input, shape index: {}]
  %s16 = inlined_call_operand.hbm [shape: f32[3,1,1024], index: 16, kind: input, shape index: {}]
  %s17 = inlined_call_operand.hbm [shape: f32[3,1,1024], index: 17, kind: input, shape index: {}]
  %s18 = inlined_call_operand.hbm [shape: s8[3,1024,256], index: 18, kind: input, shape index: {}]
  %s19 = inlined_call_operand.hbm [shape: f32[3,1,256], index: 19, kind: input, shape index: {}]
  %s20 = inlined_call_operand.hbm [shape: f32[3,1,256], index: 20, kind: input, shape index: {}]
  %s21 = inlined_call_operand.hbm [shape: f32[1,256], index: 21, kind: input, shape index: {}]
  %s22 = inlined_call_operand.hbm [shape: f32[1,256], index: 22, kind: input, shape index: {}]
  %s23 = inlined_call_operand.hbm [shape: bf16[256,128], index: 23, kind: input, shape index: {}]
  %s24 = inlined_call_operand.hbm [shape: f32[1,128], index: 24, kind: input, shape index: {}]
  %s25 = inlined_call_operand.hbm [shape: f32[2,128], index: 25, kind: output, shape index: {}]
  %s26 = sld [smem:[#allocation0]]
  $region237: #{vit_forward.1} parent=0
    _
  %s28 = ssub.s32 1, %s26
  %s29 = scalar_select 0, %s28, %s26
  $region1: #{vit_forward.1} parent=0
    #allocation5 [shape = 'u8[1572864]{0}', space=vmem, size = 0x180000, scoped, tag = 'input window, operand 1, single buffered']
    #allocation6 [shape = 's32[2]{0}', space=sflag, size = 0x8, scoped, tag = 'scoped memory for vit_forward.1']
    #allocation7 [shape = 's32[2]{0}', space=sflag, size = 0x8, scoped, tag = 'scoped memory for vit_forward.1']
    #allocation8 [shape = 'u8[1024]{0}', space=vmem, size = 0x400, scoped, tag = 'input window, operand 2, single buffered']
    #allocation9 [shape = 's32[1]{0}', space=sflag, size = 0x4, scoped, tag = 'scoped memory for vit_forward.1']
    #allocation10 [shape = 'u8[1024]{0}', space=vmem, size = 0x400, scoped, tag = 'input window, operand 3, single buffered']
    #allocation11 [shape = 'u8[2048]{0}', space=vmem, size = 0x800, scoped, tag = 'input window, operand 4, single buffered']
    #allocation12 [shape = 's32[1]{0}', space=sflag, size = 0x4, scoped, tag = 'scoped memory for vit_forward.1']
    #allocation13 [shape = 'u8[2048]{0}', space=vmem, size = 0x800, scoped, tag = 'input window, operand 5']
    #allocation14 [shape = 'u8[2048]{0}', space=vmem, size = 0x800, scoped, tag = 'input window, operand 6']
    #allocation15 [shape = 'u8[393216]{0}', space=vmem, size = 0x60000, scoped, tag = 'input window, operand 7']
    #allocation16 [shape = 'u8[6144]{0}', space=vmem, size = 0x1800, scoped, tag = 'input window, operand 8']
    #allocation17 [shape = 'u8[6144]{0}', space=vmem, size = 0x1800, scoped, tag = 'input window, operand 9']
    #allocation18 [shape = 'u8[131072]{0}', space=vmem, size = 0x20000, scoped, tag = 'input window, operand 10']
    #allocation19 [shape = 'u8[2048]{0}', space=vmem, size = 0x800, scoped, tag = 'input window, operand 11']
    #allocation20 [shape = 'u8[2048]{0}', space=vmem, size = 0x800, scoped, tag = 'input window, operand 12']
    #allocation21 [shape = 'u8[2048]{0}', space=vmem, size = 0x800, scoped, tag = 'input window, operand 13']
    #allocation22 [shape = 'u8[2048]{0}', space=vmem, size = 0x800, scoped, tag = 'input window, operand 14']
    #allocation23 [shape = 'u8[524288]{0}', space=vmem, size = 0x80000, scoped, tag = 'input window, operand 15']
    #allocation24 [shape = 'u8[8192]{0}', space=vmem, size = 0x2000, scoped, tag = 'input window, operand 16']
    #allocation25 [shape = 'u8[8192]{0}', space=vmem, size = 0x2000, scoped, tag = 'input window, operand 17']
    #allocation26 [shape = 'u8[524288]{0}', space=vmem, size = 0x80000, scoped, tag = 'input window, operand 18']
    #allocation27 [shape = 'u8[2048]{0}', space=vmem, size = 0x800, scoped, tag = 'input window, operand 19']
    #allocation28 [shape = 'u8[2048]{0}', space=vmem, size = 0x800, scoped, tag = 'input window, operand 20']
    #allocation29 [shape = 'u8[1024]{0}', space=vmem, size = 0x400, scoped, tag = 'input window, operand 21, single buffered']
    #allocation30 [shape = 'u8[1024]{0}', space=vmem, size = 0x400, scoped, tag = 'input window, operand 22, single buffered']
    #allocation31 [shape = 'u8[65536]{0}', space=vmem, size = 0x10000, scoped, tag = 'input window, operand 23, single buffered']
    #allocation32 [shape = 's32[1]{0}', space=sflag, size = 0x4, scoped, tag = 'scoped memory for vit_forward.1']
    #allocation33 [shape = 'u8[512]{0}', space=vmem, size = 0x400, scoped, tag = 'input window, operand 24, single buffered']
    #allocation34 [shape = 'u8[1024]{0}', space=vmem, size = 0x400, scoped, tag = 'output window, operand 0, single buffered']
    %30 = vsyncpa [#allocation6], 0
    %31 = vsyncpa [#allocation9], 0
    %32 = vsyncpa [#allocation12], 0
    %33 = vsyncpa [#allocation32], 0
    %34 = vsyncpa [#allocation7], 0
    loop: start=0, step=1, limit=5
    $region2: #{vit_forward.1} parent=1 // loop_pre_header
      _
    $region3: #{vit_forward.1} parent=1 // loop_header
      %s36 = sphi 0, %s40
      %p37 = scmp.ge.s32.totalorder %s36, 5
      %s44 = sphi 0, %s44
      %s46 = sphi 0, %s44
      %s47 = sphi 0, %s46
      %s61 = sphi 0, %s47
      %s65 = sphi 0, %s65
      %s67 = sphi 0, %s65
      %s68 = sphi 0, %s67
      %s82 = sphi 0, %s68
      %s86 = sphi 0, %s86
      %s88 = sphi 0, %s86
      %s89 = sphi 0, %s88
      %s103 = sphi 0, %s89
      %s107 = sphi 0, %s107
      %s109 = sphi 0, %s107
      %s110 = sphi 0, %s109
      %s124 = sphi 0, %s110
      %s128 = sphi 0, %s128
      %s130 = sphi 0, %s128
      %s131 = sphi 0, %s130
      %s145 = sphi 0, %s131
      %s151 = sphi 0, %s153
      %s154 = sphi 0, %s151
      %s155 = sphi 0, %s154
      %s171 = sphi 0, %s155
      %s177 = sphi 0, %s179
      %s180 = sphi 0, %s177
      %s181 = sphi 0, %s180
      %s197 = sphi 0, %s181
      %s203 = sphi 0, %s205
      %s206 = sphi 0, %s203
      %s207 = sphi 0, %s206
      %s223 = sphi 0, %s207
      %s229 = sphi 0, %s231
      %s232 = sphi 0, %s229
      %s233 = sphi 0, %s232
      %s249 = sphi 0, %s233
      %s255 = sphi 0, %s257
      %s258 = sphi 0, %s255
      %s259 = sphi 0, %s258
      %s275 = sphi 0, %s259
      %s281 = sphi 0, %s283
      %s284 = sphi 0, %s281
      %s285 = sphi 0, %s284
      %s301 = sphi 0, %s285
      %s307 = sphi 0, %s309
      %s310 = sphi 0, %s307
      %s311 = sphi 0, %s310
      %s327 = sphi 0, %s311
      %s333 = sphi 0, %s335
      %s336 = sphi 0, %s333
      %s337 = sphi 0, %s336
      %s353 = sphi 0, %s337
      %s359 = sphi 0, %s361
      %s362 = sphi 0, %s359
      %s363 = sphi 0, %s362
      %s379 = sphi 0, %s363
      %s385 = sphi 0, %s387
      %s388 = sphi 0, %s385
      %s389 = sphi 0, %s388
      %s405 = sphi 0, %s389
      %s411 = sphi 0, %s413
      %s414 = sphi 0, %s411
      %s415 = sphi 0, %s414
      %s431 = sphi 0, %s415
      %s437 = sphi 0, %s439
      %s440 = sphi 0, %s437
      %s441 = sphi 0, %s440
      %s457 = sphi 0, %s441
      %s463 = sphi 0, %s465
      %s466 = sphi 0, %s463
      %s467 = sphi 0, %s466
      %s483 = sphi 0, %s467
      %s489 = sphi 0, %s491
      %s492 = sphi 0, %s489
      %s493 = sphi 0, %s492
      %s509 = sphi 0, %s493
      %s515 = sphi 0, %s517
      %s518 = sphi 0, %s515
      %s519 = sphi 0, %s518
      %s535 = sphi 0, %s519
      %s541 = sphi 0, %s543
      %s544 = sphi 0, %s541
      %s545 = sphi 0, %s544
      %s561 = sphi 0, %s545
      %s565 = sphi 0, %s565
      %s567 = sphi 0, %s565
      %s568 = sphi 0, %s567
      %s582 = sphi 0, %s568
      %s586 = sphi 0, %s586
      %s588 = sphi 0, %s586
      %s589 = sphi 0, %s588
      %s603 = sphi 0, %s589
      %s607 = sphi 0, %s607
      %s609 = sphi 0, %s607
      %s610 = sphi 0, %s609
      %s624 = sphi 0, %s610
      %s628 = sphi 0, %s628
      %s630 = sphi 0, %s628
      %s631 = sphi 0, %s630
      %s645 = sphi 0, %s631
      %s649 = sphi 0, %s649
      %s651 = sphi 0, %s649
      %s652 = sphi 0, %s651
      %s666 = sphi 0, %s652
    $region4: #{vit_forward.1} parent=1 // loop_header_branch
      %39 = sbr.rel (%p37) target = $region8
    $region5: #{vit_forward.1} parent=1 // loop_body
      %s41 = ssub.s32 %s36, 1
      %s42 = ssub.s32 %s36, 2
      %s43 = sadd.s32 %s36, 1
      %s45 = sadd.s32 %s44, 1
      %p48 = scmp.eq.s32.totalorder %s36, 2
      %p49 = scmp.ne.s32.totalorder %s44, %s46
      %p50 = scmp.eq.s32.totalorder %s36, 0
      %p51 = por %p49, %p50
      %p52 = scmp.ne.s32.totalorder %s44, %s46
      %p53 = scmp.eq.s32.totalorder %s41, 2
      %p54 = por %p52, %p53
      %p55 = scmp.ne.s32.totalorder %s46, %s47
      %p56 = scmp.eq.s32.totalorder %s41, 0
      %p57 = por %p55, %p56
      %p58 = scmp.ne.s32.totalorder %s46, %s47
      %p59 = scmp.eq.s32.totalorder %s42, 2
      %p60 = por %p58, %p59
      %p62 = scmp.ne.s32.totalorder %s47, %s61
      %p63 = scmp.eq.s32.totalorder %s42, 0
      %p64 = por %p62, %p63
      %s66 = sadd.s32 %s65, 1
      %p69 = scmp.eq.s32.totalorder %s36, 2
      %p70 = scmp.ne.s32.totalorder %s65, %s67
      %p71 = scmp.eq.s32.totalorder %s36, 0
      %p72 = por %p70, %p71
      %p73 = scmp.ne.s32.totalorder %s65, %s67
      %p74 = scmp.eq.s32.totalorder %s41, 2
      %p75 = por %p73, %p74
      %p76 = scmp.ne.s32.totalorder %s67, %s68
      %p77 = scmp.eq.s32.totalorder %s41, 0
      %p78 = por %p76, %p77
      %p79 = scmp.ne.s32.totalorder %s67, %s68
      %p80 = scmp.eq.s32.totalorder %s42, 2
      %p81 = por %p79, %p80
      %p83 = scmp.ne.s32.totalorder %s68, %s82
      %p84 = scmp.eq.s32.totalorder %s42, 0
      %p85 = por %p83, %p84
      %s87 = sadd.s32 %s86, 1
      %p90 = scmp.eq.s32.totalorder %s36, 2
      %p91 = scmp.ne.s32.totalorder %s86, %s88
      %p92 = scmp.eq.s32.totalorder %s36, 0
      %p93 = por %p91, %p92
      %p94 = scmp.ne.s32.totalorder %s86, %s88
      %p95 = scmp.eq.s32.totalorder %s41, 2
      %p96 = por %p94, %p95
      %p97 = scmp.ne.s32.totalorder %s88, %s89
      %p98 = scmp.eq.s32.totalorder %s41, 0
      %p99 = por %p97, %p98
      %p100 = scmp.ne.s32.totalorder %s88, %s89
      %p101 = scmp.eq.s32.totalorder %s42, 2
      %p102 = por %p100, %p101
      %p104 = scmp.ne.s32.totalorder %s89, %s103
      %p105 = scmp.eq.s32.totalorder %s42, 0
      %p106 = por %p104, %p105
      %s108 = sadd.s32 %s107, 1
      %p111 = scmp.eq.s32.totalorder %s36, 2
      %p112 = scmp.ne.s32.totalorder %s107, %s109
      %p113 = scmp.eq.s32.totalorder %s36, 0
      %p114 = por %p112, %p113
      %p115 = scmp.ne.s32.totalorder %s107, %s109
      %p116 = scmp.eq.s32.totalorder %s41, 2
      %p117 = por %p115, %p116
      %p118 = scmp.ne.s32.totalorder %s109, %s110
      %p119 = scmp.eq.s32.totalorder %s41, 0
      %p120 = por %p118, %p119
      %p121 = scmp.ne.s32.totalorder %s109, %s110
      %p122 = scmp.eq.s32.totalorder %s42, 2
      %p123 = por %p121, %p122
      %p125 = scmp.ne.s32.totalorder %s110, %s124
      %p126 = scmp.eq.s32.totalorder %s42, 0
      %p127 = por %p125, %p126
      %s129 = sadd.s32 %s128, 1
      %p132 = scmp.eq.s32.totalorder %s36, 2
      %p133 = scmp.ne.s32.totalorder %s128, %s130
      %p134 = scmp.eq.s32.totalorder %s36, 0
      %p135 = por %p133, %p134
      %p136 = scmp.ne.s32.totalorder %s128, %s130
      %p137 = scmp.eq.s32.totalorder %s41, 2
      %p138 = por %p136, %p137
      %p139 = scmp.ne.s32.totalorder %s130, %s131
      %p140 = scmp.eq.s32.totalorder %s41, 0
      %p141 = por %p139, %p140
      %p142 = scmp.ne.s32.totalorder %s130, %s131
      %p143 = scmp.eq.s32.totalorder %s42, 2
      %p144 = por %p142, %p143
      %p146 = scmp.ne.s32.totalorder %s131, %s145
      %p147 = scmp.eq.s32.totalorder %s42, 0
      %p148 = por %p146, %p147
      %s149 = ssub.s32 %s36, %s43
      %p150 = scmp.eq.s32.totalorder %s149, 0
      %s152 = sadd.s32 %s151, 1
      %s153 = scalar_select %p150, %s151, %s152
      %p156 = pneg %p150
      %p157 = scmp.eq.s32.totalorder %s36, 2
      %p158 = por %p156, %p157
      %p159 = scmp.ne.s32.totalorder %s151, %s154
      %p160 = scmp.eq.s32.totalorder %s36, 0
      %p161 = por %p159, %p160
      %p162 = scmp.ne.s32.totalorder %s151, %s154
      %p163 = scmp.eq.s32.totalorder %s41, 2
      %p164 = por %p162, %p163
      %p165 = scmp.ne.s32.totalorder %s154, %s155
      %p166 = scmp.eq.s32.totalorder %s41, 0
      %p167 = por %p165, %p166
      %p168 = scmp.ne.s32.totalorder %s154, %s155
      %p169 = scmp.eq.s32.totalorder %s42, 2
      %p170 = por %p168, %p169
      %p172 = scmp.ne.s32.totalorder %s155, %s171
      %p173 = scmp.eq.s32.totalorder %s42, 0
      %p174 = por %p172, %p173
      %s175 = ssub.s32 %s36, %s43
      %p176 = scmp.eq.s32.totalorder %s175, 0
      %s178 = sadd.s32 %s177, 1
      %s179 = scalar_select %p176, %s177, %s178
      %p182 = pneg %p176
      %p183 = scmp.eq.s32.totalorder %s36, 2
      %p184 = por %p182, %p183
      %p185 = scmp.ne.s32.totalorder %s177, %s180
      %p186 = scmp.eq.s32.totalorder %s36, 0
      %p187 = por %p185, %p186
      %p188 = scmp.ne.s32.totalorder %s177, %s180
      %p189 = scmp.eq.s32.totalorder %s41, 2
      %p190 = por %p188, %p189
      %p191 = scmp.ne.s32.totalorder %s180, %s181
      %p192 = scmp.eq.s32.totalorder %s41, 0
      %p193 = por %p191, %p192
      %p194 = scmp.ne.s32.totalorder %s180, %s181
      %p195 = scmp.eq.s32.totalorder %s42, 2
      %p196 = por %p194, %p195
      %p198 = scmp.ne.s32.totalorder %s181, %s197
      %p199 = scmp.eq.s32.totalorder %s42, 0
      %p200 = por %p198, %p199
      %s201 = ssub.s32 %s36, %s43
      %p202 = scmp.eq.s32.totalorder %s201, 0
      %s204 = sadd.s32 %s203, 1
      %s205 = scalar_select %p202, %s203, %s204
      %p208 = pneg %p202
      %p209 = scmp.eq.s32.totalorder %s36, 2
      %p210 = por %p208, %p209
      %p211 = scmp.ne.s32.totalorder %s203, %s206
      %p212 = scmp.eq.s32.totalorder %s36, 0
      %p213 = por %p211, %p212
      %p214 = scmp.ne.s32.totalorder %s203, %s206
      %p215 = scmp.eq.s32.totalorder %s41, 2
      %p216 = por %p214, %p215
      %p217 = scmp.ne.s32.totalorder %s206, %s207
      %p218 = scmp.eq.s32.totalorder %s41, 0
      %p219 = por %p217, %p218
      %p220 = scmp.ne.s32.totalorder %s206, %s207
      %p221 = scmp.eq.s32.totalorder %s42, 2
      %p222 = por %p220, %p221
      %p224 = scmp.ne.s32.totalorder %s207, %s223
      %p225 = scmp.eq.s32.totalorder %s42, 0
      %p226 = por %p224, %p225
      %s227 = ssub.s32 %s36, %s43
      %p228 = scmp.eq.s32.totalorder %s227, 0
      %s230 = sadd.s32 %s229, 1
      %s231 = scalar_select %p228, %s229, %s230
      %p234 = pneg %p228
      %p235 = scmp.eq.s32.totalorder %s36, 2
      %p236 = por %p234, %p235
      %p237 = scmp.ne.s32.totalorder %s229, %s232
      %p238 = scmp.eq.s32.totalorder %s36, 0
      %p239 = por %p237, %p238
      %p240 = scmp.ne.s32.totalorder %s229, %s232
      %p241 = scmp.eq.s32.totalorder %s41, 2
      %p242 = por %p240, %p241
      %p243 = scmp.ne.s32.totalorder %s232, %s233
      %p244 = scmp.eq.s32.totalorder %s41, 0
      %p245 = por %p243, %p244
      %p246 = scmp.ne.s32.totalorder %s232, %s233
      %p247 = scmp.eq.s32.totalorder %s42, 2
      %p248 = por %p246, %p247
      %p250 = scmp.ne.s32.totalorder %s233, %s249
      %p251 = scmp.eq.s32.totalorder %s42, 0
      %p252 = por %p250, %p251
      %s253 = ssub.s32 %s36, %s43
      %p254 = scmp.eq.s32.totalorder %s253, 0
      %s256 = sadd.s32 %s255, 1
      %s257 = scalar_select %p254, %s255, %s256
      %p260 = pneg %p254
      %p261 = scmp.eq.s32.totalorder %s36, 2
      %p262 = por %p260, %p261
      %p263 = scmp.ne.s32.totalorder %s255, %s258
      %p264 = scmp.eq.s32.totalorder %s36, 0
      %p265 = por %p263, %p264
      %p266 = scmp.ne.s32.totalorder %s255, %s258
      %p267 = scmp.eq.s32.totalorder %s41, 2
      %p268 = por %p266, %p267
      %p269 = scmp.ne.s32.totalorder %s258, %s259
      %p270 = scmp.eq.s32.totalorder %s41, 0
      %p271 = por %p269, %p270
      %p272 = scmp.ne.s32.totalorder %s258, %s259
      %p273 = scmp.eq.s32.totalorder %s42, 2
      %p274 = por %p272, %p273
      %p276 = scmp.ne.s32.totalorder %s259, %s275
      %p277 = scmp.eq.s32.totalorder %s42, 0
      %p278 = por %p276, %p277
      %s279 = ssub.s32 %s36, %s43
      %p280 = scmp.eq.s32.totalorder %s279, 0
      %s282 = sadd.s32 %s281, 1
      %s283 = scalar_select %p280, %s281, %s282
      %p286 = pneg %p280
      %p287 = scmp.eq.s32.totalorder %s36, 2
      %p288 = por %p286, %p287
      %p289 = scmp.ne.s32.totalorder %s281, %s284
      %p290 = scmp.eq.s32.totalorder %s36, 0
      %p291 = por %p289, %p290
      %p292 = scmp.ne.s32.totalorder %s281, %s284
      %p293 = scmp.eq.s32.totalorder %s41, 2
      %p294 = por %p292, %p293
      %p295 = scmp.ne.s32.totalorder %s284, %s285
      %p296 = scmp.eq.s32.totalorder %s41, 0
      %p297 = por %p295, %p296
      %p298 = scmp.ne.s32.totalorder %s284, %s285
      %p299 = scmp.eq.s32.totalorder %s42, 2
      %p300 = por %p298, %p299
      %p302 = scmp.ne.s32.totalorder %s285, %s301
      %p303 = scmp.eq.s32.totalorder %s42, 0
      %p304 = por %p302, %p303
      %s305 = ssub.s32 %s36, %s43
      %p306 = scmp.eq.s32.totalorder %s305, 0
      %s308 = sadd.s32 %s307, 1
      %s309 = scalar_select %p306, %s307, %s308
      %p312 = pneg %p306
      %p313 = scmp.eq.s32.totalorder %s36, 2
      %p314 = por %p312, %p313
      %p315 = scmp.ne.s32.totalorder %s307, %s310
      %p316 = scmp.eq.s32.totalorder %s36, 0
      %p317 = por %p315, %p316
      %p318 = scmp.ne.s32.totalorder %s307, %s310
      %p319 = scmp.eq.s32.totalorder %s41, 2
      %p320 = por %p318, %p319
      %p321 = scmp.ne.s32.totalorder %s310, %s311
      %p322 = scmp.eq.s32.totalorder %s41, 0
      %p323 = por %p321, %p322
      %p324 = scmp.ne.s32.totalorder %s310, %s311
      %p325 = scmp.eq.s32.totalorder %s42, 2
      %p326 = por %p324, %p325
      %p328 = scmp.ne.s32.totalorder %s311, %s327
      %p329 = scmp.eq.s32.totalorder %s42, 0
      %p330 = por %p328, %p329
      %s331 = ssub.s32 %s36, %s43
      %p332 = scmp.eq.s32.totalorder %s331, 0
      %s334 = sadd.s32 %s333, 1
      %s335 = scalar_select %p332, %s333, %s334
      %p338 = pneg %p332
      %p339 = scmp.eq.s32.totalorder %s36, 2
      %p340 = por %p338, %p339
      %p341 = scmp.ne.s32.totalorder %s333, %s336
      %p342 = scmp.eq.s32.totalorder %s36, 0
      %p343 = por %p341, %p342
      %p344 = scmp.ne.s32.totalorder %s333, %s336
      %p345 = scmp.eq.s32.totalorder %s41, 2
      %p346 = por %p344, %p345
      %p347 = scmp.ne.s32.totalorder %s336, %s337
      %p348 = scmp.eq.s32.totalorder %s41, 0
      %p349 = por %p347, %p348
      %p350 = scmp.ne.s32.totalorder %s336, %s337
      %p351 = scmp.eq.s32.totalorder %s42, 2
      %p352 = por %p350, %p351
      %p354 = scmp.ne.s32.totalorder %s337, %s353
      %p355 = scmp.eq.s32.totalorder %s42, 0
      %p356 = por %p354, %p355
      %s357 = ssub.s32 %s36, %s43
      %p358 = scmp.eq.s32.totalorder %s357, 0
      %s360 = sadd.s32 %s359, 1
      %s361 = scalar_select %p358, %s359, %s360
      %p364 = pneg %p358
      %p365 = scmp.eq.s32.totalorder %s36, 2
      %p366 = por %p364, %p365
      %p367 = scmp.ne.s32.totalorder %s359, %s362
      %p368 = scmp.eq.s32.totalorder %s36, 0
      %p369 = por %p367, %p368
      %p370 = scmp.ne.s32.totalorder %s359, %s362
      %p371 = scmp.eq.s32.totalorder %s41, 2
      %p372 = por %p370, %p371
      %p373 = scmp.ne.s32.totalorder %s362, %s363
      %p374 = scmp.eq.s32.totalorder %s41, 0
      %p375 = por %p373, %p374
      %p376 = scmp.ne.s32.totalorder %s362, %s363
      %p377 = scmp.eq.s32.totalorder %s42, 2
      %p378 = por %p376, %p377
      %p380 = scmp.ne.s32.totalorder %s363, %s379
      %p381 = scmp.eq.s32.totalorder %s42, 0
      %p382 = por %p380, %p381
      %s383 = ssub.s32 %s36, %s43
      %p384 = scmp.eq.s32.totalorder %s383, 0
      %s386 = sadd.s32 %s385, 1
      %s387 = scalar_select %p384, %s385, %s386
      %p390 = pneg %p384
      %p391 = scmp.eq.s32.totalorder %s36, 2
      %p392 = por %p390, %p391
      %p393 = scmp.ne.s32.totalorder %s385, %s388
      %p394 = scmp.eq.s32.totalorder %s36, 0
      %p395 = por %p393, %p394
      %p396 = scmp.ne.s32.totalorder %s385, %s388
      %p397 = scmp.eq.s32.totalorder %s41, 2
      %p398 = por %p396, %p397
      %p399 = scmp.ne.s32.totalorder %s388, %s389
      %p400 = scmp.eq.s32.totalorder %s41, 0
      %p401 = por %p399, %p400
      %p402 = scmp.ne.s32.totalorder %s388, %s389
      %p403 = scmp.eq.s32.totalorder %s42, 2
      %p404 = por %p402, %p403
      %p406 = scmp.ne.s32.totalorder %s389, %s405
      %p407 = scmp.eq.s32.totalorder %s42, 0
      %p408 = por %p406, %p407
      %s409 = ssub.s32 %s36, %s43
      %p410 = scmp.eq.s32.totalorder %s409, 0
      %s412 = sadd.s32 %s411, 1
      %s413 = scalar_select %p410, %s411, %s412
      %p416 = pneg %p410
      %p417 = scmp.eq.s32.totalorder %s36, 2
      %p418 = por %p416, %p417
      %p419 = scmp.ne.s32.totalorder %s411, %s414
      %p420 = scmp.eq.s32.totalorder %s36, 0
      %p421 = por %p419, %p420
      %p422 = scmp.ne.s32.totalorder %s411, %s414
      %p423 = scmp.eq.s32.totalorder %s41, 2
      %p424 = por %p422, %p423
      %p425 = scmp.ne.s32.totalorder %s414, %s415
      %p426 = scmp.eq.s32.totalorder %s41, 0
      %p427 = por %p425, %p426
      %p428 = scmp.ne.s32.totalorder %s414, %s415
      %p429 = scmp.eq.s32.totalorder %s42, 2
      %p430 = por %p428, %p429
      %p432 = scmp.ne.s32.totalorder %s415, %s431
      %p433 = scmp.eq.s32.totalorder %s42, 0
      %p434 = por %p432, %p433
      %s435 = ssub.s32 %s36, %s43
      %p436 = scmp.eq.s32.totalorder %s435, 0
      %s438 = sadd.s32 %s437, 1
      %s439 = scalar_select %p436, %s437, %s438
      %p442 = pneg %p436
      %p443 = scmp.eq.s32.totalorder %s36, 2
      %p444 = por %p442, %p443
      %p445 = scmp.ne.s32.totalorder %s437, %s440
      %p446 = scmp.eq.s32.totalorder %s36, 0
      %p447 = por %p445, %p446
      %p448 = scmp.ne.s32.totalorder %s437, %s440
      %p449 = scmp.eq.s32.totalorder %s41, 2
      %p450 = por %p448, %p449
      %p451 = scmp.ne.s32.totalorder %s440, %s441
      %p452 = scmp.eq.s32.totalorder %s41, 0
      %p453 = por %p451, %p452
      %p454 = scmp.ne.s32.totalorder %s440, %s441
      %p455 = scmp.eq.s32.totalorder %s42, 2
      %p456 = por %p454, %p455
      %p458 = scmp.ne.s32.totalorder %s441, %s457
      %p459 = scmp.eq.s32.totalorder %s42, 0
      %p460 = por %p458, %p459
      %s461 = ssub.s32 %s36, %s43
      %p462 = scmp.eq.s32.totalorder %s461, 0
      %s464 = sadd.s32 %s463, 1
      %s465 = scalar_select %p462, %s463, %s464
      %p468 = pneg %p462
      %p469 = scmp.eq.s32.totalorder %s36, 2
      %p470 = por %p468, %p469
      %p471 = scmp.ne.s32.totalorder %s463, %s466
      %p472 = scmp.eq.s32.totalorder %s36, 0
      %p473 = por %p471, %p472
      %p474 = scmp.ne.s32.totalorder %s463, %s466
      %p475 = scmp.eq.s32.totalorder %s41, 2
      %p476 = por %p474, %p475
      %p477 = scmp.ne.s32.totalorder %s466, %s467
      %p478 = scmp.eq.s32.totalorder %s41, 0
      %p479 = por %p477, %p478
      %p480 = scmp.ne.s32.totalorder %s466, %s467
      %p481 = scmp.eq.s32.totalorder %s42, 2
      %p482 = por %p480, %p481
      %p484 = scmp.ne.s32.totalorder %s467, %s483
      %p485 = scmp.eq.s32.totalorder %s42, 0
      %p486 = por %p484, %p485
      %s487 = ssub.s32 %s36, %s43
      %p488 = scmp.eq.s32.totalorder %s487, 0
      %s490 = sadd.s32 %s489, 1
      %s491 = scalar_select %p488, %s489, %s490
      %p494 = pneg %p488
      %p495 = scmp.eq.s32.totalorder %s36, 2
      %p496 = por %p494, %p495
      %p497 = scmp.ne.s32.totalorder %s489, %s492
      %p498 = scmp.eq.s32.totalorder %s36, 0
      %p499 = por %p497, %p498
      %p500 = scmp.ne.s32.totalorder %s489, %s492
      %p501 = scmp.eq.s32.totalorder %s41, 2
      %p502 = por %p500, %p501
      %p503 = scmp.ne.s32.totalorder %s492, %s493
      %p504 = scmp.eq.s32.totalorder %s41, 0
      %p505 = por %p503, %p504
      %p506 = scmp.ne.s32.totalorder %s492, %s493
      %p507 = scmp.eq.s32.totalorder %s42, 2
      %p508 = por %p506, %p507
      %p510 = scmp.ne.s32.totalorder %s493, %s509
      %p511 = scmp.eq.s32.totalorder %s42, 0
      %p512 = por %p510, %p511
      %s513 = ssub.s32 %s36, %s43
      %p514 = scmp.eq.s32.totalorder %s513, 0
      %s516 = sadd.s32 %s515, 1
      %s517 = scalar_select %p514, %s515, %s516
      %p520 = pneg %p514
      %p521 = scmp.eq.s32.totalorder %s36, 2
      %p522 = por %p520, %p521
      %p523 = scmp.ne.s32.totalorder %s515, %s518
      %p524 = scmp.eq.s32.totalorder %s36, 0
      %p525 = por %p523, %p524
      %p526 = scmp.ne.s32.totalorder %s515, %s518
      %p527 = scmp.eq.s32.totalorder %s41, 2
      %p528 = por %p526, %p527
      %p529 = scmp.ne.s32.totalorder %s518, %s519
      %p530 = scmp.eq.s32.totalorder %s41, 0
      %p531 = por %p529, %p530
      %p532 = scmp.ne.s32.totalorder %s518, %s519
      %p533 = scmp.eq.s32.totalorder %s42, 2
      %p534 = por %p532, %p533
      %p536 = scmp.ne.s32.totalorder %s519, %s535
      %p537 = scmp.eq.s32.totalorder %s42, 0
      %p538 = por %p536, %p537
      %s539 = ssub.s32 %s36, %s43
      %p540 = scmp.eq.s32.totalorder %s539, 0
      %s542 = sadd.s32 %s541, 1
      %s543 = scalar_select %p540, %s541, %s542
      %p546 = pneg %p540
      %p547 = scmp.eq.s32.totalorder %s36, 2
      %p548 = por %p546, %p547
      %p549 = scmp.ne.s32.totalorder %s541, %s544
      %p550 = scmp.eq.s32.totalorder %s36, 0
      %p551 = por %p549, %p550
      %p552 = scmp.ne.s32.totalorder %s541, %s544
      %p553 = scmp.eq.s32.totalorder %s41, 2
      %p554 = por %p552, %p553
      %p555 = scmp.ne.s32.totalorder %s544, %s545
      %p556 = scmp.eq.s32.totalorder %s41, 0
      %p557 = por %p555, %p556
      %p558 = scmp.ne.s32.totalorder %s544, %s545
      %p559 = scmp.eq.s32.totalorder %s42, 2
      %p560 = por %p558, %p559
      %p562 = scmp.ne.s32.totalorder %s545, %s561
      %p563 = scmp.eq.s32.totalorder %s42, 0
      %p564 = por %p562, %p563
      %s566 = sadd.s32 %s565, 1
      %p569 = scmp.eq.s32.totalorder %s36, 2
      %p570 = scmp.ne.s32.totalorder %s565, %s567
      %p571 = scmp.eq.s32.totalorder %s36, 0
      %p572 = por %p570, %p571
      %p573 = scmp.ne.s32.totalorder %s565, %s567
      %p574 = scmp.eq.s32.totalorder %s41, 2
      %p575 = por %p573, %p574
      %p576 = scmp.ne.s32.totalorder %s567, %s568
      %p577 = scmp.eq.s32.totalorder %s41, 0
      %p578 = por %p576, %p577
      %p579 = scmp.ne.s32.totalorder %s567, %s568
      %p580 = scmp.eq.s32.totalorder %s42, 2
      %p581 = por %p579, %p580
      %p583 = scmp.ne.s32.totalorder %s568, %s582
      %p584 = scmp.eq.s32.totalorder %s42, 0
      %p585 = por %p583, %p584
      %s587 = sadd.s32 %s586, 1
      %p590 = scmp.eq.s32.totalorder %s36, 2
      %p591 = scmp.ne.s32.totalorder %s586, %s588
      %p592 = scmp.eq.s32.totalorder %s36, 0
      %p593 = por %p591, %p592
      %p594 = scmp.ne.s32.totalorder %s586, %s588
      %p595 = scmp.eq.s32.totalorder %s41, 2
      %p596 = por %p594, %p595
      %p597 = scmp.ne.s32.totalorder %s588, %s589
      %p598 = scmp.eq.s32.totalorder %s41, 0
      %p599 = por %p597, %p598
      %p600 = scmp.ne.s32.totalorder %s588, %s589
      %p601 = scmp.eq.s32.totalorder %s42, 2
      %p602 = por %p600, %p601
      %p604 = scmp.ne.s32.totalorder %s589, %s603
      %p605 = scmp.eq.s32.totalorder %s42, 0
      %p606 = por %p604, %p605
      %s608 = sadd.s32 %s607, 1
      %p611 = scmp.eq.s32.totalorder %s36, 2
      %p612 = scmp.ne.s32.totalorder %s607, %s609
      %p613 = scmp.eq.s32.totalorder %s36, 0
      %p614 = por %p612, %p613
      %p615 = scmp.ne.s32.totalorder %s607, %s609
      %p616 = scmp.eq.s32.totalorder %s41, 2
      %p617 = por %p615, %p616
      %p618 = scmp.ne.s32.totalorder %s609, %s610
      %p619 = scmp.eq.s32.totalorder %s41, 0
      %p620 = por %p618, %p619
      %p621 = scmp.ne.s32.totalorder %s609, %s610
      %p622 = scmp.eq.s32.totalorder %s42, 2
      %p623 = por %p621, %p622
      %p625 = scmp.ne.s32.totalorder %s610, %s624
      %p626 = scmp.eq.s32.totalorder %s42, 0
      %p627 = por %p625, %p626
      %s629 = sadd.s32 %s628, 1
      %p632 = scmp.eq.s32.totalorder %s36, 2
      %p633 = scmp.ne.s32.totalorder %s628, %s630
      %p634 = scmp.eq.s32.totalorder %s36, 0
      %p635 = por %p633, %p634
      %p636 = scmp.ne.s32.totalorder %s628, %s630
      %p637 = scmp.eq.s32.totalorder %s41, 2
      %p638 = por %p636, %p637
      %p639 = scmp.ne.s32.totalorder %s630, %s631
      %p640 = scmp.eq.s32.totalorder %s41, 0
      %p641 = por %p639, %p640
      %p642 = scmp.ne.s32.totalorder %s630, %s631
      %p643 = scmp.eq.s32.totalorder %s42, 2
      %p644 = por %p642, %p643
      %p646 = scmp.ne.s32.totalorder %s631, %s645
      %p647 = scmp.eq.s32.totalorder %s42, 0
      %p648 = por %p646, %p647
      %s650 = sadd.s32 %s649, 1
      %p653 = scmp.eq.s32.totalorder %s36, 2
      %p654 = scmp.ne.s32.totalorder %s649, %s651
      %p655 = scmp.eq.s32.totalorder %s36, 0
      %p656 = por %p654, %p655
      %p657 = scmp.ne.s32.totalorder %s649, %s651
      %p658 = scmp.eq.s32.totalorder %s41, 2
      %p659 = por %p657, %p658
      %p660 = scmp.ne.s32.totalorder %s651, %s652
      %p661 = scmp.eq.s32.totalorder %s41, 0
      %p662 = por %p660, %p661
      %p663 = scmp.ne.s32.totalorder %s651, %s652
      %p664 = scmp.eq.s32.totalorder %s42, 2
      %p665 = por %p663, %p664
      %p667 = scmp.ne.s32.totalorder %s652, %s666
      %p668 = scmp.eq.s32.totalorder %s42, 0
      %p669 = por %p667, %p668
      %p670 = scmp.le.s32.totalorder 1, %s36
      %p671 = scmp.lt.s32.totalorder %s36, 4
      %p672 = pnand %p670, %p671
      %p673 = pneg %p672
      // Predicated region
      $region9: #{vit_forward.1} parent=5 // pred_check
        _
      $region10: #{vit_forward.1} parent=5 // pred_check_branch
        %675 = sbr.rel (%p672) target = $region12
      $region11: #{vit_forward.1} parent=5 // pred_region
        %s676 = ssub.s32 %s36, 1
        // Predicated region
        $region13: #{vit_forward.1} parent=11 // pred_check
          %p677 = pneg %p57
        $region14: #{vit_forward.1} parent=11 // pred_check_branch
          %679 = sbr.rel (%p677) target = $region16
        $region15: #{vit_forward.1} parent=11 // pred_region
          _
        $region16: #{vit_forward.1} parent=11 // pred_fallthru
          _
        // Predicated region
        $region17: #{vit_forward.1} parent=11 // pred_check
          %p680 = pneg %p78
        $region18: #{vit_forward.1} parent=11 // pred_check_branch
          %682 = sbr.rel (%p680) target = $region20
        $region19: #{vit_forward.1} parent=11 // pred_region
          %s684 = ssub.s32 49152, 49152
          %685 = vsyncadd [#allocation6], %s684
          %s686 = sshll.u32 [#allocation5], 4
          %s687 = int_to_ptr.vmem [resolvable:$true] %s686
          %692 = dma.hbm_to_vmem [thread:$0]  %s1, 49152, %s687, [#allocation6], 128, 128, 8
        $region20: #{vit_forward.1} parent=11 // pred_fallthru
          _
        // Predicated region
        $region21: #{vit_forward.1} parent=11 // pred_check
          %p693 = pneg %p99
        $region22: #{vit_forward.1} parent=11 // pred_check_branch
          %695 = sbr.rel (%p693) target = $region24
        $region23: #{vit_forward.1} parent=11 // pred_region
          %s697 = ssub.s32 32, 32
          %698 = vsyncadd [#allocation9], %s697
          %s700 = sshll.u32 [#allocation8], 4
          %s701 = int_to_ptr.vmem [resolvable:$true] %s700
          %703 = dma.hbm_to_vmem [thread:$0]  %s2, 32, %s701, [#allocation9]
        $region24: #{vit_forward.1} parent=11 // pred_fallthru
          _
        // Predicated region
        $region25: #{vit_forward.1} parent=11 // pred_check
          %p704 = pneg %p120
        $region26: #{vit_forward.1} parent=11 // pred_check_branch
          %706 = sbr.rel (%p704) target = $region28
        $region27: #{vit_forward.1} parent=11 // pred_region
          %s708 = ssub.s32 32, 32
          %709 = vsyncadd [#allocation9], %s708
          %s711 = sshll.u32 [#allocation10], 4
          %s712 = int_to_ptr.vmem [resolvable:$true] %s711
          %714 = dma.hbm_to_vmem [thread:$0]  %s3, 32, %s712, [#allocation9]
        $region28: #{vit_forward.1} parent=11 // pred_fallthru
          _
        // Predicated region
        $region29: #{vit_forward.1} parent=11 // pred_check
          %p715 = pneg %p141
        $region30: #{vit_forward.1} parent=11 // pred_check_branch
          %717 = sbr.rel (%p715) target = $region32
        $region31: #{vit_forward.1} parent=11 // pred_region
          %s719 = ssub.s32 64, 64
          %720 = vsyncadd [#allocation12], %s719
          %s722 = sshll.u32 [#allocation11], 4
          %s723 = int_to_ptr.vmem [resolvable:$true] %s722
          %725 = dma.hbm_to_vmem [thread:$0]  %s4, 64, %s723, [#allocation12]
        $region32: #{vit_forward.1} parent=11 // pred_fallthru
          _
        // Predicated region
        $region33: #{vit_forward.1} parent=11 // pred_check
          %p726 = pneg %p578
        $region34: #{vit_forward.1} parent=11 // pred_check_branch
          %728 = sbr.rel (%p726) target = $region36
        $region35: #{vit_forward.1} parent=11 // pred_region
          %s730 = ssub.s32 32, 32
          %731 = vsyncadd [#allocation9], %s730
          %s733 = sshll.u32 [#allocation29], 4
          %s734 = int_to_ptr.vmem [resolvable:$true] %s733
          %736 = dma.hbm_to_vmem [thread:$0]  %s21, 32, %s734, [#allocation9]
        $region36: #{vit_forward.1} parent=11 // pred_fallthru
          _
        // Predicated region
        $region37: #{vit_forward.1} parent=11 // pred_check
          %p737 = pneg %p599
        $region38: #{vit_forward.1} parent=11 // pred_check_branch
          %739 = sbr.rel (%p737) target = $region40
        $region39: #{vit_forward.1} parent=11 // pred_region
          %s741 = ssub.s32 32, 32
          %742 = vsyncadd [#allocation12], %s741
          %s744 = sshll.u32 [#allocation30], 4
          %s745 = int_to_ptr.vmem [resolvable:$true] %s744
          %747 = dma.hbm_to_vmem [thread:$0]  %s22, 32, %s745, [#allocation12]
        $region40: #{vit_forward.1} parent=11 // pred_fallthru
          _
        // Predicated region
        $region41: #{vit_forward.1} parent=11 // pred_check
          %p748 = pneg %p620
        $region42: #{vit_forward.1} parent=11 // pred_check_branch
          %750 = sbr.rel (%p748) target = $region44
        $region43: #{vit_forward.1} parent=11 // pred_region
          %s752 = ssub.s32 2048, 2048
          %753 = vsyncadd [#allocation32], %s752
          %s754 = sshll.u32 [#allocation31], 4
          %s755 = int_to_ptr.vmem [resolvable:$true] %s754
          %760 = dma.hbm_to_vmem [thread:$0]  %s23, 2048, %s755, [#allocation32], 64, 64, 4
        $region44: #{vit_forward.1} parent=11 // pred_fallthru
          _
        // Predicated region
        $region45: #{vit_forward.1} parent=11 // pred_check
          %p761 = pneg %p641
        $region46: #{vit_forward.1} parent=11 // pred_check_branch
          %763 = sbr.rel (%p761) target = $region48
        $region47: #{vit_forward.1} parent=11 // pred_region
          %s765 = ssub.s32 16, 16
          %766 = vsyncadd [#allocation32], %s765
          %s768 = sshll.u32 [#allocation33], 4
          %s769 = int_to_ptr.vmem [resolvable:$true] %s768
          %771 = dma.hbm_to_vmem [thread:$0]  %s24, 16, %s769, [#allocation32]
        $region48: #{vit_forward.1} parent=11 // pred_fallthru
          _
      $region12: #{vit_forward.1} parent=5 // pred_fallthru
        _
      %p772 = scmp.lt.s32.totalorder %s36, 3
      // Predicated region
      $region49: #{vit_forward.1} parent=5 // pred_check
        %p773 = pneg %p772
      $region50: #{vit_forward.1} parent=5 // pred_check_branch
        %775 = sbr.rel (%p773) target = $region52
      $region51: #{vit_forward.1} parent=5 // pred_region
        // Predicated region
        $region53: #{vit_forward.1} parent=51 // pred_check
          %p776 = pneg %p161
        $region54: #{vit_forward.1} parent=51 // pred_check_branch
          %778 = sbr.rel (%p776) target = $region56
        $region55: #{vit_forward.1} parent=51 // pred_region
          %s779 = sand.u32 %s36, 1
          %s780 = scalar_lea.sflag [#allocation6], %s779
          %s781 = sand.u32 %s151, 1
          %s782 = smul.addr %s781, 2
          %s783 = scalar_lea.vmem [#allocation13], %s782
          %s785 = ssub.s32 32, 32
          %786 = vsyncadd %s780, %s785
          %s787 = smul.addr %s36, 2
          %s788 = smul.addr %s787, 16
          %s789 = scalar_lea.hbm %s5, %s788
          %s791 = sshll.u32 %s783, 4
          %s792 = int_to_ptr.vmem [resolvable:$true] %s791
          %794 = dma.hbm_to_vmem [thread:$0]  %s789, 32, %s792, %s780
        $region56: #{vit_forward.1} parent=51 // pred_fallthru
          _
        // Predicated region
        $region57: #{vit_forward.1} parent=51 // pred_check
          %p795 = pneg %p187
        $region58: #{vit_forward.1} parent=51 // pred_check_branch
          %797 = sbr.rel (%p795) target = $region60
        $region59: #{vit_forward.1} parent=51 // pred_region
          %s798 = sand.u32 %s36, 1
          %s799 = scalar_lea.sflag [#allocation6], %s798
          %s800 = sand.u32 %s177, 1
          %s801 = smul.addr %s800, 2
          %s802 = scalar_lea.vmem [#allocation14], %s801
          %s804 = ssub.s32 32, 32
          %805 = vsyncadd %s799, %s804
          %s806 = smul.addr %s36, 2
          %s807 = smul.addr %s806, 16
          %s808 = scalar_lea.hbm %s6, %s807
          %s810 = sshll.u32 %s802, 4
          %s811 = int_to_ptr.vmem [resolvable:$true] %s810
          %813 = dma.hbm_to_vmem [thread:$0]  %s808, 32, %s811, %s799
        $region60: #{vit_forward.1} parent=51 // pred_fallthru
          _
        // Predicated region
        $region61: #{vit_forward.1} parent=51 // pred_check
          %p814 = pneg %p213
        $region62: #{vit_forward.1} parent=51 // pred_check_branch
          %816 = sbr.rel (%p814) target = $region64
        $region63: #{vit_forward.1} parent=51 // pred_region
          %s817 = sand.u32 %s36, 1
          %s818 = scalar_lea.sflag [#allocation6], %s817
          %s819 = sand.u32 %s203, 1
          %s820 = smul.addr %s819, 384
          %s821 = scalar_lea.vmem [#allocation15], %s820
          %s823 = ssub.s32 6144, 6144
          %824 = vsyncadd %s818, %s823
          %s825 = smul.addr %s36, 48
          %s826 = smul.addr %s825, 128
          %s827 = scalar_lea.hbm %s7, %s826
          %s828 = sshll.u32 %s821, 4
          %s829 = int_to_ptr.vmem [resolvable:$true] %s828
          %834 = dma.hbm_to_vmem [thread:$0]  %s827, 6144, %s829, %s818, 768, 768, 48
        $region64: #{vit_forward.1} parent=51 // pred_fallthru
          _
        // Predicated region
        $region65: #{vit_forward.1} parent=51 // pred_check
          %p835 = pneg %p239
        $region66: #{vit_forward.1} parent=51 // pred_check_branch
          %837 = sbr.rel (%p835) target = $region68
        $region67: #{vit_forward.1} parent=51 // pred_region
          %s838 = sand.u32 %s36, 1
          %s839 = scalar_lea.sflag [#allocation6], %s838
          %s840 = sand.u32 %s229, 1
          %s841 = smul.addr %s840, 6
          %s842 = scalar_lea.vmem [#allocation16], %s841
          %s844 = ssub.s32 96, 96
          %845 = vsyncadd %s839, %s844
          %s846 = smul.addr %s36, 6
          %s847 = smul.addr %s846, 16
          %s848 = scalar_lea.hbm %s8, %s847
          %s850 = sshll.u32 %s842, 4
          %s851 = int_to_ptr.vmem [resolvable:$true] %s850
          %853 = dma.hbm_to_vmem [thread:$0]  %s848, 96, %s851, %s839
        $region68: #{vit_forward.1} parent=51 // pred_fallthru
          _
        // Predicated region
        $region69: #{vit_forward.1} parent=51 // pred_check
          %p854 = pneg %p265
        $region70: #{vit_forward.1} parent=51 // pred_check_branch
          %856 = sbr.rel (%p854) target = $region72
        $region71: #{vit_forward.1} parent=51 // pred_region
          %s857 = sand.u32 %s36, 1
          %s858 = scalar_lea.sflag [#allocation6], %s857
          %s859 = sand.u32 %s255, 1
          %s860 = smul.addr %s859, 6
          %s861 = scalar_lea.vmem [#allocation17], %s860
          %s863 = ssub.s32 96, 96
          %864 = vsyncadd %s858, %s863
          %s865 = smul.addr %s36, 6
          %s866 = smul.addr %s865, 16
          %s867 = scalar_lea.hbm %s9, %s866
          %s869 = sshll.u32 %s861, 4
          %s870 = int_to_ptr.vmem [resolvable:$true] %s869
          %872 = dma.hbm_to_vmem [thread:$0]  %s867, 96, %s870, %s858
        $region72: #{vit_forward.1} parent=51 // pred_fallthru
          _
        // Predicated region
        $region73: #{vit_forward.1} parent=51 // pred_check
          %p873 = pneg %p291
        $region74: #{vit_forward.1} parent=51 // pred_check_branch
          %875 = sbr.rel (%p873) target = $region76
        $region75: #{vit_forward.1} parent=51 // pred_region
          %s876 = sand.u32 %s36, 1
          %s877 = scalar_lea.sflag [#allocation6], %s876
          %s878 = sand.u32 %s281, 1
          %s879 = smul.addr %s878, 128
          %s880 = scalar_lea.vmem [#allocation18], %s879
          %s882 = ssub.s32 2048, 2048
          %883 = vsyncadd %s877, %s882
          %s884 = smul.addr %s36, 16
          %s885 = smul.addr %s884, 128
          %s886 = scalar_lea.hbm %s10, %s885
          %s887 = sshll.u32 %s880, 4
          %s888 = int_to_ptr.vmem [resolvable:$true] %s887
          %893 = dma.hbm_to_vmem [thread:$0]  %s886, 2048, %s888, %s877, 256, 256, 16
        $region76: #{vit_forward.1} parent=51 // pred_fallthru
          _
        // Predicated region
        $region77: #{vit_forward.1} parent=51 // pred_check
          %p894 = pneg %p317
        $region78: #{vit_forward.1} parent=51 // pred_check_branch
          %896 = sbr.rel (%p894) target = $region80
        $region79: #{vit_forward.1} parent=51 // pred_region
          %s897 = sand.u32 %s36, 1
          %s898 = scalar_lea.sflag [#allocation6], %s897
          %s899 = sand.u32 %s307, 1
          %s900 = smul.addr %s899, 2
          %s901 = scalar_lea.vmem [#allocation19], %s900
          %s903 = ssub.s32 32, 32
          %904 = vsyncadd %s898, %s903
          %s905 = smul.addr %s36, 2
          %s906 = smul.addr %s905, 16
          %s907 = scalar_lea.hbm %s11, %s906
          %s909 = sshll.u32 %s901, 4
          %s910 = int_to_ptr.vmem [resolvable:$true] %s909
          %912 = dma.hbm_to_vmem [thread:$0]  %s907, 32, %s910, %s898
        $region80: #{vit_forward.1} parent=51 // pred_fallthru
          _
        // Predicated region
        $region81: #{vit_forward.1} parent=51 // pred_check
          %p913 = pneg %p343
        $region82: #{vit_forward.1} parent=51 // pred_check_branch
          %915 = sbr.rel (%p913) target = $region84
        $region83: #{vit_forward.1} parent=51 // pred_region
          %s916 = sand.u32 %s36, 1
          %s917 = scalar_lea.sflag [#allocation6], %s916
          %s918 = sand.u32 %s333, 1
          %s919 = smul.addr %s918, 2
          %s920 = scalar_lea.vmem [#allocation20], %s919
          %s922 = ssub.s32 32, 32
          %923 = vsyncadd %s917, %s922
          %s924 = smul.addr %s36, 2
          %s925 = smul.addr %s924, 16
          %s926 = scalar_lea.hbm %s12, %s925
          %s928 = sshll.u32 %s920, 4
          %s929 = int_to_ptr.vmem [resolvable:$true] %s928
          %931 = dma.hbm_to_vmem [thread:$0]  %s926, 32, %s929, %s917
        $region84: #{vit_forward.1} parent=51 // pred_fallthru
          _
        // Predicated region
        $region85: #{vit_forward.1} parent=51 // pred_check
          %p932 = pneg %p369
        $region86: #{vit_forward.1} parent=51 // pred_check_branch
          %934 = sbr.rel (%p932) target = $region88
        $region87: #{vit_forward.1} parent=51 // pred_region
          %s935 = sand.u32 %s36, 1
          %s936 = scalar_lea.sflag [#allocation6], %s935
          %s937 = sand.u32 %s359, 1
          %s938 = smul.addr %s937, 2
          %s939 = scalar_lea.vmem [#allocation21], %s938
          %s941 = ssub.s32 32, 32
          %942 = vsyncadd %s936, %s941
          %s943 = smul.addr %s36, 2
          %s944 = smul.addr %s943, 16
          %s945 = scalar_lea.hbm %s13, %s944
          %s947 = sshll.u32 %s939, 4
          %s948 = int_to_ptr.vmem [resolvable:$true] %s947
          %950 = dma.hbm_to_vmem [thread:$0]  %s945, 32, %s948, %s936
        $region88: #{vit_forward.1} parent=51 // pred_fallthru
          _
        // Predicated region
        $region89: #{vit_forward.1} parent=51 // pred_check
          %p951 = pneg %p395
        $region90: #{vit_forward.1} parent=51 // pred_check_branch
          %953 = sbr.rel (%p951) target = $region92
        $region91: #{vit_forward.1} parent=51 // pred_region
          %s954 = sand.u32 %s36, 1
          %s955 = scalar_lea.sflag [#allocation6], %s954
          %s956 = sand.u32 %s385, 1
          %s957 = smul.addr %s956, 2
          %s958 = scalar_lea.vmem [#allocation22], %s957
          %s960 = ssub.s32 32, 32
          %961 = vsyncadd %s955, %s960
          %s962 = smul.addr %s36, 2
          %s963 = smul.addr %s962, 16
          %s964 = scalar_lea.hbm %s14, %s963
          %s966 = sshll.u32 %s958, 4
          %s967 = int_to_ptr.vmem [resolvable:$true] %s966
          %969 = dma.hbm_to_vmem [thread:$0]  %s964, 32, %s967, %s955
        $region92: #{vit_forward.1} parent=51 // pred_fallthru
          _
        // Predicated region
        $region93: #{vit_forward.1} parent=51 // pred_check
          %p970 = pneg %p421
        $region94: #{vit_forward.1} parent=51 // pred_check_branch
          %972 = sbr.rel (%p970) target = $region96
        $region95: #{vit_forward.1} parent=51 // pred_region
          %s973 = sand.u32 %s36, 1
          %s974 = scalar_lea.sflag [#allocation6], %s973
          %s975 = sand.u32 %s411, 1
          %s976 = smul.addr %s975, 512
          %s977 = scalar_lea.vmem [#allocation23], %s976
          %s979 = ssub.s32 8192, 8192
          %980 = vsyncadd %s974, %s979
          %s981 = smul.addr %s36, 64
          %s982 = smul.addr %s981, 128
          %s983 = scalar_lea.hbm %s15, %s982
          %s984 = sshll.u32 %s977, 4
          %s985 = int_to_ptr.vmem [resolvable:$true] %s984
          %990 = dma.hbm_to_vmem [thread:$0]  %s983, 8192, %s985, %s974, 1024, 1024, 64
        $region96: #{vit_forward.1} parent=51 // pred_fallthru
          _
        // Predicated region
        $region97: #{vit_forward.1} parent=51 // pred_check
          %p991 = pneg %p447
        $region98: #{vit_forward.1} parent=51 // pred_check_branch
          %993 = sbr.rel (%p991) target = $region100
        $region99: #{vit_forward.1} parent=51 // pred_region
          %s994 = sand.u32 %s36, 1
          %s995 = scalar_lea.sflag [#allocation6], %s994
          %s996 = sand.u32 %s437, 1
          %s997 = smul.addr %s996, 8
          %s998 = scalar_lea.vmem [#allocation24], %s997
          %s1000 = ssub.s32 128, 128
          %1001 = vsyncadd %s995, %s1000
          %s1002 = smul.addr %s36, 8
          %s1003 = smul.addr %s1002, 16
          %s1004 = scalar_lea.hbm %s16, %s1003
          %s1006 = sshll.u32 %s998, 4
          %s1007 = int_to_ptr.vmem [resolvable:$true] %s1006
          %1009 = dma.hbm_to_vmem [thread:$0]  %s1004, 128, %s1007, %s995
        $region100: #{vit_forward.1} parent=51 // pred_fallthru
          _
        // Predicated region
        $region101: #{vit_forward.1} parent=51 // pred_check
          %p1010 = pneg %p473
        $region102: #{vit_forward.1} parent=51 // pred_check_branch
          %1012 = sbr.rel (%p1010) target = $region104
        $region103: #{vit_forward.1} parent=51 // pred_region
          %s1013 = sand.u32 %s36, 1
          %s1014 = scalar_lea.sflag [#allocation6], %s1013
          %s1015 = sand.u32 %s463, 1
          %s1016 = smul.addr %s1015, 8
          %s1017 = scalar_lea.vmem [#allocation25], %s1016
          %s1019 = ssub.s32 128, 128
          %1020 = vsyncadd %s1014, %s1019
          %s1021 = smul.addr %s36, 8
          %s1022 = smul.addr %s1021, 16
          %s1023 = scalar_lea.hbm %s17, %s1022
          %s1025 = sshll.u32 %s1017, 4
          %s1026 = int_to_ptr.vmem [resolvable:$true] %s1025
          %1028 = dma.hbm_to_vmem [thread:$0]  %s1023, 128, %s1026, %s1014
        $region104: #{vit_forward.1} parent=51 // pred_fallthru
          _
        // Predicated region
        $region105: #{vit_forward.1} parent=51 // pred_check
          %p1029 = pneg %p499
        $region106: #{vit_forward.1} parent=51 // pred_check_branch
          %1031 = sbr.rel (%p1029) target = $region108
        $region107: #{vit_forward.1} parent=51 // pred_region
          %s1032 = sand.u32 %s36, 1
          %s1033 = scalar_lea.sflag [#allocation6], %s1032
          %s1034 = sand.u32 %s489, 1
          %s1035 = smul.addr %s1034, 512
          %s1036 = scalar_lea.vmem [#allocation26], %s1035
          %s1038 = ssub.s32 8192, 8192
          %1039 = vsyncadd %s1033, %s1038
          %s1040 = smul.addr %s36, 64
          %s1041 = smul.addr %s1040, 128
          %s1042 = scalar_lea.hbm %s18, %s1041
          %s1043 = sshll.u32 %s1036, 4
          %s1044 = int_to_ptr.vmem [resolvable:$true] %s1043
          %1049 = dma.hbm_to_vmem [thread:$0]  %s1042, 8192, %s1044, %s1033, 256, 256, 16
        $region108: #{vit_forward.1} parent=51 // pred_fallthru
          _
        // Predicated region
        $region109: #{vit_forward.1} parent=51 // pred_check
          %p1050 = pneg %p525
        $region110: #{vit_forward.1} parent=51 // pred_check_branch
          %1052 = sbr.rel (%p1050) target = $region112
        $region111: #{vit_forward.1} parent=51 // pred_region
          %s1053 = sand.u32 %s36, 1
          %s1054 = scalar_lea.sflag [#allocation6], %s1053
          %s1055 = sand.u32 %s515, 1
          %s1056 = smul.addr %s1055, 2
          %s1057 = scalar_lea.vmem [#allocation27], %s1056
          %s1059 = ssub.s32 32, 32
          %1060 = vsyncadd %s1054, %s1059
          %s1061 = smul.addr %s36, 2
          %s1062 = smul.addr %s1061, 16
          %s1063 = scalar_lea.hbm %s19, %s1062
          %s1065 = sshll.u32 %s1057, 4
          %s1066 = int_to_ptr.vmem [resolvable:$true] %s1065
          %1068 = dma.hbm_to_vmem [thread:$0]  %s1063, 32, %s1066, %s1054
        $region112: #{vit_forward.1} parent=51 // pred_fallthru
          _
        // Predicated region
        $region113: #{vit_forward.1} parent=51 // pred_check
          %p1069 = pneg %p551
        $region114: #{vit_forward.1} parent=51 // pred_check_branch
          %1071 = sbr.rel (%p1069) target = $region116
        $region115: #{vit_forward.1} parent=51 // pred_region
          %s1072 = sand.u32 %s36, 1
          %s1073 = scalar_lea.sflag [#allocation6], %s1072
          %s1074 = sand.u32 %s541, 1
          %s1075 = smul.addr %s1074, 2
          %s1076 = scalar_lea.vmem [#allocation28], %s1075
          %s1078 = ssub.s32 32, 32
          %1079 = vsyncadd %s1073, %s1078
          %s1080 = smul.addr %s36, 2
          %s1081 = smul.addr %s1080, 16
          %s1082 = scalar_lea.hbm %s20, %s1081
          %s1084 = sshll.u32 %s1076, 4
          %s1085 = int_to_ptr.vmem [resolvable:$true] %s1084
          %1087 = dma.hbm_to_vmem [thread:$0]  %s1082, 32, %s1085, %s1073
        $region116: #{vit_forward.1} parent=51 // pred_fallthru
          _
      $region52: #{vit_forward.1} parent=5 // pred_fallthru
        _
      %p1088 = scmp.le.s32.totalorder 1, %s36
      %p1089 = scmp.lt.s32.totalorder %s36, 4
      %p1090 = pnand %p1088, %p1089
      %p1091 = pneg %p1090
      // Predicated region
      $region117: #{vit_forward.1} parent=5 // pred_check
        _
      $region118: #{vit_forward.1} parent=5 // pred_check_branch
        %1093 = sbr.rel (%p1090) target = $region120
      $region119: #{vit_forward.1} parent=5 // pred_region
        %s1094 = ssub.s32 %s36, 1
        // Predicated region
        $region121: #{vit_forward.1} parent=119 // pred_check
          %p1095 = pneg %p78
        $region122: #{vit_forward.1} parent=119 // pred_check_branch
          %1097 = sbr.rel (%p1095) target = $region124
        $region123: #{vit_forward.1} parent=119 // pred_region
          %1098 = dma.done [#allocation6], 49152
        $region124: #{vit_forward.1} parent=119 // pred_fallthru
          _
        // Predicated region
        $region125: #{vit_forward.1} parent=119 // pred_check
          %p1099 = pneg %p99
        $region126: #{vit_forward.1} parent=119 // pred_check_branch
          %1101 = sbr.rel (%p1099) target = $region128
        $region127: #{vit_forward.1} parent=119 // pred_region
          %1102 = dma.done [#allocation9], 32
        $region128: #{vit_forward.1} parent=119 // pred_fallthru
          _
        // Predicated region
        $region129: #{vit_forward.1} parent=119 // pred_check
          %p1103 = pneg %p120
        $region130: #{vit_forward.1} parent=119 // pred_check_branch
          %1105 = sbr.rel (%p1103) target = $region132
        $region131: #{vit_forward.1} parent=119 // pred_region
          %1106 = dma.done [#allocation9], 32
        $region132: #{vit_forward.1} parent=119 // pred_fallthru
          _
        // Predicated region
        $region133: #{vit_forward.1} parent=119 // pred_check
          %p1107 = pneg %p141
        $region134: #{vit_forward.1} parent=119 // pred_check_branch
          %1109 = sbr.rel (%p1107) target = $region136
        $region135: #{vit_forward.1} parent=119 // pred_region
          %1110 = dma.done [#allocation12], 64
        $region136: #{vit_forward.1} parent=119 // pred_fallthru
          _
        %s1111 = sand.u32 %s41, 1
        %s1112 = scalar_lea.sflag [#allocation6], %s1111
        %s1113 = sand.u32 %s154, 1
        %s1114 = smul.addr %s1113, 2
        %s1115 = scalar_lea.vmem [#allocation13], %s1114
        // Predicated region
        $region137: #{vit_forward.1} parent=119 // pred_check
          %p1116 = pneg %p167
        $region138: #{vit_forward.1} parent=119 // pred_check_branch
          %1118 = sbr.rel (%p1116) target = $region140
        $region139: #{vit_forward.1} parent=119 // pred_region
          %1119 = dma.done %s1112, 32
        $region140: #{vit_forward.1} parent=119 // pred_fallthru
          _
        %s1120 = sand.u32 %s41, 1
        %s1121 = scalar_lea.sflag [#allocation6], %s1120
        %s1122 = sand.u32 %s180, 1
        %s1123 = smul.addr %s1122, 2
        %s1124 = scalar_lea.vmem [#allocation14], %s1123
        // Predicated region
        $region141: #{vit_forward.1} parent=119 // pred_check
          %p1125 = pneg %p193
        $region142: #{vit_forward.1} parent=119 // pred_check_branch
          %1127 = sbr.rel (%p1125) target = $region144
        $region143: #{vit_forward.1} parent=119 // pred_region
          %1128 = dma.done %s1121, 32
        $region144: #{vit_forward.1} parent=119 // pred_fallthru
          _
        %s1129 = sand.u32 %s41, 1
        %s1130 = scalar_lea.sflag [#allocation6], %s1129
        %s1131 = sand.u32 %s206, 1
        %s1132 = smul.addr %s1131, 384
        %s1133 = scalar_lea.vmem [#allocation15], %s1132
        // Predicated region
        $region145: #{vit_forward.1} parent=119 // pred_check
          %p1134 = pneg %p219
        $region146: #{vit_forward.1} parent=119 // pred_check_branch
          %1136 = sbr.rel (%p1134) target = $region148
        $region147: #{vit_forward.1} parent=119 // pred_region
          %1137 = dma.done %s1130, 6144
        $region148: #{vit_forward.1} parent=119 // pred_fallthru
          _
        %s1138 = sand.u32 %s41, 1
        %s1139 = scalar_lea.sflag [#allocation6], %s1138
        %s1140 = sand.u32 %s232, 1
        %s1141 = smul.addr %s1140, 6
        %s1142 = scalar_lea.vmem [#allocation16], %s1141
        // Predicated region
        $region149: #{vit_forward.1} parent=119 // pred_check
          %p1143 = pneg %p245
        $region150: #{vit_forward.1} parent=119 // pred_check_branch
          %1145 = sbr.rel (%p1143) target = $region152
        $region151: #{vit_forward.1} parent=119 // pred_region
          %1146 = dma.done %s1139, 96
        $region152: #{vit_forward.1} parent=119 // pred_fallthru
          _
        %s1147 = sand.u32 %s41, 1
        %s1148 = scalar_lea.sflag [#allocation6], %s1147
        %s1149 = sand.u32 %s258, 1
        %s1150 = smul.addr %s1149, 6
        %s1151 = scalar_lea.vmem [#allocation17], %s1150
        // Predicated region
        $region153: #{vit_forward.1} parent=119 // pred_check
          %p1152 = pneg %p271
        $region154: #{vit_forward.1} parent=119 // pred_check_branch
          %1154 = sbr.rel (%p1152) target = $region156
        $region155: #{vit_forward.1} parent=119 // pred_region
          %1155 = dma.done %s1148, 96
        $region156: #{vit_forward.1} parent=119 // pred_fallthru
          _
        %s1156 = sand.u32 %s41, 1
        %s1157 = scalar_lea.sflag [#allocation6], %s1156
        %s1158 = sand.u32 %s284, 1
        %s1159 = smul.addr %s1158, 128
        %s1160 = scalar_lea.vmem [#allocation18], %s1159
        // Predicated region
        $region157: #{vit_forward.1} parent=119 // pred_check
          %p1161 = pneg %p297
        $region158: #{vit_forward.1} parent=119 // pred_check_branch
          %1163 = sbr.rel (%p1161) target = $region160
        $region159: #{vit_forward.1} parent=119 // pred_region
          %1164 = dma.done %s1157, 2048
        $region160: #{vit_forward.1} parent=119 // pred_fallthru
          _
        %s1165 = sand.u32 %s41, 1
        %s1166 = scalar_lea.sflag [#allocation6], %s1165
        %s1167 = sand.u32 %s310, 1
        %s1168 = smul.addr %s1167, 2
        %s1169 = scalar_lea.vmem [#allocation19], %s1168
        // Predicated region
        $region161: #{vit_forward.1} parent=119 // pred_check
          %p1170 = pneg %p323
        $region162: #{vit_forward.1} parent=119 // pred_check_branch
          %1172 = sbr.rel (%p1170) target = $region164
        $region163: #{vit_forward.1} parent=119 // pred_region
          %1173 = dma.done %s1166, 32
        $region164: #{vit_forward.1} parent=119 // pred_fallthru
          _
        %s1174 = sand.u32 %s41, 1
        %s1175 = scalar_lea.sflag [#allocation6], %s1174
        %s1176 = sand.u32 %s336, 1
        %s1177 = smul.addr %s1176, 2
        %s1178 = scalar_lea.vmem [#allocation20], %s1177
        // Predicated region
        $region165: #{vit_forward.1} parent=119 // pred_check
          %p1179 = pneg %p349
        $region166: #{vit_forward.1} parent=119 // pred_check_branch
          %1181 = sbr.rel (%p1179) target = $region168
        $region167: #{vit_forward.1} parent=119 // pred_region
          %1182 = dma.done %s1175, 32
        $region168: #{vit_forward.1} parent=119 // pred_fallthru
          _
        %s1183 = sand.u32 %s41, 1
        %s1184 = scalar_lea.sflag [#allocation6], %s1183
        %s1185 = sand.u32 %s362, 1
        %s1186 = smul.addr %s1185, 2
        %s1187 = scalar_lea.vmem [#allocation21], %s1186
        // Predicated region
        $region169: #{vit_forward.1} parent=119 // pred_check
          %p1188 = pneg %p375
        $region170: #{vit_forward.1} parent=119 // pred_check_branch
          %1190 = sbr.rel (%p1188) target = $region172
        $region171: #{vit_forward.1} parent=119 // pred_region
          %1191 = dma.done %s1184, 32
        $region172: #{vit_forward.1} parent=119 // pred_fallthru
          _
        %s1192 = sand.u32 %s41, 1
        %s1193 = scalar_lea.sflag [#allocation6], %s1192
        %s1194 = sand.u32 %s388, 1
        %s1195 = smul.addr %s1194, 2
        %s1196 = scalar_lea.vmem [#allocation22], %s1195
        // Predicated region
        $region173: #{vit_forward.1} parent=119 // pred_check
          %p1197 = pneg %p401
        $region174: #{vit_forward.1} parent=119 // pred_check_branch
          %1199 = sbr.rel (%p1197) target = $region176
        $region175: #{vit_forward.1} parent=119 // pred_region
          %1200 = dma.done %s1193, 32
        $region176: #{vit_forward.1} parent=119 // pred_fallthru
          _
        %s1201 = sand.u32 %s41, 1
        %s1202 = scalar_lea.sflag [#allocation6], %s1201
        %s1203 = sand.u32 %s414, 1
        %s1204 = smul.addr %s1203, 512
        %s1205 = scalar_lea.vmem [#allocation23], %s1204
        // Predicated region
        $region177: #{vit_forward.1} parent=119 // pred_check
          %p1206 = pneg %p427
        $region178: #{vit_forward.1} parent=119 // pred_check_branch
          %1208 = sbr.rel (%p1206) target = $region180
        $region179: #{vit_forward.1} parent=119 // pred_region
          %1209 = dma.done %s1202, 8192
        $region180: #{vit_forward.1} parent=119 // pred_fallthru
          _
        %s1210 = sand.u32 %s41, 1
        %s1211 = scalar_lea.sflag [#allocation6], %s1210
        %s1212 = sand.u32 %s440, 1
        %s1213 = smul.addr %s1212, 8
        %s1214 = scalar_lea.vmem [#allocation24], %s1213
        // Predicated region
        $region181: #{vit_forward.1} parent=119 // pred_check
          %p1215 = pneg %p453
        $region182: #{vit_forward.1} parent=119 // pred_check_branch
          %1217 = sbr.rel (%p1215) target = $region184
        $region183: #{vit_forward.1} parent=119 // pred_region
          %1218 = dma.done %s1211, 128
        $region184: #{vit_forward.1} parent=119 // pred_fallthru
          _
        %s1219 = sand.u32 %s41, 1
        %s1220 = scalar_lea.sflag [#allocation6], %s1219
        %s1221 = sand.u32 %s466, 1
        %s1222 = smul.addr %s1221, 8
        %s1223 = scalar_lea.vmem [#allocation25], %s1222
        // Predicated region
        $region185: #{vit_forward.1} parent=119 // pred_check
          %p1224 = pneg %p479
        $region186: #{vit_forward.1} parent=119 // pred_check_branch
          %1226 = sbr.rel (%p1224) target = $region188
        $region187: #{vit_forward.1} parent=119 // pred_region
          %1227 = dma.done %s1220, 128
        $region188: #{vit_forward.1} parent=119 // pred_fallthru
          _
        %s1228 = sand.u32 %s41, 1
        %s1229 = scalar_lea.sflag [#allocation6], %s1228
        %s1230 = sand.u32 %s492, 1
        %s1231 = smul.addr %s1230, 512
        %s1232 = scalar_lea.vmem [#allocation26], %s1231
        // Predicated region
        $region189: #{vit_forward.1} parent=119 // pred_check
          %p1233 = pneg %p505
        $region190: #{vit_forward.1} parent=119 // pred_check_branch
          %1235 = sbr.rel (%p1233) target = $region192
        $region191: #{vit_forward.1} parent=119 // pred_region
          %1236 = dma.done %s1229, 8192
        $region192: #{vit_forward.1} parent=119 // pred_fallthru
          _
        %s1237 = sand.u32 %s41, 1
        %s1238 = scalar_lea.sflag [#allocation6], %s1237
        %s1239 = sand.u32 %s518, 1
        %s1240 = smul.addr %s1239, 2
        %s1241 = scalar_lea.vmem [#allocation27], %s1240
        // Predicated region
        $region193: #{vit_forward.1} parent=119 // pred_check
          %p1242 = pneg %p531
        $region194: #{vit_forward.1} parent=119 // pred_check_branch
          %1244 = sbr.rel (%p1242) target = $region196
        $region195: #{vit_forward.1} parent=119 // pred_region
          %1245 = dma.done %s1238, 32
        $region196: #{vit_forward.1} parent=119 // pred_fallthru
          _
        %s1246 = sand.u32 %s41, 1
        %s1247 = scalar_lea.sflag [#allocation6], %s1246
        %s1248 = sand.u32 %s544, 1
        %s1249 = smul.addr %s1248, 2
        %s1250 = scalar_lea.vmem [#allocation28], %s1249
        // Predicated region
        $region197: #{vit_forward.1} parent=119 // pred_check
          %p1251 = pneg %p557
        $region198: #{vit_forward.1} parent=119 // pred_check_branch
          %1253 = sbr.rel (%p1251) target = $region200
        $region199: #{vit_forward.1} parent=119 // pred_region
          %1254 = dma.done %s1247, 32
        $region200: #{vit_forward.1} parent=119 // pred_fallthru
          _
        // Predicated region
        $region201: #{vit_forward.1} parent=119 // pred_check
          %p1255 = pneg %p578
        $region202: #{vit_forward.1} parent=119 // pred_check_branch
          %1257 = sbr.rel (%p1255) target = $region204
        $region203: #{vit_forward.1} parent=119 // pred_region
          %1258 = dma.done [#allocation9], 32
        $region204: #{vit_forward.1} parent=119 // pred_fallthru
          _
        // Predicated region
        $region205: #{vit_forward.1} parent=119 // pred_check
          %p1259 = pneg %p599
        $region206: #{vit_forward.1} parent=119 // pred_check_branch
          %1261 = sbr.rel (%p1259) target = $region208
        $region207: #{vit_forward.1} parent=119 // pred_region
          %1262 = dma.done [#allocation12], 32
        $region208: #{vit_forward.1} parent=119 // pred_fallthru
          _
        // Predicated region
        $region209: #{vit_forward.1} parent=119 // pred_check
          %p1263 = pneg %p620
        $region210: #{vit_forward.1} parent=119 // pred_check_branch
          %1265 = sbr.rel (%p1263) target = $region212
        $region211: #{vit_forward.1} parent=119 // pred_region
          %1266 = dma.done [#allocation32], 2048
        $region212: #{vit_forward.1} parent=119 // pred_fallthru
          _
        // Predicated region
        $region213: #{vit_forward.1} parent=119 // pred_check
          %p1267 = pneg %p641
        $region214: #{vit_forward.1} parent=119 // pred_check_branch
          %1269 = sbr.rel (%p1267) target = $region216
        $region215: #{vit_forward.1} parent=119 // pred_region
          %1270 = dma.done [#allocation32], 16
        $region216: #{vit_forward.1} parent=119 // pred_fallthru
          _
        %p1271 = pneg %p57
        %p1272 = pneg %p54
        %p1273 = pneg %p78
        %p1274 = pneg %p75
        %p1275 = pneg %p99
        %p1276 = pneg %p96
        %p1277 = pneg %p120
        %p1278 = pneg %p117
        %p1279 = pneg %p141
        %p1280 = pneg %p138
        %s1281 = sand.u32 %s41, 1
        %s1282 = scalar_lea.sflag [#allocation6], %s1281
        %s1283 = sand.u32 %s154, 1
        %s1284 = smul.addr %s1283, 2
        %s1285 = scalar_lea.vmem [#allocation13], %s1284
        %p1286 = pneg %p167
        %p1287 = pneg %p164
        %s1288 = sand.u32 %s41, 1
        %s1289 = scalar_lea.sflag [#allocation6], %s1288
        %s1290 = sand.u32 %s180, 1
        %s1291 = smul.addr %s1290, 2
        %s1292 = scalar_lea.vmem [#allocation14], %s1291
        %p1293 = pneg %p193
        %p1294 = pneg %p190
        %s1295 = sand.u32 %s41, 1
        %s1296 = scalar_lea.sflag [#allocation6], %s1295
        %s1297 = sand.u32 %s206, 1
        %s1298 = smul.addr %s1297, 384
        %s1299 = scalar_lea.vmem [#allocation15], %s1298
        %p1300 = pneg %p219
        %p1301 = pneg %p216
        %s1302 = sand.u32 %s41, 1
        %s1303 = scalar_lea.sflag [#allocation6], %s1302
        %s1304 = sand.u32 %s232, 1
        %s1305 = smul.addr %s1304, 6
        %s1306 = scalar_lea.vmem [#allocation16], %s1305
        %p1307 = pneg %p245
        %p1308 = pneg %p242
        %s1309 = sand.u32 %s41, 1
        %s1310 = scalar_lea.sflag [#allocation6], %s1309
        %s1311 = sand.u32 %s258, 1
        %s1312 = smul.addr %s1311, 6
        %s1313 = scalar_lea.vmem [#allocation17], %s1312
        %p1314 = pneg %p271
        %p1315 = pneg %p268
        %s1316 = sand.u32 %s41, 1
        %s1317 = scalar_lea.sflag [#allocation6], %s1316
        %s1318 = sand.u32 %s284, 1
        %s1319 = smul.addr %s1318, 128
        %s1320 = scalar_lea.vmem [#allocation18], %s1319
        %p1321 = pneg %p297
        %p1322 = pneg %p294
        %s1323 = sand.u32 %s41, 1
        %s1324 = scalar_lea.sflag [#allocation6], %s1323
        %s1325 = sand.u32 %s310, 1
        %s1326 = smul.addr %s1325, 2
        %s1327 = scalar_lea.vmem [#allocation19], %s1326
        %p1328 = pneg %p323
        %p1329 = pneg %p320
        %s1330 = sand.u32 %s41, 1
        %s1331 = scalar_lea.sflag [#allocation6], %s1330
        %s1332 = sand.u32 %s336, 1
        %s1333 = smul.addr %s1332, 2
        %s1334 = scalar_lea.vmem [#allocation20], %s1333
        %p1335 = pneg %p349
        %p1336 = pneg %p346
        %s1337 = sand.u32 %s41, 1
        %s1338 = scalar_lea.sflag [#allocation6], %s1337
        %s1339 = sand.u32 %s362, 1
        %s1340 = smul.addr %s1339, 2
        %s1341 = scalar_lea.vmem [#allocation21], %s1340
        %p1342 = pneg %p375
        %p1343 = pneg %p372
        %s1344 = sand.u32 %s41, 1
        %s1345 = scalar_lea.sflag [#allocation6], %s1344
        %s1346 = sand.u32 %s388, 1
        %s1347 = smul.addr %s1346, 2
        %s1348 = scalar_lea.vmem [#allocation22], %s1347
        %p1349 = pneg %p401
        %p1350 = pneg %p398
        %s1351 = sand.u32 %s41, 1
        %s1352 = scalar_lea.sflag [#allocation6], %s1351
        %s1353 = sand.u32 %s414, 1
        %s1354 = smul.addr %s1353, 512
        %s1355 = scalar_lea.vmem [#allocation23], %s1354
        %p1356 = pneg %p427
        %p1357 = pneg %p424
        %s1358 = sand.u32 %s41, 1
        %s1359 = scalar_lea.sflag [#allocation6], %s1358
        %s1360 = sand.u32 %s440, 1
        %s1361 = smul.addr %s1360, 8
        %s1362 = scalar_lea.vmem [#allocation24], %s1361
        %p1363 = pneg %p453
        %p1364 = pneg %p450
        %s1365 = sand.u32 %s41, 1
        %s1366 = scalar_lea.sflag [#allocation6], %s1365
        %s1367 = sand.u32 %s466, 1
        %s1368 = smul.addr %s1367, 8
        %s1369 = scalar_lea.vmem [#allocation25], %s1368
        %p1370 = pneg %p479
        %p1371 = pneg %p476
        %s1372 = sand.u32 %s41, 1
        %s1373 = scalar_lea.sflag [#allocation6], %s1372
        %s1374 = sand.u32 %s492, 1
        %s1375 = smul.addr %s1374, 512
        %s1376 = scalar_lea.vmem [#allocation26], %s1375
        %p1377 = pneg %p505
        %p1378 = pneg %p502
        %s1379 = sand.u32 %s41, 1
        %s1380 = scalar_lea.sflag [#allocation6], %s1379
        %s1381 = sand.u32 %s518, 1
        %s1382 = smul.addr %s1381, 2
        %s1383 = scalar_lea.vmem [#allocation27], %s1382
        %p1384 = pneg %p531
        %p1385 = pneg %p528
        %s1386 = sand.u32 %s41, 1
        %s1387 = scalar_lea.sflag [#allocation6], %s1386
        %s1388 = sand.u32 %s544, 1
        %s1389 = smul.addr %s1388, 2
        %s1390 = scalar_lea.vmem [#allocation28], %s1389
        %p1391 = pneg %p557
        %p1392 = pneg %p554
        %p1393 = pneg %p578
        %p1394 = pneg %p575
        %p1395 = pneg %p599
        %p1396 = pneg %p596
        %p1397 = pneg %p620
        %p1398 = pneg %p617
        %p1399 = pneg %p641
        %p1400 = pneg %p638
        %p1401 = pneg %p662
        %p1402 = pneg %p659
        %p1404 = scmp.eq.s32.totalorder %s41, 0
        // Predicated region
        $region217: #{vit_forward.1} parent=119 // pred_check
          %p1405 = pneg %p1404
        $region218: #{vit_forward.1} parent=119 // pred_check_branch
          %1407 = sbr.rel (%p1405) target = $region220
        $region219: #{vit_forward.1} parent=119 // pred_region
          %v1408 = vld [vmem:[%s0] sm:$0xff]
          %v1409 = vld [vmem:[%s0 + $0x8] sm:$0xff]
          %v1410 = vld [vmem:[%s0 + $0x10] sm:$0xff]
          %v1411 = vld [vmem:[%s0 + $0x18] sm:$0xff]
          %v1412 = vld [vmem:[%s0 + $0x20] sm:$0xff]
          %v1413 = vld [vmem:[%s0 + $0x28] sm:$0xff]
          %v1420 = vcombine.high %v1408, %v1408
          %v1422 = vunpack.c.l.s4 1983009808
          %v1423 = vunpack.c.0.s8 %v1422
          %v1424 = vlaneseq
          %v1425 = vshrl.u32 %v1424, 7
          %v1426 = vsub.s32 %v1423, %v1425
          %v1427 = vrot.slane %v1408, %v1426
          %v1429 = vunpack.c.l.s4 1983009808
          %v1430 = vunpack.c.0.s8 %v1429
          %v1431 = vlaneseq
          %v1432 = vshrl.u32 %v1431, 7
          %v1433 = vsub.s32 %v1430, %v1432
          %v1434 = vrot.slane %v1420, %v1433
          %v1435 = vcombine.high %v1427, %v1427
          %v1436 = vcombine.high %v1434, %v1434
          %v1437 = vcombine.high %v1409, %v1409
          %v1439 = vunpack.c.l.s4 1983009808
          %v1440 = vunpack.c.0.s8 %v1439
          %v1441 = vlaneseq
          %v1442 = vshrl.u32 %v1441, 7
          %v1443 = vsub.s32 %v1440, %v1442
          %v1444 = vrot.slane %v1409, %v1443
          %v1446 = vunpack.c.l.s4 1983009808
          %v1447 = vunpack.c.0.s8 %v1446
          %v1448 = vlaneseq
          %v1449 = vshrl.u32 %v1448, 7
          %v1450 = vsub.s32 %v1447, %v1449
          %v1451 = vrot.slane %v1437, %v1450
          %v1452 = vcombine.high %v1444, %v1444
          %v1453 = vcombine.high %v1451, %v1451
          %v1454 = vcombine.high %v1410, %v1410
          %v1456 = vunpack.c.l.s4 1983009808
          %v1457 = vunpack.c.0.s8 %v1456
          %v1458 = vlaneseq
          %v1459 = vshrl.u32 %v1458, 7
          %v1460 = vsub.s32 %v1457, %v1459
          %v1461 = vrot.slane %v1410, %v1460
          %v1463 = vunpack.c.l.s4 1983009808
          %v1464 = vunpack.c.0.s8 %v1463
          %v1465 = vlaneseq
          %v1466 = vshrl.u32 %v1465, 7
          %v1467 = vsub.s32 %v1464, %v1466
          %v1468 = vrot.slane %v1454, %v1467
          %v1469 = vcombine.high %v1461, %v1461
          %v1470 = vcombine.high %v1468, %v1468
          %v1471 = vcombine.high %v1411, %v1411
          %v1473 = vunpack.c.l.s4 1983009808
          %v1474 = vunpack.c.0.s8 %v1473
          %v1475 = vlaneseq
          %v1476 = vshrl.u32 %v1475, 7
          %v1477 = vsub.s32 %v1474, %v1476
          %v1478 = vrot.slane %v1411, %v1477
          %v1480 = vunpack.c.l.s4 1983009808
          %v1481 = vunpack.c.0.s8 %v1480
          %v1482 = vlaneseq
          %v1483 = vshrl.u32 %v1482, 7
          %v1484 = vsub.s32 %v1481, %v1483
          %v1485 = vrot.slane %v1471, %v1484
          %v1486 = vcombine.high %v1478, %v1478
          %v1487 = vcombine.high %v1485, %v1485
          %v1488 = vcombine.high %v1412, %v1412
          %v1490 = vunpack.c.l.s4 1983009808
          %v1491 = vunpack.c.0.s8 %v1490
          %v1492 = vlaneseq
          %v1493 = vshrl.u32 %v1492, 7
          %v1494 = vsub.s32 %v1491, %v1493
          %v1495 = vrot.slane %v1412, %v1494
          %v1497 = vunpack.c.l.s4 1983009808
          %v1498 = vunpack.c.0.s8 %v1497
          %v1499 = vlaneseq
          %v1500 = vshrl.u32 %v1499, 7
          %v1501 = vsub.s32 %v1498, %v1500
          %v1502 = vrot.slane %v1488, %v1501
          %v1503 = vcombine.high %v1495, %v1495
          %v1504 = vcombine.high %v1502, %v1502
          %v1505 = vcombine.high %v1413, %v1413
          %v1507 = vunpack.c.l.s4 1983009808
          %v1508 = vunpack.c.0.s8 %v1507
          %v1509 = vlaneseq
          %v1510 = vshrl.u32 %v1509, 7
          %v1511 = vsub.s32 %v1508, %v1510
          %v1512 = vrot.slane %v1413, %v1511
          %v1514 = vunpack.c.l.s4 1983009808
          %v1515 = vunpack.c.0.s8 %v1514
          %v1516 = vlaneseq
          %v1517 = vshrl.u32 %v1516, 7
          %v1518 = vsub.s32 %v1515, %v1517
          %v1519 = vrot.slane %v1505, %v1518
          %v1520 = vcombine.high %v1512, %v1512
          %v1521 = vcombine.high %v1519, %v1519
          %v1546 = vpack.c.bf16 %v1427, %v1427
          %v1547 = vpack.c.bf16 %v1435, %v1435
          %v1548 = vpack.c.bf16 %v1434, %v1434
          %v1549 = vpack.c.bf16 %v1436, %v1436
          %v1550 = vpack.c.bf16 %v1444, %v1444
          %v1551 = vpack.c.bf16 %v1452, %v1452
          %v1552 = vpack.c.bf16 %v1451, %v1451
          %v1553 = vpack.c.bf16 %v1453, %v1453
          %v1554 = vpack.c.bf16 %v1461, %v1461
          %v1555 = vpack.c.bf16 %v1469, %v1469
          %v1556 = vpack.c.bf16 %v1468, %v1468
          %v1557 = vpack.c.bf16 %v1470, %v1470
          %v1558 = vpack.c.bf16 %v1478, %v1478
          %v1559 = vpack.c.bf16 %v1486, %v1486
          %v1560 = vpack.c.bf16 %v1485, %v1485
          %v1561 = vpack.c.bf16 %v1487, %v1487
          %v1562 = vpack.c.bf16 %v1495, %v1495
          %v1563 = vpack.c.bf16 %v1503, %v1503
          %v1564 = vpack.c.bf16 %v1502, %v1502
          %v1565 = vpack.c.bf16 %v1504, %v1504
          %v1566 = vpack.c.bf16 %v1512, %v1512
          %v1567 = vpack.c.bf16 %v1520, %v1520
          %v1568 = vpack.c.bf16 %v1519, %v1519
          %v1569 = vpack.c.bf16 %v1521, %v1521
          %v1570 = vld [vmem:[#allocation5] sm:$0xff]
          %v1571 = vld [vmem:[#allocation5 + $0x8] sm:$0xff]
          %v1572 = vld [vmem:[#allocation5 + $0x10] sm:$0xff]
          %v1573 = vld [vmem:[#allocation5 + $0x18] sm:$0xff]
          %v1574 = vld [vmem:[#allocation5 + $0x20] sm:$0xff]
          %v1575 = vld [vmem:[#allocation5 + $0x28] sm:$0xff]
          %v1576 = vld [vmem:[#allocation5 + $0x30] sm:$0xff]
          %v1577 = vld [vmem:[#allocation5 + $0x38] sm:$0xff]
          %v1578 = vld [vmem:[#allocation5 + $0x40] sm:$0xff]
          %v1579 = vld [vmem:[#allocation5 + $0x48] sm:$0xff]
          %v1580 = vld [vmem:[#allocation5 + $0x50] sm:$0xff]
          %v1581 = vld [vmem:[#allocation5 + $0x58] sm:$0xff]
          %v1582 = vld [vmem:[#allocation5 + $0x60] sm:$0xff]
          %v1583 = vld [vmem:[#allocation5 + $0x68] sm:$0xff]
          %v1584 = vld [vmem:[#allocation5 + $0x70] sm:$0xff]
          %v1585 = vld [vmem:[#allocation5 + $0x78] sm:$0xff]
          %v1586 = vld [vmem:[#allocation5 + $0x80] sm:$0xff]
          %v1587 = vld [vmem:[#allocation5 + $0x88] sm:$0xff]
          %v1588 = vld [vmem:[#allocation5 + $0x90] sm:$0xff]
          %v1589 = vld [vmem:[#allocation5 + $0x98] sm:$0xff]
          %v1590 = vld [vmem:[#allocation5 + $0xa0] sm:$0xff]
          %v1591 = vld [vmem:[#allocation5 + $0xa8] sm:$0xff]
          %v1592 = vld [vmem:[#allocation5 + $0xb0] sm:$0xff]
          %v1593 = vld [vmem:[#allocation5 + $0xb8] sm:$0xff]
          %v1594 = vld [vmem:[#allocation5 + $0xc0] sm:$0xff]
          %v1595 = vld [vmem:[#allocation5 + $0xc8] sm:$0xff]
          %v1596 = vld [vmem:[#allocation5 + $0xd0] sm:$0xff]
          %v1597 = vld [vmem:[#allocation5 + $0xd8] sm:$0xff]
          %v1598 = vld [vmem:[#allocation5 + $0xe0] sm:$0xff]
          %v1599 = vld [vmem:[#allocation5 + $0xe8] sm:$0xff]
          %v1600 = vld [vmem:[#allocation5 + $0xf0] sm:$0xff]
          %v1601 = vld [vmem:[#allocation5 + $0xf8] sm:$0xff]
          %v1602 = vld [vmem:[#allocation5 + $0x100] sm:$0xff]
          %v1603 = vld [vmem:[#allocation5 + $0x108] sm:$0xff]
          %v1604 = vld [vmem:[#allocation5 + $0x110] sm:$0xff]
          %v1605 = vld [vmem:[#allocation5 + $0x118] sm:$0xff]
          %v1606 = vld [vmem:[#allocation5 + $0x120] sm:$0xff]
          %v1607 = vld [vmem:[#allocation5 + $0x128] sm:$0xff]
          %v1608 = vld [vmem:[#allocation5 + $0x130] sm:$0xff]
          %v1609 = vld [vmem:[#allocation5 + $0x138] sm:$0xff]
          %v1610 = vld [vmem:[#allocation5 + $0x140] sm:$0xff]
          %v1611 = vld [vmem:[#allocation5 + $0x148] sm:$0xff]
          %v1612 = vld [vmem:[#allocation5 + $0x150] sm:$0xff]
          %v1613 = vld [vmem:[#allocation5 + $0x158] sm:$0xff]
          %v1614 = vld [vmem:[#allocation5 + $0x160] sm:$0xff]
          %v1615 = vld [vmem:[#allocation5 + $0x168] sm:$0xff]
          %v1616 = vld [vmem:[#allocation5 + $0x170] sm:$0xff]
          %v1617 = vld [vmem:[#allocation5 + $0x178] sm:$0xff]
          %v1618 = vld [vmem:[#allocation5 + $0x180] sm:$0xff]
          %v1619 = vld [vmem:[#allocation5 + $0x188] sm:$0xff]
          %v1620 = vld [vmem:[#allocation5 + $0x190] sm:$0xff]
          %v1621 = vld [vmem:[#allocation5 + $0x198] sm:$0xff]
          %v1622 = vld [vmem:[#allocation5 + $0x1a0] sm:$0xff]
          %v1623 = vld [vmem:[#allocation5 + $0x1a8] sm:$0xff]
          %v1624 = vld [vmem:[#allocation5 + $0x1b0] sm:$0xff]
          %v1625 = vld [vmem:[#allocation5 + $0x1b8] sm:$0xff]
          %v1626 = vld [vmem:[#allocation5 + $0x1c0] sm:$0xff]
          %v1627 = vld [vmem:[#allocation5 + $0x1c8] sm:$0xff]
          %v1628 = vld [vmem:[#allocation5 + $0x1d0] sm:$0xff]
          %v1629 = vld [vmem:[#allocation5 + $0x1d8] sm:$0xff]
          %v1630 = vld [vmem:[#allocation5 + $0x1e0] sm:$0xff]
          %v1631 = vld [vmem:[#allocation5 + $0x1e8] sm:$0xff]
          %v1632 = vld [vmem:[#allocation5 + $0x1f0] sm:$0xff]
          %v1633 = vld [vmem:[#allocation5 + $0x1f8] sm:$0xff]
          %v1634 = vld [vmem:[#allocation5 + $0x200] sm:$0xff]
          %v1635 = vld [vmem:[#allocation5 + $0x208] sm:$0xff]
          %v1636 = vld [vmem:[#allocation5 + $0x210] sm:$0xff]
          %v1637 = vld [vmem:[#allocation5 + $0x218] sm:$0xff]
          %v1638 = vld [vmem:[#allocation5 + $0x220] sm:$0xff]
          %v1639 = vld [vmem:[#allocation5 + $0x228] sm:$0xff]
          %v1640 = vld [vmem:[#allocation5 + $0x230] sm:$0xff]
          %v1641 = vld [vmem:[#allocation5 + $0x238] sm:$0xff]
          %v1642 = vld [vmem:[#allocation5 + $0x240] sm:$0xff]
          %v1643 = vld [vmem:[#allocation5 + $0x248] sm:$0xff]
          %v1644 = vld [vmem:[#allocation5 + $0x250] sm:$0xff]
          %v1645 = vld [vmem:[#allocation5 + $0x258] sm:$0xff]
          %v1646 = vld [vmem:[#allocation5 + $0x260] sm:$0xff]
          %v1647 = vld [vmem:[#allocation5 + $0x268] sm:$0xff]
          %v1648 = vld [vmem:[#allocation5 + $0x270] sm:$0xff]
          %v1649 = vld [vmem:[#allocation5 + $0x278] sm:$0xff]
          %v1650 = vld [vmem:[#allocation5 + $0x280] sm:$0xff]
          %v1651 = vld [vmem:[#allocation5 + $0x288] sm:$0xff]
          %v1652 = vld [vmem:[#allocation5 + $0x290] sm:$0xff]
          %v1653 = vld [vmem:[#allocation5 + $0x298] sm:$0xff]
          %v1654 = vld [vmem:[#allocation5 + $0x2a0] sm:$0xff]
          %v1655 = vld [vmem:[#allocation5 + $0x2a8] sm:$0xff]
          %v1656 = vld [vmem:[#allocation5 + $0x2b0] sm:$0xff]
          %v1657 = vld [vmem:[#allocation5 + $0x2b8] sm:$0xff]
          %v1658 = vld [vmem:[#allocation5 + $0x2c0] sm:$0xff]
          %v1659 = vld [vmem:[#allocation5 + $0x2c8] sm:$0xff]
          %v1660 = vld [vmem:[#allocation5 + $0x2d0] sm:$0xff]
          %v1661 = vld [vmem:[#allocation5 + $0x2d8] sm:$0xff]
          %v1662 = vld [vmem:[#allocation5 + $0x2e0] sm:$0xff]
          %v1663 = vld [vmem:[#allocation5 + $0x2e8] sm:$0xff]
          %v1664 = vld [vmem:[#allocation5 + $0x2f0] sm:$0xff]
          %v1665 = vld [vmem:[#allocation5 + $0x2f8] sm:$0xff]
          %v1666 = vld [vmem:[#allocation5 + $0x300] sm:$0xff]
          %v1667 = vld [vmem:[#allocation5 + $0x308] sm:$0xff]
          %v1668 = vld [vmem:[#allocation5 + $0x310] sm:$0xff]
          %v1669 = vld [vmem:[#allocation5 + $0x318] sm:$0xff]
          %v1670 = vld [vmem:[#allocation5 + $0x320] sm:$0xff]
          %v1671 = vld [vmem:[#allocation5 + $0x328] sm:$0xff]
          %v1672 = vld [vmem:[#allocation5 + $0x330] sm:$0xff]
          %v1673 = vld [vmem:[#allocation5 + $0x338] sm:$0xff]
          %v1674 = vld [vmem:[#allocation5 + $0x340] sm:$0xff]
          %v1675 = vld [vmem:[#allocation5 + $0x348] sm:$0xff]
          %v1676 = vld [vmem:[#allocation5 + $0x350] sm:$0xff]
          %v1677 = vld [vmem:[#allocation5 + $0x358] sm:$0xff]
          %v1678 = vld [vmem:[#allocation5 + $0x360] sm:$0xff]
          %v1679 = vld [vmem:[#allocation5 + $0x368] sm:$0xff]
          %v1680 = vld [vmem:[#allocation5 + $0x370] sm:$0xff]
          %v1681 = vld [vmem:[#allocation5 + $0x378] sm:$0xff]
          %v1682 = vld [vmem:[#allocation5 + $0x380] sm:$0xff]
          %v1683 = vld [vmem:[#allocation5 + $0x388] sm:$0xff]
          %v1684 = vld [vmem:[#allocation5 + $0x390] sm:$0xff]
          %v1685 = vld [vmem:[#allocation5 + $0x398] sm:$0xff]
          %v1686 = vld [vmem:[#allocation5 + $0x3a0] sm:$0xff]
          %v1687 = vld [vmem:[#allocation5 + $0x3a8] sm:$0xff]
          %v1688 = vld [vmem:[#allocation5 + $0x3b0] sm:$0xff]
          %v1689 = vld [vmem:[#allocation5 + $0x3b8] sm:$0xff]
          %v1690 = vld [vmem:[#allocation5 + $0x3c0] sm:$0xff]
          %v1691 = vld [vmem:[#allocation5 + $0x3c8] sm:$0xff]
          %v1692 = vld [vmem:[#allocation5 + $0x3d0] sm:$0xff]
          %v1693 = vld [vmem:[#allocation5 + $0x3d8] sm:$0xff]
          %v1694 = vld [vmem:[#allocation5 + $0x3e0] sm:$0xff]
          %v1695 = vld [vmem:[#allocation5 + $0x3e8] sm:$0xff]
          %v1696 = vld [vmem:[#allocation5 + $0x3f0] sm:$0xff]
          %v1697 = vld [vmem:[#allocation5 + $0x3f8] sm:$0xff]
          %v1698 = vld [vmem:[#allocation5 + $0x400] sm:$0xff]
          %v1699 = vld [vmem:[#allocation5 + $0x408] sm:$0xff]
          %v1700 = vld [vmem:[#allocation5 + $0x410] sm:$0xff]
          %v1701 = vld [vmem:[#allocation5 + $0x418] sm:$0xff]
          %v1702 = vld [vmem:[#allocation5 + $0x420] sm:$0xff]
          %v1703 = vld [vmem:[#allocation5 + $0x428] sm:$0xff]
          %v1704 = vld [vmem:[#allocation5 + $0x430] sm:$0xff]
          %v1705 = vld [vmem:[#allocation5 + $0x438] sm:$0xff]
          %v1706 = vld [vmem:[#allocation5 + $0x440] sm:$0xff]
          %v1707 = vld [vmem:[#allocation5 + $0x448] sm:$0xff]
          %v1708 = vld [vmem:[#allocation5 + $0x450] sm:$0xff]
          %v1709 = vld [vmem:[#allocation5 + $0x458] sm:$0xff]
          %v1710 = vld [vmem:[#allocation5 + $0x460] sm:$0xff]
          %v1711 = vld [vmem:[#allocation5 + $0x468] sm:$0xff]
          %v1712 = vld [vmem:[#allocation5 + $0x470] sm:$0xff]
          %v1713 = vld [vmem:[#allocation5 + $0x478] sm:$0xff]
          %v1714 = vld [vmem:[#allocation5 + $0x480] sm:$0xff]
          %v1715 = vld [vmem:[#allocation5 + $0x488] sm:$0xff]
          %v1716 = vld [vmem:[#allocation5 + $0x490] sm:$0xff]
          %v1717 = vld [vmem:[#allocation5 + $0x498] sm:$0xff]
          %v1718 = vld [vmem:[#allocation5 + $0x4a0] sm:$0xff]
          %v1719 = vld [vmem:[#allocation5 + $0x4a8] sm:$0xff]
          %v1720 = vld [vmem:[#allocation5 + $0x4b0] sm:$0xff]
          %v1721 = vld [vmem:[#allocation5 + $0x4b8] sm:$0xff]
          %v1722 = vld [vmem:[#allocation5 + $0x4c0] sm:$0xff]
          %v1723 = vld [vmem:[#allocation5 + $0x4c8] sm:$0xff]
          %v1724 = vld [vmem:[#allocation5 + $0x4d0] sm:$0xff]
          %v1725 = vld [vmem:[#allocation5 + $0x4d8] sm:$0xff]
          %v1726 = vld [vmem:[#allocation5 + $0x4e0] sm:$0xff]
          %v1727 = vld [vmem:[#allocation5 + $0x4e8] sm:$0xff]
          %v1728 = vld [vmem:[#allocation5 + $0x4f0] sm:$0xff]
          %v1729 = vld [vmem:[#allocation5 + $0x4f8] sm:$0xff]
          %v1730 = vld [vmem:[#allocation5 + $0x500] sm:$0xff]
          %v1731 = vld [vmem:[#allocation5 + $0x508] sm:$0xff]
          %v1732 = vld [vmem:[#allocation5 + $0x510] sm:$0xff]
          %v1733 = vld [vmem:[#allocation5 + $0x518] sm:$0xff]
          %v1734 = vld [vmem:[#allocation5 + $0x520] sm:$0xff]
          %v1735 = vld [vmem:[#allocation5 + $0x528] sm:$0xff]
          %v1736 = vld [vmem:[#allocation5 + $0x530] sm:$0xff]
          %v1737 = vld [vmem:[#allocation5 + $0x538] sm:$0xff]
          %v1738 = vld [vmem:[#allocation5 + $0x540] sm:$0xff]
          %v1739 = vld [vmem:[#allocation5 + $0x548] sm:$0xff]
          %v1740 = vld [vmem:[#allocation5 + $0x550] sm:$0xff]
          %v1741 = vld [vmem:[#allocation5 + $0x558] sm:$0xff]
          %v1742 = vld [vmem:[#allocation5 + $0x560] sm:$0xff]
          %v1743 = vld [vmem:[#allocation5 + $0x568] sm:$0xff]
          %v1744 = vld [vmem:[#allocation5 + $0x570] sm:$0xff]
          %v1745 = vld [vmem:[#allocation5 + $0x578] sm:$0xff]
          %v1746 = vld [vmem:[#allocation5 + $0x580] sm:$0xff]
          %v1747 = vld [vmem:[#allocation5 + $0x588] sm:$0xff]
          %v1748 = vld [vmem:[#allocation5 + $0x590] sm:$0xff]
          %v1749 = vld [vmem:[#allocation5 + $0x598] sm:$0xff]
          %v1750 = vld [vmem:[#allocation5 + $0x5a0] sm:$0xff]
          %v1751 = vld [vmem:[#allocation5 + $0x5a8] sm:$0xff]
          %v1752 = vld [vmem:[#allocation5 + $0x5b0] sm:$0xff]
          %v1753 = vld [vmem:[#allocation5 + $0x5b8] sm:$0xff]
          %v1754 = vld [vmem:[#allocation5 + $0x5c0] sm:$0xff]
          %v1755 = vld [vmem:[#allocation5 + $0x5c8] sm:$0xff]
          %v1756 = vld [vmem:[#allocation5 + $0x5d0] sm:$0xff]
          %v1757 = vld [vmem:[#allocation5 + $0x5d8] sm:$0xff]
          %v1758 = vld [vmem:[#allocation5 + $0x5e0] sm:$0xff]
          %v1759 = vld [vmem:[#allocation5 + $0x5e8] sm:$0xff]
          %v1760 = vld [vmem:[#allocation5 + $0x5f0] sm:$0xff]
          %v1761 = vld [vmem:[#allocation5 + $0x5f8] sm:$0xff]
          %v1762 = vld [vmem:[#allocation5 + $0x600] sm:$0xff]
          %v1763 = vld [vmem:[#allocation5 + $0x608] sm:$0xff]
          %v1764 = vld [vmem:[#allocation5 + $0x610] sm:$0xff]
          %v1765 = vld [vmem:[#allocation5 + $0x618] sm:$0xff]
          %v1766 = vld [vmem:[#allocation5 + $0x620] sm:$0xff]
          %v1767 = vld [vmem:[#allocation5 + $0x628] sm:$0xff]
          %v1768 = vld [vmem:[#allocation5 + $0x630] sm:$0xff]
          %v1769 = vld [vmem:[#allocation5 + $0x638] sm:$0xff]
          %v1770 = vld [vmem:[#allocation5 + $0x640] sm:$0xff]
          %v1771 = vld [vmem:[#allocation5 + $0x648] sm:$0xff]
          %v1772 = vld [vmem:[#allocation5 + $0x650] sm:$0xff]
          %v1773 = vld [vmem:[#allocation5 + $0x658] sm:$0xff]
          %v1774 = vld [vmem:[#allocation5 + $0x660] sm:$0xff]
          %v1775 = vld [vmem:[#allocation5 + $0x668] sm:$0xff]
          %v1776 = vld [vmem:[#allocation5 + $0x670] sm:$0xff]
          %v1777 = vld [vmem:[#allocation5 + $0x678] sm:$0xff]
          %v1778 = vld [vmem:[#allocation5 + $0x680] sm:$0xff]
          %v1779 = vld [vmem:[#allocation5 + $0x688] sm:$0xff]
          %v1780 = vld [vmem:[#allocation5 + $0x690] sm:$0xff]
          %v1781 = vld [vmem:[#allocation5 + $0x698] sm:$0xff]
          %v1782 = vld [vmem:[#allocation5 + $0x6a0] sm:$0xff]
          %v1783 = vld [vmem:[#allocation5 + $0x6a8] sm:$0xff]
          %v1784 = vld [vmem:[#allocation5 + $0x6b0] sm:$0xff]
          %v1785 = vld [vmem:[#allocation5 + $0x6b8] sm:$0xff]
          %v1786 = vld [vmem:[#allocation5 + $0x6c0] sm:$0xff]
          %v1787 = vld [vmem:[#allocation5 + $0x6c8] sm:$0xff]
          %v1788 = vld [vmem:[#allocation5 + $0x6d0] sm:$0xff]
          %v1789 = vld [vmem:[#allocation5 + $0x6d8] sm:$0xff]
          %v1790 = vld [vmem:[#allocation5 + $0x6e0] sm:$0xff]
          %v1791 = vld [vmem:[#allocation5 + $0x6e8] sm:$0xff]
          %v1792 = vld [vmem:[#allocation5 + $0x6f0] sm:$0xff]
          %v1793 = vld [vmem:[#allocation5 + $0x6f8] sm:$0xff]
          %v1794 = vld [vmem:[#allocation5 + $0x700] sm:$0xff]
          %v1795 = vld [vmem:[#allocation5 + $0x708] sm:$0xff]
          %v1796 = vld [vmem:[#allocation5 + $0x710] sm:$0xff]
          %v1797 = vld [vmem:[#allocation5 + $0x718] sm:$0xff]
          %v1798 = vld [vmem:[#allocation5 + $0x720] sm:$0xff]
          %v1799 = vld [vmem:[#allocation5 + $0x728] sm:$0xff]
          %v1800 = vld [vmem:[#allocation5 + $0x730] sm:$0xff]
          %v1801 = vld [vmem:[#allocation5 + $0x738] sm:$0xff]
          %v1802 = vld [vmem:[#allocation5 + $0x740] sm:$0xff]
          %v1803 = vld [vmem:[#allocation5 + $0x748] sm:$0xff]
          %v1804 = vld [vmem:[#allocation5 + $0x750] sm:$0xff]
          %v1805 = vld [vmem:[#allocation5 + $0x758] sm:$0xff]
          %v1806 = vld [vmem:[#allocation5 + $0x760] sm:$0xff]
          %v1807 = vld [vmem:[#allocation5 + $0x768] sm:$0xff]
          %v1808 = vld [vmem:[#allocation5 + $0x770] sm:$0xff]
          %v1809 = vld [vmem:[#allocation5 + $0x778] sm:$0xff]
          %v1810 = vld [vmem:[#allocation5 + $0x780] sm:$0xff]
          %v1811 = vld [vmem:[#allocation5 + $0x788] sm:$0xff]
          %v1812 = vld [vmem:[#allocation5 + $0x790] sm:$0xff]
          %v1813 = vld [vmem:[#allocation5 + $0x798] sm:$0xff]
          %v1814 = vld [vmem:[#allocation5 + $0x7a0] sm:$0xff]
          %v1815 = vld [vmem:[#allocation5 + $0x7a8] sm:$0xff]
          %v1816 = vld [vmem:[#allocation5 + $0x7b0] sm:$0xff]
          %v1817 = vld [vmem:[#allocation5 + $0x7b8] sm:$0xff]
          %v1818 = vld [vmem:[#allocation5 + $0x7c0] sm:$0xff]
          %v1819 = vld [vmem:[#allocation5 + $0x7c8] sm:$0xff]
          %v1820 = vld [vmem:[#allocation5 + $0x7d0] sm:$0xff]
          %v1821 = vld [vmem:[#allocation5 + $0x7d8] sm:$0xff]
          %v1822 = vld [vmem:[#allocation5 + $0x7e0] sm:$0xff]
          %v1823 = vld [vmem:[#allocation5 + $0x7e8] sm:$0xff]
          %v1824 = vld [vmem:[#allocation5 + $0x7f0] sm:$0xff]
          %v1825 = vld [vmem:[#allocation5 + $0x7f8] sm:$0xff]
          %v1826 = vld [vmem:[#allocation5 + $0x800] sm:$0xff]
          %v1827 = vld [vmem:[#allocation5 + $0x808] sm:$0xff]
          %v1828 = vld [vmem:[#allocation5 + $0x810] sm:$0xff]
          %v1829 = vld [vmem:[#allocation5 + $0x818] sm:$0xff]
          %v1830 = vld [vmem:[#allocation5 + $0x820] sm:$0xff]
          %v1831 = vld [vmem:[#allocation5 + $0x828] sm:$0xff]
          %v1832 = vld [vmem:[#allocation5 + $0x830] sm:$0xff]
          %v1833 = vld [vmem:[#allocation5 + $0x838] sm:$0xff]
          %v1834 = vld [vmem:[#allocation5 + $0x840] sm:$0xff]
          %v1835 = vld [vmem:[#allocation5 + $0x848] sm:$0xff]
          %v1836 = vld [vmem:[#allocation5 + $0x850] sm:$0xff]
          %v1837 = vld [vmem:[#allocation5 + $0x858] sm:$0xff]
          %v1838 = vld [vmem:[#allocation5 + $0x860] sm:$0xff]
          %v1839 = vld [vmem:[#allocation5 + $0x868] sm:$0xff]
          %v1840 = vld [vmem:[#allocation5 + $0x870] sm:$0xff]
          %v1841 = vld [vmem:[#allocation5 + $0x878] sm:$0xff]
          %v1842 = vld [vmem:[#allocation5 + $0x880] sm:$0xff]
          %v1843 = vld [vmem:[#allocation5 + $0x888] sm:$0xff]
          %v1844 = vld [vmem:[#allocation5 + $0x890] sm:$0xff]
          %v1845 = vld [vmem:[#allocation5 + $0x898] sm:$0xff]
          %v1846 = vld [vmem:[#allocation5 + $0x8a0] sm:$0xff]
          %v1847 = vld [vmem:[#allocation5 + $0x8a8] sm:$0xff]
          %v1848 = vld [vmem:[#allocation5 + $0x8b0] sm:$0xff]
          %v1849 = vld [vmem:[#allocation5 + $0x8b8] sm:$0xff]
          %v1850 = vld [vmem:[#allocation5 + $0x8c0] sm:$0xff]
          %v1851 = vld [vmem:[#allocation5 + $0x8c8] sm:$0xff]
          %v1852 = vld [vmem:[#allocation5 + $0x8d0] sm:$0xff]
          %v1853 = vld [vmem:[#allocation5 + $0x8d8] sm:$0xff]
          %v1854 = vld [vmem:[#allocation5 + $0x8e0] sm:$0xff]
          %v1855 = vld [vmem:[#allocation5 + $0x8e8] sm:$0xff]
          %v1856 = vld [vmem:[#allocation5 + $0x8f0] sm:$0xff]
          %v1857 = vld [vmem:[#allocation5 + $0x8f8] sm:$0xff]
          %v1858 = vld [vmem:[#allocation5 + $0x900] sm:$0xff]
          %v1859 = vld [vmem:[#allocation5 + $0x908] sm:$0xff]
          %v1860 = vld [vmem:[#allocation5 + $0x910] sm:$0xff]
          %v1861 = vld [vmem:[#allocation5 + $0x918] sm:$0xff]
          %v1862 = vld [vmem:[#allocation5 + $0x920] sm:$0xff]
          %v1863 = vld [vmem:[#allocation5 + $0x928] sm:$0xff]
          %v1864 = vld [vmem:[#allocation5 + $0x930] sm:$0xff]
          %v1865 = vld [vmem:[#allocation5 + $0x938] sm:$0xff]
          %v1866 = vld [vmem:[#allocation5 + $0x940] sm:$0xff]
          %v1867 = vld [vmem:[#allocation5 + $0x948] sm:$0xff]
          %v1868 = vld [vmem:[#allocation5 + $0x950] sm:$0xff]
          %v1869 = vld [vmem:[#allocation5 + $0x958] sm:$0xff]
          %v1870 = vld [vmem:[#allocation5 + $0x960] sm:$0xff]
          %v1871 = vld [vmem:[#allocation5 + $0x968] sm:$0xff]
          %v1872 = vld [vmem:[#allocation5 + $0x970] sm:$0xff]
          %v1873 = vld [vmem:[#allocation5 + $0x978] sm:$0xff]
          %v1874 = vld [vmem:[#allocation5 + $0x980] sm:$0xff]
          %v1875 = vld [vmem:[#allocation5 + $0x988] sm:$0xff]
          %v1876 = vld [vmem:[#allocation5 + $0x990] sm:$0xff]
          %v1877 = vld [vmem:[#allocation5 + $0x998] sm:$0xff]
          %v1878 = vld [vmem:[#allocation5 + $0x9a0] sm:$0xff]
          %v1879 = vld [vmem:[#allocation5 + $0x9a8] sm:$0xff]
          %v1880 = vld [vmem:[#allocation5 + $0x9b0] sm:$0xff]
          %v1881 = vld [vmem:[#allocation5 + $0x9b8] sm:$0xff]
          %v1882 = vld [vmem:[#allocation5 + $0x9c0] sm:$0xff]
          %v1883 = vld [vmem:[#allocation5 + $0x9c8] sm:$0xff]
          %v1884 = vld [vmem:[#allocation5 + $0x9d0] sm:$0xff]
          %v1885 = vld [vmem:[#allocation5 + $0x9d8] sm:$0xff]
          %v1886 = vld [vmem:[#allocation5 + $0x9e0] sm:$0xff]
          %v1887 = vld [vmem:[#allocation5 + $0x9e8] sm:$0xff]
          %v1888 = vld [vmem:[#allocation5 + $0x9f0] sm:$0xff]
          %v1889 = vld [vmem:[#allocation5 + $0x9f8] sm:$0xff]
          %v1890 = vld [vmem:[#allocation5 + $0xa00] sm:$0xff]
          %v1891 = vld [vmem:[#allocation5 + $0xa08] sm:$0xff]
          %v1892 = vld [vmem:[#allocation5 + $0xa10] sm:$0xff]
          %v1893 = vld [vmem:[#allocation5 + $0xa18] sm:$0xff]
          %v1894 = vld [vmem:[#allocation5 + $0xa20] sm:$0xff]
          %v1895 = vld [vmem:[#allocation5 + $0xa28] sm:$0xff]
          %v1896 = vld [vmem:[#allocation5 + $0xa30] sm:$0xff]
          %v1897 = vld [vmem:[#allocation5 + $0xa38] sm:$0xff]
          %v1898 = vld [vmem:[#allocation5 + $0xa40] sm:$0xff]
          %v1899 = vld [vmem:[#allocation5 + $0xa48] sm:$0xff]
          %v1900 = vld [vmem:[#allocation5 + $0xa50] sm:$0xff]
          %v1901 = vld [vmem:[#allocation5 + $0xa58] sm:$0xff]
          %v1902 = vld [vmem:[#allocation5 + $0xa60] sm:$0xff]
          %v1903 = vld [vmem:[#allocation5 + $0xa68] sm:$0xff]
          %v1904 = vld [vmem:[#allocation5 + $0xa70] sm:$0xff]
          %v1905 = vld [vmem:[#allocation5 + $0xa78] sm:$0xff]
          %v1906 = vld [vmem:[#allocation5 + $0xa80] sm:$0xff]
          %v1907 = vld [vmem:[#allocation5 + $0xa88] sm:$0xff]
          %v1908 = vld [vmem:[#allocation5 + $0xa90] sm:$0xff]
          %v1909 = vld [vmem:[#allocation5 + $0xa98] sm:$0xff]
          %v1910 = vld [vmem:[#allocation5 + $0xaa0] sm:$0xff]
          %v1911 = vld [vmem:[#allocation5 + $0xaa8] sm:$0xff]
          %v1912 = vld [vmem:[#allocation5 + $0xab0] sm:$0xff]
          %v1913 = vld [vmem:[#allocation5 + $0xab8] sm:$0xff]
          %v1914 = vld [vmem:[#allocation5 + $0xac0] sm:$0xff]
          %v1915 = vld [vmem:[#allocation5 + $0xac8] sm:$0xff]
          %v1916 = vld [vmem:[#allocation5 + $0xad0] sm:$0xff]
          %v1917 = vld [vmem:[#allocation5 + $0xad8] sm:$0xff]
          %v1918 = vld [vmem:[#allocation5 + $0xae0] sm:$0xff]
          %v1919 = vld [vmem:[#allocation5 + $0xae8] sm:$0xff]
          %v1920 = vld [vmem:[#allocation5 + $0xaf0] sm:$0xff]
          %v1921 = vld [vmem:[#allocation5 + $0xaf8] sm:$0xff]
          %v1922 = vld [vmem:[#allocation5 + $0xb00] sm:$0xff]
          %v1923 = vld [vmem:[#allocation5 + $0xb08] sm:$0xff]
          %v1924 = vld [vmem:[#allocation5 + $0xb10] sm:$0xff]
          %v1925 = vld [vmem:[#allocation5 + $0xb18] sm:$0xff]
          %v1926 = vld [vmem:[#allocation5 + $0xb20] sm:$0xff]
          %v1927 = vld [vmem:[#allocation5 + $0xb28] sm:$0xff]
          %v1928 = vld [vmem:[#allocation5 + $0xb30] sm:$0xff]
          %v1929 = vld [vmem:[#allocation5 + $0xb38] sm:$0xff]
          %v1930 = vld [vmem:[#allocation5 + $0xb40] sm:$0xff]
          %v1931 = vld [vmem:[#allocation5 + $0xb48] sm:$0xff]
          %v1932 = vld [vmem:[#allocation5 + $0xb50] sm:$0xff]
          %v1933 = vld [vmem:[#allocation5 + $0xb58] sm:$0xff]
          %v1934 = vld [vmem:[#allocation5 + $0xb60] sm:$0xff]
          %v1935 = vld [vmem:[#allocation5 + $0xb68] sm:$0xff]
          %v1936 = vld [vmem:[#allocation5 + $0xb70] sm:$0xff]
          %v1937 = vld [vmem:[#allocation5 + $0xb78] sm:$0xff]
          %v1938 = vld [vmem:[#allocation5 + $0xb80] sm:$0xff]
          %v1939 = vld [vmem:[#allocation5 + $0xb88] sm:$0xff]
          %v1940 = vld [vmem:[#allocation5 + $0xb90] sm:$0xff]
          %v1941 = vld [vmem:[#allocation5 + $0xb98] sm:$0xff]
          %v1942 = vld [vmem:[#allocation5 + $0xba0] sm:$0xff]
          %v1943 = vld [vmem:[#allocation5 + $0xba8] sm:$0xff]
          %v1944 = vld [vmem:[#allocation5 + $0xbb0] sm:$0xff]
          %v1945 = vld [vmem:[#allocation5 + $0xbb8] sm:$0xff]
          %v1946 = vld [vmem:[#allocation5 + $0xbc0] sm:$0xff]
          %v1947 = vld [vmem:[#allocation5 + $0xbc8] sm:$0xff]
          %v1948 = vld [vmem:[#allocation5 + $0xbd0] sm:$0xff]
          %v1949 = vld [vmem:[#allocation5 + $0xbd8] sm:$0xff]
          %v1950 = vld [vmem:[#allocation5 + $0xbe0] sm:$0xff]
          %v1951 = vld [vmem:[#allocation5 + $0xbe8] sm:$0xff]
          %v1952 = vld [vmem:[#allocation5 + $0xbf0] sm:$0xff]
          %v1953 = vld [vmem:[#allocation5 + $0xbf8] sm:$0xff]
          %v1954 = vld [vmem:[#allocation8] sm:$0x3]
          %v1956 = vlaneseq
          %v1957 = vshrl.u32 %v1956, 7
          %v1958 = vsub.s32 0, %v1957
          %v1959 = vrot.slane %v1954, %v1958
          %v1960 = vlaneseq
          %v1961 = vshrl.u32 %v1960, 7
          %v1962 = vsub.s32 1, %v1961
          %v1963 = vrot.slane %v1954, %v1962
          %v2350 = vunpack.c.l.b16 %v1570
          %v2351 = vunpack.c.h.b16 %v1570
          %v2352 = vunpack.c.l.b16 %v1571
          %v2353 = vunpack.c.h.b16 %v1571
          %v2354 = vunpack.c.l.b16 %v1572
          %v2355 = vunpack.c.h.b16 %v1572
          %v2356 = vunpack.c.l.b16 %v1573
          %v2357 = vunpack.c.h.b16 %v1573
          %v2358 = vunpack.c.l.b16 %v1574
          %v2359 = vunpack.c.h.b16 %v1574
          %v2360 = vunpack.c.l.b16 %v1575
          %v2361 = vunpack.c.h.b16 %v1575
          %v2362 = vunpack.c.l.b16 %v1576
          %v2363 = vunpack.c.h.b16 %v1576
          %v2364 = vunpack.c.l.b16 %v1577
          %v2365 = vunpack.c.h.b16 %v1577
          %v2366 = vunpack.c.l.b16 %v1578
          %v2367 = vunpack.c.h.b16 %v1578
          %v2368 = vunpack.c.l.b16 %v1579
          %v2369 = vunpack.c.h.b16 %v1579
          %v2370 = vunpack.c.l.b16 %v1580
          %v2371 = vunpack.c.h.b16 %v1580
          %v2372 = vunpack.c.l.b16 %v1581
          %v2373 = vunpack.c.h.b16 %v1581
          %v2374 = vunpack.c.l.b16 %v1582
          %v2375 = vunpack.c.h.b16 %v1582
          %v2376 = vunpack.c.l.b16 %v1583
          %v2377 = vunpack.c.h.b16 %v1583
          %v2378 = vunpack.c.l.b16 %v1584
          %v2379 = vunpack.c.h.b16 %v1584
          %v2380 = vunpack.c.l.b16 %v1585
          %v2381 = vunpack.c.h.b16 %v1585
          %v2382 = vunpack.c.l.b16 %v1586
          %v2383 = vunpack.c.h.b16 %v1586
          %v2384 = vunpack.c.l.b16 %v1587
          %v2385 = vunpack.c.h.b16 %v1587
          %v2386 = vunpack.c.l.b16 %v1588
          %v2387 = vunpack.c.h.b16 %v1588
          %v2388 = vunpack.c.l.b16 %v1589
          %v2389 = vunpack.c.h.b16 %v1589
          %v2390 = vunpack.c.l.b16 %v1590
          %v2391 = vunpack.c.h.b16 %v1590
          %v2392 = vunpack.c.l.b16 %v1591
          %v2393 = vunpack.c.h.b16 %v1591
          %v2394 = vunpack.c.l.b16 %v1592
          %v2395 = vunpack.c.h.b16 %v1592
          %v2396 = vunpack.c.l.b16 %v1593
          %v2397 = vunpack.c.h.b16 %v1593
          %v2398 = vunpack.c.l.b16 %v1594
          %v2399 = vunpack.c.h.b16 %v1594
          %v2400 = vunpack.c.l.b16 %v1595
          %v2401 = vunpack.c.h.b16 %v1595
          %v2402 = vunpack.c.l.b16 %v1596
          %v2403 = vunpack.c.h.b16 %v1596
          %v2404 = vunpack.c.l.b16 %v1597
          %v2405 = vunpack.c.h.b16 %v1597
          %v2406 = vunpack.c.l.b16 %v1598
          %v2407 = vunpack.c.h.b16 %v1598
          %v2408 = vunpack.c.l.b16 %v1599
          %v2409 = vunpack.c.h.b16 %v1599
          %v2410 = vunpack.c.l.b16 %v1600
          %v2411 = vunpack.c.h.b16 %v1600
          %v2412 = vunpack.c.l.b16 %v1601
          %v2413 = vunpack.c.h.b16 %v1601
          %v2414 = vunpack.c.l.b16 %v1602
          %v2415 = vunpack.c.h.b16 %v1602
          %v2416 = vunpack.c.l.b16 %v1603
          %v2417 = vunpack.c.h.b16 %v1603
          %v2418 = vunpack.c.l.b16 %v1604
          %v2419 = vunpack.c.h.b16 %v1604
          %v2420 = vunpack.c.l.b16 %v1605
          %v2421 = vunpack.c.h.b16 %v1605
          %v2422 = vunpack.c.l.b16 %v1606
          %v2423 = vunpack.c.h.b16 %v1606
          %v2424 = vunpack.c.l.b16 %v1607
          %v2425 = vunpack.c.h.b16 %v1607
          %v2426 = vunpack.c.l.b16 %v1608
          %v2427 = vunpack.c.h.b16 %v1608
          %v2428 = vunpack.c.l.b16 %v1609
          %v2429 = vunpack.c.h.b16 %v1609
          %v2430 = vunpack.c.l.b16 %v1610
          %v2431 = vunpack.c.h.b16 %v1610
          %v2432 = vunpack.c.l.b16 %v1611
          %v2433 = vunpack.c.h.b16 %v1611
          %v2434 = vunpack.c.l.b16 %v1612
          %v2435 = vunpack.c.h.b16 %v1612
          %v2436 = vunpack.c.l.b16 %v1613
          %v2437 = vunpack.c.h.b16 %v1613
          %v2438 = vunpack.c.l.b16 %v1614
          %v2439 = vunpack.c.h.b16 %v1614
          %v2440 = vunpack.c.l.b16 %v1615
          %v2441 = vunpack.c.h.b16 %v1615
          %v2442 = vunpack.c.l.b16 %v1616
          %v2443 = vunpack.c.h.b16 %v1616
          %v2444 = vunpack.c.l.b16 %v1617
          %v2445 = vunpack.c.h.b16 %v1617
          %v2446 = vunpack.c.l.b16 %v1618
          %v2447 = vunpack.c.h.b16 %v1618
          %v2448 = vunpack.c.l.b16 %v1619
          %v2449 = vunpack.c.h.b16 %v1619
          %v2450 = vunpack.c.l.b16 %v1620
          %v2451 = vunpack.c.h.b16 %v1620
          %v2452 = vunpack.c.l.b16 %v1621
          %v2453 = vunpack.c.h.b16 %v1621
          %v2454 = vunpack.c.l.b16 %v1622
          %v2455 = vunpack.c.h.b16 %v1622
          %v2456 = vunpack.c.l.b16 %v1623
          %v2457 = vunpack.c.h.b16 %v1623
          %v2458 = vunpack.c.l.b16 %v1624
          %v2459 = vunpack.c.h.b16 %v1624
          %v2460 = vunpack.c.l.b16 %v1625
          %v2461 = vunpack.c.h.b16 %v1625
          %v2462 = vunpack.c.l.b16 %v1626
          %v2463 = vunpack.c.h.b16 %v1626
          %v2464 = vunpack.c.l.b16 %v1627
          %v2465 = vunpack.c.h.b16 %v1627
          %v2466 = vunpack.c.l.b16 %v1628
          %v2467 = vunpack.c.h.b16 %v1628
          %v2468 = vunpack.c.l.b16 %v1629
          %v2469 = vunpack.c.h.b16 %v1629
          %v2470 = vunpack.c.l.b16 %v1630
          %v2471 = vunpack.c.h.b16 %v1630
          %v2472 = vunpack.c.l.b16 %v1631
          %v2473 = vunpack.c.h.b16 %v1631
          %v2474 = vunpack.c.l.b16 %v1632
          %v2475 = vunpack.c.h.b16 %v1632
          %v2476 = vunpack.c.l.b16 %v1633
          %v2477 = vunpack.c.h.b16 %v1633
          %v2478 = vunpack.c.l.b16 %v1634
          %v2479 = vunpack.c.h.b16 %v1634
          %v2480 = vunpack.c.l.b16 %v1635
          %v2481 = vunpack.c.h.b16 %v1635
          %v2482 = vunpack.c.l.b16 %v1636
          %v2483 = vunpack.c.h.b16 %v1636
          %v2484 = vunpack.c.l.b16 %v1637
          %v2485 = vunpack.c.h.b16 %v1637
          %v2486 = vunpack.c.l.b16 %v1638
          %v2487 = vunpack.c.h.b16 %v1638
          %v2488 = vunpack.c.l.b16 %v1639
          %v2489 = vunpack.c.h.b16 %v1639
          %v2490 = vunpack.c.l.b16 %v1640
          %v2491 = vunpack.c.h.b16 %v1640
          %v2492 = vunpack.c.l.b16 %v1641
          %v2493 = vunpack.c.h.b16 %v1641
          %v2494 = vunpack.c.l.b16 %v1642
          %v2495 = vunpack.c.h.b16 %v1642
          %v2496 = vunpack.c.l.b16 %v1643
          %v2497 = vunpack.c.h.b16 %v1643
          %v2498 = vunpack.c.l.b16 %v1644
          %v2499 = vunpack.c.h.b16 %v1644
          %v2500 = vunpack.c.l.b16 %v1645
          %v2501 = vunpack.c.h.b16 %v1645
          %v2502 = vunpack.c.l.b16 %v1646
          %v2503 = vunpack.c.h.b16 %v1646
          %v2504 = vunpack.c.l.b16 %v1647
          %v2505 = vunpack.c.h.b16 %v1647
          %v2506 = vunpack.c.l.b16 %v1648
          %v2507 = vunpack.c.h.b16 %v1648
          %v2508 = vunpack.c.l.b16 %v1649
          %v2509 = vunpack.c.h.b16 %v1649
          %v2510 = vunpack.c.l.b16 %v1650
          %v2511 = vunpack.c.h.b16 %v1650
          %v2512 = vunpack.c.l.b16 %v1651
          %v2513 = vunpack.c.h.b16 %v1651
          %v2514 = vunpack.c.l.b16 %v1652
          %v2515 = vunpack.c.h.b16 %v1652
          %v2516 = vunpack.c.l.b16 %v1653
          %v2517 = vunpack.c.h.b16 %v1653
          %v2518 = vunpack.c.l.b16 %v1654
          %v2519 = vunpack.c.h.b16 %v1654
          %v2520 = vunpack.c.l.b16 %v1655
          %v2521 = vunpack.c.h.b16 %v1655
          %v2522 = vunpack.c.l.b16 %v1656
          %v2523 = vunpack.c.h.b16 %v1656
          %v2524 = vunpack.c.l.b16 %v1657
          %v2525 = vunpack.c.h.b16 %v1657
          %v2526 = vunpack.c.l.b16 %v1658
          %v2527 = vunpack.c.h.b16 %v1658
          %v2528 = vunpack.c.l.b16 %v1659
          %v2529 = vunpack.c.h.b16 %v1659
          %v2530 = vunpack.c.l.b16 %v1660
          %v2531 = vunpack.c.h.b16 %v1660
          %v2532 = vunpack.c.l.b16 %v1661
          %v2533 = vunpack.c.h.b16 %v1661
          %v2534 = vunpack.c.l.b16 %v1662
          %v2535 = vunpack.c.h.b16 %v1662
          %v2536 = vunpack.c.l.b16 %v1663
          %v2537 = vunpack.c.h.b16 %v1663
          %v2538 = vunpack.c.l.b16 %v1664
          %v2539 = vunpack.c.h.b16 %v1664
          %v2540 = vunpack.c.l.b16 %v1665
          %v2541 = vunpack.c.h.b16 %v1665
          %v2542 = vunpack.c.l.b16 %v1666
          %v2543 = vunpack.c.h.b16 %v1666
          %v2544 = vunpack.c.l.b16 %v1667
          %v2545 = vunpack.c.h.b16 %v1667
          %v2546 = vunpack.c.l.b16 %v1668
          %v2547 = vunpack.c.h.b16 %v1668
          %v2548 = vunpack.c.l.b16 %v1669
          %v2549 = vunpack.c.h.b16 %v1669
          %v2550 = vunpack.c.l.b16 %v1670
          %v2551 = vunpack.c.h.b16 %v1670
          %v2552 = vunpack.c.l.b16 %v1671
          %v2553 = vunpack.c.h.b16 %v1671
          %v2554 = vunpack.c.l.b16 %v1672
          %v2555 = vunpack.c.h.b16 %v1672
          %v2556 = vunpack.c.l.b16 %v1673
          %v2557 = vunpack.c.h.b16 %v1673
          %v2558 = vunpack.c.l.b16 %v1674
          %v2559 = vunpack.c.h.b16 %v1674
          %v2560 = vunpack.c.l.b16 %v1675
          %v2561 = vunpack.c.h.b16 %v1675
          %v2562 = vunpack.c.l.b16 %v1676
          %v2563 = vunpack.c.h.b16 %v1676
          %v2564 = vunpack.c.l.b16 %v1677
          %v2565 = vunpack.c.h.b16 %v1677
          %v2566 = vunpack.c.l.b16 %v1678
          %v2567 = vunpack.c.h.b16 %v1678
          %v2568 = vunpack.c.l.b16 %v1679
          %v2569 = vunpack.c.h.b16 %v1679
          %v2570 = vunpack.c.l.b16 %v1680
          %v2571 = vunpack.c.h.b16 %v1680
          %v2572 = vunpack.c.l.b16 %v1681
          %v2573 = vunpack.c.h.b16 %v1681
          %v2574 = vunpack.c.l.b16 %v1682
          %v2575 = vunpack.c.h.b16 %v1682
          %v2576 = vunpack.c.l.b16 %v1683
          %v2577 = vunpack.c.h.b16 %v1683
          %v2578 = vunpack.c.l.b16 %v1684
          %v2579 = vunpack.c.h.b16 %v1684
          %v2580 = vunpack.c.l.b16 %v1685
          %v2581 = vunpack.c.h.b16 %v1685
          %v2582 = vunpack.c.l.b16 %v1686
          %v2583 = vunpack.c.h.b16 %v1686
          %v2584 = vunpack.c.l.b16 %v1687
          %v2585 = vunpack.c.h.b16 %v1687
          %v2586 = vunpack.c.l.b16 %v1688
          %v2587 = vunpack.c.h.b16 %v1688
          %v2588 = vunpack.c.l.b16 %v1689
          %v2589 = vunpack.c.h.b16 %v1689
          %v2590 = vunpack.c.l.b16 %v1690
          %v2591 = vunpack.c.h.b16 %v1690
          %v2592 = vunpack.c.l.b16 %v1691
          %v2593 = vunpack.c.h.b16 %v1691
          %v2594 = vunpack.c.l.b16 %v1692
          %v2595 = vunpack.c.h.b16 %v1692
          %v2596 = vunpack.c.l.b16 %v1693
          %v2597 = vunpack.c.h.b16 %v1693
          %v2598 = vunpack.c.l.b16 %v1694
          %v2599 = vunpack.c.h.b16 %v1694
          %v2600 = vunpack.c.l.b16 %v1695
          %v2601 = vunpack.c.h.b16 %v1695
          %v2602 = vunpack.c.l.b16 %v1696
          %v2603 = vunpack.c.h.b16 %v1696
          %v2604 = vunpack.c.l.b16 %v1697
          %v2605 = vunpack.c.h.b16 %v1697
          %v2606 = vunpack.c.l.b16 %v1698
          %v2607 = vunpack.c.h.b16 %v1698
          %v2608 = vunpack.c.l.b16 %v1699
          %v2609 = vunpack.c.h.b16 %v1699
          %v2610 = vunpack.c.l.b16 %v1700
          %v2611 = vunpack.c.h.b16 %v1700
          %v2612 = vunpack.c.l.b16 %v1701
          %v2613 = vunpack.c.h.b16 %v1701
          %v2614 = vunpack.c.l.b16 %v1702
          %v2615 = vunpack.c.h.b16 %v1702
          %v2616 = vunpack.c.l.b16 %v1703
          %v2617 = vunpack.c.h.b16 %v1703
          %v2618 = vunpack.c.l.b16 %v1704
          %v2619 = vunpack.c.h.b16 %v1704
          %v2620 = vunpack.c.l.b16 %v1705
          %v2621 = vunpack.c.h.b16 %v1705
          %v2622 = vunpack.c.l.b16 %v1706
          %v2623 = vunpack.c.h.b16 %v1706
          %v2624 = vunpack.c.l.b16 %v1707
          %v2625 = vunpack.c.h.b16 %v1707
          %v2626 = vunpack.c.l.b16 %v1708
          %v2627 = vunpack.c.h.b16 %v1708
          %v2628 = vunpack.c.l.b16 %v1709
          %v2629 = vunpack.c.h.b16 %v1709
          %v2630 = vunpack.c.l.b16 %v1710
          %v2631 = vunpack.c.h.b16 %v1710
          %v2632 = vunpack.c.l.b16 %v1711
          %v2633 = vunpack.c.h.b16 %v1711
          %v2634 = vunpack.c.l.b16 %v1712
          %v2635 = vunpack.c.h.b16 %v1712
          %v2636 = vunpack.c.l.b16 %v1713
          %v2637 = vunpack.c.h.b16 %v1713
          %v2638 = vunpack.c.l.b16 %v1714
          %v2639 = vunpack.c.h.b16 %v1714
          %v2640 = vunpack.c.l.b16 %v1715
          %v2641 = vunpack.c.h.b16 %v1715
          %v2642 = vunpack.c.l.b16 %v1716
          %v2643 = vunpack.c.h.b16 %v1716
          %v2644 = vunpack.c.l.b16 %v1717
          %v2645 = vunpack.c.h.b16 %v1717
          %v2646 = vunpack.c.l.b16 %v1718
          %v2647 = vunpack.c.h.b16 %v1718
          %v2648 = vunpack.c.l.b16 %v1719
          %v2649 = vunpack.c.h.b16 %v1719
          %v2650 = vunpack.c.l.b16 %v1720
          %v2651 = vunpack.c.h.b16 %v1720
          %v2652 = vunpack.c.l.b16 %v1721
          %v2653 = vunpack.c.h.b16 %v1721
          %v2654 = vunpack.c.l.b16 %v1722
          %v2655 = vunpack.c.h.b16 %v1722
          %v2656 = vunpack.c.l.b16 %v1723
          %v2657 = vunpack.c.h.b16 %v1723
          %v2658 = vunpack.c.l.b16 %v1724
          %v2659 = vunpack.c.h.b16 %v1724
          %v2660 = vunpack.c.l.b16 %v1725
          %v2661 = vunpack.c.h.b16 %v1725
          %v2662 = vunpack.c.l.b16 %v1726
          %v2663 = vunpack.c.h.b16 %v1726
          %v2664 = vunpack.c.l.b16 %v1727
          %v2665 = vunpack.c.h.b16 %v1727
          %v2666 = vunpack.c.l.b16 %v1728
          %v2667 = vunpack.c.h.b16 %v1728
          %v2668 = vunpack.c.l.b16 %v1729
          %v2669 = vunpack.c.h.b16 %v1729
          %v2670 = vunpack.c.l.b16 %v1730
          %v2671 = vunpack.c.h.b16 %v1730
          %v2672 = vunpack.c.l.b16 %v1731
          %v2673 = vunpack.c.h.b16 %v1731
          %v2674 = vunpack.c.l.b16 %v1732
          %v2675 = vunpack.c.h.b16 %v1732
          %v2676 = vunpack.c.l.b16 %v1733
          %v2677 = vunpack.c.h.b16 %v1733
          %v2678 = vunpack.c.l.b16 %v1734
          %v2679 = vunpack.c.h.b16 %v1734
          %v2680 = vunpack.c.l.b16 %v1735
          %v2681 = vunpack.c.h.b16 %v1735
          %v2682 = vunpack.c.l.b16 %v1736
          %v2683 = vunpack.c.h.b16 %v1736
          %v2684 = vunpack.c.l.b16 %v1737
          %v2685 = vunpack.c.h.b16 %v1737
          %v2686 = vunpack.c.l.b16 %v1738
          %v2687 = vunpack.c.h.b16 %v1738
          %v2688 = vunpack.c.l.b16 %v1739
          %v2689 = vunpack.c.h.b16 %v1739
          %v2690 = vunpack.c.l.b16 %v1740
          %v2691 = vunpack.c.h.b16 %v1740
          %v2692 = vunpack.c.l.b16 %v1741
          %v2693 = vunpack.c.h.b16 %v1741
          %v2694 = vunpack.c.l.b16 %v1742
          %v2695 = vunpack.c.h.b16 %v1742
          %v2696 = vunpack.c.l.b16 %v1743
          %v2697 = vunpack.c.h.b16 %v1743
          %v2698 = vunpack.c.l.b16 %v1744
          %v2699 = vunpack.c.h.b16 %v1744
          %v2700 = vunpack.c.l.b16 %v1745
          %v2701 = vunpack.c.h.b16 %v1745
          %v2702 = vunpack.c.l.b16 %v1746
          %v2703 = vunpack.c.h.b16 %v1746
          %v2704 = vunpack.c.l.b16 %v1747
          %v2705 = vunpack.c.h.b16 %v1747
          %v2706 = vunpack.c.l.b16 %v1748
          %v2707 = vunpack.c.h.b16 %v1748
          %v2708 = vunpack.c.l.b16 %v1749
          %v2709 = vunpack.c.h.b16 %v1749
          %v2710 = vunpack.c.l.b16 %v1750
          %v2711 = vunpack.c.h.b16 %v1750
          %v2712 = vunpack.c.l.b16 %v1751
          %v2713 = vunpack.c.h.b16 %v1751
          %v2714 = vunpack.c.l.b16 %v1752
          %v2715 = vunpack.c.h.b16 %v1752
          %v2716 = vunpack.c.l.b16 %v1753
          %v2717 = vunpack.c.h.b16 %v1753
          %v2718 = vunpack.c.l.b16 %v1754
          %v2719 = vunpack.c.h.b16 %v1754
          %v2720 = vunpack.c.l.b16 %v1755
          %v2721 = vunpack.c.h.b16 %v1755
          %v2722 = vunpack.c.l.b16 %v1756
          %v2723 = vunpack.c.h.b16 %v1756
          %v2724 = vunpack.c.l.b16 %v1757
          %v2725 = vunpack.c.h.b16 %v1757
          %v2726 = vunpack.c.l.b16 %v1758
          %v2727 = vunpack.c.h.b16 %v1758
          %v2728 = vunpack.c.l.b16 %v1759
          %v2729 = vunpack.c.h.b16 %v1759
          %v2730 = vunpack.c.l.b16 %v1760
          %v2731 = vunpack.c.h.b16 %v1760
          %v2732 = vunpack.c.l.b16 %v1761
          %v2733 = vunpack.c.h.b16 %v1761
          %v2734 = vunpack.c.l.b16 %v1762
          %v2735 = vunpack.c.h.b16 %v1762
          %v2736 = vunpack.c.l.b16 %v1763
          %v2737 = vunpack.c.h.b16 %v1763
          %v2738 = vunpack.c.l.b16 %v1764
          %v2739 = vunpack.c.h.b16 %v1764
          %v2740 = vunpack.c.l.b16 %v1765
          %v2741 = vunpack.c.h.b16 %v1765
          %v2742 = vunpack.c.l.b16 %v1766
          %v2743 = vunpack.c.h.b16 %v1766
          %v2744 = vunpack.c.l.b16 %v1767
          %v2745 = vunpack.c.h.b16 %v1767
          %v2746 = vunpack.c.l.b16 %v1768
          %v2747 = vunpack.c.h.b16 %v1768
          %v2748 = vunpack.c.l.b16 %v1769
          %v2749 = vunpack.c.h.b16 %v1769
          %v2750 = vunpack.c.l.b16 %v1770
          %v2751 = vunpack.c.h.b16 %v1770
          %v2752 = vunpack.c.l.b16 %v1771
          %v2753 = vunpack.c.h.b16 %v1771
          %v2754 = vunpack.c.l.b16 %v1772
          %v2755 = vunpack.c.h.b16 %v1772
          %v2756 = vunpack.c.l.b16 %v1773
          %v2757 = vunpack.c.h.b16 %v1773
          %v2758 = vunpack.c.l.b16 %v1774
          %v2759 = vunpack.c.h.b16 %v1774
          %v2760 = vunpack.c.l.b16 %v1775
          %v2761 = vunpack.c.h.b16 %v1775
          %v2762 = vunpack.c.l.b16 %v1776
          %v2763 = vunpack.c.h.b16 %v1776
          %v2764 = vunpack.c.l.b16 %v1777
          %v2765 = vunpack.c.h.b16 %v1777
          %v2766 = vunpack.c.l.b16 %v1778
          %v2767 = vunpack.c.h.b16 %v1778
          %v2768 = vunpack.c.l.b16 %v1779
          %v2769 = vunpack.c.h.b16 %v1779
          %v2770 = vunpack.c.l.b16 %v1780
          %v2771 = vunpack.c.h.b16 %v1780
          %v2772 = vunpack.c.l.b16 %v1781
          %v2773 = vunpack.c.h.b16 %v1781
          %v2774 = vunpack.c.l.b16 %v1782
          %v2775 = vunpack.c.h.b16 %v1782
          %v2776 = vunpack.c.l.b16 %v1783
          %v2777 = vunpack.c.h.b16 %v1783
          %v2778 = vunpack.c.l.b16 %v1784
          %v2779 = vunpack.c.h.b16 %v1784
          %v2780 = vunpack.c.l.b16 %v1785
          %v2781 = vunpack.c.h.b16 %v1785
          %v2782 = vunpack.c.l.b16 %v1786
          %v2783 = vunpack.c.h.b16 %v1786
          %v2784 = vunpack.c.l.b16 %v1787
          %v2785 = vunpack.c.h.b16 %v1787
          %v2786 = vunpack.c.l.b16 %v1788
          %v2787 = vunpack.c.h.b16 %v1788
          %v2788 = vunpack.c.l.b16 %v1789
          %v2789 = vunpack.c.h.b16 %v1789
          %v2790 = vunpack.c.l.b16 %v1790
          %v2791 = vunpack.c.h.b16 %v1790
          %v2792 = vunpack.c.l.b16 %v1791
          %v2793 = vunpack.c.h.b16 %v1791
          %v2794 = vunpack.c.l.b16 %v1792
          %v2795 = vunpack.c.h.b16 %v1792
          %v2796 = vunpack.c.l.b16 %v1793
          %v2797 = vunpack.c.h.b16 %v1793
          %v2798 = vunpack.c.l.b16 %v1794
          %v2799 = vunpack.c.h.b16 %v1794
          %v2800 = vunpack.c.l.b16 %v1795
          %v2801 = vunpack.c.h.b16 %v1795
          %v2802 = vunpack.c.l.b16 %v1796
          %v2803 = vunpack.c.h.b16 %v1796
          %v2804 = vunpack.c.l.b16 %v1797
          %v2805 = vunpack.c.h.b16 %v1797
          %v2806 = vunpack.c.l.b16 %v1798
          %v2807 = vunpack.c.h.b16 %v1798
          %v2808 = vunpack.c.l.b16 %v1799
          %v2809 = vunpack.c.h.b16 %v1799
          %v2810 = vunpack.c.l.b16 %v1800
          %v2811 = vunpack.c.h.b16 %v1800
          %v2812 = vunpack.c.l.b16 %v1801
          %v2813 = vunpack.c.h.b16 %v1801
          %v2814 = vunpack.c.l.b16 %v1802
          %v2815 = vunpack.c.h.b16 %v1802
          %v2816 = vunpack.c.l.b16 %v1803
          %v2817 = vunpack.c.h.b16 %v1803
          %v2818 = vunpack.c.l.b16 %v1804
          %v2819 = vunpack.c.h.b16 %v1804
          %v2820 = vunpack.c.l.b16 %v1805
          %v2821 = vunpack.c.h.b16 %v1805
          %v2822 = vunpack.c.l.b16 %v1806
          %v2823 = vunpack.c.h.b16 %v1806
          %v2824 = vunpack.c.l.b16 %v1807
          %v2825 = vunpack.c.h.b16 %v1807
          %v2826 = vunpack.c.l.b16 %v1808
          %v2827 = vunpack.c.h.b16 %v1808
          %v2828 = vunpack.c.l.b16 %v1809
          %v2829 = vunpack.c.h.b16 %v1809
          %v2830 = vunpack.c.l.b16 %v1810
          %v2831 = vunpack.c.h.b16 %v1810
          %v2832 = vunpack.c.l.b16 %v1811
          %v2833 = vunpack.c.h.b16 %v1811
          %v2834 = vunpack.c.l.b16 %v1812
          %v2835 = vunpack.c.h.b16 %v1812
          %v2836 = vunpack.c.l.b16 %v1813
          %v2837 = vunpack.c.h.b16 %v1813
          %v2838 = vunpack.c.l.b16 %v1814
          %v2839 = vunpack.c.h.b16 %v1814
          %v2840 = vunpack.c.l.b16 %v1815
          %v2841 = vunpack.c.h.b16 %v1815
          %v2842 = vunpack.c.l.b16 %v1816
          %v2843 = vunpack.c.h.b16 %v1816
          %v2844 = vunpack.c.l.b16 %v1817
          %v2845 = vunpack.c.h.b16 %v1817
          %v2846 = vunpack.c.l.b16 %v1818
          %v2847 = vunpack.c.h.b16 %v1818
          %v2848 = vunpack.c.l.b16 %v1819
          %v2849 = vunpack.c.h.b16 %v1819
          %v2850 = vunpack.c.l.b16 %v1820
          %v2851 = vunpack.c.h.b16 %v1820
          %v2852 = vunpack.c.l.b16 %v1821
          %v2853 = vunpack.c.h.b16 %v1821
          %v2854 = vunpack.c.l.b16 %v1822
          %v2855 = vunpack.c.h.b16 %v1822
          %v2856 = vunpack.c.l.b16 %v1823
          %v2857 = vunpack.c.h.b16 %v1823
          %v2858 = vunpack.c.l.b16 %v1824
          %v2859 = vunpack.c.h.b16 %v1824
          %v2860 = vunpack.c.l.b16 %v1825
          %v2861 = vunpack.c.h.b16 %v1825
          %v2862 = vunpack.c.l.b16 %v1826
          %v2863 = vunpack.c.h.b16 %v1826
          %v2864 = vunpack.c.l.b16 %v1827
          %v2865 = vunpack.c.h.b16 %v1827
          %v2866 = vunpack.c.l.b16 %v1828
          %v2867 = vunpack.c.h.b16 %v1828
          %v2868 = vunpack.c.l.b16 %v1829
          %v2869 = vunpack.c.h.b16 %v1829
          %v2870 = vunpack.c.l.b16 %v1830
          %v2871 = vunpack.c.h.b16 %v1830
          %v2872 = vunpack.c.l.b16 %v1831
          %v2873 = vunpack.c.h.b16 %v1831
          %v2874 = vunpack.c.l.b16 %v1832
          %v2875 = vunpack.c.h.b16 %v1832
          %v2876 = vunpack.c.l.b16 %v1833
          %v2877 = vunpack.c.h.b16 %v1833
          %v2878 = vunpack.c.l.b16 %v1834
          %v2879 = vunpack.c.h.b16 %v1834
          %v2880 = vunpack.c.l.b16 %v1835
          %v2881 = vunpack.c.h.b16 %v1835
          %v2882 = vunpack.c.l.b16 %v1836
          %v2883 = vunpack.c.h.b16 %v1836
          %v2884 = vunpack.c.l.b16 %v1837
          %v2885 = vunpack.c.h.b16 %v1837
          %v2886 = vunpack.c.l.b16 %v1838
          %v2887 = vunpack.c.h.b16 %v1838
          %v2888 = vunpack.c.l.b16 %v1839
          %v2889 = vunpack.c.h.b16 %v1839
          %v2890 = vunpack.c.l.b16 %v1840
          %v2891 = vunpack.c.h.b16 %v1840
          %v2892 = vunpack.c.l.b16 %v1841
          %v2893 = vunpack.c.h.b16 %v1841
          %v2894 = vunpack.c.l.b16 %v1842
          %v2895 = vunpack.c.h.b16 %v1842
          %v2896 = vunpack.c.l.b16 %v1843
          %v2897 = vunpack.c.h.b16 %v1843
          %v2898 = vunpack.c.l.b16 %v1844
          %v2899 = vunpack.c.h.b16 %v1844
          %v2900 = vunpack.c.l.b16 %v1845
          %v2901 = vunpack.c.h.b16 %v1845
          %v2902 = vunpack.c.l.b16 %v1846
          %v2903 = vunpack.c.h.b16 %v1846
          %v2904 = vunpack.c.l.b16 %v1847
          %v2905 = vunpack.c.h.b16 %v1847
          %v2906 = vunpack.c.l.b16 %v1848
          %v2907 = vunpack.c.h.b16 %v1848
          %v2908 = vunpack.c.l.b16 %v1849
          %v2909 = vunpack.c.h.b16 %v1849
          %v2910 = vunpack.c.l.b16 %v1850
          %v2911 = vunpack.c.h.b16 %v1850
          %v2912 = vunpack.c.l.b16 %v1851
          %v2913 = vunpack.c.h.b16 %v1851
          %v2914 = vunpack.c.l.b16 %v1852
          %v2915 = vunpack.c.h.b16 %v1852
          %v2916 = vunpack.c.l.b16 %v1853
          %v2917 = vunpack.c.h.b16 %v1853
          %v2918 = vunpack.c.l.b16 %v1854
          %v2919 = vunpack.c.h.b16 %v1854
          %v2920 = vunpack.c.l.b16 %v1855
          %v2921 = vunpack.c.h.b16 %v1855
          %v2922 = vunpack.c.l.b16 %v1856
          %v2923 = vunpack.c.h.b16 %v1856
          %v2924 = vunpack.c.l.b16 %v1857
          %v2925 = vunpack.c.h.b16 %v1857
          %v2926 = vunpack.c.l.b16 %v1858
          %v2927 = vunpack.c.h.b16 %v1858
          %v2928 = vunpack.c.l.b16 %v1859
          %v2929 = vunpack.c.h.b16 %v1859
          %v2930 = vunpack.c.l.b16 %v1860
          %v2931 = vunpack.c.h.b16 %v1860
          %v2932 = vunpack.c.l.b16 %v1861
          %v2933 = vunpack.c.h.b16 %v1861
          %v2934 = vunpack.c.l.b16 %v1862
          %v2935 = vunpack.c.h.b16 %v1862
          %v2936 = vunpack.c.l.b16 %v1863
          %v2937 = vunpack.c.h.b16 %v1863
          %v2938 = vunpack.c.l.b16 %v1864
          %v2939 = vunpack.c.h.b16 %v1864
          %v2940 = vunpack.c.l.b16 %v1865
          %v2941 = vunpack.c.h.b16 %v1865
          %v2942 = vunpack.c.l.b16 %v1866
          %v2943 = vunpack.c.h.b16 %v1866
          %v2944 = vunpack.c.l.b16 %v1867
          %v2945 = vunpack.c.h.b16 %v1867
          %v2946 = vunpack.c.l.b16 %v1868
          %v2947 = vunpack.c.h.b16 %v1868
          %v2948 = vunpack.c.l.b16 %v1869
          %v2949 = vunpack.c.h.b16 %v1869
          %v2950 = vunpack.c.l.b16 %v1870
          %v2951 = vunpack.c.h.b16 %v1870
          %v2952 = vunpack.c.l.b16 %v1871
          %v2953 = vunpack.c.h.b16 %v1871
          %v2954 = vunpack.c.l.b16 %v1872
          %v2955 = vunpack.c.h.b16 %v1872
          %v2956 = vunpack.c.l.b16 %v1873
          %v2957 = vunpack.c.h.b16 %v1873
          %v2958 = vunpack.c.l.b16 %v1874
          %v2959 = vunpack.c.h.b16 %v1874
          %v2960 = vunpack.c.l.b16 %v1875
          %v2961 = vunpack.c.h.b16 %v1875
          %v2962 = vunpack.c.l.b16 %v1876
          %v2963 = vunpack.c.h.b16 %v1876
          %v2964 = vunpack.c.l.b16 %v1877
          %v2965 = vunpack.c.h.b16 %v1877
          %v2966 = vunpack.c.l.b16 %v1878
          %v2967 = vunpack.c.h.b16 %v1878
          %v2968 = vunpack.c.l.b16 %v1879
          %v2969 = vunpack.c.h.b16 %v1879
          %v2970 = vunpack.c.l.b16 %v1880
          %v2971 = vunpack.c.h.b16 %v1880
          %v2972 = vunpack.c.l.b16 %v1881
          %v2973 = vunpack.c.h.b16 %v1881
          %v2974 = vunpack.c.l.b16 %v1882
          %v2975 = vunpack.c.h.b16 %v1882
          %v2976 = vunpack.c.l.b16 %v1883
          %v2977 = vunpack.c.h.b16 %v1883
          %v2978 = vunpack.c.l.b16 %v1884
          %v2979 = vunpack.c.h.b16 %v1884
          %v2980 = vunpack.c.l.b16 %v1885
          %v2981 = vunpack.c.h.b16 %v1885
          %v2982 = vunpack.c.l.b16 %v1886
          %v2983 = vunpack.c.h.b16 %v1886
          %v2984 = vunpack.c.l.b16 %v1887
          %v2985 = vunpack.c.h.b16 %v1887
          %v2986 = vunpack.c.l.b16 %v1888
          %v2987 = vunpack.c.h.b16 %v1888
          %v2988 = vunpack.c.l.b16 %v1889
          %v2989 = vunpack.c.h.b16 %v1889
          %v2990 = vunpack.c.l.b16 %v1890
          %v2991 = vunpack.c.h.b16 %v1890
          %v2992 = vunpack.c.l.b16 %v1891
          %v2993 = vunpack.c.h.b16 %v1891
          %v2994 = vunpack.c.l.b16 %v1892
          %v2995 = vunpack.c.h.b16 %v1892
          %v2996 = vunpack.c.l.b16 %v1893
          %v2997 = vunpack.c.h.b16 %v1893
          %v2998 = vunpack.c.l.b16 %v1894
          %v2999 = vunpack.c.h.b16 %v1894
          %v3000 = vunpack.c.l.b16 %v1895
          %v3001 = vunpack.c.h.b16 %v1895
          %v3002 = vunpack.c.l.b16 %v1896
          %v3003 = vunpack.c.h.b16 %v1896
          %v3004 = vunpack.c.l.b16 %v1897
          %v3005 = vunpack.c.h.b16 %v1897
          %v3006 = vunpack.c.l.b16 %v1898
          %v3007 = vunpack.c.h.b16 %v1898
          %v3008 = vunpack.c.l.b16 %v1899
          %v3009 = vunpack.c.h.b16 %v1899
          %v3010 = vunpack.c.l.b16 %v1900
          %v3011 = vunpack.c.h.b16 %v1900
          %v3012 = vunpack.c.l.b16 %v1901
          %v3013 = vunpack.c.h.b16 %v1901
          %v3014 = vunpack.c.l.b16 %v1902
          %v3015 = vunpack.c.h.b16 %v1902
          %v3016 = vunpack.c.l.b16 %v1903
          %v3017 = vunpack.c.h.b16 %v1903
          %v3018 = vunpack.c.l.b16 %v1904
          %v3019 = vunpack.c.h.b16 %v1904
          %v3020 = vunpack.c.l.b16 %v1905
          %v3021 = vunpack.c.h.b16 %v1905
          %v3022 = vunpack.c.l.b16 %v1906
          %v3023 = vunpack.c.h.b16 %v1906
          %v3024 = vunpack.c.l.b16 %v1907
          %v3025 = vunpack.c.h.b16 %v1907
          %v3026 = vunpack.c.l.b16 %v1908
          %v3027 = vunpack.c.h.b16 %v1908
          %v3028 = vunpack.c.l.b16 %v1909
          %v3029 = vunpack.c.h.b16 %v1909
          %v3030 = vunpack.c.l.b16 %v1910
          %v3031 = vunpack.c.h.b16 %v1910
          %v3032 = vunpack.c.l.b16 %v1911
          %v3033 = vunpack.c.h.b16 %v1911
          %v3034 = vunpack.c.l.b16 %v1912
          %v3035 = vunpack.c.h.b16 %v1912
          %v3036 = vunpack.c.l.b16 %v1913
          %v3037 = vunpack.c.h.b16 %v1913
          %v3038 = vunpack.c.l.b16 %v1914
          %v3039 = vunpack.c.h.b16 %v1914
          %v3040 = vunpack.c.l.b16 %v1915
          %v3041 = vunpack.c.h.b16 %v1915
          %v3042 = vunpack.c.l.b16 %v1916
          %v3043 = vunpack.c.h.b16 %v1916
          %v3044 = vunpack.c.l.b16 %v1917
          %v3045 = vunpack.c.h.b16 %v1917
          %v3046 = vunpack.c.l.b16 %v1918
          %v3047 = vunpack.c.h.b16 %v1918
          %v3048 = vunpack.c.l.b16 %v1919
          %v3049 = vunpack.c.h.b16 %v1919
          %v3050 = vunpack.c.l.b16 %v1920
          %v3051 = vunpack.c.h.b16 %v1920
          %v3052 = vunpack.c.l.b16 %v1921
          %v3053 = vunpack.c.h.b16 %v1921
          %v3054 = vunpack.c.l.b16 %v1922
          %v3055 = vunpack.c.h.b16 %v1922
          %v3056 = vunpack.c.l.b16 %v1923
          %v3057 = vunpack.c.h.b16 %v1923
          %v3058 = vunpack.c.l.b16 %v1924
          %v3059 = vunpack.c.h.b16 %v1924
          %v3060 = vunpack.c.l.b16 %v1925
          %v3061 = vunpack.c.h.b16 %v1925
          %v3062 = vunpack.c.l.b16 %v1926
          %v3063 = vunpack.c.h.b16 %v1926
          %v3064 = vunpack.c.l.b16 %v1927
          %v3065 = vunpack.c.h.b16 %v1927
          %v3066 = vunpack.c.l.b16 %v1928
          %v3067 = vunpack.c.h.b16 %v1928
          %v3068 = vunpack.c.l.b16 %v1929
          %v3069 = vunpack.c.h.b16 %v1929
          %v3070 = vunpack.c.l.b16 %v1930
          %v3071 = vunpack.c.h.b16 %v1930
          %v3072 = vunpack.c.l.b16 %v1931
          %v3073 = vunpack.c.h.b16 %v1931
          %v3074 = vunpack.c.l.b16 %v1932
          %v3075 = vunpack.c.h.b16 %v1932
          %v3076 = vunpack.c.l.b16 %v1933
          %v3077 = vunpack.c.h.b16 %v1933
          %v3078 = vunpack.c.l.b16 %v1934
          %v3079 = vunpack.c.h.b16 %v1934
          %v3080 = vunpack.c.l.b16 %v1935
          %v3081 = vunpack.c.h.b16 %v1935
          %v3082 = vunpack.c.l.b16 %v1936
          %v3083 = vunpack.c.h.b16 %v1936
          %v3084 = vunpack.c.l.b16 %v1937
          %v3085 = vunpack.c.h.b16 %v1937
          %v3086 = vunpack.c.l.b16 %v1938
          %v3087 = vunpack.c.h.b16 %v1938
          %v3088 = vunpack.c.l.b16 %v1939
          %v3089 = vunpack.c.h.b16 %v1939
          %v3090 = vunpack.c.l.b16 %v1940
          %v3091 = vunpack.c.h.b16 %v1940
          %v3092 = vunpack.c.l.b16 %v1941
          %v3093 = vunpack.c.h.b16 %v1941
          %v3094 = vunpack.c.l.b16 %v1942
          %v3095 = vunpack.c.h.b16 %v1942
          %v3096 = vunpack.c.l.b16 %v1943
          %v3097 = vunpack.c.h.b16 %v1943
          %v3098 = vunpack.c.l.b16 %v1944
          %v3099 = vunpack.c.h.b16 %v1944
          %v3100 = vunpack.c.l.b16 %v1945
          %v3101 = vunpack.c.h.b16 %v1945
          %v3102 = vunpack.c.l.b16 %v1946
          %v3103 = vunpack.c.h.b16 %v1946
          %v3104 = vunpack.c.l.b16 %v1947
          %v3105 = vunpack.c.h.b16 %v1947
          %v3106 = vunpack.c.l.b16 %v1948
          %v3107 = vunpack.c.h.b16 %v1948
          %v3108 = vunpack.c.l.b16 %v1949
          %v3109 = vunpack.c.h.b16 %v1949
          %v3110 = vunpack.c.l.b16 %v1950
          %v3111 = vunpack.c.h.b16 %v1950
          %v3112 = vunpack.c.l.b16 %v1951
          %v3113 = vunpack.c.h.b16 %v1951
          %v3114 = vunpack.c.l.b16 %v1952
          %v3115 = vunpack.c.h.b16 %v1952
          %v3116 = vunpack.c.l.b16 %v1953
          %v3117 = vunpack.c.h.b16 %v1953
          %v3118 = vpack.c.b16 %v2352, %v2350
          %v3119 = vpack.c.b16 %v2353, %v2351
          %v3120 = vpack.c.b16 %v2356, %v2354
          %v3121 = vpack.c.b16 %v2357, %v2355
          %v3122 = vpack.c.b16 %v2360, %v2358
          %v3123 = vpack.c.b16 %v2361, %v2359
          %v3124 = vpack.c.b16 %v2364, %v2362
          %v3125 = vpack.c.b16 %v2365, %v2363
          %v3126 = vpack.c.b16 %v2368, %v2366
          %v3127 = vpack.c.b16 %v2369, %v2367
          %v3128 = vpack.c.b16 %v2372, %v2370
          %v3129 = vpack.c.b16 %v2373, %v2371
          %v3130 = vpack.c.b16 %v2376, %v2374
          %v3131 = vpack.c.b16 %v2377, %v2375
          %v3132 = vpack.c.b16 %v2380, %v2378
          %v3133 = vpack.c.b16 %v2381, %v2379
          %v3134 = vpack.c.b16 %v2384, %v2382
          %v3135 = vpack.c.b16 %v2385, %v2383
          %v3136 = vpack.c.b16 %v2388, %v2386
          %v3137 = vpack.c.b16 %v2389, %v2387
          %v3138 = vpack.c.b16 %v2392, %v2390
          %v3139 = vpack.c.b16 %v2393, %v2391
          %v3140 = vpack.c.b16 %v2396, %v2394
          %v3141 = vpack.c.b16 %v2397, %v2395
          %v3142 = vpack.c.b16 %v2400, %v2398
          %v3143 = vpack.c.b16 %v2401, %v2399
          %v3144 = vpack.c.b16 %v2404, %v2402
          %v3145 = vpack.c.b16 %v2405, %v2403
          %v3146 = vpack.c.b16 %v2408, %v2406
          %v3147 = vpack.c.b16 %v2409, %v2407
          %v3148 = vpack.c.b16 %v2412, %v2410
          %v3149 = vpack.c.b16 %v2413, %v2411
          %v3150 = vpack.c.b16 %v2416, %v2414
          %v3151 = vpack.c.b16 %v2417, %v2415
          %v3152 = vpack.c.b16 %v2420, %v2418
          %v3153 = vpack.c.b16 %v2421, %v2419
          %v3154 = vpack.c.b16 %v2424, %v2422
          %v3155 = vpack.c.b16 %v2425, %v2423
          %v3156 = vpack.c.b16 %v2428, %v2426
          %v3157 = vpack.c.b16 %v2429, %v2427
          %v3158 = vpack.c.b16 %v2432, %v2430
          %v3159 = vpack.c.b16 %v2433, %v2431
          %v3160 = vpack.c.b16 %v2436, %v2434
          %v3161 = vpack.c.b16 %v2437, %v2435
          %v3162 = vpack.c.b16 %v2440, %v2438
          %v3163 = vpack.c.b16 %v2441, %v2439
          %v3164 = vpack.c.b16 %v2444, %v2442
          %v3165 = vpack.c.b16 %v2445, %v2443
          %v3166 = vpack.c.b16 %v2448, %v2446
          %v3167 = vpack.c.b16 %v2449, %v2447
          %v3168 = vpack.c.b16 %v2452, %v2450
          %v3169 = vpack.c.b16 %v2453, %v2451
          %v3170 = vpack.c.b16 %v2456, %v2454
          %v3171 = vpack.c.b16 %v2457, %v2455
          %v3172 = vpack.c.b16 %v2460, %v2458
          %v3173 = vpack.c.b16 %v2461, %v2459
          %v3174 = vpack.c.b16 %v2464, %v2462
          %v3175 = vpack.c.b16 %v2465, %v2463
          %v3176 = vpack.c.b16 %v2468, %v2466
          %v3177 = vpack.c.b16 %v2469, %v2467
          %v3178 = vpack.c.b16 %v2472, %v2470
          %v3179 = vpack.c.b16 %v2473, %v2471
          %v3180 = vpack.c.b16 %v2476, %v2474
          %v3181 = vpack.c.b16 %v2477, %v2475
          %v3182 = vpack.c.b16 %v2480, %v2478
          %v3183 = vpack.c.b16 %v2481, %v2479
          %v3184 = vpack.c.b16 %v2484, %v2482
          %v3185 = vpack.c.b16 %v2485, %v2483
          %v3186 = vpack.c.b16 %v2488, %v2486
          %v3187 = vpack.c.b16 %v2489, %v2487
          %v3188 = vpack.c.b16 %v2492, %v2490
          %v3189 = vpack.c.b16 %v2493, %v2491
          %v3190 = vpack.c.b16 %v2496, %v2494
          %v3191 = vpack.c.b16 %v2497, %v2495
          %v3192 = vpack.c.b16 %v2500, %v2498
          %v3193 = vpack.c.b16 %v2501, %v2499
          %v3194 = vpack.c.b16 %v2504, %v2502
          %v3195 = vpack.c.b16 %v2505, %v2503
          %v3196 = vpack.c.b16 %v2508, %v2506
          %v3197 = vpack.c.b16 %v2509, %v2507
          %v3198 = vpack.c.b16 %v2512, %v2510
          %v3199 = vpack.c.b16 %v2513, %v2511
          %v3200 = vpack.c.b16 %v2516, %v2514
          %v3201 = vpack.c.b16 %v2517, %v2515
          %v3202 = vpack.c.b16 %v2520, %v2518
          %v3203 = vpack.c.b16 %v2521, %v2519
          %v3204 = vpack.c.b16 %v2524, %v2522
          %v3205 = vpack.c.b16 %v2525, %v2523
          %v3206 = vpack.c.b16 %v2528, %v2526
          %v3207 = vpack.c.b16 %v2529, %v2527
          %v3208 = vpack.c.b16 %v2532, %v2530
          %v3209 = vpack.c.b16 %v2533, %v2531
          %v3210 = vpack.c.b16 %v2536, %v2534
          %v3211 = vpack.c.b16 %v2537, %v2535
          %v3212 = vpack.c.b16 %v2540, %v2538
          %v3213 = vpack.c.b16 %v2541, %v2539
          %v3214 = vpack.c.b16 %v2544, %v2542
          %v3215 = vpack.c.b16 %v2545, %v2543
          %v3216 = vpack.c.b16 %v2548, %v2546
          %v3217 = vpack.c.b16 %v2549, %v2547
          %v3218 = vpack.c.b16 %v2552, %v2550
          %v3219 = vpack.c.b16 %v2553, %v2551
          %v3220 = vpack.c.b16 %v2556, %v2554
          %v3221 = vpack.c.b16 %v2557, %v2555
          %v3222 = vpack.c.b16 %v2560, %v2558
          %v3223 = vpack.c.b16 %v2561, %v2559
          %v3224 = vpack.c.b16 %v2564, %v2562
          %v3225 = vpack.c.b16 %v2565, %v2563
          %v3226 = vpack.c.b16 %v2568, %v2566
          %v3227 = vpack.c.b16 %v2569, %v2567
          %v3228 = vpack.c.b16 %v2572, %v2570
          %v3229 = vpack.c.b16 %v2573, %v2571
          %v3230 = vpack.c.b16 %v2576, %v2574
          %v3231 = vpack.c.b16 %v2577, %v2575
          %v3232 = vpack.c.b16 %v2580, %v2578
          %v3233 = vpack.c.b16 %v2581, %v2579
          %v3234 = vpack.c.b16 %v2584, %v2582
          %v3235 = vpack.c.b16 %v2585, %v2583
          %v3236 = vpack.c.b16 %v2588, %v2586
          %v3237 = vpack.c.b16 %v2589, %v2587
          %v3238 = vpack.c.b16 %v2592, %v2590
          %v3239 = vpack.c.b16 %v2593, %v2591
          %v3240 = vpack.c.b16 %v2596, %v2594
          %v3241 = vpack.c.b16 %v2597, %v2595
          %v3242 = vpack.c.b16 %v2600, %v2598
          %v3243 = vpack.c.b16 %v2601, %v2599
          %v3244 = vpack.c.b16 %v2604, %v2602
          %v3245 = vpack.c.b16 %v2605, %v2603
          %v3246 = vpack.c.b16 %v2608, %v2606
          %v3247 = vpack.c.b16 %v2609, %v2607
          %v3248 = vpack.c.b16 %v2612, %v2610
          %v3249 = vpack.c.b16 %v2613, %v2611
          %v3250 = vpack.c.b16 %v2616, %v2614
          %v3251 = vpack.c.b16 %v2617, %v2615
          %v3252 = vpack.c.b16 %v2620, %v2618
          %v3253 = vpack.c.b16 %v2621, %v2619
          %v3254 = vpack.c.b16 %v2624, %v2622
          %v3255 = vpack.c.b16 %v2625, %v2623
          %v3256 = vpack.c.b16 %v2628, %v2626
          %v3257 = vpack.c.b16 %v2629, %v2627
          %v3258 = vpack.c.b16 %v2632, %v2630
          %v3259 = vpack.c.b16 %v2633, %v2631
          %v3260 = vpack.c.b16 %v2636, %v2634
          %v3261 = vpack.c.b16 %v2637, %v2635
          %v3262 = vpack.c.b16 %v2640, %v2638
          %v3263 = vpack.c.b16 %v2641, %v2639
          %v3264 = vpack.c.b16 %v2644, %v2642
          %v3265 = vpack.c.b16 %v2645, %v2643
          %v3266 = vpack.c.b16 %v2648, %v2646
          %v3267 = vpack.c.b16 %v2649, %v2647
          %v3268 = vpack.c.b16 %v2652, %v2650
          %v3269 = vpack.c.b16 %v2653, %v2651
          %v3270 = vpack.c.b16 %v2656, %v2654
          %v3271 = vpack.c.b16 %v2657, %v2655
          %v3272 = vpack.c.b16 %v2660, %v2658
          %v3273 = vpack.c.b16 %v2661, %v2659
          %v3274 = vpack.c.b16 %v2664, %v2662
          %v3275 = vpack.c.b16 %v2665, %v2663
          %v3276 = vpack.c.b16 %v2668, %v2666
          %v3277 = vpack.c.b16 %v2669, %v2667
          %v3278 = vpack.c.b16 %v2672, %v2670
          %v3279 = vpack.c.b16 %v2673, %v2671
          %v3280 = vpack.c.b16 %v2676, %v2674
          %v3281 = vpack.c.b16 %v2677, %v2675
          %v3282 = vpack.c.b16 %v2680, %v2678
          %v3283 = vpack.c.b16 %v2681, %v2679
          %v3284 = vpack.c.b16 %v2684, %v2682
          %v3285 = vpack.c.b16 %v2685, %v2683
          %v3286 = vpack.c.b16 %v2688, %v2686
          %v3287 = vpack.c.b16 %v2689, %v2687
          %v3288 = vpack.c.b16 %v2692, %v2690
          %v3289 = vpack.c.b16 %v2693, %v2691
          %v3290 = vpack.c.b16 %v2696, %v2694
          %v3291 = vpack.c.b16 %v2697, %v2695
          %v3292 = vpack.c.b16 %v2700, %v2698
          %v3293 = vpack.c.b16 %v2701, %v2699
          %v3294 = vpack.c.b16 %v2704, %v2702
          %v3295 = vpack.c.b16 %v2705, %v2703
          %v3296 = vpack.c.b16 %v2708, %v2706
          %v3297 = vpack.c.b16 %v2709, %v2707
          %v3298 = vpack.c.b16 %v2712, %v2710
          %v3299 = vpack.c.b16 %v2713, %v2711
          %v3300 = vpack.c.b16 %v2716, %v2714
          %v3301 = vpack.c.b16 %v2717, %v2715
          %v3302 = vpack.c.b16 %v2720, %v2718
          %v3303 = vpack.c.b16 %v2721, %v2719
          %v3304 = vpack.c.b16 %v2724, %v2722
          %v3305 = vpack.c.b16 %v2725, %v2723
          %v3306 = vpack.c.b16 %v2728, %v2726
          %v3307 = vpack.c.b16 %v2729, %v2727
          %v3308 = vpack.c.b16 %v2732, %v2730
          %v3309 = vpack.c.b16 %v2733, %v2731
          %v3310 = vpack.c.b16 %v2736, %v2734
          %v3311 = vpack.c.b16 %v2737, %v2735
          %v3312 = vpack.c.b16 %v2740, %v2738
          %v3313 = vpack.c.b16 %v2741, %v2739
          %v3314 = vpack.c.b16 %v2744, %v2742
          %v3315 = vpack.c.b16 %v2745, %v2743
          %v3316 = vpack.c.b16 %v2748, %v2746
          %v3317 = vpack.c.b16 %v2749, %v2747
          %v3318 = vpack.c.b16 %v2752, %v2750
          %v3319 = vpack.c.b16 %v2753, %v2751
          %v3320 = vpack.c.b16 %v2756, %v2754
          %v3321 = vpack.c.b16 %v2757, %v2755
          %v3322 = vpack.c.b16 %v2760, %v2758
          %v3323 = vpack.c.b16 %v2761, %v2759
          %v3324 = vpack.c.b16 %v2764, %v2762
          %v3325 = vpack.c.b16 %v2765, %v2763
          %v3326 = vpack.c.b16 %v2768, %v2766
          %v3327 = vpack.c.b16 %v2769, %v2767
          %v3328 = vpack.c.b16 %v2772, %v2770
          %v3329 = vpack.c.b16 %v2773, %v2771
          %v3330 = vpack.c.b16 %v2776, %v2774
          %v3331 = vpack.c.b16 %v2777, %v2775
          %v3332 = vpack.c.b16 %v2780, %v2778
          %v3333 = vpack.c.b16 %v2781, %v2779
          %v3334 = vpack.c.b16 %v2784, %v2782
          %v3335 = vpack.c.b16 %v2785, %v2783
          %v3336 = vpack.c.b16 %v2788, %v2786
          %v3337 = vpack.c.b16 %v2789, %v2787
          %v3338 = vpack.c.b16 %v2792, %v2790
          %v3339 = vpack.c.b16 %v2793, %v2791
          %v3340 = vpack.c.b16 %v2796, %v2794
          %v3341 = vpack.c.b16 %v2797, %v2795
          %v3342 = vpack.c.b16 %v2800, %v2798
          %v3343 = vpack.c.b16 %v2801, %v2799
          %v3344 = vpack.c.b16 %v2804, %v2802
          %v3345 = vpack.c.b16 %v2805, %v2803
          %v3346 = vpack.c.b16 %v2808, %v2806
          %v3347 = vpack.c.b16 %v2809, %v2807
          %v3348 = vpack.c.b16 %v2812, %v2810
          %v3349 = vpack.c.b16 %v2813, %v2811
          %v3350 = vpack.c.b16 %v2816, %v2814
          %v3351 = vpack.c.b16 %v2817, %v2815
          %v3352 = vpack.c.b16 %v2820, %v2818
          %v3353 = vpack.c.b16 %v2821, %v2819
          %v3354 = vpack.c.b16 %v2824, %v2822
          %v3355 = vpack.c.b16 %v2825, %v2823
          %v3356 = vpack.c.b16 %v2828, %v2826
          %v3357 = vpack.c.b16 %v2829, %v2827
          %v3358 = vpack.c.b16 %v2832, %v2830
          %v3359 = vpack.c.b16 %v2833, %v2831
          %v3360 = vpack.c.b16 %v2836, %v2834
          %v3361 = vpack.c.b16 %v2837, %v2835
          %v3362 = vpack.c.b16 %v2840, %v2838
          %v3363 = vpack.c.b16 %v2841, %v2839
          %v3364 = vpack.c.b16 %v2844, %v2842
          %v3365 = vpack.c.b16 %v2845, %v2843
          %v3366 = vpack.c.b16 %v2848, %v2846
          %v3367 = vpack.c.b16 %v2849, %v2847
          %v3368 = vpack.c.b16 %v2852, %v2850
          %v3369 = vpack.c.b16 %v2853, %v2851
          %v3370 = vpack.c.b16 %v2856, %v2854
          %v3371 = vpack.c.b16 %v2857, %v2855
          %v3372 = vpack.c.b16 %v2860, %v2858
          %v3373 = vpack.c.b16 %v2861, %v2859
          %v3374 = vpack.c.b16 %v2864, %v2862
          %v3375 = vpack.c.b16 %v2865, %v2863
          %v3376 = vpack.c.b16 %v2868, %v2866
          %v3377 = vpack.c.b16 %v2869, %v2867
          %v3378 = vpack.c.b16 %v2872, %v2870
          %v3379 = vpack.c.b16 %v2873, %v2871
          %v3380 = vpack.c.b16 %v2876, %v2874
          %v3381 = vpack.c.b16 %v2877, %v2875
          %v3382 = vpack.c.b16 %v2880, %v2878
          %v3383 = vpack.c.b16 %v2881, %v2879
          %v3384 = vpack.c.b16 %v2884, %v2882
          %v3385 = vpack.c.b16 %v2885, %v2883
          %v3386 = vpack.c.b16 %v2888, %v2886
          %v3387 = vpack.c.b16 %v2889, %v2887
          %v3388 = vpack.c.b16 %v2892, %v2890
          %v3389 = vpack.c.b16 %v2893, %v2891
          %v3390 = vpack.c.b16 %v2896, %v2894
          %v3391 = vpack.c.b16 %v2897, %v2895
          %v3392 = vpack.c.b16 %v2900, %v2898
          %v3393 = vpack.c.b16 %v2901, %v2899
          %v3394 = vpack.c.b16 %v2904, %v2902
          %v3395 = vpack.c.b16 %v2905, %v2903
          %v3396 = vpack.c.b16 %v2908, %v2906
          %v3397 = vpack.c.b16 %v2909, %v2907
          %v3398 = vpack.c.b16 %v2912, %v2910
          %v3399 = vpack.c.b16 %v2913, %v2911
          %v3400 = vpack.c.b16 %v2916, %v2914
          %v3401 = vpack.c.b16 %v2917, %v2915
          %v3402 = vpack.c.b16 %v2920, %v2918
          %v3403 = vpack.c.b16 %v2921, %v2919
          %v3404 = vpack.c.b16 %v2924, %v2922
          %v3405 = vpack.c.b16 %v2925, %v2923
          %v3406 = vpack.c.b16 %v2928, %v2926
          %v3407 = vpack.c.b16 %v2929, %v2927
          %v3408 = vpack.c.b16 %v2932, %v2930
          %v3409 = vpack.c.b16 %v2933, %v2931
          %v3410 = vpack.c.b16 %v2936, %v2934
          %v3411 = vpack.c.b16 %v2937, %v2935
          %v3412 = vpack.c.b16 %v2940, %v2938
          %v3413 = vpack.c.b16 %v2941, %v2939
          %v3414 = vpack.c.b16 %v2944, %v2942
          %v3415 = vpack.c.b16 %v2945, %v2943
          %v3416 = vpack.c.b16 %v2948, %v2946
          %v3417 = vpack.c.b16 %v2949, %v2947
          %v3418 = vpack.c.b16 %v2952, %v2950
          %v3419 = vpack.c.b16 %v2953, %v2951
          %v3420 = vpack.c.b16 %v2956, %v2954
          %v3421 = vpack.c.b16 %v2957, %v2955
          %v3422 = vpack.c.b16 %v2960, %v2958
          %v3423 = vpack.c.b16 %v2961, %v2959
          %v3424 = vpack.c.b16 %v2964, %v2962
          %v3425 = vpack.c.b16 %v2965, %v2963
          %v3426 = vpack.c.b16 %v2968, %v2966
          %v3427 = vpack.c.b16 %v2969, %v2967
          %v3428 = vpack.c.b16 %v2972, %v2970
          %v3429 = vpack.c.b16 %v2973, %v2971
          %v3430 = vpack.c.b16 %v2976, %v2974
          %v3431 = vpack.c.b16 %v2977, %v2975
          %v3432 = vpack.c.b16 %v2980, %v2978
          %v3433 = vpack.c.b16 %v2981, %v2979
          %v3434 = vpack.c.b16 %v2984, %v2982
          %v3435 = vpack.c.b16 %v2985, %v2983
          %v3436 = vpack.c.b16 %v2988, %v2986
          %v3437 = vpack.c.b16 %v2989, %v2987
          %v3438 = vpack.c.b16 %v2992, %v2990
          %v3439 = vpack.c.b16 %v2993, %v2991
          %v3440 = vpack.c.b16 %v2996, %v2994
          %v3441 = vpack.c.b16 %v2997, %v2995
          %v3442 = vpack.c.b16 %v3000, %v2998
          %v3443 = vpack.c.b16 %v3001, %v2999
          %v3444 = vpack.c.b16 %v3004, %v3002
          %v3445 = vpack.c.b16 %v3005, %v3003
          %v3446 = vpack.c.b16 %v3008, %v3006
          %v3447 = vpack.c.b16 %v3009, %v3007
          %v3448 = vpack.c.b16 %v3012, %v3010
          %v3449 = vpack.c.b16 %v3013, %v3011
          %v3450 = vpack.c.b16 %v3016, %v3014
          %v3451 = vpack.c.b16 %v3017, %v3015
          %v3452 = vpack.c.b16 %v3020, %v3018
          %v3453 = vpack.c.b16 %v3021, %v3019
          %v3454 = vpack.c.b16 %v3024, %v3022
          %v3455 = vpack.c.b16 %v3025, %v3023
          %v3456 = vpack.c.b16 %v3028, %v3026
          %v3457 = vpack.c.b16 %v3029, %v3027
          %v3458 = vpack.c.b16 %v3032, %v3030
          %v3459 = vpack.c.b16 %v3033, %v3031
          %v3460 = vpack.c.b16 %v3036, %v3034
          %v3461 = vpack.c.b16 %v3037, %v3035
          %v3462 = vpack.c.b16 %v3040, %v3038
          %v3463 = vpack.c.b16 %v3041, %v3039
          %v3464 = vpack.c.b16 %v3044, %v3042
          %v3465 = vpack.c.b16 %v3045, %v3043
          %v3466 = vpack.c.b16 %v3048, %v3046
          %v3467 = vpack.c.b16 %v3049, %v3047
          %v3468 = vpack.c.b16 %v3052, %v3050
          %v3469 = vpack.c.b16 %v3053, %v3051
          %v3470 = vpack.c.b16 %v3056, %v3054
          %v3471 = vpack.c.b16 %v3057, %v3055
          %v3472 = vpack.c.b16 %v3060, %v3058
          %v3473 = vpack.c.b16 %v3061, %v3059
          %v3474 = vpack.c.b16 %v3064, %v3062
          %v3475 = vpack.c.b16 %v3065, %v3063
          %v3476 = vpack.c.b16 %v3068, %v3066
          %v3477 = vpack.c.b16 %v3069, %v3067
          %v3478 = vpack.c.b16 %v3072, %v3070
          %v3479 = vpack.c.b16 %v3073, %v3071
          %v3480 = vpack.c.b16 %v3076, %v3074
          %v3481 = vpack.c.b16 %v3077, %v3075
          %v3482 = vpack.c.b16 %v3080, %v3078
          %v3483 = vpack.c.b16 %v3081, %v3079
          %v3484 = vpack.c.b16 %v3084, %v3082
          %v3485 = vpack.c.b16 %v3085, %v3083
          %v3486 = vpack.c.b16 %v3088, %v3086
          %v3487 = vpack.c.b16 %v3089, %v3087
          %v3488 = vpack.c.b16 %v3092, %v3090
          %v3489 = vpack.c.b16 %v3093, %v3091
          %v3490 = vpack.c.b16 %v3096, %v3094
          %v3491 = vpack.c.b16 %v3097, %v3095
          %v3492 = vpack.c.b16 %v3100, %v3098
          %v3493 = vpack.c.b16 %v3101, %v3099
          %v3494 = vpack.c.b16 %v3104, %v3102
          %v3495 = vpack.c.b16 %v3105, %v3103
          %v3496 = vpack.c.b16 %v3108, %v3106
          %v3497 = vpack.c.b16 %v3109, %v3107
          %v3498 = vpack.c.b16 %v3112, %v3110
          %v3499 = vpack.c.b16 %v3113, %v3111
          %v3500 = vpack.c.b16 %v3116, %v3114
          %v3501 = vpack.c.b16 %v3117, %v3115
          %3886 = vmatprep.subr.bf16.mxu0 %v3133
          %3887 = vmatpush1.bf16.msra.mxu0 %v3132
          %3888 = vmatprep.subr.bf16.mxu0 %v3131
          %3889 = vmatpush1.bf16.msra.mxu0 %v3130
          %3890 = vmatprep.subr.bf16.mxu0 %v3129
          %3891 = vmatpush1.bf16.msra.mxu0 %v3128
          %3892 = vmatprep.subr.bf16.mxu0 %v3127
          %3893 = vmatpush1.bf16.msra.mxu0 %v3126
          %3894 = vmatprep.subr.bf16.mxu0 %v3125
          %3895 = vmatpush1.bf16.msra.mxu0 %v3124
          %3896 = vmatprep.subr.bf16.mxu0 %v3123
          %3897 = vmatpush1.bf16.msra.mxu0 %v3122
          %3898 = vmatprep.subr.bf16.mxu0 %v3121
          %3899 = vmatpush1.bf16.msra.mxu0 %v3120
          %3900 = vmatprep.subr.bf16.mxu0 %v3119
          %3901 = vmatpush1.bf16.msra.mxu0 %v3118
          %3902 = vmatprep.subr.bf16.mxu0 %v3149
          %3903 = vmatpush2.bf16.msra.mxu0 %v3148
          %3904 = vmatprep.subr.bf16.mxu0 %v3147
          %3905 = vmatpush2.bf16.msra.mxu0 %v3146
          %3906 = vmatprep.subr.bf16.mxu0 %v3145
          %3907 = vmatpush2.bf16.msra.mxu0 %v3144
          %3908 = vmatprep.subr.bf16.mxu0 %v3143
          %3909 = vmatpush2.bf16.msra.mxu0 %v3142
          %3910 = vmatprep.subr.bf16.mxu0 %v3141
          %3911 = vmatpush2.bf16.msra.mxu0 %v3140
          %3912 = vmatprep.subr.bf16.mxu0 %v3139
          %3913 = vmatpush2.bf16.msra.mxu0 %v3138
          %3914 = vmatprep.subr.bf16.mxu0 %v3137
          %3915 = vmatpush2.bf16.msra.mxu0 %v3136
          %3916 = vmatprep.subr.bf16.mxu0 %v3135
          %3917 = vmatpush2.bf16.msra.mxu0 %v3134
          %3918 = vmatprep.mubr.bf16.mxu0 %v1547
          %3919 = vmatmul.mubr.bf16.gmra.mxu0 %v1546
          %v3920 = vpop.f32.mrf.mxu0
          %v3921 = vadd.f32 %v1959, %v3920
          %v3922 = vpop.f32.mrf.mxu0
          %v3923 = vadd.f32 %v1963, %v3922
          %v3924 = vpop.f32.mrf.mxu0
          %v3925 = vpop.f32.mrf.mxu0
          %3926 = vdwg.mxu0
          %3927 = vmatprep.subr.bf16.mxu0 %v3165
          %3928 = vmatpush1.bf16.msra.mxu0 %v3164
          %3929 = vmatprep.subr.bf16.mxu0 %v3163
          %3930 = vmatpush1.bf16.msra.mxu0 %v3162
          %3931 = vmatprep.subr.bf16.mxu0 %v3161
          %3932 = vmatpush1.bf16.msra.mxu0 %v3160
          %3933 = vmatprep.subr.bf16.mxu0 %v3159
          %3934 = vmatpush1.bf16.msra.mxu0 %v3158
          %3935 = vmatprep.subr.bf16.mxu0 %v3157
          %3936 = vmatpush1.bf16.msra.mxu0 %v3156
          %3937 = vmatprep.subr.bf16.mxu0 %v3155
          %3938 = vmatpush1.bf16.msra.mxu0 %v3154
          %3939 = vmatprep.subr.bf16.mxu0 %v3153
          %3940 = vmatpush1.bf16.msra.mxu0 %v3152
          %3941 = vmatprep.subr.bf16.mxu0 %v3151
          %3942 = vmatpush1.bf16.msra.mxu0 %v3150
          %3943 = vmatprep.subr.bf16.mxu0 %v3181
          %3944 = vmatpush2.bf16.msra.mxu0 %v3180
          %3945 = vmatprep.subr.bf16.mxu0 %v3179
          %3946 = vmatpush2.bf16.msra.mxu0 %v3178
          %3947 = vmatprep.subr.bf16.mxu0 %v3177
          %3948 = vmatpush2.bf16.msra.mxu0 %v3176
          %3949 = vmatprep.subr.bf16.mxu0 %v3175
          %3950 = vmatpush2.bf16.msra.mxu0 %v3174
          %3951 = vmatprep.subr.bf16.mxu0 %v3173
          %3952 = vmatpush2.bf16.msra.mxu0 %v3172
          %3953 = vmatprep.subr.bf16.mxu0 %v3171
          %3954 = vmatpush2.bf16.msra.mxu0 %v3170
          %3955 = vmatprep.subr.bf16.mxu0 %v3169
          %3956 = vmatpush2.bf16.msra.mxu0 %v3168
          %3957 = vmatprep.subr.bf16.mxu0 %v3167
          %3958 = vmatpush2.bf16.msra.mxu0 %v3166
          %3959 = vmatprep.mubr.bf16.mxu0 %v1549
          %3960 = vmatmul.mubr.bf16.gmra.mxu0 %v1548
          %v3961 = vpop.f32.mrf.mxu0
          %v3962 = vadd.f32 %v3921, %v3961
          %v3963 = vpop.f32.mrf.mxu0
          %v3964 = vadd.f32 %v3923, %v3963
          %v3965 = vpop.f32.mrf.mxu0
          %v3966 = vpop.f32.mrf.mxu0
          %3967 = vdwg.mxu0
          %3968 = vmatprep.subr.bf16.mxu0 %v3197
          %3969 = vmatpush1.bf16.msra.mxu0 %v3196
          %3970 = vmatprep.subr.bf16.mxu0 %v3195
          %3971 = vmatpush1.bf16.msra.mxu0 %v3194
          %3972 = vmatprep.subr.bf16.mxu0 %v3193
          %3973 = vmatpush1.bf16.msra.mxu0 %v3192
          %3974 = vmatprep.subr.bf16.mxu0 %v3191
          %3975 = vmatpush1.bf16.msra.mxu0 %v3190
          %3976 = vmatprep.subr.bf16.mxu0 %v3189
          %3977 = vmatpush1.bf16.msra.mxu0 %v3188
          %3978 = vmatprep.subr.bf16.mxu0 %v3187
          %3979 = vmatpush1.bf16.msra.mxu0 %v3186
          %3980 = vmatprep.subr.bf16.mxu0 %v3185
          %3981 = vmatpush1.bf16.msra.mxu0 %v3184
          %3982 = vmatprep.subr.bf16.mxu0 %v3183
          %3983 = vmatpush1.bf16.msra.mxu0 %v3182
          %3984 = vmatprep.subr.bf16.mxu0 %v3213
          %3985 = vmatpush2.bf16.msra.mxu0 %v3212
          %3986 = vmatprep.subr.bf16.mxu0 %v3211
          %3987 = vmatpush2.bf16.msra.mxu0 %v3210
          %3988 = vmatprep.subr.bf16.mxu0 %v3209
          %3989 = vmatpush2.bf16.msra.mxu0 %v3208
          %3990 = vmatprep.subr.bf16.mxu0 %v3207
          %3991 = vmatpush2.bf16.msra.mxu0 %v3206
          %3992 = vmatprep.subr.bf16.mxu0 %v3205
          %3993 = vmatpush2.bf16.msra.mxu0 %v3204
          %3994 = vmatprep.subr.bf16.mxu0 %v3203
          %3995 = vmatpush2.bf16.msra.mxu0 %v3202
          %3996 = vmatprep.subr.bf16.mxu0 %v3201
          %3997 = vmatpush2.bf16.msra.mxu0 %v3200
          %3998 = vmatprep.subr.bf16.mxu0 %v3199
          %3999 = vmatpush2.bf16.msra.mxu0 %v3198
          %4000 = vmatprep.mubr.bf16.mxu0 %v1551
          %4001 = vmatmul.mubr.bf16.gmra.mxu0 %v1550
          %v4002 = vpop.f32.mrf.mxu0
          %v4003 = vadd.f32 %v3962, %v4002
          %v4004 = vpop.f32.mrf.mxu0
          %v4005 = vadd.f32 %v3964, %v4004
          %v4006 = vpop.f32.mrf.mxu0
          %v4007 = vpop.f32.mrf.mxu0
          %4008 = vdwg.mxu0
          %4009 = vmatprep.subr.bf16.mxu0 %v3229
          %4010 = vmatpush1.bf16.msra.mxu0 %v3228
          %4011 = vmatprep.subr.bf16.mxu0 %v3227
          %4012 = vmatpush1.bf16.msra.mxu0 %v3226
          %4013 = vmatprep.subr.bf16.mxu0 %v3225
          %4014 = vmatpush1.bf16.msra.mxu0 %v3224
          %4015 = vmatprep.subr.bf16.mxu0 %v3223
          %4016 = vmatpush1.bf16.msra.mxu0 %v3222
          %4017 = vmatprep.subr.bf16.mxu0 %v3221
          %4018 = vmatpush1.bf16.msra.mxu0 %v3220
          %4019 = vmatprep.subr.bf16.mxu0 %v3219
          %4020 = vmatpush1.bf16.msra.mxu0 %v3218
          %4021 = vmatprep.subr.bf16.mxu0 %v3217
          %4022 = vmatpush1.bf16.msra.mxu0 %v3216
          %4023 = vmatprep.subr.bf16.mxu0 %v3215
          %4024 = vmatpush1.bf16.msra.mxu0 %v3214
          %4025 = vmatprep.subr.bf16.mxu0 %v3245
          %4026 = vmatpush2.bf16.msra.mxu0 %v3244
          %4027 = vmatprep.subr.bf16.mxu0 %v3243
          %4028 = vmatpush2.bf16.msra.mxu0 %v3242
          %4029 = vmatprep.subr.bf16.mxu0 %v3241
          %4030 = vmatpush2.bf16.msra.mxu0 %v3240
          %4031 = vmatprep.subr.bf16.mxu0 %v3239
          %4032 = vmatpush2.bf16.msra.mxu0 %v3238
          %4033 = vmatprep.subr.bf16.mxu0 %v3237
          %4034 = vmatpush2.bf16.msra.mxu0 %v3236
          %4035 = vmatprep.subr.bf16.mxu0 %v3235
          %4036 = vmatpush2.bf16.msra.mxu0 %v3234
          %4037 = vmatprep.subr.bf16.mxu0 %v3233
          %4038 = vmatpush2.bf16.msra.mxu0 %v3232
          %4039 = vmatprep.subr.bf16.mxu0 %v3231
          %4040 = vmatpush2.bf16.msra.mxu0 %v3230
          %4041 = vmatprep.mubr.bf16.mxu0 %v1553
          %4042 = vmatmul.mubr.bf16.gmra.mxu0 %v1552
          %v4043 = vpop.f32.mrf.mxu0
          %v4044 = vadd.f32 %v4003, %v4043
          %v4045 = vpop.f32.mrf.mxu0
          %v4046 = vadd.f32 %v4005, %v4045
          %v4047 = vpop.f32.mrf.mxu0
          %v4048 = vpop.f32.mrf.mxu0
          %4049 = vdwg.mxu0
          %4050 = vmatprep.subr.bf16.mxu0 %v3261
          %4051 = vmatpush1.bf16.msra.mxu0 %v3260
          %4052 = vmatprep.subr.bf16.mxu0 %v3259
          %4053 = vmatpush1.bf16.msra.mxu0 %v3258
          %4054 = vmatprep.subr.bf16.mxu0 %v3257
          %4055 = vmatpush1.bf16.msra.mxu0 %v3256
          %4056 = vmatprep.subr.bf16.mxu0 %v3255
          %4057 = vmatpush1.bf16.msra.mxu0 %v3254
          %4058 = vmatprep.subr.bf16.mxu0 %v3253
          %4059 = vmatpush1.bf16.msra.mxu0 %v3252
          %4060 = vmatprep.subr.bf16.mxu0 %v3251
          %4061 = vmatpush1.bf16.msra.mxu0 %v3250
          %4062 = vmatprep.subr.bf16.mxu0 %v3249
          %4063 = vmatpush1.bf16.msra.mxu0 %v3248
          %4064 = vmatprep.subr.bf16.mxu0 %v3247
          %4065 = vmatpush1.bf16.msra.mxu0 %v3246
          %4066 = vmatprep.subr.bf16.mxu0 %v3277
          %4067 = vmatpush2.bf16.msra.mxu0 %v3276
          %4068 = vmatprep.subr.bf16.mxu0 %v3275
          %4069 = vmatpush2.bf16.msra.mxu0 %v3274
          %4070 = vmatprep.subr.bf16.mxu0 %v3273
          %4071 = vmatpush2.bf16.msra.mxu0 %v3272
          %4072 = vmatprep.subr.bf16.mxu0 %v3271
          %4073 = vmatpush2.bf16.msra.mxu0 %v3270
          %4074 = vmatprep.subr.bf16.mxu0 %v3269
          %4075 = vmatpush2.bf16.msra.mxu0 %v3268
          %4076 = vmatprep.subr.bf16.mxu0 %v3267
          %4077 = vmatpush2.bf16.msra.mxu0 %v3266
          %4078 = vmatprep.subr.bf16.mxu0 %v3265
          %4079 = vmatpush2.bf16.msra.mxu0 %v3264
          %4080 = vmatprep.subr.bf16.mxu0 %v3263
          %4081 = vmatpush2.bf16.msra.mxu0 %v3262
          %4082 = vmatprep.mubr.bf16.mxu0 %v1555
          %4083 = vmatmul.mubr.bf16.gmra.mxu0 %v1554
          %v4084 = vpop.f32.mrf.mxu0
          %v4085 = vadd.f32 %v4044, %v4084
          %v4086 = vpop.f32.mrf.mxu0
          %v4087 = vadd.f32 %v4046, %v4086
          %v4088 = vpop.f32.mrf.mxu0
          %v4089 = vpop.f32.mrf.mxu0
          %4090 = vdwg.mxu0
          %4091 = vmatprep.subr.bf16.mxu0 %v3293
          %4092 = vmatpush1.bf16.msra.mxu0 %v3292
          %4093 = vmatprep.subr.bf16.mxu0 %v3291
          %4094 = vmatpush1.bf16.msra.mxu0 %v3290
          %4095 = vmatprep.subr.bf16.mxu0 %v3289
          %4096 = vmatpush1.bf16.msra.mxu0 %v3288
          %4097 = vmatprep.subr.bf16.mxu0 %v3287
          %4098 = vmatpush1.bf16.msra.mxu0 %v3286
          %4099 = vmatprep.subr.bf16.mxu0 %v3285
          %4100 = vmatpush1.bf16.msra.mxu0 %v3284
          %4101 = vmatprep.subr.bf16.mxu0 %v3283
          %4102 = vmatpush1.bf16.msra.mxu0 %v3282
          %4103 = vmatprep.subr.bf16.mxu0 %v3281
          %4104 = vmatpush1.bf16.msra.mxu0 %v3280
          %4105 = vmatprep.subr.bf16.mxu0 %v3279
          %4106 = vmatpush1.bf16.msra.mxu0 %v3278
          %4107 = vmatprep.subr.bf16.mxu0 %v3309
          %4108 = vmatpush2.bf16.msra.mxu0 %v3308
          %4109 = vmatprep.subr.bf16.mxu0 %v3307
          %4110 = vmatpush2.bf16.msra.mxu0 %v3306
          %4111 = vmatprep.subr.bf16.mxu0 %v3305
          %4112 = vmatpush2.bf16.msra.mxu0 %v3304
          %4113 = vmatprep.subr.bf16.mxu0 %v3303
          %4114 = vmatpush2.bf16.msra.mxu0 %v3302
          %4115 = vmatprep.subr.bf16.mxu0 %v3301
          %4116 = vmatpush2.bf16.msra.mxu0 %v3300
          %4117 = vmatprep.subr.bf16.mxu0 %v3299
          %4118 = vmatpush2.bf16.msra.mxu0 %v3298
          %4119 = vmatprep.subr.bf16.mxu0 %v3297
          %4120 = vmatpush2.bf16.msra.mxu0 %v3296
          %4121 = vmatprep.subr.bf16.mxu0 %v3295
          %4122 = vmatpush2.bf16.msra.mxu0 %v3294
          %4123 = vmatprep.mubr.bf16.mxu0 %v1557
          %4124 = vmatmul.mubr.bf16.gmra.mxu0 %v1556
          %v4125 = vpop.f32.mrf.mxu0
          %v4126 = vadd.f32 %v4085, %v4125
          %v4127 = vpop.f32.mrf.mxu0
          %v4128 = vadd.f32 %v4087, %v4127
          %v4129 = vpop.f32.mrf.mxu0
          %v4130 = vpop.f32.mrf.mxu0
          %4131 = vdwg.mxu0
          %4132 = vmatprep.subr.bf16.mxu0 %v3325
          %4133 = vmatpush1.bf16.msra.mxu0 %v3324
          %4134 = vmatprep.subr.bf16.mxu0 %v3323
          %4135 = vmatpush1.bf16.msra.mxu0 %v3322
          %4136 = vmatprep.subr.bf16.mxu0 %v3321
          %4137 = vmatpush1.bf16.msra.mxu0 %v3320
          %4138 = vmatprep.subr.bf16.mxu0 %v3319
          %4139 = vmatpush1.bf16.msra.mxu0 %v3318
          %4140 = vmatprep.subr.bf16.mxu0 %v3317
          %4141 = vmatpush1.bf16.msra.mxu0 %v3316
          %4142 = vmatprep.subr.bf16.mxu0 %v3315
          %4143 = vmatpush1.bf16.msra.mxu0 %v3314
          %4144 = vmatprep.subr.bf16.mxu0 %v3313
          %4145 = vmatpush1.bf16.msra.mxu0 %v3312
          %4146 = vmatprep.subr.bf16.mxu0 %v3311
          %4147 = vmatpush1.bf16.msra.mxu0 %v3310
          %4148 = vmatprep.subr.bf16.mxu0 %v3341
          %4149 = vmatpush2.bf16.msra.mxu0 %v3340
          %4150 = vmatprep.subr.bf16.mxu0 %v3339
          %4151 = vmatpush2.bf16.msra.mxu0 %v3338
          %4152 = vmatprep.subr.bf16.mxu0 %v3337
          %4153 = vmatpush2.bf16.msra.mxu0 %v3336
          %4154 = vmatprep.subr.bf16.mxu0 %v3335
          %4155 = vmatpush2.bf16.msra.mxu0 %v3334
          %4156 = vmatprep.subr.bf16.mxu0 %v3333
          %4157 = vmatpush2.bf16.msra.mxu0 %v3332
          %4158 = vmatprep.subr.bf16.mxu0 %v3331
          %4159 = vmatpush2.bf16.msra.mxu0 %v3330
          %4160 = vmatprep.subr.bf16.mxu0 %v3329
          %4161 = vmatpush2.bf16.msra.mxu0 %v3328
          %4162 = vmatprep.subr.bf16.mxu0 %v3327
          %4163 = vmatpush2.bf16.msra.mxu0 %v3326
          %4164 = vmatprep.mubr.bf16.mxu0 %v1559
          %4165 = vmatmul.mubr.bf16.gmra.mxu0 %v1558
          %v4166 = vpop.f32.mrf.mxu0
          %v4167 = vadd.f32 %v4126, %v4166
          %v4168 = vpop.f32.mrf.mxu0
          %v4169 = vadd.f32 %v4128, %v4168
          %v4170 = vpop.f32.mrf.mxu0
          %v4171 = vpop.f32.mrf.mxu0
          %4172 = vdwg.mxu0
          %4173 = vmatprep.subr.bf16.mxu0 %v3357
          %4174 = vmatpush1.bf16.msra.mxu0 %v3356
          %4175 = vmatprep.subr.bf16.mxu0 %v3355
          %4176 = vmatpush1.bf16.msra.mxu0 %v3354
          %4177 = vmatprep.subr.bf16.mxu0 %v3353
          %4178 = vmatpush1.bf16.msra.mxu0 %v3352
          %4179 = vmatprep.subr.bf16.mxu0 %v3351
          %4180 = vmatpush1.bf16.msra.mxu0 %v3350
          %4181 = vmatprep.subr.bf16.mxu0 %v3349
          %4182 = vmatpush1.bf16.msra.mxu0 %v3348
          %4183 = vmatprep.subr.bf16.mxu0 %v3347
          %4184 = vmatpush1.bf16.msra.mxu0 %v3346
          %4185 = vmatprep.subr.bf16.mxu0 %v3345
          %4186 = vmatpush1.bf16.msra.mxu0 %v3344
          %4187 = vmatprep.subr.bf16.mxu0 %v3343
          %4188 = vmatpush1.bf16.msra.mxu0 %v3342
          %4189 = vmatprep.subr.bf16.mxu0 %v3373
          %4190 = vmatpush2.bf16.msra.mxu0 %v3372
          %4191 = vmatprep.subr.bf16.mxu0 %v3371
          %4192 = vmatpush2.bf16.msra.mxu0 %v3370
          %4193 = vmatprep.subr.bf16.mxu0 %v3369
          %4194 = vmatpush2.bf16.msra.mxu0 %v3368
          %4195 = vmatprep.subr.bf16.mxu0 %v3367
          %4196 = vmatpush2.bf16.msra.mxu0 %v3366
          %4197 = vmatprep.subr.bf16.mxu0 %v3365
          %4198 = vmatpush2.bf16.msra.mxu0 %v3364
          %4199 = vmatprep.subr.bf16.mxu0 %v3363
          %4200 = vmatpush2.bf16.msra.mxu0 %v3362
          %4201 = vmatprep.subr.bf16.mxu0 %v3361
          %4202 = vmatpush2.bf16.msra.mxu0 %v3360
          %4203 = vmatprep.subr.bf16.mxu0 %v3359
          %4204 = vmatpush2.bf16.msra.mxu0 %v3358
          %4205 = vmatprep.mubr.bf16.mxu0 %v1561
          %4206 = vmatmul.mubr.bf16.gmra.mxu0 %v1560
          %v4207 = vpop.f32.mrf.mxu0
          %v4208 = vadd.f32 %v4167, %v4207
          %v4209 = vpop.f32.mrf.mxu0
          %v4210 = vadd.f32 %v4169, %v4209
          %v4211 = vpop.f32.mrf.mxu0
          %v4212 = vpop.f32.mrf.mxu0
          %4213 = vdwg.mxu0
          %4214 = vmatprep.subr.bf16.mxu0 %v3389
          %4215 = vmatpush1.bf16.msra.mxu0 %v3388
          %4216 = vmatprep.subr.bf16.mxu0 %v3387
          %4217 = vmatpush1.bf16.msra.mxu0 %v3386
          %4218 = vmatprep.subr.bf16.mxu0 %v3385
          %4219 = vmatpush1.bf16.msra.mxu0 %v3384
          %4220 = vmatprep.subr.bf16.mxu0 %v3383
          %4221 = vmatpush1.bf16.msra.mxu0 %v3382
          %4222 = vmatprep.subr.bf16.mxu0 %v3381
          %4223 = vmatpush1.bf16.msra.mxu0 %v3380
          %4224 = vmatprep.subr.bf16.mxu0 %v3379
          %4225 = vmatpush1.bf16.msra.mxu0 %v3378
          %4226 = vmatprep.subr.bf16.mxu0 %v3377
          %4227 = vmatpush1.bf16.msra.mxu0 %v3376
          %4228 = vmatprep.subr.bf16.mxu0 %v3375
          %4229 = vmatpush1.bf16.msra.mxu0 %v3374
          %4230 = vmatprep.subr.bf16.mxu0 %v3405
          %4231 = vmatpush2.bf16.msra.mxu0 %v3404
          %4232 = vmatprep.subr.bf16.mxu0 %v3403
          %4233 = vmatpush2.bf16.msra.mxu0 %v3402
          %4234 = vmatprep.subr.bf16.mxu0 %v3401
          %4235 = vmatpush2.bf16.msra.mxu0 %v3400
          %4236 = vmatprep.subr.bf16.mxu0 %v3399
          %4237 = vmatpush2.bf16.msra.mxu0 %v3398
          %4238 = vmatprep.subr.bf16.mxu0 %v3397
          %4239 = vmatpush2.bf16.msra.mxu0 %v3396
          %4240 = vmatprep.subr.bf16.mxu0 %v3395
          %4241 = vmatpush2.bf16.msra.mxu0 %v3394
          %4242 = vmatprep.subr.bf16.mxu0 %v3393
          %4243 = vmatpush2.bf16.msra.mxu0 %v3392
          %4244 = vmatprep.subr.bf16.mxu0 %v3391
          %4245 = vmatpush2.bf16.msra.mxu0 %v3390
          %4246 = vmatprep.mubr.bf16.mxu0 %v1563
          %4247 = vmatmul.mubr.bf16.gmra.mxu0 %v1562
          %v4248 = vpop.f32.mrf.mxu0
          %v4249 = vadd.f32 %v4208, %v4248
          %v4250 = vpop.f32.mrf.mxu0
          %v4251 = vadd.f32 %v4210, %v4250
          %v4252 = vpop.f32.mrf.mxu0
          %v4253 = vpop.f32.mrf.mxu0
          %4254 = vdwg.mxu0
          %4255 = vmatprep.subr.bf16.mxu0 %v3421
          %4256 = vmatpush1.bf16.msra.mxu0 %v3420
          %4257 = vmatprep.subr.bf16.mxu0 %v3419
          %4258 = vmatpush1.bf16.msra.mxu0 %v3418
          %4259 = vmatprep.subr.bf16.mxu0 %v3417
          %4260 = vmatpush1.bf16.msra.mxu0 %v3416
          %4261 = vmatprep.subr.bf16.mxu0 %v3415
          %4262 = vmatpush1.bf16.msra.mxu0 %v3414
          %4263 = vmatprep.subr.bf16.mxu0 %v3413
          %4264 = vmatpush1.bf16.msra.mxu0 %v3412
          %4265 = vmatprep.subr.bf16.mxu0 %v3411
          %4266 = vmatpush1.bf16.msra.mxu0 %v3410
          %4267 = vmatprep.subr.bf16.mxu0 %v3409
          %4268 = vmatpush1.bf16.msra.mxu0 %v3408
          %4269 = vmatprep.subr.bf16.mxu0 %v3407
          %4270 = vmatpush1.bf16.msra.mxu0 %v3406
          %4271 = vmatprep.subr.bf16.mxu0 %v3437
          %4272 = vmatpush2.bf16.msra.mxu0 %v3436
          %4273 = vmatprep.subr.bf16.mxu0 %v3435
          %4274 = vmatpush2.bf16.msra.mxu0 %v3434
          %4275 = vmatprep.subr.bf16.mxu0 %v3433
          %4276 = vmatpush2.bf16.msra.mxu0 %v3432
          %4277 = vmatprep.subr.bf16.mxu0 %v3431
          %4278 = vmatpush2.bf16.msra.mxu0 %v3430
          %4279 = vmatprep.subr.bf16.mxu0 %v3429
          %4280 = vmatpush2.bf16.msra.mxu0 %v3428
          %4281 = vmatprep.subr.bf16.mxu0 %v3427
          %4282 = vmatpush2.bf16.msra.mxu0 %v3426
          %4283 = vmatprep.subr.bf16.mxu0 %v3425
          %4284 = vmatpush2.bf16.msra.mxu0 %v3424
          %4285 = vmatprep.subr.bf16.mxu0 %v3423
          %4286 = vmatpush2.bf16.msra.mxu0 %v3422
          %4287 = vmatprep.mubr.bf16.mxu0 %v1565
          %4288 = vmatmul.mubr.bf16.gmra.mxu0 %v1564
          %v4289 = vpop.f32.mrf.mxu0
          %v4290 = vadd.f32 %v4249, %v4289
          %v4291 = vpop.f32.mrf.mxu0
          %v4292 = vadd.f32 %v4251, %v4291
          %v4293 = vpop.f32.mrf.mxu0
          %v4294 = vpop.f32.mrf.mxu0
          %4295 = vdwg.mxu0
          %4296 = vmatprep.subr.bf16.mxu0 %v3453
          %4297 = vmatpush1.bf16.msra.mxu0 %v3452
          %4298 = vmatprep.subr.bf16.mxu0 %v3451
          %4299 = vmatpush1.bf16.msra.mxu0 %v3450
          %4300 = vmatprep.subr.bf16.mxu0 %v3449
          %4301 = vmatpush1.bf16.msra.mxu0 %v3448
          %4302 = vmatprep.subr.bf16.mxu0 %v3447
          %4303 = vmatpush1.bf16.msra.mxu0 %v3446
          %4304 = vmatprep.subr.bf16.mxu0 %v3445
          %4305 = vmatpush1.bf16.msra.mxu0 %v3444
          %4306 = vmatprep.subr.bf16.mxu0 %v3443
          %4307 = vmatpush1.bf16.msra.mxu0 %v3442
          %4308 = vmatprep.subr.bf16.mxu0 %v3441
          %4309 = vmatpush1.bf16.msra.mxu0 %v3440
          %4310 = vmatprep.subr.bf16.mxu0 %v3439
          %4311 = vmatpush1.bf16.msra.mxu0 %v3438
          %4312 = vmatprep.subr.bf16.mxu0 %v3469
          %4313 = vmatpush2.bf16.msra.mxu0 %v3468
          %4314 = vmatprep.subr.bf16.mxu0 %v3467
          %4315 = vmatpush2.bf16.msra.mxu0 %v3466
          %4316 = vmatprep.subr.bf16.mxu0 %v3465
          %4317 = vmatpush2.bf16.msra.mxu0 %v3464
          %4318 = vmatprep.subr.bf16.mxu0 %v3463
          %4319 = vmatpush2.bf16.msra.mxu0 %v3462
          %4320 = vmatprep.subr.bf16.mxu0 %v3461
          %4321 = vmatpush2.bf16.msra.mxu0 %v3460
          %4322 = vmatprep.subr.bf16.mxu0 %v3459
          %4323 = vmatpush2.bf16.msra.mxu0 %v3458
          %4324 = vmatprep.subr.bf16.mxu0 %v3457
          %4325 = vmatpush2.bf16.msra.mxu0 %v3456
          %4326 = vmatprep.subr.bf16.mxu0 %v3455
          %4327 = vmatpush2.bf16.msra.mxu0 %v3454
          %4328 = vmatprep.mubr.bf16.mxu0 %v1567
          %4329 = vmatmul.mubr.bf16.gmra.mxu0 %v1566
          %v4330 = vpop.f32.mrf.mxu0
          %v4331 = vadd.f32 %v4290, %v4330
          %v4332 = vpop.f32.mrf.mxu0
          %v4333 = vadd.f32 %v4292, %v4332
          %v4334 = vpop.f32.mrf.mxu0
          %v4335 = vpop.f32.mrf.mxu0
          %4336 = vdwg.mxu0
          %4337 = vmatprep.subr.bf16.mxu0 %v3485
          %4338 = vmatpush1.bf16.msra.mxu0 %v3484
          %4339 = vmatprep.subr.bf16.mxu0 %v3483
          %4340 = vmatpush1.bf16.msra.mxu0 %v3482
          %4341 = vmatprep.subr.bf16.mxu0 %v3481
          %4342 = vmatpush1.bf16.msra.mxu0 %v3480
          %4343 = vmatprep.subr.bf16.mxu0 %v3479
          %4344 = vmatpush1.bf16.msra.mxu0 %v3478
          %4345 = vmatprep.subr.bf16.mxu0 %v3477
          %4346 = vmatpush1.bf16.msra.mxu0 %v3476
          %4347 = vmatprep.subr.bf16.mxu0 %v3475
          %4348 = vmatpush1.bf16.msra.mxu0 %v3474
          %4349 = vmatprep.subr.bf16.mxu0 %v3473
          %4350 = vmatpush1.bf16.msra.mxu0 %v3472
          %4351 = vmatprep.subr.bf16.mxu0 %v3471
          %4352 = vmatpush1.bf16.msra.mxu0 %v3470
          %4353 = vmatprep.subr.bf16.mxu0 %v3501
          %4354 = vmatpush2.bf16.msra.mxu0 %v3500
          %4355 = vmatprep.subr.bf16.mxu0 %v3499
          %4356 = vmatpush2.bf16.msra.mxu0 %v3498
          %4357 = vmatprep.subr.bf16.mxu0 %v3497
          %4358 = vmatpush2.bf16.msra.mxu0 %v3496
          %4359 = vmatprep.subr.bf16.mxu0 %v3495
          %4360 = vmatpush2.bf16.msra.mxu0 %v3494
          %4361 = vmatprep.subr.bf16.mxu0 %v3493
          %4362 = vmatpush2.bf16.msra.mxu0 %v3492
          %4363 = vmatprep.subr.bf16.mxu0 %v3491
          %4364 = vmatpush2.bf16.msra.mxu0 %v3490
          %4365 = vmatprep.subr.bf16.mxu0 %v3489
          %4366 = vmatpush2.bf16.msra.mxu0 %v3488
          %4367 = vmatprep.subr.bf16.mxu0 %v3487
          %4368 = vmatpush2.bf16.msra.mxu0 %v3486
          %4369 = vmatprep.mubr.bf16.mxu0 %v1569
          %4370 = vmatmul.mubr.bf16.gmra.mxu0 %v1568
          %v4371 = vpop.f32.mrf.mxu0
          %v4372 = vadd.f32 %v4331, %v4371
          %v4373 = vpop.f32.mrf.mxu0
          %v4374 = vadd.f32 %v4333, %v4373
          %v4375 = vpop.f32.mrf.mxu0
          %v4376 = vpop.f32.mrf.mxu0
          %4377 = vdwg.mxu0
          %v4378 = vld [vmem:[#allocation10] sm:$0x3]
          %v4379 = vld [vmem:[#allocation11] ss:$2 sm:$0x3]
          %v4380 = vadd.f32 %v4378, %v4379
          %v4382 = vlaneseq
          %v4383 = vshrl.u32 %v4382, 7
          %v4384 = vsub.s32 0, %v4383
          %v4385 = vrot.slane %v4380, %v4384
          %v4386 = vlaneseq
          %v4387 = vshrl.u32 %v4386, 7
          %v4388 = vsub.s32 1, %v4387
          %v4389 = vrot.slane %v4380, %v4388
          %v4390 = vcombine.low %v4385, %v4389
          %4392 = vst [vmem:[#allocation2] sm:$0x33] %v4390
          %s4393 = scalar_lea.vmem [#allocation11], 1
          %v4394 = vld [vmem:[%s4393] ss:$2 sm:$0x3]
          %v4396 = vlaneseq
          %v4397 = vshrl.u32 %v4396, 7
          %v4398 = vsub.s32 0, %v4397
          %v4399 = vrot.slane %v4394, %v4398
          %v4400 = vlaneseq
          %v4401 = vshrl.u32 %v4400, 7
          %v4402 = vsub.s32 1, %v4401
          %v4403 = vrot.slane %v4394, %v4402
          %v4406 = vadd.f32 %v4372, %v4399
          %v4407 = vadd.f32 %v4374, %v4403
          %v4410 = vcombine.low %v4406, %v4407
          %v4411 = vrot.slane %v4410, 6
          %4413 = vst [vmem:[#allocation2] sm:$0xcc] %v4411
          %v4414 = vlaneseq
          %v4415 = vshrl.u32 %v4414, 7
          %v4416 = vlaneseq
          %v4417 = vand.u32 %v4416, 127
          %v4418 = vand.u32 %v4415, 1
          %v4419 = vand.u32 %v4417, 1
          %vm4420 = vcmp.eq.s32.totalorder %v4418, %v4419
          %v4421 = vsel %vm4420, 0.0, -1e+30
          %vm4422 = vcmask 27648
          %4423 = vst.msk [vmem:[#allocation4] sm:$0xf] %vm4422, %v4421
        $region220: #{vit_forward.1} parent=119 // pred_fallthru
          _
        %v4424 = vld [vmem:[#allocation2] sm:$0xff]
        %v4425 = vld [vmem:[%s1115] sm:$0x3]
        %v4426 = vld [vmem:[%s1124] sm:$0x3]
        %v4428 = vcombine.high %v4424, %v4424
        %vm4430 = vcmask 1043456
        %v4431 = vsel %vm4430, %v4424, 0.0
        %v4432 = vsel %vm4430, %v4428, 0.0
        %v4433 = vadd.f32 %v4431, %v4432
        %4434 = vadd.xlane.f32.xlu0 %v4433
        %v4435 = vpop.xlane.xlu0 %4434
        %v4436 = vrcp.pop 256.0
        %v4437 = vmul.f32 %v4435, %v4436
        %v4440 = vunpack.c.l.s4 839922192
        %v4441 = vunpack.c.0.s8 %v4440
        %v4442 = vlaneseq
        %v4443 = vshrl.u32 %v4442, 7
        %v4444 = vsub.s32 %v4441, %v4443
        %v4445 = vrot.slane %v4437, %v4444
        %v4447 = vsub.f32 %v4424, %v4445
        %v4448 = vmul.f32 %v4447, %v4447
        %v4450 = vcombine.high %v4448, %v4448
        %v4452 = vsel %vm4430, %v4448, 0.0
        %v4453 = vsel %vm4430, %v4450, 0.0
        %v4454 = vadd.f32 %v4452, %v4453
        %4455 = vadd.xlane.f32.xlu0 %v4454
        %v4456 = vpop.xlane.xlu0 %4455
        %v4457 = vmul.f32 %v4456, %v4436
        %v4458 = vadd.f32 %v4457, 1e-06
        %v4459 = vrsqrt.pop %v4458
        %v4462 = vunpack.c.l.s4 839922192
        %v4463 = vunpack.c.0.s8 %v4462
        %v4464 = vlaneseq
        %v4465 = vshrl.u32 %v4464, 7
        %v4466 = vsub.s32 %v4463, %v4465
        %v4467 = vrot.slane %v4459, %v4466
        %v4469 = vmul.f32 %v4447, %v4467
        %v4471 = vlaneseq
        %v4472 = vshrl.u32 %v4471, 7
        %v4473 = vsub.s32 0, %v4472
        %v4474 = vrot.slane %v4425, %v4473
        %v4475 = vlaneseq
        %v4476 = vshrl.u32 %v4475, 7
        %v4477 = vsub.s32 1, %v4476
        %v4478 = vrot.slane %v4425, %v4477
        %v4479 = vcombine.low %v4474, %v4478
        %v4481 = vmul.f32 %v4469, %v4479
        %v4483 = vlaneseq
        %v4484 = vshrl.u32 %v4483, 7
        %v4485 = vsub.s32 0, %v4484
        %v4486 = vrot.slane %v4426, %v4485
        %v4487 = vlaneseq
        %v4488 = vshrl.u32 %v4487, 7
        %v4489 = vsub.s32 1, %v4488
        %v4490 = vrot.slane %v4426, %v4489
        %v4491 = vcombine.low %v4486, %v4490
        %v4493 = vadd.f32 %v4481, %v4491
        %v4495 = vcombine.high %v4493, %v4493
        %v4497 = vpack.c.bf16 %v4493, %v4493
        %v4498 = vpack.c.bf16 %v4495, %v4495
        %v4499 = vld [vmem:[%s1133] sm:$0xff]
        %v4500 = vld [vmem:[%s1133 + $0x8] sm:$0xff]
        %v4501 = vld [vmem:[%s1133 + $0x10] sm:$0xff]
        %v4502 = vld [vmem:[%s1133 + $0x18] sm:$0xff]
        %v4503 = vld [vmem:[%s1133 + $0x20] sm:$0xff]
        %v4504 = vld [vmem:[%s1133 + $0x28] sm:$0xff]
        %v4505 = vld [vmem:[%s1133 + $0x30] sm:$0xff]
        %v4506 = vld [vmem:[%s1133 + $0x38] sm:$0xff]
        %v4507 = vld [vmem:[%s1133 + $0x40] sm:$0xff]
        %v4508 = vld [vmem:[%s1133 + $0x48] sm:$0xff]
        %v4509 = vld [vmem:[%s1133 + $0x50] sm:$0xff]
        %v4510 = vld [vmem:[%s1133 + $0x58] sm:$0xff]
        %v4511 = vld [vmem:[%s1133 + $0x60] sm:$0xff]
        %v4512 = vld [vmem:[%s1133 + $0x68] sm:$0xff]
        %v4513 = vld [vmem:[%s1133 + $0x70] sm:$0xff]
        %v4514 = vld [vmem:[%s1133 + $0x78] sm:$0xff]
        %v4515 = vld [vmem:[%s1133 + $0x80] sm:$0xff]
        %v4516 = vld [vmem:[%s1133 + $0x88] sm:$0xff]
        %v4517 = vld [vmem:[%s1133 + $0x90] sm:$0xff]
        %v4518 = vld [vmem:[%s1133 + $0x98] sm:$0xff]
        %v4519 = vld [vmem:[%s1133 + $0xa0] sm:$0xff]
        %v4520 = vld [vmem:[%s1133 + $0xa8] sm:$0xff]
        %v4521 = vld [vmem:[%s1133 + $0xb0] sm:$0xff]
        %v4522 = vld [vmem:[%s1133 + $0xb8] sm:$0xff]
        %v4523 = vld [vmem:[%s1133 + $0xc0] sm:$0xff]
        %v4524 = vld [vmem:[%s1133 + $0xc8] sm:$0xff]
        %v4525 = vld [vmem:[%s1133 + $0xd0] sm:$0xff]
        %v4526 = vld [vmem:[%s1133 + $0xd8] sm:$0xff]
        %v4527 = vld [vmem:[%s1133 + $0xe0] sm:$0xff]
        %v4528 = vld [vmem:[%s1133 + $0xe8] sm:$0xff]
        %v4529 = vld [vmem:[%s1133 + $0xf0] sm:$0xff]
        %v4530 = vld [vmem:[%s1133 + $0xf8] sm:$0xff]
        %v4531 = vld [vmem:[%s1133 + $0x100] sm:$0xff]
        %v4532 = vld [vmem:[%s1133 + $0x108] sm:$0xff]
        %v4533 = vld [vmem:[%s1133 + $0x110] sm:$0xff]
        %v4534 = vld [vmem:[%s1133 + $0x118] sm:$0xff]
        %v4535 = vld [vmem:[%s1133 + $0x120] sm:$0xff]
        %v4536 = vld [vmem:[%s1133 + $0x128] sm:$0xff]
        %v4537 = vld [vmem:[%s1133 + $0x130] sm:$0xff]
        %v4538 = vld [vmem:[%s1133 + $0x138] sm:$0xff]
        %v4539 = vld [vmem:[%s1133 + $0x140] sm:$0xff]
        %v4540 = vld [vmem:[%s1133 + $0x148] sm:$0xff]
        %v4541 = vld [vmem:[%s1133 + $0x150] sm:$0xff]
        %v4542 = vld [vmem:[%s1133 + $0x158] sm:$0xff]
        %v4543 = vld [vmem:[%s1133 + $0x160] sm:$0xff]
        %v4544 = vld [vmem:[%s1133 + $0x168] sm:$0xff]
        %v4545 = vld [vmem:[%s1133 + $0x170] sm:$0xff]
        %v4546 = vld [vmem:[%s1133 + $0x178] sm:$0xff]
        %v4547 = vunpack.c.l.s8.bf16 %v4499
        %v4548 = vunpack.c.l.s8.bf16 %v4500
        %v4549 = vunpack.c.l.s8.bf16 %v4501
        %v4550 = vunpack.c.l.s8.bf16 %v4502
        %v4551 = vunpack.c.l.s8.bf16 %v4503
        %v4552 = vunpack.c.l.s8.bf16 %v4504
        %v4553 = vunpack.c.h.s8.bf16 %v4499
        %v4554 = vunpack.c.h.s8.bf16 %v4500
        %v4555 = vunpack.c.h.s8.bf16 %v4501
        %v4556 = vunpack.c.h.s8.bf16 %v4502
        %v4557 = vunpack.c.h.s8.bf16 %v4503
        %v4558 = vunpack.c.h.s8.bf16 %v4504
        %v4559 = vunpack.c.l.s8.bf16 %v4505
        %v4560 = vunpack.c.l.s8.bf16 %v4506
        %v4561 = vunpack.c.l.s8.bf16 %v4507
        %v4562 = vunpack.c.l.s8.bf16 %v4508
        %v4563 = vunpack.c.l.s8.bf16 %v4509
        %v4564 = vunpack.c.l.s8.bf16 %v4510
        %v4565 = vunpack.c.h.s8.bf16 %v4505
        %v4566 = vunpack.c.h.s8.bf16 %v4506
        %v4567 = vunpack.c.h.s8.bf16 %v4507
        %v4568 = vunpack.c.h.s8.bf16 %v4508
        %v4569 = vunpack.c.h.s8.bf16 %v4509
        %v4570 = vunpack.c.h.s8.bf16 %v4510
        %v4571 = vunpack.c.l.s8.bf16 %v4511
        %v4572 = vunpack.c.l.s8.bf16 %v4512
        %v4573 = vunpack.c.l.s8.bf16 %v4513
        %v4574 = vunpack.c.l.s8.bf16 %v4514
        %v4575 = vunpack.c.l.s8.bf16 %v4515
        %v4576 = vunpack.c.l.s8.bf16 %v4516
        %v4577 = vunpack.c.h.s8.bf16 %v4511
        %v4578 = vunpack.c.h.s8.bf16 %v4512
        %v4579 = vunpack.c.h.s8.bf16 %v4513
        %v4580 = vunpack.c.h.s8.bf16 %v4514
        %v4581 = vunpack.c.h.s8.bf16 %v4515
        %v4582 = vunpack.c.h.s8.bf16 %v4516
        %v4583 = vunpack.c.l.s8.bf16 %v4517
        %v4584 = vunpack.c.l.s8.bf16 %v4518
        %v4585 = vunpack.c.l.s8.bf16 %v4519
        %v4586 = vunpack.c.l.s8.bf16 %v4520
        %v4587 = vunpack.c.l.s8.bf16 %v4521
        %v4588 = vunpack.c.l.s8.bf16 %v4522
        %v4589 = vunpack.c.h.s8.bf16 %v4517
        %v4590 = vunpack.c.h.s8.bf16 %v4518
        %v4591 = vunpack.c.h.s8.bf16 %v4519
        %v4592 = vunpack.c.h.s8.bf16 %v4520
        %v4593 = vunpack.c.h.s8.bf16 %v4521
        %v4594 = vunpack.c.h.s8.bf16 %v4522
        %v4595 = vunpack.c.l.s8.bf16 %v4523
        %v4596 = vunpack.c.l.s8.bf16 %v4524
        %v4597 = vunpack.c.l.s8.bf16 %v4525
        %v4598 = vunpack.c.l.s8.bf16 %v4526
        %v4599 = vunpack.c.l.s8.bf16 %v4527
        %v4600 = vunpack.c.l.s8.bf16 %v4528
        %v4601 = vunpack.c.h.s8.bf16 %v4523
        %v4602 = vunpack.c.h.s8.bf16 %v4524
        %v4603 = vunpack.c.h.s8.bf16 %v4525
        %v4604 = vunpack.c.h.s8.bf16 %v4526
        %v4605 = vunpack.c.h.s8.bf16 %v4527
        %v4606 = vunpack.c.h.s8.bf16 %v4528
        %v4607 = vunpack.c.l.s8.bf16 %v4529
        %v4608 = vunpack.c.l.s8.bf16 %v4530
        %v4609 = vunpack.c.l.s8.bf16 %v4531
        %v4610 = vunpack.c.l.s8.bf16 %v4532
        %v4611 = vunpack.c.l.s8.bf16 %v4533
        %v4612 = vunpack.c.l.s8.bf16 %v4534
        %v4613 = vunpack.c.h.s8.bf16 %v4529
        %v4614 = vunpack.c.h.s8.bf16 %v4530
        %v4615 = vunpack.c.h.s8.bf16 %v4531
        %v4616 = vunpack.c.h.s8.bf16 %v4532
        %v4617 = vunpack.c.h.s8.bf16 %v4533
        %v4618 = vunpack.c.h.s8.bf16 %v4534
        %v4619 = vunpack.c.l.s8.bf16 %v4535
        %v4620 = vunpack.c.l.s8.bf16 %v4536
        %v4621 = vunpack.c.l.s8.bf16 %v4537
        %v4622 = vunpack.c.l.s8.bf16 %v4538
        %v4623 = vunpack.c.l.s8.bf16 %v4539
        %v4624 = vunpack.c.l.s8.bf16 %v4540
        %v4625 = vunpack.c.h.s8.bf16 %v4535
        %v4626 = vunpack.c.h.s8.bf16 %v4536
        %v4627 = vunpack.c.h.s8.bf16 %v4537
        %v4628 = vunpack.c.h.s8.bf16 %v4538
        %v4629 = vunpack.c.h.s8.bf16 %v4539
        %v4630 = vunpack.c.h.s8.bf16 %v4540
        %v4631 = vunpack.c.l.s8.bf16 %v4541
        %v4632 = vunpack.c.l.s8.bf16 %v4542
        %v4633 = vunpack.c.l.s8.bf16 %v4543
        %v4634 = vunpack.c.l.s8.bf16 %v4544
        %v4635 = vunpack.c.l.s8.bf16 %v4545
        %v4636 = vunpack.c.l.s8.bf16 %v4546
        %v4637 = vunpack.c.h.s8.bf16 %v4541
        %v4638 = vunpack.c.h.s8.bf16 %v4542
        %v4639 = vunpack.c.h.s8.bf16 %v4543
        %v4640 = vunpack.c.h.s8.bf16 %v4544
        %v4641 = vunpack.c.h.s8.bf16 %v4545
        %v4642 = vunpack.c.h.s8.bf16 %v4546
        %4643 = vmatprep.subr.bf16.mxu0 %v4590
        %4644 = vmatpush1.bf16.msra.mxu0 %v4589
        %4645 = vmatprep.subr.bf16.mxu0 %v4584
        %4646 = vmatpush1.bf16.msra.mxu0 %v4583
        %4647 = vmatprep.subr.bf16.mxu0 %v4578
        %4648 = vmatpush1.bf16.msra.mxu0 %v4577
        %4649 = vmatprep.subr.bf16.mxu0 %v4572
        %4650 = vmatpush1.bf16.msra.mxu0 %v4571
        %4651 = vmatprep.subr.bf16.mxu0 %v4566
        %4652 = vmatpush1.bf16.msra.mxu0 %v4565
        %4653 = vmatprep.subr.bf16.mxu0 %v4560
        %4654 = vmatpush1.bf16.msra.mxu0 %v4559
        %4655 = vmatprep.subr.bf16.mxu0 %v4554
        %4656 = vmatpush1.bf16.msra.mxu0 %v4553
        %4657 = vmatprep.subr.bf16.mxu0 %v4548
        %4658 = vmatpush1.bf16.msra.mxu0 %v4547
        %4659 = vmatprep.subr.bf16.mxu0 %v4638
        %4660 = vmatpush2.bf16.msra.mxu0 %v4637
        %4661 = vmatprep.subr.bf16.mxu0 %v4632
        %4662 = vmatpush2.bf16.msra.mxu0 %v4631
        %4663 = vmatprep.subr.bf16.mxu0 %v4626
        %4664 = vmatpush2.bf16.msra.mxu0 %v4625
        %4665 = vmatprep.subr.bf16.mxu0 %v4620
        %4666 = vmatpush2.bf16.msra.mxu0 %v4619
        %4667 = vmatprep.subr.bf16.mxu0 %v4614
        %4668 = vmatpush2.bf16.msra.mxu0 %v4613
        %4669 = vmatprep.subr.bf16.mxu0 %v4608
        %4670 = vmatpush2.bf16.msra.mxu0 %v4607
        %4671 = vmatprep.subr.bf16.mxu0 %v4602
        %4672 = vmatpush2.bf16.msra.mxu0 %v4601
        %4673 = vmatprep.subr.bf16.mxu0 %v4596
        %4674 = vmatpush2.bf16.msra.mxu0 %v4595
        %4675 = vmatprep.mubr.bf16.mxu0 %v4498
        %4676 = vmatmul.mubr.bf16.gmra.mxu0 %v4497
        %v4677 = vpop.f32.mrf.mxu0
        %v4678 = vadd.f32 0.0, %v4677
        %v4679 = vpop.f32.mrf.mxu0
        %v4680 = vadd.f32 0.0, %v4679
        %v4681 = vpop.f32.mrf.mxu0
        %v4682 = vpop.f32.mrf.mxu0
        %4683 = vdwg.mxu0
        %4684 = vmatprep.subr.bf16.mxu0 %v4592
        %4685 = vmatpush1.bf16.msra.mxu0 %v4591
        %4686 = vmatprep.subr.bf16.mxu0 %v4586
        %4687 = vmatpush1.bf16.msra.mxu0 %v4585
        %4688 = vmatprep.subr.bf16.mxu0 %v4580
        %4689 = vmatpush1.bf16.msra.mxu0 %v4579
        %4690 = vmatprep.subr.bf16.mxu0 %v4574
        %4691 = vmatpush1.bf16.msra.mxu0 %v4573
        %4692 = vmatprep.subr.bf16.mxu0 %v4568
        %4693 = vmatpush1.bf16.msra.mxu0 %v4567
        %4694 = vmatprep.subr.bf16.mxu0 %v4562
        %4695 = vmatpush1.bf16.msra.mxu0 %v4561
        %4696 = vmatprep.subr.bf16.mxu0 %v4556
        %4697 = vmatpush1.bf16.msra.mxu0 %v4555
        %4698 = vmatprep.subr.bf16.mxu0 %v4550
        %4699 = vmatpush1.bf16.msra.mxu0 %v4549
        %4700 = vmatprep.subr.bf16.mxu0 %v4640
        %4701 = vmatpush2.bf16.msra.mxu0 %v4639
        %4702 = vmatprep.subr.bf16.mxu0 %v4634
        %4703 = vmatpush2.bf16.msra.mxu0 %v4633
        %4704 = vmatprep.subr.bf16.mxu0 %v4628
        %4705 = vmatpush2.bf16.msra.mxu0 %v4627
        %4706 = vmatprep.subr.bf16.mxu0 %v4622
        %4707 = vmatpush2.bf16.msra.mxu0 %v4621
        %4708 = vmatprep.subr.bf16.mxu0 %v4616
        %4709 = vmatpush2.bf16.msra.mxu0 %v4615
        %4710 = vmatprep.subr.bf16.mxu0 %v4610
        %4711 = vmatpush2.bf16.msra.mxu0 %v4609
        %4712 = vmatprep.subr.bf16.mxu0 %v4604
        %4713 = vmatpush2.bf16.msra.mxu0 %v4603
        %4714 = vmatprep.subr.bf16.mxu0 %v4598
        %4715 = vmatpush2.bf16.msra.mxu0 %v4597
        %4716 = vmatprep.mubr.bf16.mxu0 %v4498
        %4717 = vmatmul.mubr.bf16.gmra.mxu0 %v4497
        %v4718 = vpop.f32.mrf.mxu0
        %v4719 = vadd.f32 0.0, %v4718
        %v4720 = vpop.f32.mrf.mxu0
        %v4721 = vadd.f32 0.0, %v4720
        %v4722 = vpop.f32.mrf.mxu0
        %v4723 = vpop.f32.mrf.mxu0
        %4724 = vdwg.mxu0
        %4725 = vmatprep.subr.bf16.mxu0 %v4594
        %4726 = vmatpush1.bf16.msra.mxu0 %v4593
        %4727 = vmatprep.subr.bf16.mxu0 %v4588
        %4728 = vmatpush1.bf16.msra.mxu0 %v4587
        %4729 = vmatprep.subr.bf16.mxu0 %v4582
        %4730 = vmatpush1.bf16.msra.mxu0 %v4581
        %4731 = vmatprep.subr.bf16.mxu0 %v4576
        %4732 = vmatpush1.bf16.msra.mxu0 %v4575
        %4733 = vmatprep.subr.bf16.mxu0 %v4570
        %4734 = vmatpush1.bf16.msra.mxu0 %v4569
        %4735 = vmatprep.subr.bf16.mxu0 %v4564
        %4736 = vmatpush1.bf16.msra.mxu0 %v4563
        %4737 = vmatprep.subr.bf16.mxu0 %v4558
        %4738 = vmatpush1.bf16.msra.mxu0 %v4557
        %4739 = vmatprep.subr.bf16.mxu0 %v4552
        %4740 = vmatpush1.bf16.msra.mxu0 %v4551
        %4741 = vmatprep.subr.bf16.mxu0 %v4642
        %4742 = vmatpush2.bf16.msra.mxu0 %v4641
        %4743 = vmatprep.subr.bf16.mxu0 %v4636
        %4744 = vmatpush2.bf16.msra.mxu0 %v4635
        %4745 = vmatprep.subr.bf16.mxu0 %v4630
        %4746 = vmatpush2.bf16.msra.mxu0 %v4629
        %4747 = vmatprep.subr.bf16.mxu0 %v4624
        %4748 = vmatpush2.bf16.msra.mxu0 %v4623
        %4749 = vmatprep.subr.bf16.mxu0 %v4618
        %4750 = vmatpush2.bf16.msra.mxu0 %v4617
        %4751 = vmatprep.subr.bf16.mxu0 %v4612
        %4752 = vmatpush2.bf16.msra.mxu0 %v4611
        %4753 = vmatprep.subr.bf16.mxu0 %v4606
        %4754 = vmatpush2.bf16.msra.mxu0 %v4605
        %4755 = vmatprep.subr.bf16.mxu0 %v4600
        %4756 = vmatpush2.bf16.msra.mxu0 %v4599
        %4757 = vmatprep.mubr.bf16.mxu0 %v4498
        %4758 = vmatmul.mubr.bf16.gmra.mxu0 %v4497
        %v4759 = vpop.f32.mrf.mxu0
        %v4760 = vadd.f32 0.0, %v4759
        %v4761 = vpop.f32.mrf.mxu0
        %v4762 = vadd.f32 0.0, %v4761
        %v4763 = vpop.f32.mrf.mxu0
        %v4764 = vpop.f32.mrf.mxu0
        %4765 = vdwg.mxu0
        %v4766 = vld [vmem:[%s1142] sm:$0x3f]
        %v4768 = vlaneseq
        %v4769 = vshrl.u32 %v4768, 7
        %v4770 = vsub.s32 0, %v4769
        %v4771 = vrot.slane %v4766, %v4770
        %v4772 = vlaneseq
        %v4773 = vshrl.u32 %v4772, 7
        %v4774 = vsub.s32 1, %v4773
        %v4775 = vrot.slane %v4766, %v4774
        %v4776 = vlaneseq
        %v4777 = vshrl.u32 %v4776, 7
        %v4778 = vsub.s32 2, %v4777
        %v4779 = vrot.slane %v4766, %v4778
        %v4780 = vlaneseq
        %v4781 = vshrl.u32 %v4780, 7
        %v4782 = vsub.s32 3, %v4781
        %v4783 = vrot.slane %v4766, %v4782
        %v4784 = vlaneseq
        %v4785 = vshrl.u32 %v4784, 7
        %v4786 = vsub.s32 4, %v4785
        %v4787 = vrot.slane %v4766, %v4786
        %v4788 = vlaneseq
        %v4789 = vshrl.u32 %v4788, 7
        %v4790 = vsub.s32 5, %v4789
        %v4791 = vrot.slane %v4766, %v4790
        %v4798 = vmul.f32 %v4678, %v4771
        %v4799 = vmul.f32 %v4680, %v4775
        %v4800 = vmul.f32 %v4719, %v4779
        %v4801 = vmul.f32 %v4721, %v4783
        %v4802 = vmul.f32 %v4760, %v4787
        %v4803 = vmul.f32 %v4762, %v4791
        %v4804 = vld [vmem:[%s1151] sm:$0x3f]
        %v4806 = vlaneseq
        %v4807 = vshrl.u32 %v4806, 7
        %v4808 = vsub.s32 0, %v4807
        %v4809 = vrot.slane %v4804, %v4808
        %v4810 = vlaneseq
        %v4811 = vshrl.u32 %v4810, 7
        %v4812 = vsub.s32 1, %v4811
        %v4813 = vrot.slane %v4804, %v4812
        %v4814 = vlaneseq
        %v4815 = vshrl.u32 %v4814, 7
        %v4816 = vsub.s32 2, %v4815
        %v4817 = vrot.slane %v4804, %v4816
        %v4818 = vlaneseq
        %v4819 = vshrl.u32 %v4818, 7
        %v4820 = vsub.s32 3, %v4819
        %v4821 = vrot.slane %v4804, %v4820
        %v4822 = vlaneseq
        %v4823 = vshrl.u32 %v4822, 7
        %v4824 = vsub.s32 4, %v4823
        %v4825 = vrot.slane %v4804, %v4824
        %v4826 = vlaneseq
        %v4827 = vshrl.u32 %v4826, 7
        %v4828 = vsub.s32 5, %v4827
        %v4829 = vrot.slane %v4804, %v4828
        %v4836 = vadd.f32 %v4798, %v4809
        %v4837 = vadd.f32 %v4799, %v4813
        %v4838 = vadd.f32 %v4800, %v4817
        %v4839 = vadd.f32 %v4801, %v4821
        %v4840 = vadd.f32 %v4802, %v4825
        %v4841 = vadd.f32 %v4803, %v4829
        %v4842 = vld [vmem:[#allocation4] sm:$0xf]
        %vm4843 = vcmask 523264
        %v4845 = vsel %vm4843, %v4836, 0
        %v4848 = vsel %vm4843, %v4838, 0
        %4850 = vmatprep.subr.mxu0 0.0
        %4851 = vmatpush1.xpose.msra.mxu0 0.0
        %4852 = vmatprep.subr.mxu0 0.0
        %4853 = vmatpush1.xpose.msra.mxu0 0.0
        %4854 = vmatprep.subr.mxu0 0.0
        %4855 = vmatpush1.xpose.msra.mxu0 0.0
        %4856 = vmatprep.subr.mxu0 0.0
        %4857 = vmatpush1.xpose.msra.mxu0 0.0
        %4858 = vmatprep.subr.mxu0 0.0
        %4859 = vmatpush1.xpose.msra.mxu0 0.0
        %4860 = vmatprep.subr.mxu0 0.0
        %4861 = vmatpush1.xpose.msra.mxu0 0.0
        %4862 = vmatprep.subr.mxu0 0.0
        %4863 = vmatpush1.xpose.msra.mxu0 0.0
        %4864 = vmatprep.subr.mxu0 0.0
        %4865 = vmatpush1.xpose.msra.mxu0 0.0
        %4866 = vmatprep.subr.mxu0 0.0
        %4867 = vmatpush1.xpose.msra.mxu0 0.0
        %4868 = vmatprep.subr.mxu0 0.0
        %4869 = vmatpush1.xpose.msra.mxu0 0.0
        %4870 = vmatprep.subr.mxu0 0.0
        %4871 = vmatpush1.xpose.msra.mxu0 0.0
        %4872 = vmatprep.subr.mxu0 0.0
        %4873 = vmatpush1.xpose.msra.mxu0 0.0
        %4874 = vmatprep.subr.mxu0 0.0
        %4875 = vmatpush1.xpose.msra.mxu0 0.0
        %4876 = vmatprep.subr.mxu0 0.0
        %4877 = vmatpush1.xpose.msra.mxu0 0.0
        %4878 = vmatprep.subr.mxu0 0.0
        %4879 = vmatpush1.xpose.msra.mxu0 0.0
        %4880 = vmatprep.subr.mxu0 0.0
        %4881 = vmatpush1.xpose.msra.mxu0 %v4848
        %4882 = vmatprep.subr.mxu0 0.0
        %4883 = vmatpush2.xpose.msra.mxu0 0.0
        %4884 = vmatprep.subr.mxu0 0.0
        %4885 = vmatpush2.xpose.msra.mxu0 0.0
        %4886 = vmatprep.subr.mxu0 0.0
        %4887 = vmatpush2.xpose.msra.mxu0 0.0
        %4888 = vmatprep.subr.mxu0 0.0
        %4889 = vmatpush2.xpose.msra.mxu0 0.0
        %4890 = vmatprep.subr.mxu0 0.0
        %4891 = vmatpush2.xpose.msra.mxu0 0.0
        %4892 = vmatprep.subr.mxu0 0.0
        %4893 = vmatpush2.xpose.msra.mxu0 0.0
        %4894 = vmatprep.subr.mxu0 0.0
        %4895 = vmatpush2.xpose.msra.mxu0 0.0
        %4896 = vmatprep.subr.mxu0 0.0
        %4897 = vmatpush2.xpose.msra.mxu0 0.0
        %4898 = vmatprep.subr.mxu0 0.0
        %4899 = vmatpush2.xpose.msra.mxu0 0.0
        %4900 = vmatprep.subr.mxu0 0.0
        %4901 = vmatpush2.xpose.msra.mxu0 0.0
        %4902 = vmatprep.subr.mxu0 0.0
        %4903 = vmatpush2.xpose.msra.mxu0 0.0
        %4904 = vmatprep.subr.mxu0 0.0
        %4905 = vmatpush2.xpose.msra.mxu0 0.0
        %4906 = vmatprep.subr.mxu0 0.0
        %4907 = vmatpush2.xpose.msra.mxu0 0.0
        %4908 = vmatprep.subr.mxu0 0.0
        %4909 = vmatpush2.xpose.msra.mxu0 0.0
        %4910 = vmatprep.subr.mxu0 0.0
        %4911 = vmatpush2.xpose.msra.mxu0 0.0
        %4912 = vmatprep.subr.mxu0 0.0
        %4913 = vmatpush2.xpose.msra.mxu0 0.0
        %4914 = vmatprep.mubr.f32.mxu0 0.0
        %4915 = vmatmul.mubr.f32.gmra.mxu0 %v4845
        %v4916 = vpop.f32.mrf.mxu0
        %v4917 = vadd.f32 0.0, %v4916
        %v4918 = vpop.f32.mrf.mxu0
        %4919 = vdwg.mxu0
        %v4920 = vmul.f32 %v4917, 0.125
        %v4921 = vadd.f32 %v4920, %v4842
        %vm4922 = vcmask 27648
        %v4923 = vsel %vm4922, %v4921, -inf
        %4924 = vmax.xlane.f32.xlu0 %v4923
        %v4925 = vpop.xlane.xlu0 %4924
        %v4926 = vsub.f32 %v4921, %v4925
        %v4927 = vmul.f32 %v4926, 1.442695
        %v4928 = vpow.pop %v4927
        %v4929 = vsel %vm4922, %v4928, 0.0
        %4930 = vadd.xlane.f32.xlu0 %v4929
        %v4931 = vpop.xlane.xlu0 %4930
        %v4932 = vrcp.pop %v4931
        %v4933 = vmul.f32 %v4928, %v4932
        %vm4934 = vcmask 31744
        %v4936 = vsel %vm4934, %v4933, 0
        %v4939 = vsel %vm4430, %v4840, 0
        %4941 = vmatprep.subr.mxu0 0.0
        %4942 = vmatpush1.msra.mxu0 0.0
        %4943 = vmatprep.subr.mxu0 0.0
        %4944 = vmatpush1.msra.mxu0 0.0
        %4945 = vmatprep.subr.mxu0 0.0
        %4946 = vmatpush1.msra.mxu0 0.0
        %4947 = vmatprep.subr.mxu0 0.0
        %4948 = vmatpush1.msra.mxu0 0.0
        %4949 = vmatprep.subr.mxu0 0.0
        %4950 = vmatpush1.msra.mxu0 0.0
        %4951 = vmatprep.subr.mxu0 0.0
        %4952 = vmatpush1.msra.mxu0 0.0
        %4953 = vmatprep.subr.mxu0 0.0
        %4954 = vmatpush1.msra.mxu0 0.0
        %4955 = vmatprep.subr.mxu0 0.0
        %4956 = vmatpush1.msra.mxu0 0.0
        %4957 = vmatprep.subr.mxu0 0.0
        %4958 = vmatpush1.msra.mxu0 0.0
        %4959 = vmatprep.subr.mxu0 0.0
        %4960 = vmatpush1.msra.mxu0 0.0
        %4961 = vmatprep.subr.mxu0 0.0
        %4962 = vmatpush1.msra.mxu0 0.0
        %4963 = vmatprep.subr.mxu0 0.0
        %4964 = vmatpush1.msra.mxu0 0.0
        %4965 = vmatprep.subr.mxu0 0.0
        %4966 = vmatpush1.msra.mxu0 0.0
        %4967 = vmatprep.subr.mxu0 0.0
        %4968 = vmatpush1.msra.mxu0 0.0
        %4969 = vmatprep.subr.mxu0 0.0
        %4970 = vmatpush1.msra.mxu0 0.0
        %4971 = vmatprep.subr.mxu0 0.0
        %4972 = vmatpush1.msra.mxu0 %v4939
        %4973 = vmatprep.subr.mxu0 0.0
        %4974 = vmatpush2.msra.mxu0 0.0
        %4975 = vmatprep.subr.mxu0 0.0
        %4976 = vmatpush2.msra.mxu0 0.0
        %4977 = vmatprep.subr.mxu0 0.0
        %4978 = vmatpush2.msra.mxu0 0.0
        %4979 = vmatprep.subr.mxu0 0.0
        %4980 = vmatpush2.msra.mxu0 0.0
        %4981 = vmatprep.subr.mxu0 0.0
        %4982 = vmatpush2.msra.mxu0 0.0
        %4983 = vmatprep.subr.mxu0 0.0
        %4984 = vmatpush2.msra.mxu0 0.0
        %4985 = vmatprep.subr.mxu0 0.0
        %4986 = vmatpush2.msra.mxu0 0.0
        %4987 = vmatprep.subr.mxu0 0.0
        %4988 = vmatpush2.msra.mxu0 0.0
        %4989 = vmatprep.subr.mxu0 0.0
        %4990 = vmatpush2.msra.mxu0 0.0
        %4991 = vmatprep.subr.mxu0 0.0
        %4992 = vmatpush2.msra.mxu0 0.0
        %4993 = vmatprep.subr.mxu0 0.0
        %4994 = vmatpush2.msra.mxu0 0.0
        %4995 = vmatprep.subr.mxu0 0.0
        %4996 = vmatpush2.msra.mxu0 0.0
        %4997 = vmatprep.subr.mxu0 0.0
        %4998 = vmatpush2.msra.mxu0 0.0
        %4999 = vmatprep.subr.mxu0 0.0
        %5000 = vmatpush2.msra.mxu0 0.0
        %5001 = vmatprep.subr.mxu0 0.0
        %5002 = vmatpush2.msra.mxu0 0.0
        %5003 = vmatprep.subr.mxu0 0.0
        %5004 = vmatpush2.msra.mxu0 0.0
        %5005 = vmatprep.mubr.f32.mxu0 0.0
        %5006 = vmatmul.mubr.f32.gmra.mxu0 %v4936
        %v5007 = vpop.f32.mrf.mxu0
        %v5008 = vadd.f32 0.0, %v5007
        %v5009 = vpop.f32.mrf.mxu0
        %5010 = vdwg.mxu0
        %vm5011 = vcmask 519168
        %5012 = vst.msk [vmem:[#allocation3] sm:$0xf] %vm5011, %v5008
        %5013 = vrot.lane.b32.xlu0 %v4836, 64
        %v5014 = vpop.permute.xlu0 %5013
        %5015 = vrot.lane.b32.xlu0 %v4838, 64
        %v5016 = vpop.permute.xlu0 %5015
        %v5017 = vsel %vm4843, %v5014, 0
        %v5019 = vsel %vm4843, %v5016, 0
        %5021 = vmatprep.subr.mxu0 0.0
        %5022 = vmatpush1.xpose.msra.mxu0 0.0
        %5023 = vmatprep.subr.mxu0 0.0
        %5024 = vmatpush1.xpose.msra.mxu0 0.0
        %5025 = vmatprep.subr.mxu0 0.0
        %5026 = vmatpush1.xpose.msra.mxu0 0.0
        %5027 = vmatprep.subr.mxu0 0.0
        %5028 = vmatpush1.xpose.msra.mxu0 0.0
        %5029 = vmatprep.subr.mxu0 0.0
        %5030 = vmatpush1.xpose.msra.mxu0 0.0
        %5031 = vmatprep.subr.mxu0 0.0
        %5032 = vmatpush1.xpose.msra.mxu0 0.0
        %5033 = vmatprep.subr.mxu0 0.0
        %5034 = vmatpush1.xpose.msra.mxu0 0.0
        %5035 = vmatprep.subr.mxu0 0.0
        %5036 = vmatpush1.xpose.msra.mxu0 0.0
        %5037 = vmatprep.subr.mxu0 0.0
        %5038 = vmatpush1.xpose.msra.mxu0 0.0
        %5039 = vmatprep.subr.mxu0 0.0
        %5040 = vmatpush1.xpose.msra.mxu0 0.0
        %5041 = vmatprep.subr.mxu0 0.0
        %5042 = vmatpush1.xpose.msra.mxu0 0.0
        %5043 = vmatprep.subr.mxu0 0.0
        %5044 = vmatpush1.xpose.msra.mxu0 0.0
        %5045 = vmatprep.subr.mxu0 0.0
        %5046 = vmatpush1.xpose.msra.mxu0 0.0
        %5047 = vmatprep.subr.mxu0 0.0
        %5048 = vmatpush1.xpose.msra.mxu0 0.0
        %5049 = vmatprep.subr.mxu0 0.0
        %5050 = vmatpush1.xpose.msra.mxu0 0.0
        %5051 = vmatprep.subr.mxu0 0.0
        %5052 = vmatpush1.xpose.msra.mxu0 %v5019
        %5053 = vmatprep.subr.mxu0 0.0
        %5054 = vmatpush2.xpose.msra.mxu0 0.0
        %5055 = vmatprep.subr.mxu0 0.0
        %5056 = vmatpush2.xpose.msra.mxu0 0.0
        %5057 = vmatprep.subr.mxu0 0.0
        %5058 = vmatpush2.xpose.msra.mxu0 0.0
        %5059 = vmatprep.subr.mxu0 0.0
        %5060 = vmatpush2.xpose.msra.mxu0 0.0
        %5061 = vmatprep.subr.mxu0 0.0
        %5062 = vmatpush2.xpose.msra.mxu0 0.0
        %5063 = vmatprep.subr.mxu0 0.0
        %5064 = vmatpush2.xpose.msra.mxu0 0.0
        %5065 = vmatprep.subr.mxu0 0.0
        %5066 = vmatpush2.xpose.msra.mxu0 0.0
        %5067 = vmatprep.subr.mxu0 0.0
        %5068 = vmatpush2.xpose.msra.mxu0 0.0
        %5069 = vmatprep.subr.mxu0 0.0
        %5070 = vmatpush2.xpose.msra.mxu0 0.0
        %5071 = vmatprep.subr.mxu0 0.0
        %5072 = vmatpush2.xpose.msra.mxu0 0.0
        %5073 = vmatprep.subr.mxu0 0.0
        %5074 = vmatpush2.xpose.msra.mxu0 0.0
        %5075 = vmatprep.subr.mxu0 0.0
        %5076 = vmatpush2.xpose.msra.mxu0 0.0
        %5077 = vmatprep.subr.mxu0 0.0
        %5078 = vmatpush2.xpose.msra.mxu0 0.0
        %5079 = vmatprep.subr.mxu0 0.0
        %5080 = vmatpush2.xpose.msra.mxu0 0.0
        %5081 = vmatprep.subr.mxu0 0.0
        %5082 = vmatpush2.xpose.msra.mxu0 0.0
        %5083 = vmatprep.subr.mxu0 0.0
        %5084 = vmatpush2.xpose.msra.mxu0 0.0
        %5085 = vmatprep.mubr.f32.mxu0 0.0
        %5086 = vmatmul.mubr.f32.gmra.mxu0 %v5017
        %v5087 = vpop.f32.mrf.mxu0
        %v5088 = vadd.f32 0.0, %v5087
        %v5089 = vpop.f32.mrf.mxu0
        %5090 = vdwg.mxu0
        %v5091 = vmul.f32 %v5088, 0.125
        %v5092 = vadd.f32 %v5091, %v4842
        %v5093 = vsel %vm4922, %v5092, -inf
        %5094 = vmax.xlane.f32.xlu0 %v5093
        %v5095 = vpop.xlane.xlu0 %5094
        %v5096 = vsub.f32 %v5092, %v5095
        %v5097 = vmul.f32 %v5096, 1.442695
        %v5098 = vpow.pop %v5097
        %v5099 = vsel %vm4922, %v5098, 0.0
        %5100 = vadd.xlane.f32.xlu0 %v5099
        %v5101 = vpop.xlane.xlu0 %5100
        %v5102 = vrcp.pop %v5101
        %v5103 = vmul.f32 %v5098, %v5102
        %5104 = vrot.lane.b32.xlu0 %v4840, 64
        %v5105 = vpop.permute.xlu0 %5104
        %v5107 = vsel %vm4934, %v5103, 0
        %v5109 = vsel %vm4430, %v5105, 0
        %5111 = vmatprep.subr.mxu0 0.0
        %5112 = vmatpush1.msra.mxu0 0.0
        %5113 = vmatprep.subr.mxu0 0.0
        %5114 = vmatpush1.msra.mxu0 0.0
        %5115 = vmatprep.subr.mxu0 0.0
        %5116 = vmatpush1.msra.mxu0 0.0
        %5117 = vmatprep.subr.mxu0 0.0
        %5118 = vmatpush1.msra.mxu0 0.0
        %5119 = vmatprep.subr.mxu0 0.0
        %5120 = vmatpush1.msra.mxu0 0.0
        %5121 = vmatprep.subr.mxu0 0.0
        %5122 = vmatpush1.msra.mxu0 0.0
        %5123 = vmatprep.subr.mxu0 0.0
        %5124 = vmatpush1.msra.mxu0 0.0
        %5125 = vmatprep.subr.mxu0 0.0
        %5126 = vmatpush1.msra.mxu0 0.0
        %5127 = vmatprep.subr.mxu0 0.0
        %5128 = vmatpush1.msra.mxu0 0.0
        %5129 = vmatprep.subr.mxu0 0.0
        %5130 = vmatpush1.msra.mxu0 0.0
        %5131 = vmatprep.subr.mxu0 0.0
        %5132 = vmatpush1.msra.mxu0 0.0
        %5133 = vmatprep.subr.mxu0 0.0
        %5134 = vmatpush1.msra.mxu0 0.0
        %5135 = vmatprep.subr.mxu0 0.0
        %5136 = vmatpush1.msra.mxu0 0.0
        %5137 = vmatprep.subr.mxu0 0.0
        %5138 = vmatpush1.msra.mxu0 0.0
        %5139 = vmatprep.subr.mxu0 0.0
        %5140 = vmatpush1.msra.mxu0 0.0
        %5141 = vmatprep.subr.mxu0 0.0
        %5142 = vmatpush1.msra.mxu0 %v5109
        %5143 = vmatprep.subr.mxu0 0.0
        %5144 = vmatpush2.msra.mxu0 0.0
        %5145 = vmatprep.subr.mxu0 0.0
        %5146 = vmatpush2.msra.mxu0 0.0
        %5147 = vmatprep.subr.mxu0 0.0
        %5148 = vmatpush2.msra.mxu0 0.0
        %5149 = vmatprep.subr.mxu0 0.0
        %5150 = vmatpush2.msra.mxu0 0.0
        %5151 = vmatprep.subr.mxu0 0.0
        %5152 = vmatpush2.msra.mxu0 0.0
        %5153 = vmatprep.subr.mxu0 0.0
        %5154 = vmatpush2.msra.mxu0 0.0
        %5155 = vmatprep.subr.mxu0 0.0
        %5156 = vmatpush2.msra.mxu0 0.0
        %5157 = vmatprep.subr.mxu0 0.0
        %5158 = vmatpush2.msra.mxu0 0.0
        %5159 = vmatprep.subr.mxu0 0.0
        %5160 = vmatpush2.msra.mxu0 0.0
        %5161 = vmatprep.subr.mxu0 0.0
        %5162 = vmatpush2.msra.mxu0 0.0
        %5163 = vmatprep.subr.mxu0 0.0
        %5164 = vmatpush2.msra.mxu0 0.0
        %5165 = vmatprep.subr.mxu0 0.0
        %5166 = vmatpush2.msra.mxu0 0.0
        %5167 = vmatprep.subr.mxu0 0.0
        %5168 = vmatpush2.msra.mxu0 0.0
        %5169 = vmatprep.subr.mxu0 0.0
        %5170 = vmatpush2.msra.mxu0 0.0
        %5171 = vmatprep.subr.mxu0 0.0
        %5172 = vmatpush2.msra.mxu0 0.0
        %5173 = vmatprep.subr.mxu0 0.0
        %5174 = vmatpush2.msra.mxu0 0.0
        %5175 = vmatprep.mubr.f32.mxu0 0.0
        %5176 = vmatmul.mubr.f32.gmra.mxu0 %v5107
        %v5177 = vpop.f32.mrf.mxu0
        %v5178 = vadd.f32 0.0, %v5177
        %v5179 = vpop.f32.mrf.mxu0
        %5180 = vdwg.mxu0
        %5182 = vrot.lane.b32.xlu0 %v5178, 64
        %v5183 = vpop.permute.xlu0 %5182
        %vm5185 = vcmask 1043968
        %5186 = vst.msk [vmem:[#allocation3] sm:$0xf] %vm5185, %v5183
        %v5188 = vsel %vm4843, %v4837, 0
        %v5191 = vsel %vm4843, %v4839, 0
        %5193 = vmatprep.subr.mxu0 0.0
        %5194 = vmatpush1.xpose.msra.mxu0 0.0
        %5195 = vmatprep.subr.mxu0 0.0
        %5196 = vmatpush1.xpose.msra.mxu0 0.0
        %5197 = vmatprep.subr.mxu0 0.0
        %5198 = vmatpush1.xpose.msra.mxu0 0.0
        %5199 = vmatprep.subr.mxu0 0.0
        %5200 = vmatpush1.xpose.msra.mxu0 0.0
        %5201 = vmatprep.subr.mxu0 0.0
        %5202 = vmatpush1.xpose.msra.mxu0 0.0
        %5203 = vmatprep.subr.mxu0 0.0
        %5204 = vmatpush1.xpose.msra.mxu0 0.0
        %5205 = vmatprep.subr.mxu0 0.0
        %5206 = vmatpush1.xpose.msra.mxu0 0.0
        %5207 = vmatprep.subr.mxu0 0.0
        %5208 = vmatpush1.xpose.msra.mxu0 0.0
        %5209 = vmatprep.subr.mxu0 0.0
        %5210 = vmatpush1.xpose.msra.mxu0 0.0
        %5211 = vmatprep.subr.mxu0 0.0
        %5212 = vmatpush1.xpose.msra.mxu0 0.0
        %5213 = vmatprep.subr.mxu0 0.0
        %5214 = vmatpush1.xpose.msra.mxu0 0.0
        %5215 = vmatprep.subr.mxu0 0.0
        %5216 = vmatpush1.xpose.msra.mxu0 0.0
        %5217 = vmatprep.subr.mxu0 0.0
        %5218 = vmatpush1.xpose.msra.mxu0 0.0
        %5219 = vmatprep.subr.mxu0 0.0
        %5220 = vmatpush1.xpose.msra.mxu0 0.0
        %5221 = vmatprep.subr.mxu0 0.0
        %5222 = vmatpush1.xpose.msra.mxu0 0.0
        %5223 = vmatprep.subr.mxu0 0.0
        %5224 = vmatpush1.xpose.msra.mxu0 %v5191
        %5225 = vmatprep.subr.mxu0 0.0
        %5226 = vmatpush2.xpose.msra.mxu0 0.0
        %5227 = vmatprep.subr.mxu0 0.0
        %5228 = vmatpush2.xpose.msra.mxu0 0.0
        %5229 = vmatprep.subr.mxu0 0.0
        %5230 = vmatpush2.xpose.msra.mxu0 0.0
        %5231 = vmatprep.subr.mxu0 0.0
        %5232 = vmatpush2.xpose.msra.mxu0 0.0
        %5233 = vmatprep.subr.mxu0 0.0
        %5234 = vmatpush2.xpose.msra.mxu0 0.0
        %5235 = vmatprep.subr.mxu0 0.0
        %5236 = vmatpush2.xpose.msra.mxu0 0.0
        %5237 = vmatprep.subr.mxu0 0.0
        %5238 = vmatpush2.xpose.msra.mxu0 0.0
        %5239 = vmatprep.subr.mxu0 0.0
        %5240 = vmatpush2.xpose.msra.mxu0 0.0
        %5241 = vmatprep.subr.mxu0 0.0
        %5242 = vmatpush2.xpose.msra.mxu0 0.0
        %5243 = vmatprep.subr.mxu0 0.0
        %5244 = vmatpush2.xpose.msra.mxu0 0.0
        %5245 = vmatprep.subr.mxu0 0.0
        %5246 = vmatpush2.xpose.msra.mxu0 0.0
        %5247 = vmatprep.subr.mxu0 0.0
        %5248 = vmatpush2.xpose.msra.mxu0 0.0
        %5249 = vmatprep.subr.mxu0 0.0
        %5250 = vmatpush2.xpose.msra.mxu0 0.0
        %5251 = vmatprep.subr.mxu0 0.0
        %5252 = vmatpush2.xpose.msra.mxu0 0.0
        %5253 = vmatprep.subr.mxu0 0.0
        %5254 = vmatpush2.xpose.msra.mxu0 0.0
        %5255 = vmatprep.subr.mxu0 0.0
        %5256 = vmatpush2.xpose.msra.mxu0 0.0
        %5257 = vmatprep.mubr.f32.mxu0 0.0
        %5258 = vmatmul.mubr.f32.gmra.mxu0 %v5188
        %v5259 = vpop.f32.mrf.mxu0
        %v5260 = vadd.f32 0.0, %v5259
        %v5261 = vpop.f32.mrf.mxu0
        %5262 = vdwg.mxu0
        %v5263 = vmul.f32 %v5260, 0.125
        %v5264 = vadd.f32 %v5263, %v4842
        %v5265 = vsel %vm4922, %v5264, -inf
        %5266 = vmax.xlane.f32.xlu0 %v5265
        %v5267 = vpop.xlane.xlu0 %5266
        %v5268 = vsub.f32 %v5264, %v5267
        %v5269 = vmul.f32 %v5268, 1.442695
        %v5270 = vpow.pop %v5269
        %v5271 = vsel %vm4922, %v5270, 0.0
        %5272 = vadd.xlane.f32.xlu0 %v5271
        %v5273 = vpop.xlane.xlu0 %5272
        %v5274 = vrcp.pop %v5273
        %v5275 = vmul.f32 %v5270, %v5274
        %v5277 = vsel %vm4934, %v5275, 0
        %v5280 = vsel %vm4430, %v4841, 0
        %5282 = vmatprep.subr.mxu0 0.0
        %5283 = vmatpush1.msra.mxu0 0.0
        %5284 = vmatprep.subr.mxu0 0.0
        %5285 = vmatpush1.msra.mxu0 0.0
        %5286 = vmatprep.subr.mxu0 0.0
        %5287 = vmatpush1.msra.mxu0 0.0
        %5288 = vmatprep.subr.mxu0 0.0
        %5289 = vmatpush1.msra.mxu0 0.0
        %5290 = vmatprep.subr.mxu0 0.0
        %5291 = vmatpush1.msra.mxu0 0.0
        %5292 = vmatprep.subr.mxu0 0.0
        %5293 = vmatpush1.msra.mxu0 0.0
        %5294 = vmatprep.subr.mxu0 0.0
        %5295 = vmatpush1.msra.mxu0 0.0
        %5296 = vmatprep.subr.mxu0 0.0
        %5297 = vmatpush1.msra.mxu0 0.0
        %5298 = vmatprep.subr.mxu0 0.0
        %5299 = vmatpush1.msra.mxu0 0.0
        %5300 = vmatprep.subr.mxu0 0.0
        %5301 = vmatpush1.msra.mxu0 0.0
        %5302 = vmatprep.subr.mxu0 0.0
        %5303 = vmatpush1.msra.mxu0 0.0
        %5304 = vmatprep.subr.mxu0 0.0
        %5305 = vmatpush1.msra.mxu0 0.0
        %5306 = vmatprep.subr.mxu0 0.0
        %5307 = vmatpush1.msra.mxu0 0.0
        %5308 = vmatprep.subr.mxu0 0.0
        %5309 = vmatpush1.msra.mxu0 0.0
        %5310 = vmatprep.subr.mxu0 0.0
        %5311 = vmatpush1.msra.mxu0 0.0
        %5312 = vmatprep.subr.mxu0 0.0
        %5313 = vmatpush1.msra.mxu0 %v5280
        %5314 = vmatprep.subr.mxu0 0.0
        %5315 = vmatpush2.msra.mxu0 0.0
        %5316 = vmatprep.subr.mxu0 0.0
        %5317 = vmatpush2.msra.mxu0 0.0
        %5318 = vmatprep.subr.mxu0 0.0
        %5319 = vmatpush2.msra.mxu0 0.0
        %5320 = vmatprep.subr.mxu0 0.0
        %5321 = vmatpush2.msra.mxu0 0.0
        %5322 = vmatprep.subr.mxu0 0.0
        %5323 = vmatpush2.msra.mxu0 0.0
        %5324 = vmatprep.subr.mxu0 0.0
        %5325 = vmatpush2.msra.mxu0 0.0
        %5326 = vmatprep.subr.mxu0 0.0
        %5327 = vmatpush2.msra.mxu0 0.0
        %5328 = vmatprep.subr.mxu0 0.0
        %5329 = vmatpush2.msra.mxu0 0.0
        %5330 = vmatprep.subr.mxu0 0.0
        %5331 = vmatpush2.msra.mxu0 0.0
        %5332 = vmatprep.subr.mxu0 0.0
        %5333 = vmatpush2.msra.mxu0 0.0
        %5334 = vmatprep.subr.mxu0 0.0
        %5335 = vmatpush2.msra.mxu0 0.0
        %5336 = vmatprep.subr.mxu0 0.0
        %5337 = vmatpush2.msra.mxu0 0.0
        %5338 = vmatprep.subr.mxu0 0.0
        %5339 = vmatpush2.msra.mxu0 0.0
        %5340 = vmatprep.subr.mxu0 0.0
        %5341 = vmatpush2.msra.mxu0 0.0
        %5342 = vmatprep.subr.mxu0 0.0
        %5343 = vmatpush2.msra.mxu0 0.0
        %5344 = vmatprep.subr.mxu0 0.0
        %5345 = vmatpush2.msra.mxu0 0.0
        %5346 = vmatprep.mubr.f32.mxu0 0.0
        %5347 = vmatmul.mubr.f32.gmra.mxu0 %v5277
        %v5348 = vpop.f32.mrf.mxu0
        %v5349 = vadd.f32 0.0, %v5348
        %v5350 = vpop.f32.mrf.mxu0
        %5351 = vdwg.mxu0
        %5352 = vst.msk [vmem:[#allocation3 + $0x4] sm:$0xf] %vm5011, %v5349
        %5353 = vrot.lane.b32.xlu0 %v4837, 64
        %v5354 = vpop.permute.xlu0 %5353
        %5355 = vrot.lane.b32.xlu0 %v4839, 64
        %v5356 = vpop.permute.xlu0 %5355
        %v5357 = vsel %vm4843, %v5354, 0
        %v5359 = vsel %vm4843, %v5356, 0
        %5361 = vmatprep.subr.mxu0 0.0
        %5362 = vmatpush1.xpose.msra.mxu0 0.0
        %5363 = vmatprep.subr.mxu0 0.0
        %5364 = vmatpush1.xpose.msra.mxu0 0.0
        %5365 = vmatprep.subr.mxu0 0.0
        %5366 = vmatpush1.xpose.msra.mxu0 0.0
        %5367 = vmatprep.subr.mxu0 0.0
        %5368 = vmatpush1.xpose.msra.mxu0 0.0
        %5369 = vmatprep.subr.mxu0 0.0
        %5370 = vmatpush1.xpose.msra.mxu0 0.0
        %5371 = vmatprep.subr.mxu0 0.0
        %5372 = vmatpush1.xpose.msra.mxu0 0.0
        %5373 = vmatprep.subr.mxu0 0.0
        %5374 = vmatpush1.xpose.msra.mxu0 0.0
        %5375 = vmatprep.subr.mxu0 0.0
        %5376 = vmatpush1.xpose.msra.mxu0 0.0
        %5377 = vmatprep.subr.mxu0 0.0
        %5378 = vmatpush1.xpose.msra.mxu0 0.0
        %5379 = vmatprep.subr.mxu0 0.0
        %5380 = vmatpush1.xpose.msra.mxu0 0.0
        %5381 = vmatprep.subr.mxu0 0.0
        %5382 = vmatpush1.xpose.msra.mxu0 0.0
        %5383 = vmatprep.subr.mxu0 0.0
        %5384 = vmatpush1.xpose.msra.mxu0 0.0
        %5385 = vmatprep.subr.mxu0 0.0
        %5386 = vmatpush1.xpose.msra.mxu0 0.0
        %5387 = vmatprep.subr.mxu0 0.0
        %5388 = vmatpush1.xpose.msra.mxu0 0.0
        %5389 = vmatprep.subr.mxu0 0.0
        %5390 = vmatpush1.xpose.msra.mxu0 0.0
        %5391 = vmatprep.subr.mxu0 0.0
        %5392 = vmatpush1.xpose.msra.mxu0 %v5359
        %5393 = vmatprep.subr.mxu0 0.0
        %5394 = vmatpush2.xpose.msra.mxu0 0.0
        %5395 = vmatprep.subr.mxu0 0.0
        %5396 = vmatpush2.xpose.msra.mxu0 0.0
        %5397 = vmatprep.subr.mxu0 0.0
        %5398 = vmatpush2.xpose.msra.mxu0 0.0
        %5399 = vmatprep.subr.mxu0 0.0
        %5400 = vmatpush2.xpose.msra.mxu0 0.0
        %5401 = vmatprep.subr.mxu0 0.0
        %5402 = vmatpush2.xpose.msra.mxu0 0.0
        %5403 = vmatprep.subr.mxu0 0.0
        %5404 = vmatpush2.xpose.msra.mxu0 0.0
        %5405 = vmatprep.subr.mxu0 0.0
        %5406 = vmatpush2.xpose.msra.mxu0 0.0
        %5407 = vmatprep.subr.mxu0 0.0
        %5408 = vmatpush2.xpose.msra.mxu0 0.0
        %5409 = vmatprep.subr.mxu0 0.0
        %5410 = vmatpush2.xpose.msra.mxu0 0.0
        %5411 = vmatprep.subr.mxu0 0.0
        %5412 = vmatpush2.xpose.msra.mxu0 0.0
        %5413 = vmatprep.subr.mxu0 0.0
        %5414 = vmatpush2.xpose.msra.mxu0 0.0
        %5415 = vmatprep.subr.mxu0 0.0
        %5416 = vmatpush2.xpose.msra.mxu0 0.0
        %5417 = vmatprep.subr.mxu0 0.0
        %5418 = vmatpush2.xpose.msra.mxu0 0.0
        %5419 = vmatprep.subr.mxu0 0.0
        %5420 = vmatpush2.xpose.msra.mxu0 0.0
        %5421 = vmatprep.subr.mxu0 0.0
        %5422 = vmatpush2.xpose.msra.mxu0 0.0
        %5423 = vmatprep.subr.mxu0 0.0
        %5424 = vmatpush2.xpose.msra.mxu0 0.0
        %5425 = vmatprep.mubr.f32.mxu0 0.0
        %5426 = vmatmul.mubr.f32.gmra.mxu0 %v5357
        %v5427 = vpop.f32.mrf.mxu0
        %v5428 = vadd.f32 0.0, %v5427
        %v5429 = vpop.f32.mrf.mxu0
        %5430 = vdwg.mxu0
        %v5431 = vmul.f32 %v5428, 0.125
        %v5432 = vadd.f32 %v5431, %v4842
        %v5433 = vsel %vm4922, %v5432, -inf
        %5434 = vmax.xlane.f32.xlu0 %v5433
        %v5435 = vpop.xlane.xlu0 %5434
        %v5436 = vsub.f32 %v5432, %v5435
        %v5437 = vmul.f32 %v5436, 1.442695
        %v5438 = vpow.pop %v5437
        %v5439 = vsel %vm4922, %v5438, 0.0
        %5440 = vadd.xlane.f32.xlu0 %v5439
        %v5441 = vpop.xlane.xlu0 %5440
        %v5442 = vrcp.pop %v5441
        %v5443 = vmul.f32 %v5438, %v5442
        %5444 = vrot.lane.b32.xlu0 %v4841, 64
        %v5445 = vpop.permute.xlu0 %5444
        %v5447 = vsel %vm4934, %v5443, 0
        %v5449 = vsel %vm4430, %v5445, 0
        %5451 = vmatprep.subr.mxu0 0.0
        %5452 = vmatpush1.msra.mxu0 0.0
        %5453 = vmatprep.subr.mxu0 0.0
        %5454 = vmatpush1.msra.mxu0 0.0
        %5455 = vmatprep.subr.mxu0 0.0
        %5456 = vmatpush1.msra.mxu0 0.0
        %5457 = vmatprep.subr.mxu0 0.0
        %5458 = vmatpush1.msra.mxu0 0.0
        %5459 = vmatprep.subr.mxu0 0.0
        %5460 = vmatpush1.msra.mxu0 0.0
        %5461 = vmatprep.subr.mxu0 0.0
        %5462 = vmatpush1.msra.mxu0 0.0
        %5463 = vmatprep.subr.mxu0 0.0
        %5464 = vmatpush1.msra.mxu0 0.0
        %5465 = vmatprep.subr.mxu0 0.0
        %5466 = vmatpush1.msra.mxu0 0.0
        %5467 = vmatprep.subr.mxu0 0.0
        %5468 = vmatpush1.msra.mxu0 0.0
        %5469 = vmatprep.subr.mxu0 0.0
        %5470 = vmatpush1.msra.mxu0 0.0
        %5471 = vmatprep.subr.mxu0 0.0
        %5472 = vmatpush1.msra.mxu0 0.0
        %5473 = vmatprep.subr.mxu0 0.0
        %5474 = vmatpush1.msra.mxu0 0.0
        %5475 = vmatprep.subr.mxu0 0.0
        %5476 = vmatpush1.msra.mxu0 0.0
        %5477 = vmatprep.subr.mxu0 0.0
        %5478 = vmatpush1.msra.mxu0 0.0
        %5479 = vmatprep.subr.mxu0 0.0
        %5480 = vmatpush1.msra.mxu0 0.0
        %5481 = vmatprep.subr.mxu0 0.0
        %5482 = vmatpush1.msra.mxu0 %v5449
        %5483 = vmatprep.subr.mxu0 0.0
        %5484 = vmatpush2.msra.mxu0 0.0
        %5485 = vmatprep.subr.mxu0 0.0
        %5486 = vmatpush2.msra.mxu0 0.0
        %5487 = vmatprep.subr.mxu0 0.0
        %5488 = vmatpush2.msra.mxu0 0.0
        %5489 = vmatprep.subr.mxu0 0.0
        %5490 = vmatpush2.msra.mxu0 0.0
        %5491 = vmatprep.subr.mxu0 0.0
        %5492 = vmatpush2.msra.mxu0 0.0
        %5493 = vmatprep.subr.mxu0 0.0
        %5494 = vmatpush2.msra.mxu0 0.0
        %5495 = vmatprep.subr.mxu0 0.0
        %5496 = vmatpush2.msra.mxu0 0.0
        %5497 = vmatprep.subr.mxu0 0.0
        %5498 = vmatpush2.msra.mxu0 0.0
        %5499 = vmatprep.subr.mxu0 0.0
        %5500 = vmatpush2.msra.mxu0 0.0
        %5501 = vmatprep.subr.mxu0 0.0
        %5502 = vmatpush2.msra.mxu0 0.0
        %5503 = vmatprep.subr.mxu0 0.0
        %5504 = vmatpush2.msra.mxu0 0.0
        %5505 = vmatprep.subr.mxu0 0.0
        %5506 = vmatpush2.msra.mxu0 0.0
        %5507 = vmatprep.subr.mxu0 0.0
        %5508 = vmatpush2.msra.mxu0 0.0
        %5509 = vmatprep.subr.mxu0 0.0
        %5510 = vmatpush2.msra.mxu0 0.0
        %5511 = vmatprep.subr.mxu0 0.0
        %5512 = vmatpush2.msra.mxu0 0.0
        %5513 = vmatprep.subr.mxu0 0.0
        %5514 = vmatpush2.msra.mxu0 0.0
        %5515 = vmatprep.mubr.f32.mxu0 0.0
        %5516 = vmatmul.mubr.f32.gmra.mxu0 %v5447
        %v5517 = vpop.f32.mrf.mxu0
        %v5518 = vadd.f32 0.0, %v5517
        %v5519 = vpop.f32.mrf.mxu0
        %5520 = vdwg.mxu0
        %5522 = vrot.lane.b32.xlu0 %v5518, 64
        %v5523 = vpop.permute.xlu0 %5522
        %5525 = vst.msk [vmem:[#allocation3 + $0x4] sm:$0xf] %vm5185, %v5523
        %v5526 = vld [vmem:[#allocation3] sm:$0xff]
        %v5528 = vcombine.high %v5526, %v5526
        %v5530 = vpack.c.bf16 %v5526, %v5526
        %v5531 = vpack.c.bf16 %v5528, %v5528
        %v5532 = vld [vmem:[%s1160] sm:$0xff]
        %v5533 = vld [vmem:[%s1160 + $0x8] sm:$0xff]
        %v5534 = vld [vmem:[%s1160 + $0x10] sm:$0xff]
        %v5535 = vld [vmem:[%s1160 + $0x18] sm:$0xff]
        %v5536 = vld [vmem:[%s1160 + $0x20] sm:$0xff]
        %v5537 = vld [vmem:[%s1160 + $0x28] sm:$0xff]
        %v5538 = vld [vmem:[%s1160 + $0x30] sm:$0xff]
        %v5539 = vld [vmem:[%s1160 + $0x38] sm:$0xff]
        %v5540 = vld [vmem:[%s1160 + $0x40] sm:$0xff]
        %v5541 = vld [vmem:[%s1160 + $0x48] sm:$0xff]
        %v5542 = vld [vmem:[%s1160 + $0x50] sm:$0xff]
        %v5543 = vld [vmem:[%s1160 + $0x58] sm:$0xff]
        %v5544 = vld [vmem:[%s1160 + $0x60] sm:$0xff]
        %v5545 = vld [vmem:[%s1160 + $0x68] sm:$0xff]
        %v5546 = vld [vmem:[%s1160 + $0x70] sm:$0xff]
        %v5547 = vld [vmem:[%s1160 + $0x78] sm:$0xff]
        %v5548 = vunpack.c.l.s8.bf16 %v5532
        %v5549 = vunpack.c.l.s8.bf16 %v5533
        %v5550 = vunpack.c.h.s8.bf16 %v5532
        %v5551 = vunpack.c.h.s8.bf16 %v5533
        %v5552 = vunpack.c.l.s8.bf16 %v5534
        %v5553 = vunpack.c.l.s8.bf16 %v5535
        %v5554 = vunpack.c.h.s8.bf16 %v5534
        %v5555 = vunpack.c.h.s8.bf16 %v5535
        %v5556 = vunpack.c.l.s8.bf16 %v5536
        %v5557 = vunpack.c.l.s8.bf16 %v5537
        %v5558 = vunpack.c.h.s8.bf16 %v5536
        %v5559 = vunpack.c.h.s8.bf16 %v5537
        %v5560 = vunpack.c.l.s8.bf16 %v5538
        %v5561 = vunpack.c.l.s8.bf16 %v5539
        %v5562 = vunpack.c.h.s8.bf16 %v5538
        %v5563 = vunpack.c.h.s8.bf16 %v5539
        %v5564 = vunpack.c.l.s8.bf16 %v5540
        %v5565 = vunpack.c.l.s8.bf16 %v5541
        %v5566 = vunpack.c.h.s8.bf16 %v5540
        %v5567 = vunpack.c.h.s8.bf16 %v5541
        %v5568 = vunpack.c.l.s8.bf16 %v5542
        %v5569 = vunpack.c.l.s8.bf16 %v5543
        %v5570 = vunpack.c.h.s8.bf16 %v5542
        %v5571 = vunpack.c.h.s8.bf16 %v5543
        %v5572 = vunpack.c.l.s8.bf16 %v5544
        %v5573 = vunpack.c.l.s8.bf16 %v5545
        %v5574 = vunpack.c.h.s8.bf16 %v5544
        %v5575 = vunpack.c.h.s8.bf16 %v5545
        %v5576 = vunpack.c.l.s8.bf16 %v5546
        %v5577 = vunpack.c.l.s8.bf16 %v5547
        %v5578 = vunpack.c.h.s8.bf16 %v5546
        %v5579 = vunpack.c.h.s8.bf16 %v5547
        %5580 = vmatprep.subr.bf16.mxu0 %v5563
        %5581 = vmatpush1.bf16.msra.mxu0 %v5562
        %5582 = vmatprep.subr.bf16.mxu0 %v5561
        %5583 = vmatpush1.bf16.msra.mxu0 %v5560
        %5584 = vmatprep.subr.bf16.mxu0 %v5559
        %5585 = vmatpush1.bf16.msra.mxu0 %v5558
        %5586 = vmatprep.subr.bf16.mxu0 %v5557
        %5587 = vmatpush1.bf16.msra.mxu0 %v5556
        %5588 = vmatprep.subr.bf16.mxu0 %v5555
        %5589 = vmatpush1.bf16.msra.mxu0 %v5554
        %5590 = vmatprep.subr.bf16.mxu0 %v5553
        %5591 = vmatpush1.bf16.msra.mxu0 %v5552
        %5592 = vmatprep.subr.bf16.mxu0 %v5551
        %5593 = vmatpush1.bf16.msra.mxu0 %v5550
        %5594 = vmatprep.subr.bf16.mxu0 %v5549
        %5595 = vmatpush1.bf16.msra.mxu0 %v5548
        %5596 = vmatprep.subr.bf16.mxu0 %v5579
        %5597 = vmatpush2.bf16.msra.mxu0 %v5578
        %5598 = vmatprep.subr.bf16.mxu0 %v5577
        %5599 = vmatpush2.bf16.msra.mxu0 %v5576
        %5600 = vmatprep.subr.bf16.mxu0 %v5575
        %5601 = vmatpush2.bf16.msra.mxu0 %v5574
        %5602 = vmatprep.subr.bf16.mxu0 %v5573
        %5603 = vmatpush2.bf16.msra.mxu0 %v5572
        %5604 = vmatprep.subr.bf16.mxu0 %v5571
        %5605 = vmatpush2.bf16.msra.mxu0 %v5570
        %5606 = vmatprep.subr.bf16.mxu0 %v5569
        %5607 = vmatpush2.bf16.msra.mxu0 %v5568
        %5608 = vmatprep.subr.bf16.mxu0 %v5567
        %5609 = vmatpush2.bf16.msra.mxu0 %v5566
        %5610 = vmatprep.subr.bf16.mxu0 %v5565
        %5611 = vmatpush2.bf16.msra.mxu0 %v5564
        %5612 = vmatprep.mubr.bf16.mxu0 %v5531
        %5613 = vmatmul.mubr.bf16.gmra.mxu0 %v5530
        %v5614 = vpop.f32.mrf.mxu0
        %v5615 = vadd.f32 0.0, %v5614
        %v5616 = vpop.f32.mrf.mxu0
        %v5617 = vadd.f32 0.0, %v5616
        %v5618 = vpop.f32.mrf.mxu0
        %v5619 = vpop.f32.mrf.mxu0
        %5620 = vdwg.mxu0
        %v5621 = vld [vmem:[%s1169] sm:$0x3]
        %v5623 = vlaneseq
        %v5624 = vshrl.u32 %v5623, 7
        %v5625 = vsub.s32 0, %v5624
        %v5626 = vrot.slane %v5621, %v5625
        %v5627 = vlaneseq
        %v5628 = vshrl.u32 %v5627, 7
        %v5629 = vsub.s32 1, %v5628
        %v5630 = vrot.slane %v5621, %v5629
        %v5633 = vmul.f32 %v5615, %v5626
        %v5634 = vmul.f32 %v5617, %v5630
        %v5635 = vld [vmem:[%s1178] sm:$0x3]
        %v5637 = vlaneseq
        %v5638 = vshrl.u32 %v5637, 7
        %v5639 = vsub.s32 0, %v5638
        %v5640 = vrot.slane %v5635, %v5639
        %v5641 = vlaneseq
        %v5642 = vshrl.u32 %v5641, 7
        %v5643 = vsub.s32 1, %v5642
        %v5644 = vrot.slane %v5635, %v5643
        %v5647 = vadd.f32 %v5633, %v5640
        %v5648 = vadd.f32 %v5634, %v5644
        %v5651 = vcombine.low %v5647, %v5648
        %v5653 = vadd.f32 %v4424, %v5651
        %v5654 = vld [vmem:[%s1187] sm:$0x3]
        %v5655 = vld [vmem:[%s1196] sm:$0x3]
        %v5657 = vcombine.high %v5653, %v5653
        %v5659 = vsel %vm4430, %v5653, 0.0
        %v5660 = vsel %vm4430, %v5657, 0.0
        %v5661 = vadd.f32 %v5659, %v5660
        %5662 = vadd.xlane.f32.xlu0 %v5661
        %v5663 = vpop.xlane.xlu0 %5662
        %v5664 = vmul.f32 %v5663, %v4436
        %v5667 = vunpack.c.l.s4 839922192
        %v5668 = vunpack.c.0.s8 %v5667
        %v5669 = vlaneseq
        %v5670 = vshrl.u32 %v5669, 7
        %v5671 = vsub.s32 %v5668, %v5670
        %v5672 = vrot.slane %v5664, %v5671
        %v5674 = vsub.f32 %v5653, %v5672
        %v5675 = vmul.f32 %v5674, %v5674
        %v5677 = vcombine.high %v5675, %v5675
        %v5679 = vsel %vm4430, %v5675, 0.0
        %v5680 = vsel %vm4430, %v5677, 0.0
        %v5681 = vadd.f32 %v5679, %v5680
        %5682 = vadd.xlane.f32.xlu0 %v5681
        %v5683 = vpop.xlane.xlu0 %5682
        %v5684 = vmul.f32 %v5683, %v4436
        %v5685 = vadd.f32 %v5684, 1e-06
        %v5686 = vrsqrt.pop %v5685
        %v5689 = vunpack.c.l.s4 839922192
        %v5690 = vunpack.c.0.s8 %v5689
        %v5691 = vlaneseq
        %v5692 = vshrl.u32 %v5691, 7
        %v5693 = vsub.s32 %v5690, %v5692
        %v5694 = vrot.slane %v5686, %v5693
        %v5696 = vmul.f32 %v5674, %v5694
        %v5698 = vlaneseq
        %v5699 = vshrl.u32 %v5698, 7
        %v5700 = vsub.s32 0, %v5699
        %v5701 = vrot.slane %v5654, %v5700
        %v5702 = vlaneseq
        %v5703 = vshrl.u32 %v5702, 7
        %v5704 = vsub.s32 1, %v5703
        %v5705 = vrot.slane %v5654, %v5704
        %v5706 = vcombine.low %v5701, %v5705
        %v5708 = vmul.f32 %v5696, %v5706
        %v5710 = vlaneseq
        %v5711 = vshrl.u32 %v5710, 7
        %v5712 = vsub.s32 0, %v5711
        %v5713 = vrot.slane %v5655, %v5712
        %v5714 = vlaneseq
        %v5715 = vshrl.u32 %v5714, 7
        %v5716 = vsub.s32 1, %v5715
        %v5717 = vrot.slane %v5655, %v5716
        %v5718 = vcombine.low %v5713, %v5717
        %v5720 = vadd.f32 %v5708, %v5718
        %v5722 = vcombine.high %v5720, %v5720
        %v5724 = vpack.c.bf16 %v5720, %v5720
        %v5725 = vpack.c.bf16 %v5722, %v5722
        %v5726 = vld [vmem:[%s1205] sm:$0xff]
        %v5727 = vld [vmem:[%s1205 + $0x8] sm:$0xff]
        %v5728 = vld [vmem:[%s1205 + $0x10] sm:$0xff]
        %v5729 = vld [vmem:[%s1205 + $0x18] sm:$0xff]
        %v5730 = vld [vmem:[%s1205 + $0x20] sm:$0xff]
        %v5731 = vld [vmem:[%s1205 + $0x28] sm:$0xff]
        %v5732 = vld [vmem:[%s1205 + $0x30] sm:$0xff]
        %v5733 = vld [vmem:[%s1205 + $0x38] sm:$0xff]
        %v5734 = vld [vmem:[%s1205 + $0x40] sm:$0xff]
        %v5735 = vld [vmem:[%s1205 + $0x48] sm:$0xff]
        %v5736 = vld [vmem:[%s1205 + $0x50] sm:$0xff]
        %v5737 = vld [vmem:[%s1205 + $0x58] sm:$0xff]
        %v5738 = vld [vmem:[%s1205 + $0x60] sm:$0xff]
        %v5739 = vld [vmem:[%s1205 + $0x68] sm:$0xff]
        %v5740 = vld [vmem:[%s1205 + $0x70] sm:$0xff]
        %v5741 = vld [vmem:[%s1205 + $0x78] sm:$0xff]
        %v5742 = vld [vmem:[%s1205 + $0x80] sm:$0xff]
        %v5743 = vld [vmem:[%s1205 + $0x88] sm:$0xff]
        %v5744 = vld [vmem:[%s1205 + $0x90] sm:$0xff]
        %v5745 = vld [vmem:[%s1205 + $0x98] sm:$0xff]
        %v5746 = vld [vmem:[%s1205 + $0xa0] sm:$0xff]
        %v5747 = vld [vmem:[%s1205 + $0xa8] sm:$0xff]
        %v5748 = vld [vmem:[%s1205 + $0xb0] sm:$0xff]
        %v5749 = vld [vmem:[%s1205 + $0xb8] sm:$0xff]
        %v5750 = vld [vmem:[%s1205 + $0xc0] sm:$0xff]
        %v5751 = vld [vmem:[%s1205 + $0xc8] sm:$0xff]
        %v5752 = vld [vmem:[%s1205 + $0xd0] sm:$0xff]
        %v5753 = vld [vmem:[%s1205 + $0xd8] sm:$0xff]
        %v5754 = vld [vmem:[%s1205 + $0xe0] sm:$0xff]
        %v5755 = vld [vmem:[%s1205 + $0xe8] sm:$0xff]
        %v5756 = vld [vmem:[%s1205 + $0xf0] sm:$0xff]
        %v5757 = vld [vmem:[%s1205 + $0xf8] sm:$0xff]
        %v5758 = vld [vmem:[%s1205 + $0x100] sm:$0xff]
        %v5759 = vld [vmem:[%s1205 + $0x108] sm:$0xff]
        %v5760 = vld [vmem:[%s1205 + $0x110] sm:$0xff]
        %v5761 = vld [vmem:[%s1205 + $0x118] sm:$0xff]
        %v5762 = vld [vmem:[%s1205 + $0x120] sm:$0xff]
        %v5763 = vld [vmem:[%s1205 + $0x128] sm:$0xff]
        %v5764 = vld [vmem:[%s1205 + $0x130] sm:$0xff]
        %v5765 = vld [vmem:[%s1205 + $0x138] sm:$0xff]
        %v5766 = vld [vmem:[%s1205 + $0x140] sm:$0xff]
        %v5767 = vld [vmem:[%s1205 + $0x148] sm:$0xff]
        %v5768 = vld [vmem:[%s1205 + $0x150] sm:$0xff]
        %v5769 = vld [vmem:[%s1205 + $0x158] sm:$0xff]
        %v5770 = vld [vmem:[%s1205 + $0x160] sm:$0xff]
        %v5771 = vld [vmem:[%s1205 + $0x168] sm:$0xff]
        %v5772 = vld [vmem:[%s1205 + $0x170] sm:$0xff]
        %v5773 = vld [vmem:[%s1205 + $0x178] sm:$0xff]
        %v5774 = vld [vmem:[%s1205 + $0x180] sm:$0xff]
        %v5775 = vld [vmem:[%s1205 + $0x188] sm:$0xff]
        %v5776 = vld [vmem:[%s1205 + $0x190] sm:$0xff]
        %v5777 = vld [vmem:[%s1205 + $0x198] sm:$0xff]
        %v5778 = vld [vmem:[%s1205 + $0x1a0] sm:$0xff]
        %v5779 = vld [vmem:[%s1205 + $0x1a8] sm:$0xff]
        %v5780 = vld [vmem:[%s1205 + $0x1b0] sm:$0xff]
        %v5781 = vld [vmem:[%s1205 + $0x1b8] sm:$0xff]
        %v5782 = vld [vmem:[%s1205 + $0x1c0] sm:$0xff]
        %v5783 = vld [vmem:[%s1205 + $0x1c8] sm:$0xff]
        %v5784 = vld [vmem:[%s1205 + $0x1d0] sm:$0xff]
        %v5785 = vld [vmem:[%s1205 + $0x1d8] sm:$0xff]
        %v5786 = vld [vmem:[%s1205 + $0x1e0] sm:$0xff]
        %v5787 = vld [vmem:[%s1205 + $0x1e8] sm:$0xff]
        %v5788 = vld [vmem:[%s1205 + $0x1f0] sm:$0xff]
        %v5789 = vld [vmem:[%s1205 + $0x1f8] sm:$0xff]
        %v5790 = vunpack.c.l.s8.bf16 %v5726
        %v5791 = vunpack.c.l.s8.bf16 %v5727
        %v5792 = vunpack.c.l.s8.bf16 %v5728
        %v5793 = vunpack.c.l.s8.bf16 %v5729
        %v5794 = vunpack.c.l.s8.bf16 %v5730
        %v5795 = vunpack.c.l.s8.bf16 %v5731
        %v5796 = vunpack.c.l.s8.bf16 %v5732
        %v5797 = vunpack.c.l.s8.bf16 %v5733
        %v5798 = vunpack.c.h.s8.bf16 %v5726
        %v5799 = vunpack.c.h.s8.bf16 %v5727
        %v5800 = vunpack.c.h.s8.bf16 %v5728
        %v5801 = vunpack.c.h.s8.bf16 %v5729
        %v5802 = vunpack.c.h.s8.bf16 %v5730
        %v5803 = vunpack.c.h.s8.bf16 %v5731
        %v5804 = vunpack.c.h.s8.bf16 %v5732
        %v5805 = vunpack.c.h.s8.bf16 %v5733
        %v5806 = vunpack.c.l.s8.bf16 %v5734
        %v5807 = vunpack.c.l.s8.bf16 %v5735
        %v5808 = vunpack.c.l.s8.bf16 %v5736
        %v5809 = vunpack.c.l.s8.bf16 %v5737
        %v5810 = vunpack.c.l.s8.bf16 %v5738
        %v5811 = vunpack.c.l.s8.bf16 %v5739
        %v5812 = vunpack.c.l.s8.bf16 %v5740
        %v5813 = vunpack.c.l.s8.bf16 %v5741
        %v5814 = vunpack.c.h.s8.bf16 %v5734
        %v5815 = vunpack.c.h.s8.bf16 %v5735
        %v5816 = vunpack.c.h.s8.bf16 %v5736
        %v5817 = vunpack.c.h.s8.bf16 %v5737
        %v5818 = vunpack.c.h.s8.bf16 %v5738
        %v5819 = vunpack.c.h.s8.bf16 %v5739
        %v5820 = vunpack.c.h.s8.bf16 %v5740
        %v5821 = vunpack.c.h.s8.bf16 %v5741
        %v5822 = vunpack.c.l.s8.bf16 %v5742
        %v5823 = vunpack.c.l.s8.bf16 %v5743
        %v5824 = vunpack.c.l.s8.bf16 %v5744
        %v5825 = vunpack.c.l.s8.bf16 %v5745
        %v5826 = vunpack.c.l.s8.bf16 %v5746
        %v5827 = vunpack.c.l.s8.bf16 %v5747
        %v5828 = vunpack.c.l.s8.bf16 %v5748
        %v5829 = vunpack.c.l.s8.bf16 %v5749
        %v5830 = vunpack.c.h.s8.bf16 %v5742
        %v5831 = vunpack.c.h.s8.bf16 %v5743
        %v5832 = vunpack.c.h.s8.bf16 %v5744
        %v5833 = vunpack.c.h.s8.bf16 %v5745
        %v5834 = vunpack.c.h.s8.bf16 %v5746
        %v5835 = vunpack.c.h.s8.bf16 %v5747
        %v5836 = vunpack.c.h.s8.bf16 %v5748
        %v5837 = vunpack.c.h.s8.bf16 %v5749
        %v5838 = vunpack.c.l.s8.bf16 %v5750
        %v5839 = vunpack.c.l.s8.bf16 %v5751
        %v5840 = vunpack.c.l.s8.bf16 %v5752
        %v5841 = vunpack.c.l.s8.bf16 %v5753
        %v5842 = vunpack.c.l.s8.bf16 %v5754
        %v5843 = vunpack.c.l.s8.bf16 %v5755
        %v5844 = vunpack.c.l.s8.bf16 %v5756
        %v5845 = vunpack.c.l.s8.bf16 %v5757
        %v5846 = vunpack.c.h.s8.bf16 %v5750
        %v5847 = vunpack.c.h.s8.bf16 %v5751
        %v5848 = vunpack.c.h.s8.bf16 %v5752
        %v5849 = vunpack.c.h.s8.bf16 %v5753
        %v5850 = vunpack.c.h.s8.bf16 %v5754
        %v5851 = vunpack.c.h.s8.bf16 %v5755
        %v5852 = vunpack.c.h.s8.bf16 %v5756
        %v5853 = vunpack.c.h.s8.bf16 %v5757
        %v5854 = vunpack.c.l.s8.bf16 %v5758
        %v5855 = vunpack.c.l.s8.bf16 %v5759
        %v5856 = vunpack.c.l.s8.bf16 %v5760
        %v5857 = vunpack.c.l.s8.bf16 %v5761
        %v5858 = vunpack.c.l.s8.bf16 %v5762
        %v5859 = vunpack.c.l.s8.bf16 %v5763
        %v5860 = vunpack.c.l.s8.bf16 %v5764
        %v5861 = vunpack.c.l.s8.bf16 %v5765
        %v5862 = vunpack.c.h.s8.bf16 %v5758
        %v5863 = vunpack.c.h.s8.bf16 %v5759
        %v5864 = vunpack.c.h.s8.bf16 %v5760
        %v5865 = vunpack.c.h.s8.bf16 %v5761
        %v5866 = vunpack.c.h.s8.bf16 %v5762
        %v5867 = vunpack.c.h.s8.bf16 %v5763
        %v5868 = vunpack.c.h.s8.bf16 %v5764
        %v5869 = vunpack.c.h.s8.bf16 %v5765
        %v5870 = vunpack.c.l.s8.bf16 %v5766
        %v5871 = vunpack.c.l.s8.bf16 %v5767
        %v5872 = vunpack.c.l.s8.bf16 %v5768
        %v5873 = vunpack.c.l.s8.bf16 %v5769
        %v5874 = vunpack.c.l.s8.bf16 %v5770
        %v5875 = vunpack.c.l.s8.bf16 %v5771
        %v5876 = vunpack.c.l.s8.bf16 %v5772
        %v5877 = vunpack.c.l.s8.bf16 %v5773
        %v5878 = vunpack.c.h.s8.bf16 %v5766
        %v5879 = vunpack.c.h.s8.bf16 %v5767
        %v5880 = vunpack.c.h.s8.bf16 %v5768
        %v5881 = vunpack.c.h.s8.bf16 %v5769
        %v5882 = vunpack.c.h.s8.bf16 %v5770
        %v5883 = vunpack.c.h.s8.bf16 %v5771
        %v5884 = vunpack.c.h.s8.bf16 %v5772
        %v5885 = vunpack.c.h.s8.bf16 %v5773
        %v5886 = vunpack.c.l.s8.bf16 %v5774
        %v5887 = vunpack.c.l.s8.bf16 %v5775
        %v5888 = vunpack.c.l.s8.bf16 %v5776
        %v5889 = vunpack.c.l.s8.bf16 %v5777
        %v5890 = vunpack.c.l.s8.bf16 %v5778
        %v5891 = vunpack.c.l.s8.bf16 %v5779
        %v5892 = vunpack.c.l.s8.bf16 %v5780
        %v5893 = vunpack.c.l.s8.bf16 %v5781
        %v5894 = vunpack.c.h.s8.bf16 %v5774
        %v5895 = vunpack.c.h.s8.bf16 %v5775
        %v5896 = vunpack.c.h.s8.bf16 %v5776
        %v5897 = vunpack.c.h.s8.bf16 %v5777
        %v5898 = vunpack.c.h.s8.bf16 %v5778
        %v5899 = vunpack.c.h.s8.bf16 %v5779
        %v5900 = vunpack.c.h.s8.bf16 %v5780
        %v5901 = vunpack.c.h.s8.bf16 %v5781
        %v5902 = vunpack.c.l.s8.bf16 %v5782
        %v5903 = vunpack.c.l.s8.bf16 %v5783
        %v5904 = vunpack.c.l.s8.bf16 %v5784
        %v5905 = vunpack.c.l.s8.bf16 %v5785
        %v5906 = vunpack.c.l.s8.bf16 %v5786
        %v5907 = vunpack.c.l.s8.bf16 %v5787
        %v5908 = vunpack.c.l.s8.bf16 %v5788
        %v5909 = vunpack.c.l.s8.bf16 %v5789
        %v5910 = vunpack.c.h.s8.bf16 %v5782
        %v5911 = vunpack.c.h.s8.bf16 %v5783
        %v5912 = vunpack.c.h.s8.bf16 %v5784
        %v5913 = vunpack.c.h.s8.bf16 %v5785
        %v5914 = vunpack.c.h.s8.bf16 %v5786
        %v5915 = vunpack.c.h.s8.bf16 %v5787
        %v5916 = vunpack.c.h.s8.bf16 %v5788
        %v5917 = vunpack.c.h.s8.bf16 %v5789
        %5918 = vmatprep.subr.bf16.mxu0 %v5847
        %5919 = vmatpush1.bf16.msra.mxu0 %v5846
        %5920 = vmatprep.subr.bf16.mxu0 %v5839
        %5921 = vmatpush1.bf16.msra.mxu0 %v5838
        %5922 = vmatprep.subr.bf16.mxu0 %v5831
        %5923 = vmatpush1.bf16.msra.mxu0 %v5830
        %5924 = vmatprep.subr.bf16.mxu0 %v5823
        %5925 = vmatpush1.bf16.msra.mxu0 %v5822
        %5926 = vmatprep.subr.bf16.mxu0 %v5815
        %5927 = vmatpush1.bf16.msra.mxu0 %v5814
        %5928 = vmatprep.subr.bf16.mxu0 %v5807
        %5929 = vmatpush1.bf16.msra.mxu0 %v5806
        %5930 = vmatprep.subr.bf16.mxu0 %v5799
        %5931 = vmatpush1.bf16.msra.mxu0 %v5798
        %5932 = vmatprep.subr.bf16.mxu0 %v5791
        %5933 = vmatpush1.bf16.msra.mxu0 %v5790
        %5934 = vmatprep.subr.bf16.mxu0 %v5911
        %5935 = vmatpush2.bf16.msra.mxu0 %v5910
        %5936 = vmatprep.subr.bf16.mxu0 %v5903
        %5937 = vmatpush2.bf16.msra.mxu0 %v5902
        %5938 = vmatprep.subr.bf16.mxu0 %v5895
        %5939 = vmatpush2.bf16.msra.mxu0 %v5894
        %5940 = vmatprep.subr.bf16.mxu0 %v5887
        %5941 = vmatpush2.bf16.msra.mxu0 %v5886
        %5942 = vmatprep.subr.bf16.mxu0 %v5879
        %5943 = vmatpush2.bf16.msra.mxu0 %v5878
        %5944 = vmatprep.subr.bf16.mxu0 %v5871
        %5945 = vmatpush2.bf16.msra.mxu0 %v5870
        %5946 = vmatprep.subr.bf16.mxu0 %v5863
        %5947 = vmatpush2.bf16.msra.mxu0 %v5862
        %5948 = vmatprep.subr.bf16.mxu0 %v5855
        %5949 = vmatpush2.bf16.msra.mxu0 %v5854
        %5950 = vmatprep.mubr.bf16.mxu0 %v5725
        %5951 = vmatmul.mubr.bf16.gmra.mxu0 %v5724
        %v5952 = vpop.f32.mrf.mxu0
        %v5953 = vadd.f32 0.0, %v5952
        %v5954 = vpop.f32.mrf.mxu0
        %v5955 = vadd.f32 0.0, %v5954
        %v5956 = vpop.f32.mrf.mxu0
        %v5957 = vpop.f32.mrf.mxu0
        %5958 = vdwg.mxu0
        %5959 = vmatprep.subr.bf16.mxu0 %v5849
        %5960 = vmatpush1.bf16.msra.mxu0 %v5848
        %5961 = vmatprep.subr.bf16.mxu0 %v5841
        %5962 = vmatpush1.bf16.msra.mxu0 %v5840
        %5963 = vmatprep.subr.bf16.mxu0 %v5833
        %5964 = vmatpush1.bf16.msra.mxu0 %v5832
        %5965 = vmatprep.subr.bf16.mxu0 %v5825
        %5966 = vmatpush1.bf16.msra.mxu0 %v5824
        %5967 = vmatprep.subr.bf16.mxu0 %v5817
        %5968 = vmatpush1.bf16.msra.mxu0 %v5816
        %5969 = vmatprep.subr.bf16.mxu0 %v5809
        %5970 = vmatpush1.bf16.msra.mxu0 %v5808
        %5971 = vmatprep.subr.bf16.mxu0 %v5801
        %5972 = vmatpush1.bf16.msra.mxu0 %v5800
        %5973 = vmatprep.subr.bf16.mxu0 %v5793
        %5974 = vmatpush1.bf16.msra.mxu0 %v5792
        %5975 = vmatprep.subr.bf16.mxu0 %v5913
        %5976 = vmatpush2.bf16.msra.mxu0 %v5912
        %5977 = vmatprep.subr.bf16.mxu0 %v5905
        %5978 = vmatpush2.bf16.msra.mxu0 %v5904
        %5979 = vmatprep.subr.bf16.mxu0 %v5897
        %5980 = vmatpush2.bf16.msra.mxu0 %v5896
        %5981 = vmatprep.subr.bf16.mxu0 %v5889
        %5982 = vmatpush2.bf16.msra.mxu0 %v5888
        %5983 = vmatprep.subr.bf16.mxu0 %v5881
        %5984 = vmatpush2.bf16.msra.mxu0 %v5880
        %5985 = vmatprep.subr.bf16.mxu0 %v5873
        %5986 = vmatpush2.bf16.msra.mxu0 %v5872
        %5987 = vmatprep.subr.bf16.mxu0 %v5865
        %5988 = vmatpush2.bf16.msra.mxu0 %v5864
        %5989 = vmatprep.subr.bf16.mxu0 %v5857
        %5990 = vmatpush2.bf16.msra.mxu0 %v5856
        %5991 = vmatprep.mubr.bf16.mxu0 %v5725
        %5992 = vmatmul.mubr.bf16.gmra.mxu0 %v5724
        %v5993 = vpop.f32.mrf.mxu0
        %v5994 = vadd.f32 0.0, %v5993
        %v5995 = vpop.f32.mrf.mxu0
        %v5996 = vadd.f32 0.0, %v5995
        %v5997 = vpop.f32.mrf.mxu0
        %v5998 = vpop.f32.mrf.mxu0
        %5999 = vdwg.mxu0
        %6000 = vmatprep.subr.bf16.mxu0 %v5851
        %6001 = vmatpush1.bf16.msra.mxu0 %v5850
        %6002 = vmatprep.subr.bf16.mxu0 %v5843
        %6003 = vmatpush1.bf16.msra.mxu0 %v5842
        %6004 = vmatprep.subr.bf16.mxu0 %v5835
        %6005 = vmatpush1.bf16.msra.mxu0 %v5834
        %6006 = vmatprep.subr.bf16.mxu0 %v5827
        %6007 = vmatpush1.bf16.msra.mxu0 %v5826
        %6008 = vmatprep.subr.bf16.mxu0 %v5819
        %6009 = vmatpush1.bf16.msra.mxu0 %v5818
        %6010 = vmatprep.subr.bf16.mxu0 %v5811
        %6011 = vmatpush1.bf16.msra.mxu0 %v5810
        %6012 = vmatprep.subr.bf16.mxu0 %v5803
        %6013 = vmatpush1.bf16.msra.mxu0 %v5802
        %6014 = vmatprep.subr.bf16.mxu0 %v5795
        %6015 = vmatpush1.bf16.msra.mxu0 %v5794
        %6016 = vmatprep.subr.bf16.mxu0 %v5915
        %6017 = vmatpush2.bf16.msra.mxu0 %v5914
        %6018 = vmatprep.subr.bf16.mxu0 %v5907
        %6019 = vmatpush2.bf16.msra.mxu0 %v5906
        %6020 = vmatprep.subr.bf16.mxu0 %v5899
        %6021 = vmatpush2.bf16.msra.mxu0 %v5898
        %6022 = vmatprep.subr.bf16.mxu0 %v5891
        %6023 = vmatpush2.bf16.msra.mxu0 %v5890
        %6024 = vmatprep.subr.bf16.mxu0 %v5883
        %6025 = vmatpush2.bf16.msra.mxu0 %v5882
        %6026 = vmatprep.subr.bf16.mxu0 %v5875
        %6027 = vmatpush2.bf16.msra.mxu0 %v5874
        %6028 = vmatprep.subr.bf16.mxu0 %v5867
        %6029 = vmatpush2.bf16.msra.mxu0 %v5866
        %6030 = vmatprep.subr.bf16.mxu0 %v5859
        %6031 = vmatpush2.bf16.msra.mxu0 %v5858
        %6032 = vmatprep.mubr.bf16.mxu0 %v5725
        %6033 = vmatmul.mubr.bf16.gmra.mxu0 %v5724
        %v6034 = vpop.f32.mrf.mxu0
        %v6035 = vadd.f32 0.0, %v6034
        %v6036 = vpop.f32.mrf.mxu0
        %v6037 = vadd.f32 0.0, %v6036
        %v6038 = vpop.f32.mrf.mxu0
        %v6039 = vpop.f32.mrf.mxu0
        %6040 = vdwg.mxu0
        %6041 = vmatprep.subr.bf16.mxu0 %v5853
        %6042 = vmatpush1.bf16.msra.mxu0 %v5852
        %6043 = vmatprep.subr.bf16.mxu0 %v5845
        %6044 = vmatpush1.bf16.msra.mxu0 %v5844
        %6045 = vmatprep.subr.bf16.mxu0 %v5837
        %6046 = vmatpush1.bf16.msra.mxu0 %v5836
        %6047 = vmatprep.subr.bf16.mxu0 %v5829
        %6048 = vmatpush1.bf16.msra.mxu0 %v5828
        %6049 = vmatprep.subr.bf16.mxu0 %v5821
        %6050 = vmatpush1.bf16.msra.mxu0 %v5820
        %6051 = vmatprep.subr.bf16.mxu0 %v5813
        %6052 = vmatpush1.bf16.msra.mxu0 %v5812
        %6053 = vmatprep.subr.bf16.mxu0 %v5805
        %6054 = vmatpush1.bf16.msra.mxu0 %v5804
        %6055 = vmatprep.subr.bf16.mxu0 %v5797
        %6056 = vmatpush1.bf16.msra.mxu0 %v5796
        %6057 = vmatprep.subr.bf16.mxu0 %v5917
        %6058 = vmatpush2.bf16.msra.mxu0 %v5916
        %6059 = vmatprep.subr.bf16.mxu0 %v5909
        %6060 = vmatpush2.bf16.msra.mxu0 %v5908
        %6061 = vmatprep.subr.bf16.mxu0 %v5901
        %6062 = vmatpush2.bf16.msra.mxu0 %v5900
        %6063 = vmatprep.subr.bf16.mxu0 %v5893
        %6064 = vmatpush2.bf16.msra.mxu0 %v5892
        %6065 = vmatprep.subr.bf16.mxu0 %v5885
        %6066 = vmatpush2.bf16.msra.mxu0 %v5884
        %6067 = vmatprep.subr.bf16.mxu0 %v5877
        %6068 = vmatpush2.bf16.msra.mxu0 %v5876
        %6069 = vmatprep.subr.bf16.mxu0 %v5869
        %6070 = vmatpush2.bf16.msra.mxu0 %v5868
        %6071 = vmatprep.subr.bf16.mxu0 %v5861
        %6072 = vmatpush2.bf16.msra.mxu0 %v5860
        %6073 = vmatprep.mubr.bf16.mxu0 %v5725
        %6074 = vmatmul.mubr.bf16.gmra.mxu0 %v5724
        %v6075 = vpop.f32.mrf.mxu0
        %v6076 = vadd.f32 0.0, %v6075
        %v6077 = vpop.f32.mrf.mxu0
        %v6078 = vadd.f32 0.0, %v6077
        %v6079 = vpop.f32.mrf.mxu0
        %v6080 = vpop.f32.mrf.mxu0
        %6081 = vdwg.mxu0
        %v6082 = vld [vmem:[%s1214] sm:$0xff]
        %v6084 = vlaneseq
        %v6085 = vshrl.u32 %v6084, 7
        %v6086 = vsub.s32 0, %v6085
        %v6087 = vrot.slane %v6082, %v6086
        %v6088 = vlaneseq
        %v6089 = vshrl.u32 %v6088, 7
        %v6090 = vsub.s32 1, %v6089
        %v6091 = vrot.slane %v6082, %v6090
        %v6092 = vlaneseq
        %v6093 = vshrl.u32 %v6092, 7
        %v6094 = vsub.s32 2, %v6093
        %v6095 = vrot.slane %v6082, %v6094
        %v6096 = vlaneseq
        %v6097 = vshrl.u32 %v6096, 7
        %v6098 = vsub.s32 3, %v6097
        %v6099 = vrot.slane %v6082, %v6098
        %v6100 = vlaneseq
        %v6101 = vshrl.u32 %v6100, 7
        %v6102 = vsub.s32 4, %v6101
        %v6103 = vrot.slane %v6082, %v6102
        %v6104 = vlaneseq
        %v6105 = vshrl.u32 %v6104, 7
        %v6106 = vsub.s32 5, %v6105
        %v6107 = vrot.slane %v6082, %v6106
        %v6108 = vlaneseq
        %v6109 = vshrl.u32 %v6108, 7
        %v6110 = vsub.s32 6, %v6109
        %v6111 = vrot.slane %v6082, %v6110
        %v6112 = vlaneseq
        %v6113 = vshrl.u32 %v6112, 7
        %v6114 = vsub.s32 7, %v6113
        %v6115 = vrot.slane %v6082, %v6114
        %v6124 = vmul.f32 %v5953, %v6087
        %v6125 = vmul.f32 %v5955, %v6091
        %v6126 = vmul.f32 %v5994, %v6095
        %v6127 = vmul.f32 %v5996, %v6099
        %v6128 = vmul.f32 %v6035, %v6103
        %v6129 = vmul.f32 %v6037, %v6107
        %v6130 = vmul.f32 %v6076, %v6111
        %v6131 = vmul.f32 %v6078, %v6115
        %v6132 = vld [vmem:[%s1223] sm:$0xff]
        %v6134 = vlaneseq
        %v6135 = vshrl.u32 %v6134, 7
        %v6136 = vsub.s32 0, %v6135
        %v6137 = vrot.slane %v6132, %v6136
        %v6138 = vlaneseq
        %v6139 = vshrl.u32 %v6138, 7
        %v6140 = vsub.s32 1, %v6139
        %v6141 = vrot.slane %v6132, %v6140
        %v6142 = vlaneseq
        %v6143 = vshrl.u32 %v6142, 7
        %v6144 = vsub.s32 2, %v6143
        %v6145 = vrot.slane %v6132, %v6144
        %v6146 = vlaneseq
        %v6147 = vshrl.u32 %v6146, 7
        %v6148 = vsub.s32 3, %v6147
        %v6149 = vrot.slane %v6132, %v6148
        %v6150 = vlaneseq
        %v6151 = vshrl.u32 %v6150, 7
        %v6152 = vsub.s32 4, %v6151
        %v6153 = vrot.slane %v6132, %v6152
        %v6154 = vlaneseq
        %v6155 = vshrl.u32 %v6154, 7
        %v6156 = vsub.s32 5, %v6155
        %v6157 = vrot.slane %v6132, %v6156
        %v6158 = vlaneseq
        %v6159 = vshrl.u32 %v6158, 7
        %v6160 = vsub.s32 6, %v6159
        %v6161 = vrot.slane %v6132, %v6160
        %v6162 = vlaneseq
        %v6163 = vshrl.u32 %v6162, 7
        %v6164 = vsub.s32 7, %v6163
        %v6165 = vrot.slane %v6132, %v6164
        %v6174 = vadd.f32 %v6124, %v6137
        %v6175 = vadd.f32 %v6125, %v6141
        %v6176 = vadd.f32 %v6126, %v6145
        %v6177 = vadd.f32 %v6127, %v6149
        %v6178 = vadd.f32 %v6128, %v6153
        %v6179 = vadd.f32 %v6129, %v6157
        %v6180 = vadd.f32 %v6130, %v6161
        %v6181 = vadd.f32 %v6131, %v6165
        %v6182 = vmul.f32 %v6174, 0.5
        %v6183 = vmul.f32 %v6175, 0.5
        %v6184 = vmul.f32 %v6176, 0.5
        %v6185 = vmul.f32 %v6177, 0.5
        %v6186 = vmul.f32 %v6178, 0.5
        %v6187 = vmul.f32 %v6179, 0.5
        %v6188 = vmul.f32 %v6180, 0.5
        %v6189 = vmul.f32 %v6181, 0.5
        %v6190 = vmul.f32 %v6174, 0.70710677
        %v6191 = vmul.f32 %v6175, 0.70710677
        %v6192 = vmul.f32 %v6176, 0.70710677
        %v6193 = vmul.f32 %v6177, 0.70710677
        %v6194 = vmul.f32 %v6178, 0.70710677
        %v6195 = vmul.f32 %v6179, 0.70710677
        %v6196 = vmul.f32 %v6180, 0.70710677
        %v6197 = vmul.f32 %v6181, 0.70710677
        %vm6198 = vcmp.lt.f32.partialorder %v6190, 0.0
        %vm6199 = vcmp.lt.f32.partialorder %v6191, 0.0
        %vm6200 = vcmp.lt.f32.partialorder %v6192, 0.0
        %vm6201 = vcmp.lt.f32.partialorder %v6193, 0.0
        %vm6202 = vcmp.lt.f32.partialorder %v6194, 0.0
        %vm6203 = vcmp.lt.f32.partialorder %v6195, 0.0
        %vm6204 = vcmp.lt.f32.partialorder %v6196, 0.0
        %vm6205 = vcmp.lt.f32.partialorder %v6197, 0.0
        %v6206 = vsel %vm6198, -1.0, 1.0
        %v6207 = vsel %vm6199, -1.0, 1.0
        %v6208 = vsel %vm6200, -1.0, 1.0
        %v6209 = vsel %vm6201, -1.0, 1.0
        %v6210 = vsel %vm6202, -1.0, 1.0
        %v6211 = vsel %vm6203, -1.0, 1.0
        %v6212 = vsel %vm6204, -1.0, 1.0
        %v6213 = vsel %vm6205, -1.0, 1.0
        %v6214 = vand.u32 2147483647, %v6190
        %v6215 = vand.u32 2147483647, %v6191
        %v6216 = vand.u32 2147483647, %v6192
        %v6217 = vand.u32 2147483647, %v6193
        %v6218 = vand.u32 2147483647, %v6194
        %v6219 = vand.u32 2147483647, %v6195
        %v6220 = vand.u32 2147483647, %v6196
        %v6221 = vand.u32 2147483647, %v6197
        %v6222 = vmul.f32 %v6214, 0.3275911
        %v6223 = vmul.f32 %v6215, 0.3275911
        %v6224 = vmul.f32 %v6216, 0.3275911
        %v6225 = vmul.f32 %v6217, 0.3275911
        %v6226 = vmul.f32 %v6218, 0.3275911
        %v6227 = vmul.f32 %v6219, 0.3275911
        %v6228 = vmul.f32 %v6220, 0.3275911
        %v6229 = vmul.f32 %v6221, 0.3275911
        %v6230 = vadd.f32 %v6222, 1.0
        %v6231 = vadd.f32 %v6223, 1.0
        %v6232 = vadd.f32 %v6224, 1.0
        %v6233 = vadd.f32 %v6225, 1.0
        %v6234 = vadd.f32 %v6226, 1.0
        %v6235 = vadd.f32 %v6227, 1.0
        %v6236 = vadd.f32 %v6228, 1.0
        %v6237 = vadd.f32 %v6229, 1.0
        %v6238 = vrcp.pop %v6230
        %v6239 = vmul.f32 1.0, %v6238
        %v6240 = vrcp.pop %v6231
        %v6241 = vmul.f32 1.0, %v6240
        %v6242 = vrcp.pop %v6232
        %v6243 = vmul.f32 1.0, %v6242
        %v6244 = vrcp.pop %v6233
        %v6245 = vmul.f32 1.0, %v6244
        %v6246 = vrcp.pop %v6234
        %v6247 = vmul.f32 1.0, %v6246
        %v6248 = vrcp.pop %v6235
        %v6249 = vmul.f32 1.0, %v6248
        %v6250 = vrcp.pop %v6236
        %v6251 = vmul.f32 1.0, %v6250
        %v6252 = vrcp.pop %v6237
        %v6253 = vmul.f32 1.0, %v6252
        %v6254 = vmul.f32 %v6239, 1.0614054
        %v6255 = vmul.f32 %v6241, 1.0614054
        %v6256 = vmul.f32 %v6243, 1.0614054
        %v6257 = vmul.f32 %v6245, 1.0614054
        %v6258 = vmul.f32 %v6247, 1.0614054
        %v6259 = vmul.f32 %v6249, 1.0614054
        %v6260 = vmul.f32 %v6251, 1.0614054
        %v6261 = vmul.f32 %v6253, 1.0614054
        %v6262 = vadd.f32 %v6254, -1.4531521
        %v6263 = vadd.f32 %v6255, -1.4531521
        %v6264 = vadd.f32 %v6256, -1.4531521
        %v6265 = vadd.f32 %v6257, -1.4531521
        %v6266 = vadd.f32 %v6258, -1.4531521
        %v6267 = vadd.f32 %v6259, -1.4531521
        %v6268 = vadd.f32 %v6260, -1.4531521
        %v6269 = vadd.f32 %v6261, -1.4531521
        %v6270 = vmul.f32 %v6239, %v6262
        %v6271 = vmul.f32 %v6241, %v6263
        %v6272 = vmul.f32 %v6243, %v6264
        %v6273 = vmul.f32 %v6245, %v6265
        %v6274 = vmul.f32 %v6247, %v6266
        %v6275 = vmul.f32 %v6249, %v6267
        %v6276 = vmul.f32 %v6251, %v6268
        %v6277 = vmul.f32 %v6253, %v6269
        %v6278 = vadd.f32 %v6270, 1.4214138
        %v6279 = vadd.f32 %v6271, 1.4214138
        %v6280 = vadd.f32 %v6272, 1.4214138
        %v6281 = vadd.f32 %v6273, 1.4214138
        %v6282 = vadd.f32 %v6274, 1.4214138
        %v6283 = vadd.f32 %v6275, 1.4214138
        %v6284 = vadd.f32 %v6276, 1.4214138
        %v6285 = vadd.f32 %v6277, 1.4214138
        %v6286 = vmul.f32 %v6239, %v6278
        %v6287 = vmul.f32 %v6241, %v6279
        %v6288 = vmul.f32 %v6243, %v6280
        %v6289 = vmul.f32 %v6245, %v6281
        %v6290 = vmul.f32 %v6247, %v6282
        %v6291 = vmul.f32 %v6249, %v6283
        %v6292 = vmul.f32 %v6251, %v6284
        %v6293 = vmul.f32 %v6253, %v6285
        %v6294 = vadd.f32 %v6286, -0.28449672
        %v6295 = vadd.f32 %v6287, -0.28449672
        %v6296 = vadd.f32 %v6288, -0.28449672
        %v6297 = vadd.f32 %v6289, -0.28449672
        %v6298 = vadd.f32 %v6290, -0.28449672
        %v6299 = vadd.f32 %v6291, -0.28449672
        %v6300 = vadd.f32 %v6292, -0.28449672
        %v6301 = vadd.f32 %v6293, -0.28449672
        %v6302 = vmul.f32 %v6239, %v6294
        %v6303 = vmul.f32 %v6241, %v6295
        %v6304 = vmul.f32 %v6243, %v6296
        %v6305 = vmul.f32 %v6245, %v6297
        %v6306 = vmul.f32 %v6247, %v6298
        %v6307 = vmul.f32 %v6249, %v6299
        %v6308 = vmul.f32 %v6251, %v6300
        %v6309 = vmul.f32 %v6253, %v6301
        %v6310 = vadd.f32 %v6302, 0.2548296
        %v6311 = vadd.f32 %v6303, 0.2548296
        %v6312 = vadd.f32 %v6304, 0.2548296
        %v6313 = vadd.f32 %v6305, 0.2548296
        %v6314 = vadd.f32 %v6306, 0.2548296
        %v6315 = vadd.f32 %v6307, 0.2548296
        %v6316 = vadd.f32 %v6308, 0.2548296
        %v6317 = vadd.f32 %v6309, 0.2548296
        %v6318 = vmul.f32 %v6239, %v6310
        %v6319 = vmul.f32 %v6241, %v6311
        %v6320 = vmul.f32 %v6243, %v6312
        %v6321 = vmul.f32 %v6245, %v6313
        %v6322 = vmul.f32 %v6247, %v6314
        %v6323 = vmul.f32 %v6249, %v6315
        %v6324 = vmul.f32 %v6251, %v6316
        %v6325 = vmul.f32 %v6253, %v6317
        %v6326 = vsub.f32 0.0, %v6214
        %v6327 = vsub.f32 0.0, %v6215
        %v6328 = vsub.f32 0.0, %v6216
        %v6329 = vsub.f32 0.0, %v6217
        %v6330 = vsub.f32 0.0, %v6218
        %v6331 = vsub.f32 0.0, %v6219
        %v6332 = vsub.f32 0.0, %v6220
        %v6333 = vsub.f32 0.0, %v6221
        %v6334 = vmul.f32 %v6326, %v6214
        %v6335 = vmul.f32 %v6327, %v6215
        %v6336 = vmul.f32 %v6328, %v6216
        %v6337 = vmul.f32 %v6329, %v6217
        %v6338 = vmul.f32 %v6330, %v6218
        %v6339 = vmul.f32 %v6331, %v6219
        %v6340 = vmul.f32 %v6332, %v6220
        %v6341 = vmul.f32 %v6333, %v6221
        %v6342 = vmul.f32 %v6334, 1.442695
        %v6343 = vpow.pop %v6342
        %v6344 = vmul.f32 %v6335, 1.442695
        %v6345 = vpow.pop %v6344
        %v6346 = vmul.f32 %v6336, 1.442695
        %v6347 = vpow.pop %v6346
        %v6348 = vmul.f32 %v6337, 1.442695
        %v6349 = vpow.pop %v6348
        %v6350 = vmul.f32 %v6338, 1.442695
        %v6351 = vpow.pop %v6350
        %v6352 = vmul.f32 %v6339, 1.442695
        %v6353 = vpow.pop %v6352
        %v6354 = vmul.f32 %v6340, 1.442695
        %v6355 = vpow.pop %v6354
        %v6356 = vmul.f32 %v6341, 1.442695
        %v6357 = vpow.pop %v6356
        %v6358 = vmul.f32 %v6318, %v6343
        %v6359 = vmul.f32 %v6319, %v6345
        %v6360 = vmul.f32 %v6320, %v6347
        %v6361 = vmul.f32 %v6321, %v6349
        %v6362 = vmul.f32 %v6322, %v6351
        %v6363 = vmul.f32 %v6323, %v6353
        %v6364 = vmul.f32 %v6324, %v6355
        %v6365 = vmul.f32 %v6325, %v6357
        %v6366 = vsub.f32 1.0, %v6358
        %v6367 = vsub.f32 1.0, %v6359
        %v6368 = vsub.f32 1.0, %v6360
        %v6369 = vsub.f32 1.0, %v6361
        %v6370 = vsub.f32 1.0, %v6362
        %v6371 = vsub.f32 1.0, %v6363
        %v6372 = vsub.f32 1.0, %v6364
        %v6373 = vsub.f32 1.0, %v6365
        %v6374 = vmul.f32 %v6206, %v6366
        %v6375 = vmul.f32 %v6207, %v6367
        %v6376 = vmul.f32 %v6208, %v6368
        %v6377 = vmul.f32 %v6209, %v6369
        %v6378 = vmul.f32 %v6210, %v6370
        %v6379 = vmul.f32 %v6211, %v6371
        %v6380 = vmul.f32 %v6212, %v6372
        %v6381 = vmul.f32 %v6213, %v6373
        %v6382 = vadd.f32 %v6374, 1.0
        %v6383 = vadd.f32 %v6375, 1.0
        %v6384 = vadd.f32 %v6376, 1.0
        %v6385 = vadd.f32 %v6377, 1.0
        %v6386 = vadd.f32 %v6378, 1.0
        %v6387 = vadd.f32 %v6379, 1.0
        %v6388 = vadd.f32 %v6380, 1.0
        %v6389 = vadd.f32 %v6381, 1.0
        %v6390 = vmul.f32 %v6182, %v6382
        %v6391 = vmul.f32 %v6183, %v6383
        %v6392 = vmul.f32 %v6184, %v6384
        %v6393 = vmul.f32 %v6185, %v6385
        %v6394 = vmul.f32 %v6186, %v6386
        %v6395 = vmul.f32 %v6187, %v6387
        %v6396 = vmul.f32 %v6188, %v6388
        %v6397 = vmul.f32 %v6189, %v6389
        %v6398 = vpack.c.bf16 %v6390, %v6390
        %v6399 = vpack.c.bf16 %v6391, %v6391
        %v6400 = vpack.c.bf16 %v6392, %v6392
        %v6401 = vpack.c.bf16 %v6393, %v6393
        %v6402 = vpack.c.bf16 %v6394, %v6394
        %v6403 = vpack.c.bf16 %v6395, %v6395
        %v6404 = vpack.c.bf16 %v6396, %v6396
        %v6405 = vpack.c.bf16 %v6397, %v6397
        %v6406 = vld [vmem:[%s1232] sm:$0xff]
        %v6407 = vld [vmem:[%s1232 + $0x8] sm:$0xff]
        %v6408 = vld [vmem:[%s1232 + $0x10] sm:$0xff]
        %v6409 = vld [vmem:[%s1232 + $0x18] sm:$0xff]
        %v6410 = vld [vmem:[%s1232 + $0x20] sm:$0xff]
        %v6411 = vld [vmem:[%s1232 + $0x28] sm:$0xff]
        %v6412 = vld [vmem:[%s1232 + $0x30] sm:$0xff]
        %v6413 = vld [vmem:[%s1232 + $0x38] sm:$0xff]
        %v6414 = vld [vmem:[%s1232 + $0x40] sm:$0xff]
        %v6415 = vld [vmem:[%s1232 + $0x48] sm:$0xff]
        %v6416 = vld [vmem:[%s1232 + $0x50] sm:$0xff]
        %v6417 = vld [vmem:[%s1232 + $0x58] sm:$0xff]
        %v6418 = vld [vmem:[%s1232 + $0x60] sm:$0xff]
        %v6419 = vld [vmem:[%s1232 + $0x68] sm:$0xff]
        %v6420 = vld [vmem:[%s1232 + $0x70] sm:$0xff]
        %v6421 = vld [vmem:[%s1232 + $0x78] sm:$0xff]
        %v6422 = vld [vmem:[%s1232 + $0x80] sm:$0xff]
        %v6423 = vld [vmem:[%s1232 + $0x88] sm:$0xff]
        %v6424 = vld [vmem:[%s1232 + $0x90] sm:$0xff]
        %v6425 = vld [vmem:[%s1232 + $0x98] sm:$0xff]
        %v6426 = vld [vmem:[%s1232 + $0xa0] sm:$0xff]
        %v6427 = vld [vmem:[%s1232 + $0xa8] sm:$0xff]
        %v6428 = vld [vmem:[%s1232 + $0xb0] sm:$0xff]
        %v6429 = vld [vmem:[%s1232 + $0xb8] sm:$0xff]
        %v6430 = vld [vmem:[%s1232 + $0xc0] sm:$0xff]
        %v6431 = vld [vmem:[%s1232 + $0xc8] sm:$0xff]
        %v6432 = vld [vmem:[%s1232 + $0xd0] sm:$0xff]
        %v6433 = vld [vmem:[%s1232 + $0xd8] sm:$0xff]
        %v6434 = vld [vmem:[%s1232 + $0xe0] sm:$0xff]
        %v6435 = vld [vmem:[%s1232 + $0xe8] sm:$0xff]
        %v6436 = vld [vmem:[%s1232 + $0xf0] sm:$0xff]
        %v6437 = vld [vmem:[%s1232 + $0xf8] sm:$0xff]
        %v6438 = vld [vmem:[%s1232 + $0x100] sm:$0xff]
        %v6439 = vld [vmem:[%s1232 + $0x108] sm:$0xff]
        %v6440 = vld [vmem:[%s1232 + $0x110] sm:$0xff]
        %v6441 = vld [vmem:[%s1232 + $0x118] sm:$0xff]
        %v6442 = vld [vmem:[%s1232 + $0x120] sm:$0xff]
        %v6443 = vld [vmem:[%s1232 + $0x128] sm:$0xff]
        %v6444 = vld [vmem:[%s1232 + $0x130] sm:$0xff]
        %v6445 = vld [vmem:[%s1232 + $0x138] sm:$0xff]
        %v6446 = vld [vmem:[%s1232 + $0x140] sm:$0xff]
        %v6447 = vld [vmem:[%s1232 + $0x148] sm:$0xff]
        %v6448 = vld [vmem:[%s1232 + $0x150] sm:$0xff]
        %v6449 = vld [vmem:[%s1232 + $0x158] sm:$0xff]
        %v6450 = vld [vmem:[%s1232 + $0x160] sm:$0xff]
        %v6451 = vld [vmem:[%s1232 + $0x168] sm:$0xff]
        %v6452 = vld [vmem:[%s1232 + $0x170] sm:$0xff]
        %v6453 = vld [vmem:[%s1232 + $0x178] sm:$0xff]
        %v6454 = vld [vmem:[%s1232 + $0x180] sm:$0xff]
        %v6455 = vld [vmem:[%s1232 + $0x188] sm:$0xff]
        %v6456 = vld [vmem:[%s1232 + $0x190] sm:$0xff]
        %v6457 = vld [vmem:[%s1232 + $0x198] sm:$0xff]
        %v6458 = vld [vmem:[%s1232 + $0x1a0] sm:$0xff]
        %v6459 = vld [vmem:[%s1232 + $0x1a8] sm:$0xff]
        %v6460 = vld [vmem:[%s1232 + $0x1b0] sm:$0xff]
        %v6461 = vld [vmem:[%s1232 + $0x1b8] sm:$0xff]
        %v6462 = vld [vmem:[%s1232 + $0x1c0] sm:$0xff]
        %v6463 = vld [vmem:[%s1232 + $0x1c8] sm:$0xff]
        %v6464 = vld [vmem:[%s1232 + $0x1d0] sm:$0xff]
        %v6465 = vld [vmem:[%s1232 + $0x1d8] sm:$0xff]
        %v6466 = vld [vmem:[%s1232 + $0x1e0] sm:$0xff]
        %v6467 = vld [vmem:[%s1232 + $0x1e8] sm:$0xff]
        %v6468 = vld [vmem:[%s1232 + $0x1f0] sm:$0xff]
        %v6469 = vld [vmem:[%s1232 + $0x1f8] sm:$0xff]
        %v6470 = vunpack.c.l.s8.bf16 %v6406
        %v6471 = vunpack.c.l.s8.bf16 %v6407
        %v6472 = vunpack.c.h.s8.bf16 %v6406
        %v6473 = vunpack.c.h.s8.bf16 %v6407
        %v6474 = vunpack.c.l.s8.bf16 %v6408
        %v6475 = vunpack.c.l.s8.bf16 %v6409
        %v6476 = vunpack.c.h.s8.bf16 %v6408
        %v6477 = vunpack.c.h.s8.bf16 %v6409
        %v6478 = vunpack.c.l.s8.bf16 %v6410
        %v6479 = vunpack.c.l.s8.bf16 %v6411
        %v6480 = vunpack.c.h.s8.bf16 %v6410
        %v6481 = vunpack.c.h.s8.bf16 %v6411
        %v6482 = vunpack.c.l.s8.bf16 %v6412
        %v6483 = vunpack.c.l.s8.bf16 %v6413
        %v6484 = vunpack.c.h.s8.bf16 %v6412
        %v6485 = vunpack.c.h.s8.bf16 %v6413
        %v6486 = vunpack.c.l.s8.bf16 %v6414
        %v6487 = vunpack.c.l.s8.bf16 %v6415
        %v6488 = vunpack.c.h.s8.bf16 %v6414
        %v6489 = vunpack.c.h.s8.bf16 %v6415
        %v6490 = vunpack.c.l.s8.bf16 %v6416
        %v6491 = vunpack.c.l.s8.bf16 %v6417
        %v6492 = vunpack.c.h.s8.bf16 %v6416
        %v6493 = vunpack.c.h.s8.bf16 %v6417
        %v6494 = vunpack.c.l.s8.bf16 %v6418
        %v6495 = vunpack.c.l.s8.bf16 %v6419
        %v6496 = vunpack.c.h.s8.bf16 %v6418
        %v6497 = vunpack.c.h.s8.bf16 %v6419
        %v6498 = vunpack.c.l.s8.bf16 %v6420
        %v6499 = vunpack.c.l.s8.bf16 %v6421
        %v6500 = vunpack.c.h.s8.bf16 %v6420
        %v6501 = vunpack.c.h.s8.bf16 %v6421
        %v6502 = vunpack.c.l.s8.bf16 %v6422
        %v6503 = vunpack.c.l.s8.bf16 %v6423
        %v6504 = vunpack.c.h.s8.bf16 %v6422
        %v6505 = vunpack.c.h.s8.bf16 %v6423
        %v6506 = vunpack.c.l.s8.bf16 %v6424
        %v6507 = vunpack.c.l.s8.bf16 %v6425
        %v6508 = vunpack.c.h.s8.bf16 %v6424
        %v6509 = vunpack.c.h.s8.bf16 %v6425
        %v6510 = vunpack.c.l.s8.bf16 %v6426
        %v6511 = vunpack.c.l.s8.bf16 %v6427
        %v6512 = vunpack.c.h.s8.bf16 %v6426
        %v6513 = vunpack.c.h.s8.bf16 %v6427
        %v6514 = vunpack.c.l.s8.bf16 %v6428
        %v6515 = vunpack.c.l.s8.bf16 %v6429
        %v6516 = vunpack.c.h.s8.bf16 %v6428
        %v6517 = vunpack.c.h.s8.bf16 %v6429
        %v6518 = vunpack.c.l.s8.bf16 %v6430
        %v6519 = vunpack.c.l.s8.bf16 %v6431
        %v6520 = vunpack.c.h.s8.bf16 %v6430
        %v6521 = vunpack.c.h.s8.bf16 %v6431
        %v6522 = vunpack.c.l.s8.bf16 %v6432
        %v6523 = vunpack.c.l.s8.bf16 %v6433
        %v6524 = vunpack.c.h.s8.bf16 %v6432
        %v6525 = vunpack.c.h.s8.bf16 %v6433
        %v6526 = vunpack.c.l.s8.bf16 %v6434
        %v6527 = vunpack.c.l.s8.bf16 %v6435
        %v6528 = vunpack.c.h.s8.bf16 %v6434
        %v6529 = vunpack.c.h.s8.bf16 %v6435
        %v6530 = vunpack.c.l.s8.bf16 %v6436
        %v6531 = vunpack.c.l.s8.bf16 %v6437
        %v6532 = vunpack.c.h.s8.bf16 %v6436
        %v6533 = vunpack.c.h.s8.bf16 %v6437
        %v6534 = vunpack.c.l.s8.bf16 %v6438
        %v6535 = vunpack.c.l.s8.bf16 %v6439
        %v6536 = vunpack.c.h.s8.bf16 %v6438
        %v6537 = vunpack.c.h.s8.bf16 %v6439
        %v6538 = vunpack.c.l.s8.bf16 %v6440
        %v6539 = vunpack.c.l.s8.bf16 %v6441
        %v6540 = vunpack.c.h.s8.bf16 %v6440
        %v6541 = vunpack.c.h.s8.bf16 %v6441
        %v6542 = vunpack.c.l.s8.bf16 %v6442
        %v6543 = vunpack.c.l.s8.bf16 %v6443
        %v6544 = vunpack.c.h.s8.bf16 %v6442
        %v6545 = vunpack.c.h.s8.bf16 %v6443
        %v6546 = vunpack.c.l.s8.bf16 %v6444
        %v6547 = vunpack.c.l.s8.bf16 %v6445
        %v6548 = vunpack.c.h.s8.bf16 %v6444
        %v6549 = vunpack.c.h.s8.bf16 %v6445
        %v6550 = vunpack.c.l.s8.bf16 %v6446
        %v6551 = vunpack.c.l.s8.bf16 %v6447
        %v6552 = vunpack.c.h.s8.bf16 %v6446
        %v6553 = vunpack.c.h.s8.bf16 %v6447
        %v6554 = vunpack.c.l.s8.bf16 %v6448
        %v6555 = vunpack.c.l.s8.bf16 %v6449
        %v6556 = vunpack.c.h.s8.bf16 %v6448
        %v6557 = vunpack.c.h.s8.bf16 %v6449
        %v6558 = vunpack.c.l.s8.bf16 %v6450
        %v6559 = vunpack.c.l.s8.bf16 %v6451
        %v6560 = vunpack.c.h.s8.bf16 %v6450
        %v6561 = vunpack.c.h.s8.bf16 %v6451
        %v6562 = vunpack.c.l.s8.bf16 %v6452
        %v6563 = vunpack.c.l.s8.bf16 %v6453
        %v6564 = vunpack.c.h.s8.bf16 %v6452
        %v6565 = vunpack.c.h.s8.bf16 %v6453
        %v6566 = vunpack.c.l.s8.bf16 %v6454
        %v6567 = vunpack.c.l.s8.bf16 %v6455
        %v6568 = vunpack.c.h.s8.bf16 %v6454
        %v6569 = vunpack.c.h.s8.bf16 %v6455
        %v6570 = vunpack.c.l.s8.bf16 %v6456
        %v6571 = vunpack.c.l.s8.bf16 %v6457
        %v6572 = vunpack.c.h.s8.bf16 %v6456
        %v6573 = vunpack.c.h.s8.bf16 %v6457
        %v6574 = vunpack.c.l.s8.bf16 %v6458
        %v6575 = vunpack.c.l.s8.bf16 %v6459
        %v6576 = vunpack.c.h.s8.bf16 %v6458
        %v6577 = vunpack.c.h.s8.bf16 %v6459
        %v6578 = vunpack.c.l.s8.bf16 %v6460
        %v6579 = vunpack.c.l.s8.bf16 %v6461
        %v6580 = vunpack.c.h.s8.bf16 %v6460
        %v6581 = vunpack.c.h.s8.bf16 %v6461
        %v6582 = vunpack.c.l.s8.bf16 %v6462
        %v6583 = vunpack.c.l.s8.bf16 %v6463
        %v6584 = vunpack.c.h.s8.bf16 %v6462
        %v6585 = vunpack.c.h.s8.bf16 %v6463
        %v6586 = vunpack.c.l.s8.bf16 %v6464
        %v6587 = vunpack.c.l.s8.bf16 %v6465
        %v6588 = vunpack.c.h.s8.bf16 %v6464
        %v6589 = vunpack.c.h.s8.bf16 %v6465
        %v6590 = vunpack.c.l.s8.bf16 %v6466
        %v6591 = vunpack.c.l.s8.bf16 %v6467
        %v6592 = vunpack.c.h.s8.bf16 %v6466
        %v6593 = vunpack.c.h.s8.bf16 %v6467
        %v6594 = vunpack.c.l.s8.bf16 %v6468
        %v6595 = vunpack.c.l.s8.bf16 %v6469
        %v6596 = vunpack.c.h.s8.bf16 %v6468
        %v6597 = vunpack.c.h.s8.bf16 %v6469
        %6598 = vmatprep.subr.bf16.mxu0 %v6485
        %6599 = vmatpush1.bf16.msra.mxu0 %v6484
        %6600 = vmatprep.subr.bf16.mxu0 %v6483
        %6601 = vmatpush1.bf16.msra.mxu0 %v6482
        %6602 = vmatprep.subr.bf16.mxu0 %v6481
        %6603 = vmatpush1.bf16.msra.mxu0 %v6480
        %6604 = vmatprep.subr.bf16.mxu0 %v6479
        %6605 = vmatpush1.bf16.msra.mxu0 %v6478
        %6606 = vmatprep.subr.bf16.mxu0 %v6477
        %6607 = vmatpush1.bf16.msra.mxu0 %v6476
        %6608 = vmatprep.subr.bf16.mxu0 %v6475
        %6609 = vmatpush1.bf16.msra.mxu0 %v6474
        %6610 = vmatprep.subr.bf16.mxu0 %v6473
        %6611 = vmatpush1.bf16.msra.mxu0 %v6472
        %6612 = vmatprep.subr.bf16.mxu0 %v6471
        %6613 = vmatpush1.bf16.msra.mxu0 %v6470
        %6614 = vmatprep.subr.bf16.mxu0 %v6501
        %6615 = vmatpush2.bf16.msra.mxu0 %v6500
        %6616 = vmatprep.subr.bf16.mxu0 %v6499
        %6617 = vmatpush2.bf16.msra.mxu0 %v6498
        %6618 = vmatprep.subr.bf16.mxu0 %v6497
        %6619 = vmatpush2.bf16.msra.mxu0 %v6496
        %6620 = vmatprep.subr.bf16.mxu0 %v6495
        %6621 = vmatpush2.bf16.msra.mxu0 %v6494
        %6622 = vmatprep.subr.bf16.mxu0 %v6493
        %6623 = vmatpush2.bf16.msra.mxu0 %v6492
        %6624 = vmatprep.subr.bf16.mxu0 %v6491
        %6625 = vmatpush2.bf16.msra.mxu0 %v6490
        %6626 = vmatprep.subr.bf16.mxu0 %v6489
        %6627 = vmatpush2.bf16.msra.mxu0 %v6488
        %6628 = vmatprep.subr.bf16.mxu0 %v6487
        %6629 = vmatpush2.bf16.msra.mxu0 %v6486
        %6630 = vmatprep.mubr.bf16.mxu0 %v6399
        %6631 = vmatmul.mubr.bf16.gmra.mxu0 %v6398
        %v6632 = vpop.f32.mrf.mxu0
        %v6633 = vadd.f32 0.0, %v6632
        %v6634 = vpop.f32.mrf.mxu0
        %v6635 = vadd.f32 0.0, %v6634
        %v6636 = vpop.f32.mrf.mxu0
        %v6637 = vpop.f32.mrf.mxu0
        %6638 = vdwg.mxu0
        %6639 = vmatprep.subr.bf16.mxu0 %v6517
        %6640 = vmatpush1.bf16.msra.mxu0 %v6516
        %6641 = vmatprep.subr.bf16.mxu0 %v6515
        %6642 = vmatpush1.bf16.msra.mxu0 %v6514
        %6643 = vmatprep.subr.bf16.mxu0 %v6513
        %6644 = vmatpush1.bf16.msra.mxu0 %v6512
        %6645 = vmatprep.subr.bf16.mxu0 %v6511
        %6646 = vmatpush1.bf16.msra.mxu0 %v6510
        %6647 = vmatprep.subr.bf16.mxu0 %v6509
        %6648 = vmatpush1.bf16.msra.mxu0 %v6508
        %6649 = vmatprep.subr.bf16.mxu0 %v6507
        %6650 = vmatpush1.bf16.msra.mxu0 %v6506
        %6651 = vmatprep.subr.bf16.mxu0 %v6505
        %6652 = vmatpush1.bf16.msra.mxu0 %v6504
        %6653 = vmatprep.subr.bf16.mxu0 %v6503
        %6654 = vmatpush1.bf16.msra.mxu0 %v6502
        %6655 = vmatprep.subr.bf16.mxu0 %v6533
        %6656 = vmatpush2.bf16.msra.mxu0 %v6532
        %6657 = vmatprep.subr.bf16.mxu0 %v6531
        %6658 = vmatpush2.bf16.msra.mxu0 %v6530
        %6659 = vmatprep.subr.bf16.mxu0 %v6529
        %6660 = vmatpush2.bf16.msra.mxu0 %v6528
        %6661 = vmatprep.subr.bf16.mxu0 %v6527
        %6662 = vmatpush2.bf16.msra.mxu0 %v6526
        %6663 = vmatprep.subr.bf16.mxu0 %v6525
        %6664 = vmatpush2.bf16.msra.mxu0 %v6524
        %6665 = vmatprep.subr.bf16.mxu0 %v6523
        %6666 = vmatpush2.bf16.msra.mxu0 %v6522
        %6667 = vmatprep.subr.bf16.mxu0 %v6521
        %6668 = vmatpush2.bf16.msra.mxu0 %v6520
        %6669 = vmatprep.subr.bf16.mxu0 %v6519
        %6670 = vmatpush2.bf16.msra.mxu0 %v6518
        %6671 = vmatprep.mubr.bf16.mxu0 %v6401
        %6672 = vmatmul.mubr.bf16.gmra.mxu0 %v6400
        %v6673 = vpop.f32.mrf.mxu0
        %v6674 = vadd.f32 %v6633, %v6673
        %v6675 = vpop.f32.mrf.mxu0
        %v6676 = vadd.f32 %v6635, %v6675
        %v6677 = vpop.f32.mrf.mxu0
        %v6678 = vpop.f32.mrf.mxu0
        %6679 = vdwg.mxu0
        %6680 = vmatprep.subr.bf16.mxu0 %v6549
        %6681 = vmatpush1.bf16.msra.mxu0 %v6548
        %6682 = vmatprep.subr.bf16.mxu0 %v6547
        %6683 = vmatpush1.bf16.msra.mxu0 %v6546
        %6684 = vmatprep.subr.bf16.mxu0 %v6545
        %6685 = vmatpush1.bf16.msra.mxu0 %v6544
        %6686 = vmatprep.subr.bf16.mxu0 %v6543
        %6687 = vmatpush1.bf16.msra.mxu0 %v6542
        %6688 = vmatprep.subr.bf16.mxu0 %v6541
        %6689 = vmatpush1.bf16.msra.mxu0 %v6540
        %6690 = vmatprep.subr.bf16.mxu0 %v6539
        %6691 = vmatpush1.bf16.msra.mxu0 %v6538
        %6692 = vmatprep.subr.bf16.mxu0 %v6537
        %6693 = vmatpush1.bf16.msra.mxu0 %v6536
        %6694 = vmatprep.subr.bf16.mxu0 %v6535
        %6695 = vmatpush1.bf16.msra.mxu0 %v6534
        %6696 = vmatprep.subr.bf16.mxu0 %v6565
        %6697 = vmatpush2.bf16.msra.mxu0 %v6564
        %6698 = vmatprep.subr.bf16.mxu0 %v6563
        %6699 = vmatpush2.bf16.msra.mxu0 %v6562
        %6700 = vmatprep.subr.bf16.mxu0 %v6561
        %6701 = vmatpush2.bf16.msra.mxu0 %v6560
        %6702 = vmatprep.subr.bf16.mxu0 %v6559
        %6703 = vmatpush2.bf16.msra.mxu0 %v6558
        %6704 = vmatprep.subr.bf16.mxu0 %v6557
        %6705 = vmatpush2.bf16.msra.mxu0 %v6556
        %6706 = vmatprep.subr.bf16.mxu0 %v6555
        %6707 = vmatpush2.bf16.msra.mxu0 %v6554
        %6708 = vmatprep.subr.bf16.mxu0 %v6553
        %6709 = vmatpush2.bf16.msra.mxu0 %v6552
        %6710 = vmatprep.subr.bf16.mxu0 %v6551
        %6711 = vmatpush2.bf16.msra.mxu0 %v6550
        %6712 = vmatprep.mubr.bf16.mxu0 %v6403
        %6713 = vmatmul.mubr.bf16.gmra.mxu0 %v6402
        %v6714 = vpop.f32.mrf.mxu0
        %v6715 = vadd.f32 %v6674, %v6714
        %v6716 = vpop.f32.mrf.mxu0
        %v6717 = vadd.f32 %v6676, %v6716
        %v6718 = vpop.f32.mrf.mxu0
        %v6719 = vpop.f32.mrf.mxu0
        %6720 = vdwg.mxu0
        %6721 = vmatprep.subr.bf16.mxu0 %v6581
        %6722 = vmatpush1.bf16.msra.mxu0 %v6580
        %6723 = vmatprep.subr.bf16.mxu0 %v6579
        %6724 = vmatpush1.bf16.msra.mxu0 %v6578
        %6725 = vmatprep.subr.bf16.mxu0 %v6577
        %6726 = vmatpush1.bf16.msra.mxu0 %v6576
        %6727 = vmatprep.subr.bf16.mxu0 %v6575
        %6728 = vmatpush1.bf16.msra.mxu0 %v6574
        %6729 = vmatprep.subr.bf16.mxu0 %v6573
        %6730 = vmatpush1.bf16.msra.mxu0 %v6572
        %6731 = vmatprep.subr.bf16.mxu0 %v6571
        %6732 = vmatpush1.bf16.msra.mxu0 %v6570
        %6733 = vmatprep.subr.bf16.mxu0 %v6569
        %6734 = vmatpush1.bf16.msra.mxu0 %v6568
        %6735 = vmatprep.subr.bf16.mxu0 %v6567
        %6736 = vmatpush1.bf16.msra.mxu0 %v6566
        %6737 = vmatprep.subr.bf16.mxu0 %v6597
        %6738 = vmatpush2.bf16.msra.mxu0 %v6596
        %6739 = vmatprep.subr.bf16.mxu0 %v6595
        %6740 = vmatpush2.bf16.msra.mxu0 %v6594
        %6741 = vmatprep.subr.bf16.mxu0 %v6593
        %6742 = vmatpush2.bf16.msra.mxu0 %v6592
        %6743 = vmatprep.subr.bf16.mxu0 %v6591
        %6744 = vmatpush2.bf16.msra.mxu0 %v6590
        %6745 = vmatprep.subr.bf16.mxu0 %v6589
        %6746 = vmatpush2.bf16.msra.mxu0 %v6588
        %6747 = vmatprep.subr.bf16.mxu0 %v6587
        %6748 = vmatpush2.bf16.msra.mxu0 %v6586
        %6749 = vmatprep.subr.bf16.mxu0 %v6585
        %6750 = vmatpush2.bf16.msra.mxu0 %v6584
        %6751 = vmatprep.subr.bf16.mxu0 %v6583
        %6752 = vmatpush2.bf16.msra.mxu0 %v6582
        %6753 = vmatprep.mubr.bf16.mxu0 %v6405
        %6754 = vmatmul.mubr.bf16.gmra.mxu0 %v6404
        %v6755 = vpop.f32.mrf.mxu0
        %v6756 = vadd.f32 %v6715, %v6755
        %v6757 = vpop.f32.mrf.mxu0
        %v6758 = vadd.f32 %v6717, %v6757
        %v6759 = vpop.f32.mrf.mxu0
        %v6760 = vpop.f32.mrf.mxu0
        %6761 = vdwg.mxu0
        %v6762 = vld [vmem:[%s1241] sm:$0x3]
        %v6764 = vlaneseq
        %v6765 = vshrl.u32 %v6764, 7
        %v6766 = vsub.s32 0, %v6765
        %v6767 = vrot.slane %v6762, %v6766
        %v6768 = vlaneseq
        %v6769 = vshrl.u32 %v6768, 7
        %v6770 = vsub.s32 1, %v6769
        %v6771 = vrot.slane %v6762, %v6770
        %v6774 = vmul.f32 %v6756, %v6767
        %v6775 = vmul.f32 %v6758, %v6771
        %v6776 = vld [vmem:[%s1250] sm:$0x3]
        %v6778 = vlaneseq
        %v6779 = vshrl.u32 %v6778, 7
        %v6780 = vsub.s32 0, %v6779
        %v6781 = vrot.slane %v6776, %v6780
        %v6782 = vlaneseq
        %v6783 = vshrl.u32 %v6782, 7
        %v6784 = vsub.s32 1, %v6783
        %v6785 = vrot.slane %v6776, %v6784
        %v6788 = vadd.f32 %v6774, %v6781
        %v6789 = vadd.f32 %v6775, %v6785
        %v6792 = vcombine.low %v6788, %v6789
        %v6794 = vadd.f32 %v5653, %v6792
        %6795 = vst [vmem:[#allocation2] sm:$0xff] %v6794
        %p6796 = scmp.eq.s32.totalorder %s41, 2
        // Predicated region
        $region221: #{vit_forward.1} parent=119 // pred_check
          %p6797 = pneg %p6796
        $region222: #{vit_forward.1} parent=119 // pred_check_branch
          %6799 = sbr.rel (%p6797) target = $region224
        $region223: #{vit_forward.1} parent=119 // pred_region
          %v6800 = vld [vmem:[#allocation29] sm:$0x3]
          %v6801 = vld [vmem:[#allocation30] sm:$0x3]
          %v6803 = vcombine.high %v6794, %v6794
          %vm6805 = vcmask 1041408
          %v6806 = vsel %vm6805, %v6794, 0.0
          %v6807 = vsel %vm6805, %v6803, 0.0
          %v6808 = vadd.f32 %v6806, %v6807
          %6809 = vadd.xlane.f32.xlu0 %v6808
          %v6810 = vpop.xlane.xlu0 %6809
          %v6811 = vmul.f32 %v6810, %v4436
          %v6814 = vunpack.c.l.s4 839922192
          %v6815 = vunpack.c.0.s8 %v6814
          %v6816 = vlaneseq
          %v6817 = vshrl.u32 %v6816, 7
          %v6818 = vsub.s32 %v6815, %v6817
          %v6819 = vrot.slane %v6811, %v6818
          %v6821 = vsub.f32 %v6794, %v6819
          %v6822 = vmul.f32 %v6821, %v6821
          %v6824 = vcombine.high %v6822, %v6822
          %v6826 = vsel %vm6805, %v6822, 0.0
          %v6827 = vsel %vm6805, %v6824, 0.0
          %v6828 = vadd.f32 %v6826, %v6827
          %6829 = vadd.xlane.f32.xlu0 %v6828
          %v6830 = vpop.xlane.xlu0 %6829
          %v6831 = vmul.f32 %v6830, %v4436
          %v6832 = vadd.f32 %v6831, 1e-06
          %v6833 = vrsqrt.pop %v6832
          %v6836 = vunpack.c.l.s4 839922192
          %v6837 = vunpack.c.0.s8 %v6836
          %v6838 = vlaneseq
          %v6839 = vshrl.u32 %v6838, 7
          %v6840 = vsub.s32 %v6837, %v6839
          %v6841 = vrot.slane %v6833, %v6840
          %v6843 = vmul.f32 %v6821, %v6841
          %v6845 = vlaneseq
          %v6846 = vshrl.u32 %v6845, 7
          %v6847 = vsub.s32 0, %v6846
          %v6848 = vrot.slane %v6800, %v6847
          %v6849 = vlaneseq
          %v6850 = vshrl.u32 %v6849, 7
          %v6851 = vsub.s32 1, %v6850
          %v6852 = vrot.slane %v6800, %v6851
          %v6853 = vcombine.low %v6848, %v6852
          %v6855 = vmul.f32 %v6843, %v6853
          %v6857 = vlaneseq
          %v6858 = vshrl.u32 %v6857, 7
          %v6859 = vsub.s32 0, %v6858
          %v6860 = vrot.slane %v6801, %v6859
          %v6861 = vlaneseq
          %v6862 = vshrl.u32 %v6861, 7
          %v6863 = vsub.s32 1, %v6862
          %v6864 = vrot.slane %v6801, %v6863
          %v6865 = vcombine.low %v6860, %v6864
          %v6867 = vadd.f32 %v6855, %v6865
          %v6869 = vcombine.high %v6867, %v6867
          %v6871 = vpack.c.bf16 %v6867, %v6867
          %v6872 = vpack.c.bf16 %v6869, %v6869
          %v6873 = vld [vmem:[#allocation31] sm:$0xf]
          %v6874 = vld [vmem:[#allocation31 + $0x4] sm:$0xf]
          %v6875 = vld [vmem:[#allocation31 + $0x8] sm:$0xf]
          %v6876 = vld [vmem:[#allocation31 + $0xc] sm:$0xf]
          %v6877 = vld [vmem:[#allocation31 + $0x10] sm:$0xf]
          %v6878 = vld [vmem:[#allocation31 + $0x14] sm:$0xf]
          %v6879 = vld [vmem:[#allocation31 + $0x18] sm:$0xf]
          %v6880 = vld [vmem:[#allocation31 + $0x1c] sm:$0xf]
          %v6881 = vld [vmem:[#allocation31 + $0x20] sm:$0xf]
          %v6882 = vld [vmem:[#allocation31 + $0x24] sm:$0xf]
          %v6883 = vld [vmem:[#allocation31 + $0x28] sm:$0xf]
          %v6884 = vld [vmem:[#allocation31 + $0x2c] sm:$0xf]
          %v6885 = vld [vmem:[#allocation31 + $0x30] sm:$0xf]
          %v6886 = vld [vmem:[#allocation31 + $0x34] sm:$0xf]
          %v6887 = vld [vmem:[#allocation31 + $0x38] sm:$0xf]
          %v6888 = vld [vmem:[#allocation31 + $0x3c] sm:$0xf]
          %v6889 = vld [vmem:[#allocation31 + $0x40] sm:$0xf]
          %v6890 = vld [vmem:[#allocation31 + $0x44] sm:$0xf]
          %v6891 = vld [vmem:[#allocation31 + $0x48] sm:$0xf]
          %v6892 = vld [vmem:[#allocation31 + $0x4c] sm:$0xf]
          %v6893 = vld [vmem:[#allocation31 + $0x50] sm:$0xf]
          %v6894 = vld [vmem:[#allocation31 + $0x54] sm:$0xf]
          %v6895 = vld [vmem:[#allocation31 + $0x58] sm:$0xf]
          %v6896 = vld [vmem:[#allocation31 + $0x5c] sm:$0xf]
          %v6897 = vld [vmem:[#allocation31 + $0x60] sm:$0xf]
          %v6898 = vld [vmem:[#allocation31 + $0x64] sm:$0xf]
          %v6899 = vld [vmem:[#allocation31 + $0x68] sm:$0xf]
          %v6900 = vld [vmem:[#allocation31 + $0x6c] sm:$0xf]
          %v6901 = vld [vmem:[#allocation31 + $0x70] sm:$0xf]
          %v6902 = vld [vmem:[#allocation31 + $0x74] sm:$0xf]
          %v6903 = vld [vmem:[#allocation31 + $0x78] sm:$0xf]
          %v6904 = vld [vmem:[#allocation31 + $0x7c] sm:$0xf]
          %v6905 = vld [vmem:[#allocation33] sm:$0x1]
          %v6907 = vlaneseq
          %v6908 = vshrl.u32 %v6907, 7
          %v6909 = vsub.s32 0, %v6908
          %v6910 = vrot.slane %v6905, %v6909
          %v6944 = vunpack.c.l.b16 %v6873
          %v6945 = vunpack.c.l.b16 %v6874
          %v6946 = vunpack.c.l.b16 %v6875
          %v6947 = vunpack.c.l.b16 %v6876
          %v6948 = vunpack.c.l.b16 %v6877
          %v6949 = vunpack.c.l.b16 %v6878
          %v6950 = vunpack.c.l.b16 %v6879
          %v6951 = vunpack.c.l.b16 %v6880
          %v6952 = vunpack.c.l.b16 %v6881
          %v6953 = vunpack.c.l.b16 %v6882
          %v6954 = vunpack.c.l.b16 %v6883
          %v6955 = vunpack.c.l.b16 %v6884
          %v6956 = vunpack.c.l.b16 %v6885
          %v6957 = vunpack.c.l.b16 %v6886
          %v6958 = vunpack.c.l.b16 %v6887
          %v6959 = vunpack.c.l.b16 %v6888
          %v6960 = vunpack.c.l.b16 %v6889
          %v6961 = vunpack.c.l.b16 %v6890
          %v6962 = vunpack.c.l.b16 %v6891
          %v6963 = vunpack.c.l.b16 %v6892
          %v6964 = vunpack.c.l.b16 %v6893
          %v6965 = vunpack.c.l.b16 %v6894
          %v6966 = vunpack.c.l.b16 %v6895
          %v6967 = vunpack.c.l.b16 %v6896
          %v6968 = vunpack.c.l.b16 %v6897
          %v6969 = vunpack.c.l.b16 %v6898
          %v6970 = vunpack.c.l.b16 %v6899
          %v6971 = vunpack.c.l.b16 %v6900
          %v6972 = vunpack.c.l.b16 %v6901
          %v6973 = vunpack.c.l.b16 %v6902
          %v6974 = vunpack.c.l.b16 %v6903
          %v6975 = vunpack.c.l.b16 %v6904
          %v6976 = vpack.c.b16 %v6945, %v6944
          %v6977 = vpack.c.b16 %v6947, %v6946
          %v6978 = vpack.c.b16 %v6949, %v6948
          %v6979 = vpack.c.b16 %v6951, %v6950
          %v6980 = vpack.c.b16 %v6953, %v6952
          %v6981 = vpack.c.b16 %v6955, %v6954
          %v6982 = vpack.c.b16 %v6957, %v6956
          %v6983 = vpack.c.b16 %v6959, %v6958
          %v6984 = vpack.c.b16 %v6961, %v6960
          %v6985 = vpack.c.b16 %v6963, %v6962
          %v6986 = vpack.c.b16 %v6965, %v6964
          %v6987 = vpack.c.b16 %v6967, %v6966
          %v6988 = vpack.c.b16 %v6969, %v6968
          %v6989 = vpack.c.b16 %v6971, %v6970
          %v6990 = vpack.c.b16 %v6973, %v6972
          %v6991 = vpack.c.b16 %v6975, %v6974
          %7008 = vmatprep.subr.bf16.mxu0 0
          %7009 = vmatpush1.bf16.msra.mxu0 %v6983
          %7010 = vmatprep.subr.bf16.mxu0 0
          %7011 = vmatpush1.bf16.msra.mxu0 %v6982
          %7012 = vmatprep.subr.bf16.mxu0 0
          %7013 = vmatpush1.bf16.msra.mxu0 %v6981
          %7014 = vmatprep.subr.bf16.mxu0 0
          %7015 = vmatpush1.bf16.msra.mxu0 %v6980
          %7016 = vmatprep.subr.bf16.mxu0 0
          %7017 = vmatpush1.bf16.msra.mxu0 %v6979
          %7018 = vmatprep.subr.bf16.mxu0 0
          %7019 = vmatpush1.bf16.msra.mxu0 %v6978
          %7020 = vmatprep.subr.bf16.mxu0 0
          %7021 = vmatpush1.bf16.msra.mxu0 %v6977
          %7022 = vmatprep.subr.bf16.mxu0 0
          %7023 = vmatpush1.bf16.msra.mxu0 %v6976
          %7024 = vmatprep.subr.bf16.mxu0 0
          %7025 = vmatpush2.bf16.msra.mxu0 %v6991
          %7026 = vmatprep.subr.bf16.mxu0 0
          %7027 = vmatpush2.bf16.msra.mxu0 %v6990
          %7028 = vmatprep.subr.bf16.mxu0 0
          %7029 = vmatpush2.bf16.msra.mxu0 %v6989
          %7030 = vmatprep.subr.bf16.mxu0 0
          %7031 = vmatpush2.bf16.msra.mxu0 %v6988
          %7032 = vmatprep.subr.bf16.mxu0 0
          %7033 = vmatpush2.bf16.msra.mxu0 %v6987
          %7034 = vmatprep.subr.bf16.mxu0 0
          %7035 = vmatpush2.bf16.msra.mxu0 %v6986
          %7036 = vmatprep.subr.bf16.mxu0 0
          %7037 = vmatpush2.bf16.msra.mxu0 %v6985
          %7038 = vmatprep.subr.bf16.mxu0 0
          %7039 = vmatpush2.bf16.msra.mxu0 %v6984
          %7040 = vmatprep.mubr.bf16.mxu0 %v6872
          %7041 = vmatmul.mubr.bf16.gmra.mxu0 %v6871
          %v7042 = vpop.f32.mrf.mxu0
          %v7043 = vadd.f32 %v6910, %v7042
          %v7044 = vpop.f32.mrf.mxu0
          %v7045 = vpop.f32.mrf.mxu0
          %v7046 = vpop.f32.mrf.mxu0
          %7047 = vdwg.mxu0
          %7048 = vst [vmem:[#allocation34] sm:$0x3] %v7043
        $region224: #{vit_forward.1} parent=119 // pred_fallthru
          _
        // Predicated region
        $region225: #{vit_forward.1} parent=119 // pred_check
          %p7049 = pneg %p659
        $region226: #{vit_forward.1} parent=119 // pred_check_branch
          %7051 = sbr.rel (%p7049) target = $region228
        $region227: #{vit_forward.1} parent=119 // pred_region
          %s7053 = ssub.s32 32, 32
          %7054 = vsyncadd [#allocation7], %s7053
          %s7056 = sshll.u32 [#allocation34], 4
          %s7057 = int_to_ptr.vmem [resolvable:$true] %s7056
          %7059 = dma.vmem_to_hbm [thread:$0]  %s7057, 32, %s25, [#allocation7]
        $region228: #{vit_forward.1} parent=119 // pred_fallthru
          _
        // Predicated region
        $region229: #{vit_forward.1} parent=119 // pred_check
          %p7060 = pneg %p659
        $region230: #{vit_forward.1} parent=119 // pred_check_branch
          %7062 = sbr.rel (%p7060) target = $region232
        $region231: #{vit_forward.1} parent=119 // pred_region
          %7063 = dma.done [#allocation7], 32
        $region232: #{vit_forward.1} parent=119 // pred_fallthru
          _
      $region120: #{vit_forward.1} parent=5 // pred_fallthru
        _
      %p7064 = scmp.le.s32.totalorder 2, %s36
      // Predicated region
      $region233: #{vit_forward.1} parent=5 // pred_check
        %p7065 = pneg %p7064
      $region234: #{vit_forward.1} parent=5 // pred_check_branch
        %7067 = sbr.rel (%p7065) target = $region236
      $region235: #{vit_forward.1} parent=5 // pred_region
        %s7068 = ssub.s32 %s36, 2
      $region236: #{vit_forward.1} parent=5 // pred_fallthru
        _
    $region6: #{vit_forward.1} parent=1 // loop_footer
      %s40 = sadd.s32 1, %s36
    $region7: #{vit_forward.1} parent=1 // loop_footer_branch
      %35 = sbr.rel target = $region3
    $region8: #{vit_forward.1} parent=1 // loop_exit
      _
    %7069 = vsyncpa [#allocation6], 1
    %s7070 = scalar_lea.sflag [#allocation6], 1
    %7071 = vsyncpa %s7070, 1
    %7072 = vsyncpa [#allocation9], 1
    %7073 = vsyncpa [#allocation12], 1
    %7074 = vsyncpa [#allocation32], 1
    %7075 = vsyncpa [#allocation7], 1
    %s7076 = scalar_lea.sflag [#allocation7], 1
    %7077 = vsyncpa %s7076, 1

</llo_original>
